<compile_context>
chip_gen: v7x
topology: tpu7x:2x2x1
jax: 0.10.0
libtpu: 0.0.40
codegen_flags: <defaults>
</compile_context>

<pallas_src>
import functools

import jax
import jax.numpy as jnp
from jax.experimental import pallas as pl
from jax.experimental.pallas import tpu as pltpu

NEG_SLOPE = 0.2          # GATv2Conv default negative_slope
MASK_BIAS = -1e9         # additive mask; exp(-1e9 - m) == 0.0 exactly in f32
LN_EPS = 1e-5            # torch LayerNorm default

ACT = {
    "relu": jax.nn.relu,
    "tanh": jnp.tanh,
    "sigmoid": jax.nn.sigmoid,
    "leaky_relu": jax.nn.leaky_relu,
    "elu": jax.nn.elu,
}


# ----------------------------------------------------------------------------
# GATv2 attention for all heads of one layer (runs inside the kernel).
# ----------------------------------------------------------------------------
def _gatv2_heads(xlr, adjb, att_ref, cb_ref, pwcol_ref, pb_ref, heads, cpl, act_fn):
    """xlr:   [Ng, 2*H*C] f32 = [lin_l(x) | lin_r(x)] (projection biases already added)
       adjb:  [Ng, Ng] f32 additive mask, block-diagonal over the packed graphs
       Returns ([H] per-head activated outputs [Ng, C], pooled column [Ng, 1])."""
    ng = xlr.shape[0]
    hc = heads * cpl
    xl = xlr[:, :hc]            # source-side features (lin_l) == aggregated values
    xr = xlr[:, hc:]            # target-side features (lin_r)
    xlT = xl.T                  # [HC, Ng]: source features along lanes (one transpose/layer)

    act_heads = []
    pool_col = jnp.zeros((ng, 1), jnp.float32)
    for h in range(heads):
        # Channel-tiled logits: e[i,j] = sum_c att[h,c] * leaky_relu(xr[i,k] + xl[j,k]).
        # Terms are independent and tree-summed (no long serial VALU chain); the [Ng,Ng,C]
        # tensor is never materialized and every live intermediate is lane-dense [Ng, Ng].
        terms = []
        for c in range(cpl):
            k = h * cpl + c
            z = xr[:, k:k + 1] + xlT[k:k + 1, :]                         # [Ng, Ng]
            terms.append(att_ref[h, c] * jnp.maximum(z, NEG_SLOPE * z))  # leaky_relu, slope<1
        while len(terms) > 1:
            nxt = [terms[i] + terms[i + 1] for i in range(0, len(terms) - 1, 2)]
            if len(terms) % 2:
                nxt.append(terms[-1])
            terms = nxt
        e = terms[0] + adjb

        # Masked softmax over source nodes (self loops guarantee a valid row max);
        # normalization deferred to one approximate EUP reciprocal per row.
        m = jnp.max(e, axis=-1, keepdims=True)
        p = jnp.exp(e - m)
        inv = pl.reciprocal(jnp.sum(p, axis=-1, keepdims=True), approx=True)

        agg = jnp.dot(p.astype(jnp.bfloat16),
                      xl[:, h * cpl:(h + 1) * cpl].astype(jnp.bfloat16),
                      preferred_element_type=jnp.float32)                # [Ng, C]
        out_h = act_fn(agg * inv + cb_ref[:, h * cpl:(h + 1) * cpl])
        act_heads.append(out_h)

        # Node-pool Linear(H*C -> 1) accumulated per head while out_h is still live
        # (no output-ref read-back, no [Ng, HC] materialization).
        pool_col = pool_col + jnp.dot(out_h.astype(jnp.bfloat16),
                                      pwcol_ref[h * cpl:(h + 1) * cpl, :],
                                      preferred_element_type=jnp.float32)
    return act_heads, pool_col + pb_ref[0]


# ----------------------------------------------------------------------------
# Fused double GATv2 layer kernel (per grid step = one packed group of G graphs):
#   x0 mean + conv1 + act + pool1 + conv2 + act + pool2, everything in VMEM/vregs.
# ----------------------------------------------------------------------------
def gat2_kernel(x_ref, adjb_ref,
                w1_ref, b1_ref, a1_ref, cb1_ref, pw1_ref, pb1_ref,
                w2_ref, b2_ref, a2_ref, cb2_ref, pw2_ref, pb2_ref,
                rows_ref, *, h1, c1, h2, c2, act_fn):
    x = x_ref[...]                                           # [Ng, Fin] f32 (kept f32 for x0)
    adjb = adjb_ref[...].astype(jnp.float32)                 # [Ng, Ng]

    # x0: per-node mean over the input features (the 'layer1' branch of the multiscale head)
    x0_col = jnp.mean(x, axis=-1, keepdims=True)             # [Ng, 1]

    # conv1: fused [lin_l | lin_r] projection (bf16 MXU operands, f32 accumulation)
    xlr1 = jnp.dot(x.astype(jnp.bfloat16), w1_ref[...],
                   preferred_element_type=jnp.float32) + b1_ref[...]
    act1, p1_col = _gatv2_heads(xlr1, adjb, a1_ref, cb1_ref, pw1_ref, pb1_ref, h1, c1, act_fn)

    # conv2: layer-1 output consumed per head by splitting the fused weight's rows,
    # so the per-head outputs are never concatenated.  (F.dropout is identity in eval.)
    xlr2 = b2_ref[...]
    for h, a in enumerate(act1):
        xlr2 = xlr2 + jnp.dot(a.astype(jnp.bfloat16), w2_ref[h * c1:(h + 1) * c1, :],
                              preferred_element_type=jnp.float32)
    act2, p2_col = _gatv2_heads(xlr2, adjb, a2_ref, cb2_ref, pw2_ref, pb2_ref, h2, c2, act_fn)
    del act2     # layer-2 node features only feed the pooled row -> never leave the kernel

    # Single lane-dense [3, Ng] store: rows = [x0 ; pool1 ; pool2]
    cols = jnp.concatenate([x0_col, p1_col, p2_col], axis=1)  # [Ng, 3]
    rows_ref[...] = cols.T                                    # [3, Ng], unmasked full-width store


def _gat_vmem_limit(ng, fin, hc1, hc2):
    """Derived scoped-VMEM budget: double-buffered blocks + headroom for [Ng,Ng] temporaries."""
    io = 2 * (ng * fin * 4 + ng * ng * 2 + 3 * ng * 4
              + (fin * 2 * hc1 + hc1 * 2 * hc2) * 2
              + (2 * hc1 + 2 * hc2 + hc1 + hc2) * 4 + (hc1 + hc2) * 2)
    work = 10 * ng * ng * 4
    return int(min(64 << 20, max(2 << 20, io + work) + (2 << 20)))


def gat_double_layer(x, adjb_packed, conv1, conv2, *, num_nodes, group, act):
    n = num_nodes
    n_total, fin = x.shape
    b = n_total // n
    assert b % group == 0
    ng = group * n
    steps = b // group
    h1, c1 = conv1["heads"], conv1["cpl"]
    h2, c2 = conv2["heads"], conv2["cpl"]
    hc1, hc2 = h1 * c1, h2 * c2

    kern = functools.partial(gat2_kernel, h1=h1, c1=c1, h2=h2, c2=c2, act_fn=ACT[act])

    rows = pl.pallas_call(
        kern,
        grid=(steps,),
        in_specs=[
            pl.BlockSpec((ng, fin), lambda k: (k, 0)),             # packed node features
            pl.BlockSpec((None, ng, ng), lambda k: (k, 0, 0)),     # block-diag adjacency bias (bf16)
            pl.BlockSpec((fin, 2 * hc1), lambda k: (0, 0)),        # conv1 fused [lin_l|lin_r] weight
            pl.BlockSpec((1, 2 * hc1), lambda k: (0, 0)),          # conv1 projection bias
            pl.BlockSpec(memory_space=pltpu.MemorySpace.SMEM),     # conv1 att [H1, C1] scalars
            pl.BlockSpec((1, hc1), lambda k: (0, 0)),              # conv1 output bias
            pl.BlockSpec((hc1, 1), lambda k: (0, 0)),              # pool1 weight (column)
            pl.BlockSpec(memory_space=pltpu.MemorySpace.SMEM),     # pool1 bias scalar
            pl.BlockSpec((hc1, 2 * hc2), lambda k: (0, 0)),        # conv2 fused weight
            pl.BlockSpec((1, 2 * hc2), lambda k: (0, 0)),          # conv2 projection bias
            pl.BlockSpec(memory_space=pltpu.MemorySpace.SMEM),     # conv2 att [H2, C2] scalars
            pl.BlockSpec((1, hc2), lambda k: (0, 0)),              # conv2 output bias
            pl.BlockSpec((hc2, 1), lambda k: (0, 0)),              # pool2 weight (column)
            pl.BlockSpec(memory_space=pltpu.MemorySpace.SMEM),     # pool2 bias scalar
        ],
        out_specs=pl.BlockSpec((None, 3, ng), lambda k: (k, 0, 0)),
        out_shape=jax.ShapeDtypeStruct((steps, 3, ng), jnp.float32),
        compiler_params=pltpu.CompilerParams(
            # Graph groups are independent: balanced 2-step grid keeps both v7x TCs busy.
            dimension_semantics=("parallel",),
            vmem_limit_bytes=_gat_vmem_limit(ng, fin, hc1, hc2),
        ),
    )(x, adjb_packed,
      conv1["w"], conv1["b"], conv1["att"], conv1["cbias"], conv1["pw"], conv1["pb"],
      conv2["w"], conv2["b"], conv2["att"], conv2["cbias"], conv2["pw"], conv2["pb"])
    return rows


# ----------------------------------------------------------------------------
# Head kernel: shared LayerNorm of x0/x1/x2, multiscale concat (written by slices),
# and the full FC encoder — one launch, no in-kernel concatenates.
# ----------------------------------------------------------------------------
def head_kernel(x0_ref, x1_ref, x2_ref, g_ref, be_ref,
                w0a_ref, w0b_ref, w0c_ref, b0_ref, *rest,
                n_rest, act_fn, use_ln, n):
    fc = rest[:2 * n_rest]
    x0o_ref, x1o_ref, x2o_ref, ms_ref, pred_ref = rest[2 * n_rest:]

    def layer_norm(v):
        mu = jnp.mean(v, axis=-1, keepdims=True)
        d = v - mu
        var = jnp.mean(d * d, axis=-1, keepdims=True)
        return d * jax.lax.rsqrt(var + LN_EPS) * g_ref[...] + be_ref[...]

    x0 = x0_ref[...]
    x1 = x1_ref[...]
    x2 = x2_ref[...]
    if use_ln:
        x0, x1, x2 = layer_norm(x0), layer_norm(x1), layer_norm(x2)
    x0o_ref[...] = x0
    x1o_ref[...] = x1
    x2o_ref[...] = x2
    ms_ref[:, 0:n] = x0
    ms_ref[:, n:2 * n] = x1
    ms_ref[:, 2 * n:3 * n] = x2

    # First FC layer with its weight split into three row blocks (removes the concat):
    feat = act_fn(
        jnp.dot(x0.astype(jnp.bfloat16), w0a_ref[...], preferred_element_type=jnp.float32)
        + jnp.dot(x1.astype(jnp.bfloat16), w0b_ref[...], preferred_element_type=jnp.float32)
        + jnp.dot(x2.astype(jnp.bfloat16), w0c_ref[...], preferred_element_type=jnp.float32)
        + b0_ref[...])
    # Remaining hidden FC layers (+act; AlphaDropout identity in eval) and the final Linear.
    for i in range(n_rest):
        w = fc[2 * i][...]
        bb = fc[2 * i + 1][...]
        z = jnp.dot(feat.astype(jnp.bfloat16), w, preferred_element_type=jnp.float32) + bb
        feat = act_fn(z) if i < n_rest - 1 else z
    pred_ref[...] = feat


def _head_vmem_limit(operands, b, n, out_ch):
    io = sum(int(a.size) * a.dtype.itemsize for a in operands)
    io += b * (3 * n + 3 * n + out_ch) * 4
    return int(min(64 << 20, 2 * io + (2 << 20)))


def head_forward(x0, x1, x2, gamma, beta, fc_params, *, num_nodes, fc_act, use_ln):
    b, n = x0.shape
    assert n == num_nodes
    w0, b0 = fc_params[0]
    w0a, w0b, w0c = w0[0:n, :], w0[n:2 * n, :], w0[2 * n:3 * n, :]   # free host-side split
    rest = []
    for w, bb in fc_params[1:]:
        rest += [w, bb]
    n_rest = len(fc_params) - 1
    out_ch = fc_params[-1][0].shape[1]
    operands = [x0, x1, x2, gamma, beta, w0a, w0b, w0c, b0] + rest
    kern = functools.partial(head_kernel, n_rest=n_rest, act_fn=ACT[fc_act],
                             use_ln=use_ln, n=n)
    # TODO(synk): for large batch, grid this kernel over batch-row blocks instead of
    # whole-array VMEM specs; at the shapes used here everything fits trivially.
    return pl.pallas_call(
        kern,
        out_shape=(
            jax.ShapeDtypeStruct((b, n), jnp.float32),          # x0 (post-LN)
            jax.ShapeDtypeStruct((b, n), jnp.float32),          # x1 (post-LN)
            jax.ShapeDtypeStruct((b, n), jnp.float32),          # x2 (post-LN)
            jax.ShapeDtypeStruct((b, 3 * n), jnp.float32),      # multiscale features
            jax.ShapeDtypeStruct((b, out_ch), jnp.float32),     # prediction
        ),
        in_specs=[pl.BlockSpec(memory_space=pltpu.MemorySpace.VMEM)] * len(operands),
        out_specs=tuple(pl.BlockSpec(memory_space=pltpu.MemorySpace.VMEM) for _ in range(5)),
        compiler_params=pltpu.CompilerParams(
            vmem_limit_bytes=_head_vmem_limit(operands, b, n, out_ch)),
    )(*operands)


# ----------------------------------------------------------------------------
# Graph packing helpers.
# ----------------------------------------------------------------------------
def pick_packing(batch, num_nodes):
    """Largest divisor g of `batch` with g*num_nodes not exceeding ~128 lanes."""
    target = max(1, pl.cdiv(128, num_nodes))
    best = 1
    for g in range(1, batch + 1):
        if batch % g == 0 and g <= target:
            best = g
    return best


def pack_adj_bias(adj, group):
    """adj: [B, n, n] in {0,1} with self loops (adj[b, i, j] = 1 iff edge j -> i).
    Returns block-diagonal additive softmax bias [B//group, group*n, group*n] in bf16.
    (For a static graph this is precomputed once, not per forward.)"""
    b, n, _ = adj.shape
    blocks = adj.reshape(b // group, group, n, n)
    eye = jnp.eye(group, dtype=adj.dtype)
    bd = jnp.einsum("kgij,gh->kgihj", blocks, eye).reshape(b // group, group * n, group * n)
    return ((1.0 - bd) * MASK_BIAS).astype(jnp.bfloat16)


# ----------------------------------------------------------------------------
# Parameter init (deterministic, xavier-uniform style; biases zero like the PyTorch
# module after reset_parameters / apply_custom_initializers).
# ----------------------------------------------------------------------------
def xavier_uniform(key, shape, fan_in, fan_out):
    bound = (6.0 / (fan_in + fan_out)) ** 0.5
    return jax.random.uniform(key, shape, jnp.float32, -bound, bound)


def init_params(key, in_channels, hidden_channels, heads, out_channels,
                num_nodes, fc_dim, num_which_layers):
    keys = iter(jax.random.split(key, 64))
    convs = []
    fin = in_channels
    for hdim, nh in zip(hidden_channels, heads):
        dout = hdim * nh
        wl = xavier_uniform(next(keys), (fin, dout), fin, dout)           # lin_l weight [in, out]
        wr = xavier_uniform(next(keys), (fin, dout), fin, dout)           # lin_r weight [in, out]
        convs.append(dict(
            w=jnp.concatenate([wl, wr], axis=1).astype(jnp.bfloat16),     # fused bf16 MXU operand
            b=jnp.zeros((1, 2 * dout), jnp.float32),                      # lin_l|lin_r biases
            # note: fan choice differs slightly from torch xavier on a [1,H,C] att tensor (init-only)
            att=xavier_uniform(next(keys), (nh, hdim), hdim, nh * hdim),  # [H, C] SMEM scalars
            cbias=jnp.zeros((1, dout), jnp.float32),                      # conv output bias
            pw=xavier_uniform(next(keys), (dout, 1), dout, 1).astype(jnp.bfloat16),  # pool W^T
            pb=jnp.zeros((1,), jnp.float32),                              # pool bias scalar
            heads=nh, cpl=hdim))
        fin = dout
    ln = (jnp.ones((1, num_nodes), jnp.float32), jnp.zeros((1, num_nodes), jnp.float32))
    fc = []
    d_in = num_nodes * num_which_layers
    for d in fc_dim:
        fc.append((xavier_uniform(next(keys), (d_in, d), d_in, d).astype(jnp.bfloat16),
                   jnp.zeros((1, d), jnp.float32)))
        d_in = d
    fc.append((xavier_uniform(next(keys), (d_in, out_channels), d_in, out_channels)
               .astype(jnp.bfloat16),
               jnp.zeros((1, out_channels), jnp.float32)))
    return {"convs": convs, "layer_norm": ln, "fc": fc}


# ----------------------------------------------------------------------------
# GATv4 forward (eval mode): 2 pallas_call launches total.
# ----------------------------------------------------------------------------
def gatv4_forward(params, x, adj, batch_size, num_nodes,
                  act="relu", fc_act="relu", use_layer_norm=True):
    group = pick_packing(batch_size, num_nodes)
    adjb = pack_adj_bias(adj, group)

    # Fused conv1+act+pool1 -> conv2+act+pool2 (+ x0 mean), one launch, h1 never hits HBM.
    rows = gat_double_layer(x, adjb, params["convs"][0], params["convs"][1],
                            num_nodes=num_nodes, group=group, act=act)
    x0 = rows[:, 0, :].reshape(batch_size, num_nodes)
    x1 = rows[:, 1, :].reshape(batch_size, num_nodes)
    x2 = rows[:, 2, :].reshape(batch_size, num_nodes)

    gamma, beta = params["layer_norm"]
    x0_ln, x1_ln, x2_ln, multiscale, pred = head_forward(
        x0, x1, x2, gamma, beta, params["fc"],
        num_nodes=num_nodes, fc_act=fc_act, use_ln=use_layer_norm)
    return pred, [x0_ln, x1_ln, x2_ln, multiscale]


if __name__ == "__main__":
    # Small config consistent with the module.
    B = 16
    num_nodes = 16
    in_channels = 16
    hidden_channels = [8, 8]
    heads = [2, 2]
    out_channels = 3
    fc_dim = [32, 16]
    which_layer = ["layer1", "layer2", "layer3"]

    key = jax.random.PRNGKey(0)
    kx, kp = jax.random.split(key)

    N = B * num_nodes
    x = jax.random.normal(kx, (N, in_channels), dtype=jnp.float32)

    # Deterministic per-graph topology: ring (+1) and skip (+3) edges, undirected, + self loops
    # (self loops match GATv2Conv add_self_loops=True and keep every softmax row valid).
    adj1 = jnp.zeros((num_nodes, num_nodes), jnp.float32)
    src_l, dst_l = [], []
    for i in range(num_nodes):
        for off in (1, 3):
            j = (i + off) % num_nodes
            src_l += [i, j]
            dst_l += [j, i]
    adj1 = adj1.at[jnp.array(dst_l), jnp.array(src_l)].set(1.0)
    adj1 = adj1.at[jnp.arange(num_nodes), jnp.arange(num_nodes)].set(1.0)
    adj = jnp.broadcast_to(adj1, (B, num_nodes, num_nodes))

    params = init_params(kp, in_channels, hidden_channels, heads, out_channels,
                         num_nodes, fc_dim, len(which_layer))

    pred, aux = gatv4_forward(params, x, adj, B, num_nodes,
                              act="relu", fc_act="relu", use_layer_norm=True)
    jax.block_until_ready(pred)
    assert pred.shape == (B, out_channels)
    assert aux[0].shape == (B, num_nodes)
    assert aux[3].shape == (B, num_nodes * len(which_layer))
    assert bool(jnp.all(jnp.isfinite(pred)))
    print("KERNEL_OK")
</pallas_src>

<mosaic_0001>
module attributes {stable_mosaic.version = 11 : i64} {
  func.func @gat2_kernel(%arg0: i32, %arg1: memref<128x16xf32, #tpu.memory_space<vmem>>, %arg2: memref<1x128x128xbf16, #tpu.memory_space<vmem>>, %arg3: memref<16x32xbf16, #tpu.memory_space<vmem>>, %arg4: memref<1x32xf32, #tpu.memory_space<vmem>>, %arg5: memref<2x8xf32, #tpu.memory_space<smem>>, %arg6: memref<1x16xf32, #tpu.memory_space<vmem>>, %arg7: memref<16x1xbf16, #tpu.memory_space<vmem>>, %arg8: memref<1xf32, #tpu.memory_space<smem>>, %arg9: memref<16x32xbf16, #tpu.memory_space<vmem>>, %arg10: memref<1x32xf32, #tpu.memory_space<vmem>>, %arg11: memref<2x8xf32, #tpu.memory_space<smem>>, %arg12: memref<1x16xf32, #tpu.memory_space<vmem>>, %arg13: memref<16x1xbf16, #tpu.memory_space<vmem>>, %arg14: memref<1xf32, #tpu.memory_space<smem>>, %arg15: memref<1x3x128xf32, #tpu.memory_space<vmem>>) attributes {dimension_semantics = [#tpu.dimension_semantics<parallel>], iteration_bounds = array<i64: 2>, scalar_prefetch = 0 : i64, scratch_operands = 0 : i64, tpu.core_type = #tpu.core_type<tc>, window_params = [{transform_indices = @transform_0, window_bounds = array<i64: 128, 16>}, {transform_indices = @transform_1, window_bounds = array<i64: 1, 128, 128>}, {pipeline_mode = #tpu.pipeline_mode<synchronous>, transform_indices = @transform_2, window_bounds = array<i64: 16, 32>}, {pipeline_mode = #tpu.pipeline_mode<synchronous>, transform_indices = @transform_3, window_bounds = array<i64: 1, 32>}, {transform_indices = @transform_4, window_bounds = array<i64: 2, 8>}, {pipeline_mode = #tpu.pipeline_mode<synchronous>, transform_indices = @transform_5, window_bounds = array<i64: 1, 16>}, {pipeline_mode = #tpu.pipeline_mode<synchronous>, transform_indices = @transform_6, window_bounds = array<i64: 16, 1>}, {transform_indices = @transform_7, window_bounds = array<i64: 1>}, {pipeline_mode = #tpu.pipeline_mode<synchronous>, transform_indices = @transform_8, window_bounds = array<i64: 16, 32>}, {pipeline_mode = #tpu.pipeline_mode<synchronous>, transform_indices = @transform_9, window_bounds = array<i64: 1, 32>}, {transform_indices = @transform_10, window_bounds = array<i64: 2, 8>}, {pipeline_mode = #tpu.pipeline_mode<synchronous>, transform_indices = @transform_11, window_bounds = array<i64: 1, 16>}, {pipeline_mode = #tpu.pipeline_mode<synchronous>, transform_indices = @transform_12, window_bounds = array<i64: 16, 1>}, {transform_indices = @transform_13, window_bounds = array<i64: 1>}, {transform_indices = @transform_14, window_bounds = array<i64: 1, 3, 128>}]} {
    %c0 = arith.constant 0 : index
    %c0_0 = arith.constant 0 : index
    %0 = vector.load %arg1[%c0, %c0_0] : memref<128x16xf32, #tpu.memory_space<vmem>>, vector<128x16xf32>
    %c0_1 = arith.constant 0 : index
    %c0_2 = arith.constant 0 : index
    %c0_3 = arith.constant 0 : index
    %1 = vector.load %arg2[%c0_1, %c0_2, %c0_3] : memref<1x128x128xbf16, #tpu.memory_space<vmem>>, vector<1x128x128xbf16>
    %2 = vector.shape_cast %1 : vector<1x128x128xbf16> to vector<128x128xbf16>
    %3 = arith.extf %2 : vector<128x128xbf16> to vector<128x128xf32>
    %cst = arith.constant dense<0.000000e+00> : vector<128xf32>
    %4 = vector.multi_reduction <add>, %0, %cst [1] : vector<128x16xf32> to vector<128xf32>
    %5 = vector.shape_cast %4 : vector<128xf32> to vector<128x1xf32>
    %cst_4 = arith.constant 1.600000e+01 : f32
    %6 = vector.broadcast %cst_4 : f32 to vector<128x1xf32>
    %7 = arith.divf %5, %6 : vector<128x1xf32>
    %8 = arith.truncf %0 : vector<128x16xf32> to vector<128x16xbf16>
    %c0_5 = arith.constant 0 : index
    %c0_6 = arith.constant 0 : index
    %9 = vector.load %arg3[%c0_5, %c0_6] : memref<16x32xbf16, #tpu.memory_space<vmem>>, vector<16x32xbf16>
    %cst_7 = arith.constant dense<0.000000e+00> : vector<128x32xf32>
    %10 = tpu.matmul %8, %9, %cst_7 {dimension_numbers = #tpu.dot_dimension_numbers<[1], [0], [0], [1], [0, 0, 1, 1], [], []>} : vector<128x16xbf16>, vector<16x32xbf16>, vector<128x32xf32> -> vector<128x32xf32>
    %c0_8 = arith.constant 0 : index
    %c0_9 = arith.constant 0 : index
    %11 = vector.load %arg4[%c0_8, %c0_9] : memref<1x32xf32, #tpu.memory_space<vmem>>, vector<1x32xf32>
    %12 = vector.broadcast %11 : vector<1x32xf32> to vector<128x32xf32>
    %13 = arith.addf %10, %12 : vector<128x32xf32>
    %14 = vector.extract_strided_slice %13 {offsets = [0, 0], sizes = [128, 16], strides = [1, 1]} : vector<128x32xf32> to vector<128x16xf32>
    %15 = vector.extract_strided_slice %13 {offsets = [0, 16], sizes = [128, 16], strides = [1, 1]} : vector<128x32xf32> to vector<128x16xf32>
    %16 = tpu.transpose %14, [1, 0] : vector<128x16xf32> -> vector<16x128xf32>
    %cst_10 = arith.constant 0.000000e+00 : f32
    %17 = vector.broadcast %cst_10 : f32 to vector<128x1xf32>
    %18 = vector.extract_strided_slice %15 {offsets = [0, 0], sizes = [128, 1], strides = [1, 1]} : vector<128x16xf32> to vector<128x1xf32>
    %19 = vector.extract_strided_slice %16 {offsets = [0, 0], sizes = [1, 128], strides = [1, 1]} : vector<16x128xf32> to vector<1x128xf32>
    %20 = vector.broadcast %18 : vector<128x1xf32> to vector<128x128xf32>
    %21 = vector.broadcast %19 : vector<1x128xf32> to vector<128x128xf32>
    %22 = arith.addf %20, %21 : vector<128x128xf32>
    %c0_11 = arith.constant 0 : index
    %c0_12 = arith.constant 0 : index
    %23 = memref.load %arg5[%c0_11, %c0_12] : memref<2x8xf32, #tpu.memory_space<smem>>
    %cst_13 = arith.constant 2.000000e-01 : f32
    %24 = vector.broadcast %cst_13 : f32 to vector<128x128xf32>
    %25 = arith.mulf %24, %22 : vector<128x128xf32>
    %26 = arith.maximumf %22, %25 : vector<128x128xf32>
    %27 = vector.broadcast %23 : f32 to vector<128x128xf32>
    %28 = arith.mulf %27, %26 : vector<128x128xf32>
    %29 = vector.extract_strided_slice %15 {offsets = [0, 1], sizes = [128, 1], strides = [1, 1]} : vector<128x16xf32> to vector<128x1xf32>
    %30 = vector.extract_strided_slice %16 {offsets = [1, 0], sizes = [1, 128], strides = [1, 1]} : vector<16x128xf32> to vector<1x128xf32>
    %31 = vector.broadcast %29 : vector<128x1xf32> to vector<128x128xf32>
    %32 = vector.broadcast %30 : vector<1x128xf32> to vector<128x128xf32>
    %33 = arith.addf %31, %32 : vector<128x128xf32>
    %c0_14 = arith.constant 0 : index
    %c1 = arith.constant 1 : index
    %34 = memref.load %arg5[%c0_14, %c1] : memref<2x8xf32, #tpu.memory_space<smem>>
    %cst_15 = arith.constant 2.000000e-01 : f32
    %35 = vector.broadcast %cst_15 : f32 to vector<128x128xf32>
    %36 = arith.mulf %35, %33 : vector<128x128xf32>
    %37 = arith.maximumf %33, %36 : vector<128x128xf32>
    %38 = vector.broadcast %34 : f32 to vector<128x128xf32>
    %39 = arith.mulf %38, %37 : vector<128x128xf32>
    %40 = vector.extract_strided_slice %15 {offsets = [0, 2], sizes = [128, 1], strides = [1, 1]} : vector<128x16xf32> to vector<128x1xf32>
    %41 = vector.extract_strided_slice %16 {offsets = [2, 0], sizes = [1, 128], strides = [1, 1]} : vector<16x128xf32> to vector<1x128xf32>
    %42 = vector.broadcast %40 : vector<128x1xf32> to vector<128x128xf32>
    %43 = vector.broadcast %41 : vector<1x128xf32> to vector<128x128xf32>
    %44 = arith.addf %42, %43 : vector<128x128xf32>
    %c0_16 = arith.constant 0 : index
    %c2 = arith.constant 2 : index
    %45 = memref.load %arg5[%c0_16, %c2] : memref<2x8xf32, #tpu.memory_space<smem>>
    %cst_17 = arith.constant 2.000000e-01 : f32
    %46 = vector.broadcast %cst_17 : f32 to vector<128x128xf32>
    %47 = arith.mulf %46, %44 : vector<128x128xf32>
    %48 = arith.maximumf %44, %47 : vector<128x128xf32>
    %49 = vector.broadcast %45 : f32 to vector<128x128xf32>
    %50 = arith.mulf %49, %48 : vector<128x128xf32>
    %51 = vector.extract_strided_slice %15 {offsets = [0, 3], sizes = [128, 1], strides = [1, 1]} : vector<128x16xf32> to vector<128x1xf32>
    %52 = vector.extract_strided_slice %16 {offsets = [3, 0], sizes = [1, 128], strides = [1, 1]} : vector<16x128xf32> to vector<1x128xf32>
    %53 = vector.broadcast %51 : vector<128x1xf32> to vector<128x128xf32>
    %54 = vector.broadcast %52 : vector<1x128xf32> to vector<128x128xf32>
    %55 = arith.addf %53, %54 : vector<128x128xf32>
    %c0_18 = arith.constant 0 : index
    %c3 = arith.constant 3 : index
    %56 = memref.load %arg5[%c0_18, %c3] : memref<2x8xf32, #tpu.memory_space<smem>>
    %cst_19 = arith.constant 2.000000e-01 : f32
    %57 = vector.broadcast %cst_19 : f32 to vector<128x128xf32>
    %58 = arith.mulf %57, %55 : vector<128x128xf32>
    %59 = arith.maximumf %55, %58 : vector<128x128xf32>
    %60 = vector.broadcast %56 : f32 to vector<128x128xf32>
    %61 = arith.mulf %60, %59 : vector<128x128xf32>
    %62 = vector.extract_strided_slice %15 {offsets = [0, 4], sizes = [128, 1], strides = [1, 1]} : vector<128x16xf32> to vector<128x1xf32>
    %63 = vector.extract_strided_slice %16 {offsets = [4, 0], sizes = [1, 128], strides = [1, 1]} : vector<16x128xf32> to vector<1x128xf32>
    %64 = vector.broadcast %62 : vector<128x1xf32> to vector<128x128xf32>
    %65 = vector.broadcast %63 : vector<1x128xf32> to vector<128x128xf32>
    %66 = arith.addf %64, %65 : vector<128x128xf32>
    %c0_20 = arith.constant 0 : index
    %c4 = arith.constant 4 : index
    %67 = memref.load %arg5[%c0_20, %c4] : memref<2x8xf32, #tpu.memory_space<smem>>
    %cst_21 = arith.constant 2.000000e-01 : f32
    %68 = vector.broadcast %cst_21 : f32 to vector<128x128xf32>
    %69 = arith.mulf %68, %66 : vector<128x128xf32>
    %70 = arith.maximumf %66, %69 : vector<128x128xf32>
    %71 = vector.broadcast %67 : f32 to vector<128x128xf32>
    %72 = arith.mulf %71, %70 : vector<128x128xf32>
    %73 = vector.extract_strided_slice %15 {offsets = [0, 5], sizes = [128, 1], strides = [1, 1]} : vector<128x16xf32> to vector<128x1xf32>
    %74 = vector.extract_strided_slice %16 {offsets = [5, 0], sizes = [1, 128], strides = [1, 1]} : vector<16x128xf32> to vector<1x128xf32>
    %75 = vector.broadcast %73 : vector<128x1xf32> to vector<128x128xf32>
    %76 = vector.broadcast %74 : vector<1x128xf32> to vector<128x128xf32>
    %77 = arith.addf %75, %76 : vector<128x128xf32>
    %c0_22 = arith.constant 0 : index
    %c5 = arith.constant 5 : index
    %78 = memref.load %arg5[%c0_22, %c5] : memref<2x8xf32, #tpu.memory_space<smem>>
    %cst_23 = arith.constant 2.000000e-01 : f32
    %79 = vector.broadcast %cst_23 : f32 to vector<128x128xf32>
    %80 = arith.mulf %79, %77 : vector<128x128xf32>
    %81 = arith.maximumf %77, %80 : vector<128x128xf32>
    %82 = vector.broadcast %78 : f32 to vector<128x128xf32>
    %83 = arith.mulf %82, %81 : vector<128x128xf32>
    %84 = vector.extract_strided_slice %15 {offsets = [0, 6], sizes = [128, 1], strides = [1, 1]} : vector<128x16xf32> to vector<128x1xf32>
    %85 = vector.extract_strided_slice %16 {offsets = [6, 0], sizes = [1, 128], strides = [1, 1]} : vector<16x128xf32> to vector<1x128xf32>
    %86 = vector.broadcast %84 : vector<128x1xf32> to vector<128x128xf32>
    %87 = vector.broadcast %85 : vector<1x128xf32> to vector<128x128xf32>
    %88 = arith.addf %86, %87 : vector<128x128xf32>
    %c0_24 = arith.constant 0 : index
    %c6 = arith.constant 6 : index
    %89 = memref.load %arg5[%c0_24, %c6] : memref<2x8xf32, #tpu.memory_space<smem>>
    %cst_25 = arith.constant 2.000000e-01 : f32
    %90 = vector.broadcast %cst_25 : f32 to vector<128x128xf32>
    %91 = arith.mulf %90, %88 : vector<128x128xf32>
    %92 = arith.maximumf %88, %91 : vector<128x128xf32>
    %93 = vector.broadcast %89 : f32 to vector<128x128xf32>
    %94 = arith.mulf %93, %92 : vector<128x128xf32>
    %95 = vector.extract_strided_slice %15 {offsets = [0, 7], sizes = [128, 1], strides = [1, 1]} : vector<128x16xf32> to vector<128x1xf32>
    %96 = vector.extract_strided_slice %16 {offsets = [7, 0], sizes = [1, 128], strides = [1, 1]} : vector<16x128xf32> to vector<1x128xf32>
    %97 = vector.broadcast %95 : vector<128x1xf32> to vector<128x128xf32>
    %98 = vector.broadcast %96 : vector<1x128xf32> to vector<128x128xf32>
    %99 = arith.addf %97, %98 : vector<128x128xf32>
    %c0_26 = arith.constant 0 : index
    %c7 = arith.constant 7 : index
    %100 = memref.load %arg5[%c0_26, %c7] : memref<2x8xf32, #tpu.memory_space<smem>>
    %cst_27 = arith.constant 2.000000e-01 : f32
    %101 = vector.broadcast %cst_27 : f32 to vector<128x128xf32>
    %102 = arith.mulf %101, %99 : vector<128x128xf32>
    %103 = arith.maximumf %99, %102 : vector<128x128xf32>
    %104 = vector.broadcast %100 : f32 to vector<128x128xf32>
    %105 = arith.mulf %104, %103 : vector<128x128xf32>
    %106 = arith.addf %28, %39 : vector<128x128xf32>
    %107 = arith.addf %50, %61 : vector<128x128xf32>
    %108 = arith.addf %72, %83 : vector<128x128xf32>
    %109 = arith.addf %94, %105 : vector<128x128xf32>
    %110 = arith.addf %106, %107 : vector<128x128xf32>
    %111 = arith.addf %108, %109 : vector<128x128xf32>
    %112 = arith.addf %110, %111 : vector<128x128xf32>
    %113 = arith.addf %112, %3 : vector<128x128xf32>
    %cst_28 = arith.constant dense<0xFF800000> : vector<128xf32>
    %114 = vector.multi_reduction <maximumf>, %113, %cst_28 [1] : vector<128x128xf32> to vector<128xf32>
    %115 = vector.shape_cast %114 : vector<128xf32> to vector<128x1xf32>
    %116 = vector.broadcast %115 : vector<128x1xf32> to vector<128x128xf32>
    %117 = arith.subf %113, %116 : vector<128x128xf32>
    %118 = math.exp %117 : vector<128x128xf32>
    %cst_29 = arith.constant dense<0.000000e+00> : vector<128xf32>
    %119 = vector.multi_reduction <add>, %118, %cst_29 [1] : vector<128x128xf32> to vector<128xf32>
    %120 = vector.shape_cast %119 : vector<128xf32> to vector<128x1xf32>
    %121 = tpu.reciprocal %120 {approx = true} : vector<128x1xf32> -> vector<128x1xf32>
    %122 = arith.truncf %118 : vector<128x128xf32> to vector<128x128xbf16>
    %123 = vector.extract_strided_slice %14 {offsets = [0, 0], sizes = [128, 8], strides = [1, 1]} : vector<128x16xf32> to vector<128x8xf32>
    %124 = arith.truncf %123 : vector<128x8xf32> to vector<128x8xbf16>
    %cst_30 = arith.constant dense<0.000000e+00> : vector<128x8xf32>
    %125 = tpu.matmul %122, %124, %cst_30 {dimension_numbers = #tpu.dot_dimension_numbers<[1], [0], [0], [1], [0, 0, 1, 1], [], []>} : vector<128x128xbf16>, vector<128x8xbf16>, vector<128x8xf32> -> vector<128x8xf32>
    %126 = vector.broadcast %121 : vector<128x1xf32> to vector<128x8xf32>
    %127 = arith.mulf %125, %126 : vector<128x8xf32>
    %c0_31 = arith.constant 0 : index
    %c0_32 = arith.constant 0 : index
    %128 = vector.load %arg6[%c0_31, %c0_32] : memref<1x16xf32, #tpu.memory_space<vmem>>, vector<1x8xf32>
    %129 = vector.broadcast %128 : vector<1x8xf32> to vector<128x8xf32>
    %130 = arith.addf %127, %129 : vector<128x8xf32>
    %cst_33 = arith.constant 0.000000e+00 : f32
    %131 = vector.broadcast %cst_33 : f32 to vector<128x8xf32>
    %132 = arith.maximumf %130, %131 : vector<128x8xf32>
    %133 = arith.truncf %132 : vector<128x8xf32> to vector<128x8xbf16>
    %c0_34 = arith.constant 0 : index
    %c0_35 = arith.constant 0 : index
    %134 = vector.load %arg7[%c0_34, %c0_35] : memref<16x1xbf16, #tpu.memory_space<vmem>>, vector<8x1xbf16>
    %cst_36 = arith.constant dense<0.000000e+00> : vector<128x1xf32>
    %135 = tpu.matmul %133, %134, %cst_36 {dimension_numbers = #tpu.dot_dimension_numbers<[1], [0], [0], [1], [0, 0, 1, 1], [], []>} : vector<128x8xbf16>, vector<8x1xbf16>, vector<128x1xf32> -> vector<128x1xf32>
    %136 = arith.addf %17, %135 : vector<128x1xf32>
    %137 = vector.extract_strided_slice %15 {offsets = [0, 8], sizes = [128, 1], strides = [1, 1]} : vector<128x16xf32> to vector<128x1xf32>
    %138 = vector.extract_strided_slice %16 {offsets = [8, 0], sizes = [1, 128], strides = [1, 1]} : vector<16x128xf32> to vector<1x128xf32>
    %139 = vector.broadcast %137 : vector<128x1xf32> to vector<128x128xf32>
    %140 = vector.broadcast %138 : vector<1x128xf32> to vector<128x128xf32>
    %141 = arith.addf %139, %140 : vector<128x128xf32>
    %c1_37 = arith.constant 1 : index
    %c0_38 = arith.constant 0 : index
    %142 = memref.load %arg5[%c1_37, %c0_38] : memref<2x8xf32, #tpu.memory_space<smem>>
    %cst_39 = arith.constant 2.000000e-01 : f32
    %143 = vector.broadcast %cst_39 : f32 to vector<128x128xf32>
    %144 = arith.mulf %143, %141 : vector<128x128xf32>
    %145 = arith.maximumf %141, %144 : vector<128x128xf32>
    %146 = vector.broadcast %142 : f32 to vector<128x128xf32>
    %147 = arith.mulf %146, %145 : vector<128x128xf32>
    %148 = vector.extract_strided_slice %15 {offsets = [0, 9], sizes = [128, 1], strides = [1, 1]} : vector<128x16xf32> to vector<128x1xf32>
    %149 = vector.extract_strided_slice %16 {offsets = [9, 0], sizes = [1, 128], strides = [1, 1]} : vector<16x128xf32> to vector<1x128xf32>
    %150 = vector.broadcast %148 : vector<128x1xf32> to vector<128x128xf32>
    %151 = vector.broadcast %149 : vector<1x128xf32> to vector<128x128xf32>
    %152 = arith.addf %150, %151 : vector<128x128xf32>
    %c1_40 = arith.constant 1 : index
    %c1_41 = arith.constant 1 : index
    %153 = memref.load %arg5[%c1_40, %c1_41] : memref<2x8xf32, #tpu.memory_space<smem>>
    %cst_42 = arith.constant 2.000000e-01 : f32
    %154 = vector.broadcast %cst_42 : f32 to vector<128x128xf32>
    %155 = arith.mulf %154, %152 : vector<128x128xf32>
    %156 = arith.maximumf %152, %155 : vector<128x128xf32>
    %157 = vector.broadcast %153 : f32 to vector<128x128xf32>
    %158 = arith.mulf %157, %156 : vector<128x128xf32>
    %159 = vector.extract_strided_slice %15 {offsets = [0, 10], sizes = [128, 1], strides = [1, 1]} : vector<128x16xf32> to vector<128x1xf32>
    %160 = vector.extract_strided_slice %16 {offsets = [10, 0], sizes = [1, 128], strides = [1, 1]} : vector<16x128xf32> to vector<1x128xf32>
    %161 = vector.broadcast %159 : vector<128x1xf32> to vector<128x128xf32>
    %162 = vector.broadcast %160 : vector<1x128xf32> to vector<128x128xf32>
    %163 = arith.addf %161, %162 : vector<128x128xf32>
    %c1_43 = arith.constant 1 : index
    %c2_44 = arith.constant 2 : index
    %164 = memref.load %arg5[%c1_43, %c2_44] : memref<2x8xf32, #tpu.memory_space<smem>>
    %cst_45 = arith.constant 2.000000e-01 : f32
    %165 = vector.broadcast %cst_45 : f32 to vector<128x128xf32>
    %166 = arith.mulf %165, %163 : vector<128x128xf32>
    %167 = arith.maximumf %163, %166 : vector<128x128xf32>
    %168 = vector.broadcast %164 : f32 to vector<128x128xf32>
    %169 = arith.mulf %168, %167 : vector<128x128xf32>
    %170 = vector.extract_strided_slice %15 {offsets = [0, 11], sizes = [128, 1], strides = [1, 1]} : vector<128x16xf32> to vector<128x1xf32>
    %171 = vector.extract_strided_slice %16 {offsets = [11, 0], sizes = [1, 128], strides = [1, 1]} : vector<16x128xf32> to vector<1x128xf32>
    %172 = vector.broadcast %170 : vector<128x1xf32> to vector<128x128xf32>
    %173 = vector.broadcast %171 : vector<1x128xf32> to vector<128x128xf32>
    %174 = arith.addf %172, %173 : vector<128x128xf32>
    %c1_46 = arith.constant 1 : index
    %c3_47 = arith.constant 3 : index
    %175 = memref.load %arg5[%c1_46, %c3_47] : memref<2x8xf32, #tpu.memory_space<smem>>
    %cst_48 = arith.constant 2.000000e-01 : f32
    %176 = vector.broadcast %cst_48 : f32 to vector<128x128xf32>
    %177 = arith.mulf %176, %174 : vector<128x128xf32>
    %178 = arith.maximumf %174, %177 : vector<128x128xf32>
    %179 = vector.broadcast %175 : f32 to vector<128x128xf32>
    %180 = arith.mulf %179, %178 : vector<128x128xf32>
    %181 = vector.extract_strided_slice %15 {offsets = [0, 12], sizes = [128, 1], strides = [1, 1]} : vector<128x16xf32> to vector<128x1xf32>
    %182 = vector.extract_strided_slice %16 {offsets = [12, 0], sizes = [1, 128], strides = [1, 1]} : vector<16x128xf32> to vector<1x128xf32>
    %183 = vector.broadcast %181 : vector<128x1xf32> to vector<128x128xf32>
    %184 = vector.broadcast %182 : vector<1x128xf32> to vector<128x128xf32>
    %185 = arith.addf %183, %184 : vector<128x128xf32>
    %c1_49 = arith.constant 1 : index
    %c4_50 = arith.constant 4 : index
    %186 = memref.load %arg5[%c1_49, %c4_50] : memref<2x8xf32, #tpu.memory_space<smem>>
    %cst_51 = arith.constant 2.000000e-01 : f32
    %187 = vector.broadcast %cst_51 : f32 to vector<128x128xf32>
    %188 = arith.mulf %187, %185 : vector<128x128xf32>
    %189 = arith.maximumf %185, %188 : vector<128x128xf32>
    %190 = vector.broadcast %186 : f32 to vector<128x128xf32>
    %191 = arith.mulf %190, %189 : vector<128x128xf32>
    %192 = vector.extract_strided_slice %15 {offsets = [0, 13], sizes = [128, 1], strides = [1, 1]} : vector<128x16xf32> to vector<128x1xf32>
    %193 = vector.extract_strided_slice %16 {offsets = [13, 0], sizes = [1, 128], strides = [1, 1]} : vector<16x128xf32> to vector<1x128xf32>
    %194 = vector.broadcast %192 : vector<128x1xf32> to vector<128x128xf32>
    %195 = vector.broadcast %193 : vector<1x128xf32> to vector<128x128xf32>
    %196 = arith.addf %194, %195 : vector<128x128xf32>
    %c1_52 = arith.constant 1 : index
    %c5_53 = arith.constant 5 : index
    %197 = memref.load %arg5[%c1_52, %c5_53] : memref<2x8xf32, #tpu.memory_space<smem>>
    %cst_54 = arith.constant 2.000000e-01 : f32
    %198 = vector.broadcast %cst_54 : f32 to vector<128x128xf32>
    %199 = arith.mulf %198, %196 : vector<128x128xf32>
    %200 = arith.maximumf %196, %199 : vector<128x128xf32>
    %201 = vector.broadcast %197 : f32 to vector<128x128xf32>
    %202 = arith.mulf %201, %200 : vector<128x128xf32>
    %203 = vector.extract_strided_slice %15 {offsets = [0, 14], sizes = [128, 1], strides = [1, 1]} : vector<128x16xf32> to vector<128x1xf32>
    %204 = vector.extract_strided_slice %16 {offsets = [14, 0], sizes = [1, 128], strides = [1, 1]} : vector<16x128xf32> to vector<1x128xf32>
    %205 = vector.broadcast %203 : vector<128x1xf32> to vector<128x128xf32>
    %206 = vector.broadcast %204 : vector<1x128xf32> to vector<128x128xf32>
    %207 = arith.addf %205, %206 : vector<128x128xf32>
    %c1_55 = arith.constant 1 : index
    %c6_56 = arith.constant 6 : index
    %208 = memref.load %arg5[%c1_55, %c6_56] : memref<2x8xf32, #tpu.memory_space<smem>>
    %cst_57 = arith.constant 2.000000e-01 : f32
    %209 = vector.broadcast %cst_57 : f32 to vector<128x128xf32>
    %210 = arith.mulf %209, %207 : vector<128x128xf32>
    %211 = arith.maximumf %207, %210 : vector<128x128xf32>
    %212 = vector.broadcast %208 : f32 to vector<128x128xf32>
    %213 = arith.mulf %212, %211 : vector<128x128xf32>
    %214 = vector.extract_strided_slice %15 {offsets = [0, 15], sizes = [128, 1], strides = [1, 1]} : vector<128x16xf32> to vector<128x1xf32>
    %215 = vector.extract_strided_slice %16 {offsets = [15, 0], sizes = [1, 128], strides = [1, 1]} : vector<16x128xf32> to vector<1x128xf32>
    %216 = vector.broadcast %214 : vector<128x1xf32> to vector<128x128xf32>
    %217 = vector.broadcast %215 : vector<1x128xf32> to vector<128x128xf32>
    %218 = arith.addf %216, %217 : vector<128x128xf32>
    %c1_58 = arith.constant 1 : index
    %c7_59 = arith.constant 7 : index
    %219 = memref.load %arg5[%c1_58, %c7_59] : memref<2x8xf32, #tpu.memory_space<smem>>
    %cst_60 = arith.constant 2.000000e-01 : f32
    %220 = vector.broadcast %cst_60 : f32 to vector<128x128xf32>
    %221 = arith.mulf %220, %218 : vector<128x128xf32>
    %222 = arith.maximumf %218, %221 : vector<128x128xf32>
    %223 = vector.broadcast %219 : f32 to vector<128x128xf32>
    %224 = arith.mulf %223, %222 : vector<128x128xf32>
    %225 = arith.addf %147, %158 : vector<128x128xf32>
    %226 = arith.addf %169, %180 : vector<128x128xf32>
    %227 = arith.addf %191, %202 : vector<128x128xf32>
    %228 = arith.addf %213, %224 : vector<128x128xf32>
    %229 = arith.addf %225, %226 : vector<128x128xf32>
    %230 = arith.addf %227, %228 : vector<128x128xf32>
    %231 = arith.addf %229, %230 : vector<128x128xf32>
    %232 = arith.addf %231, %3 : vector<128x128xf32>
    %cst_61 = arith.constant dense<0xFF800000> : vector<128xf32>
    %233 = vector.multi_reduction <maximumf>, %232, %cst_61 [1] : vector<128x128xf32> to vector<128xf32>
    %234 = vector.shape_cast %233 : vector<128xf32> to vector<128x1xf32>
    %235 = vector.broadcast %234 : vector<128x1xf32> to vector<128x128xf32>
    %236 = arith.subf %232, %235 : vector<128x128xf32>
    %237 = math.exp %236 : vector<128x128xf32>
    %cst_62 = arith.constant dense<0.000000e+00> : vector<128xf32>
    %238 = vector.multi_reduction <add>, %237, %cst_62 [1] : vector<128x128xf32> to vector<128xf32>
    %239 = vector.shape_cast %238 : vector<128xf32> to vector<128x1xf32>
    %240 = tpu.reciprocal %239 {approx = true} : vector<128x1xf32> -> vector<128x1xf32>
    %241 = arith.truncf %237 : vector<128x128xf32> to vector<128x128xbf16>
    %242 = vector.extract_strided_slice %14 {offsets = [0, 8], sizes = [128, 8], strides = [1, 1]} : vector<128x16xf32> to vector<128x8xf32>
    %243 = arith.truncf %242 : vector<128x8xf32> to vector<128x8xbf16>
    %cst_63 = arith.constant dense<0.000000e+00> : vector<128x8xf32>
    %244 = tpu.matmul %241, %243, %cst_63 {dimension_numbers = #tpu.dot_dimension_numbers<[1], [0], [0], [1], [0, 0, 1, 1], [], []>} : vector<128x128xbf16>, vector<128x8xbf16>, vector<128x8xf32> -> vector<128x8xf32>
    %245 = vector.broadcast %240 : vector<128x1xf32> to vector<128x8xf32>
    %246 = arith.mulf %244, %245 : vector<128x8xf32>
    %c0_64 = arith.constant 0 : index
    %c8 = arith.constant 8 : index
    %247 = vector.load %arg6[%c0_64, %c8] : memref<1x16xf32, #tpu.memory_space<vmem>>, vector<1x8xf32>
    %248 = vector.broadcast %247 : vector<1x8xf32> to vector<128x8xf32>
    %249 = arith.addf %246, %248 : vector<128x8xf32>
    %cst_65 = arith.constant 0.000000e+00 : f32
    %250 = vector.broadcast %cst_65 : f32 to vector<128x8xf32>
    %251 = arith.maximumf %249, %250 : vector<128x8xf32>
    %252 = arith.truncf %251 : vector<128x8xf32> to vector<128x8xbf16>
    %c8_66 = arith.constant 8 : index
    %c0_67 = arith.constant 0 : index
    %253 = vector.load %arg7[%c8_66, %c0_67] : memref<16x1xbf16, #tpu.memory_space<vmem>>, vector<8x1xbf16>
    %cst_68 = arith.constant dense<0.000000e+00> : vector<128x1xf32>
    %254 = tpu.matmul %252, %253, %cst_68 {dimension_numbers = #tpu.dot_dimension_numbers<[1], [0], [0], [1], [0, 0, 1, 1], [], []>} : vector<128x8xbf16>, vector<8x1xbf16>, vector<128x1xf32> -> vector<128x1xf32>
    %255 = arith.addf %136, %254 : vector<128x1xf32>
    %c0_69 = arith.constant 0 : index
    %256 = memref.load %arg8[%c0_69] : memref<1xf32, #tpu.memory_space<smem>>
    %257 = vector.broadcast %256 : f32 to vector<128x1xf32>
    %258 = arith.addf %255, %257 : vector<128x1xf32>
    %c0_70 = arith.constant 0 : index
    %c0_71 = arith.constant 0 : index
    %259 = vector.load %arg10[%c0_70, %c0_71] : memref<1x32xf32, #tpu.memory_space<vmem>>, vector<1x32xf32>
    %260 = arith.truncf %132 : vector<128x8xf32> to vector<128x8xbf16>
    %c0_72 = arith.constant 0 : index
    %c0_73 = arith.constant 0 : index
    %261 = vector.load %arg9[%c0_72, %c0_73] : memref<16x32xbf16, #tpu.memory_space<vmem>>, vector<8x32xbf16>
    %cst_74 = arith.constant dense<0.000000e+00> : vector<128x32xf32>
    %262 = tpu.matmul %260, %261, %cst_74 {dimension_numbers = #tpu.dot_dimension_numbers<[1], [0], [0], [1], [0, 0, 1, 1], [], []>} : vector<128x8xbf16>, vector<8x32xbf16>, vector<128x32xf32> -> vector<128x32xf32>
    %263 = vector.broadcast %259 : vector<1x32xf32> to vector<128x32xf32>
    %264 = arith.addf %263, %262 : vector<128x32xf32>
    %265 = arith.truncf %251 : vector<128x8xf32> to vector<128x8xbf16>
    %c8_75 = arith.constant 8 : index
    %c0_76 = arith.constant 0 : index
    %266 = vector.load %arg9[%c8_75, %c0_76] : memref<16x32xbf16, #tpu.memory_space<vmem>>, vector<8x32xbf16>
    %cst_77 = arith.constant dense<0.000000e+00> : vector<128x32xf32>
    %267 = tpu.matmul %265, %266, %cst_77 {dimension_numbers = #tpu.dot_dimension_numbers<[1], [0], [0], [1], [0, 0, 1, 1], [], []>} : vector<128x8xbf16>, vector<8x32xbf16>, vector<128x32xf32> -> vector<128x32xf32>
    %268 = arith.addf %264, %267 : vector<128x32xf32>
    %269 = vector.extract_strided_slice %268 {offsets = [0, 0], sizes = [128, 16], strides = [1, 1]} : vector<128x32xf32> to vector<128x16xf32>
    %270 = vector.extract_strided_slice %268 {offsets = [0, 16], sizes = [128, 16], strides = [1, 1]} : vector<128x32xf32> to vector<128x16xf32>
    %271 = tpu.transpose %269, [1, 0] : vector<128x16xf32> -> vector<16x128xf32>
    %cst_78 = arith.constant 0.000000e+00 : f32
    %272 = vector.broadcast %cst_78 : f32 to vector<128x1xf32>
    %273 = vector.extract_strided_slice %270 {offsets = [0, 0], sizes = [128, 1], strides = [1, 1]} : vector<128x16xf32> to vector<128x1xf32>
    %274 = vector.extract_strided_slice %271 {offsets = [0, 0], sizes = [1, 128], strides = [1, 1]} : vector<16x128xf32> to vector<1x128xf32>
    %275 = vector.broadcast %273 : vector<128x1xf32> to vector<128x128xf32>
    %276 = vector.broadcast %274 : vector<1x128xf32> to vector<128x128xf32>
    %277 = arith.addf %275, %276 : vector<128x128xf32>
    %c0_79 = arith.constant 0 : index
    %c0_80 = arith.constant 0 : index
    %278 = memref.load %arg11[%c0_79, %c0_80] : memref<2x8xf32, #tpu.memory_space<smem>>
    %cst_81 = arith.constant 2.000000e-01 : f32
    %279 = vector.broadcast %cst_81 : f32 to vector<128x128xf32>
    %280 = arith.mulf %279, %277 : vector<128x128xf32>
    %281 = arith.maximumf %277, %280 : vector<128x128xf32>
    %282 = vector.broadcast %278 : f32 to vector<128x128xf32>
    %283 = arith.mulf %282, %281 : vector<128x128xf32>
    %284 = vector.extract_strided_slice %270 {offsets = [0, 1], sizes = [128, 1], strides = [1, 1]} : vector<128x16xf32> to vector<128x1xf32>
    %285 = vector.extract_strided_slice %271 {offsets = [1, 0], sizes = [1, 128], strides = [1, 1]} : vector<16x128xf32> to vector<1x128xf32>
    %286 = vector.broadcast %284 : vector<128x1xf32> to vector<128x128xf32>
    %287 = vector.broadcast %285 : vector<1x128xf32> to vector<128x128xf32>
    %288 = arith.addf %286, %287 : vector<128x128xf32>
    %c0_82 = arith.constant 0 : index
    %c1_83 = arith.constant 1 : index
    %289 = memref.load %arg11[%c0_82, %c1_83] : memref<2x8xf32, #tpu.memory_space<smem>>
    %cst_84 = arith.constant 2.000000e-01 : f32
    %290 = vector.broadcast %cst_84 : f32 to vector<128x128xf32>
    %291 = arith.mulf %290, %288 : vector<128x128xf32>
    %292 = arith.maximumf %288, %291 : vector<128x128xf32>
    %293 = vector.broadcast %289 : f32 to vector<128x128xf32>
    %294 = arith.mulf %293, %292 : vector<128x128xf32>
    %295 = vector.extract_strided_slice %270 {offsets = [0, 2], sizes = [128, 1], strides = [1, 1]} : vector<128x16xf32> to vector<128x1xf32>
    %296 = vector.extract_strided_slice %271 {offsets = [2, 0], sizes = [1, 128], strides = [1, 1]} : vector<16x128xf32> to vector<1x128xf32>
    %297 = vector.broadcast %295 : vector<128x1xf32> to vector<128x128xf32>
    %298 = vector.broadcast %296 : vector<1x128xf32> to vector<128x128xf32>
    %299 = arith.addf %297, %298 : vector<128x128xf32>
    %c0_85 = arith.constant 0 : index
    %c2_86 = arith.constant 2 : index
    %300 = memref.load %arg11[%c0_85, %c2_86] : memref<2x8xf32, #tpu.memory_space<smem>>
    %cst_87 = arith.constant 2.000000e-01 : f32
    %301 = vector.broadcast %cst_87 : f32 to vector<128x128xf32>
    %302 = arith.mulf %301, %299 : vector<128x128xf32>
    %303 = arith.maximumf %299, %302 : vector<128x128xf32>
    %304 = vector.broadcast %300 : f32 to vector<128x128xf32>
    %305 = arith.mulf %304, %303 : vector<128x128xf32>
    %306 = vector.extract_strided_slice %270 {offsets = [0, 3], sizes = [128, 1], strides = [1, 1]} : vector<128x16xf32> to vector<128x1xf32>
    %307 = vector.extract_strided_slice %271 {offsets = [3, 0], sizes = [1, 128], strides = [1, 1]} : vector<16x128xf32> to vector<1x128xf32>
    %308 = vector.broadcast %306 : vector<128x1xf32> to vector<128x128xf32>
    %309 = vector.broadcast %307 : vector<1x128xf32> to vector<128x128xf32>
    %310 = arith.addf %308, %309 : vector<128x128xf32>
    %c0_88 = arith.constant 0 : index
    %c3_89 = arith.constant 3 : index
    %311 = memref.load %arg11[%c0_88, %c3_89] : memref<2x8xf32, #tpu.memory_space<smem>>
    %cst_90 = arith.constant 2.000000e-01 : f32
    %312 = vector.broadcast %cst_90 : f32 to vector<128x128xf32>
    %313 = arith.mulf %312, %310 : vector<128x128xf32>
    %314 = arith.maximumf %310, %313 : vector<128x128xf32>
    %315 = vector.broadcast %311 : f32 to vector<128x128xf32>
    %316 = arith.mulf %315, %314 : vector<128x128xf32>
    %317 = vector.extract_strided_slice %270 {offsets = [0, 4], sizes = [128, 1], strides = [1, 1]} : vector<128x16xf32> to vector<128x1xf32>
    %318 = vector.extract_strided_slice %271 {offsets = [4, 0], sizes = [1, 128], strides = [1, 1]} : vector<16x128xf32> to vector<1x128xf32>
    %319 = vector.broadcast %317 : vector<128x1xf32> to vector<128x128xf32>
    %320 = vector.broadcast %318 : vector<1x128xf32> to vector<128x128xf32>
    %321 = arith.addf %319, %320 : vector<128x128xf32>
    %c0_91 = arith.constant 0 : index
    %c4_92 = arith.constant 4 : index
    %322 = memref.load %arg11[%c0_91, %c4_92] : memref<2x8xf32, #tpu.memory_space<smem>>
    %cst_93 = arith.constant 2.000000e-01 : f32
    %323 = vector.broadcast %cst_93 : f32 to vector<128x128xf32>
    %324 = arith.mulf %323, %321 : vector<128x128xf32>
    %325 = arith.maximumf %321, %324 : vector<128x128xf32>
    %326 = vector.broadcast %322 : f32 to vector<128x128xf32>
    %327 = arith.mulf %326, %325 : vector<128x128xf32>
    %328 = vector.extract_strided_slice %270 {offsets = [0, 5], sizes = [128, 1], strides = [1, 1]} : vector<128x16xf32> to vector<128x1xf32>
    %329 = vector.extract_strided_slice %271 {offsets = [5, 0], sizes = [1, 128], strides = [1, 1]} : vector<16x128xf32> to vector<1x128xf32>
    %330 = vector.broadcast %328 : vector<128x1xf32> to vector<128x128xf32>
    %331 = vector.broadcast %329 : vector<1x128xf32> to vector<128x128xf32>
    %332 = arith.addf %330, %331 : vector<128x128xf32>
    %c0_94 = arith.constant 0 : index
    %c5_95 = arith.constant 5 : index
    %333 = memref.load %arg11[%c0_94, %c5_95] : memref<2x8xf32, #tpu.memory_space<smem>>
    %cst_96 = arith.constant 2.000000e-01 : f32
    %334 = vector.broadcast %cst_96 : f32 to vector<128x128xf32>
    %335 = arith.mulf %334, %332 : vector<128x128xf32>
    %336 = arith.maximumf %332, %335 : vector<128x128xf32>
    %337 = vector.broadcast %333 : f32 to vector<128x128xf32>
    %338 = arith.mulf %337, %336 : vector<128x128xf32>
    %339 = vector.extract_strided_slice %270 {offsets = [0, 6], sizes = [128, 1], strides = [1, 1]} : vector<128x16xf32> to vector<128x1xf32>
    %340 = vector.extract_strided_slice %271 {offsets = [6, 0], sizes = [1, 128], strides = [1, 1]} : vector<16x128xf32> to vector<1x128xf32>
    %341 = vector.broadcast %339 : vector<128x1xf32> to vector<128x128xf32>
    %342 = vector.broadcast %340 : vector<1x128xf32> to vector<128x128xf32>
    %343 = arith.addf %341, %342 : vector<128x128xf32>
    %c0_97 = arith.constant 0 : index
    %c6_98 = arith.constant 6 : index
    %344 = memref.load %arg11[%c0_97, %c6_98] : memref<2x8xf32, #tpu.memory_space<smem>>
    %cst_99 = arith.constant 2.000000e-01 : f32
    %345 = vector.broadcast %cst_99 : f32 to vector<128x128xf32>
    %346 = arith.mulf %345, %343 : vector<128x128xf32>
    %347 = arith.maximumf %343, %346 : vector<128x128xf32>
    %348 = vector.broadcast %344 : f32 to vector<128x128xf32>
    %349 = arith.mulf %348, %347 : vector<128x128xf32>
    %350 = vector.extract_strided_slice %270 {offsets = [0, 7], sizes = [128, 1], strides = [1, 1]} : vector<128x16xf32> to vector<128x1xf32>
    %351 = vector.extract_strided_slice %271 {offsets = [7, 0], sizes = [1, 128], strides = [1, 1]} : vector<16x128xf32> to vector<1x128xf32>
    %352 = vector.broadcast %350 : vector<128x1xf32> to vector<128x128xf32>
    %353 = vector.broadcast %351 : vector<1x128xf32> to vector<128x128xf32>
    %354 = arith.addf %352, %353 : vector<128x128xf32>
    %c0_100 = arith.constant 0 : index
    %c7_101 = arith.constant 7 : index
    %355 = memref.load %arg11[%c0_100, %c7_101] : memref<2x8xf32, #tpu.memory_space<smem>>
    %cst_102 = arith.constant 2.000000e-01 : f32
    %356 = vector.broadcast %cst_102 : f32 to vector<128x128xf32>
    %357 = arith.mulf %356, %354 : vector<128x128xf32>
    %358 = arith.maximumf %354, %357 : vector<128x128xf32>
    %359 = vector.broadcast %355 : f32 to vector<128x128xf32>
    %360 = arith.mulf %359, %358 : vector<128x128xf32>
    %361 = arith.addf %283, %294 : vector<128x128xf32>
    %362 = arith.addf %305, %316 : vector<128x128xf32>
    %363 = arith.addf %327, %338 : vector<128x128xf32>
    %364 = arith.addf %349, %360 : vector<128x128xf32>
    %365 = arith.addf %361, %362 : vector<128x128xf32>
    %366 = arith.addf %363, %364 : vector<128x128xf32>
    %367 = arith.addf %365, %366 : vector<128x128xf32>
    %368 = arith.addf %367, %3 : vector<128x128xf32>
    %cst_103 = arith.constant dense<0xFF800000> : vector<128xf32>
    %369 = vector.multi_reduction <maximumf>, %368, %cst_103 [1] : vector<128x128xf32> to vector<128xf32>
    %370 = vector.shape_cast %369 : vector<128xf32> to vector<128x1xf32>
    %371 = vector.broadcast %370 : vector<128x1xf32> to vector<128x128xf32>
    %372 = arith.subf %368, %371 : vector<128x128xf32>
    %373 = math.exp %372 : vector<128x128xf32>
    %cst_104 = arith.constant dense<0.000000e+00> : vector<128xf32>
    %374 = vector.multi_reduction <add>, %373, %cst_104 [1] : vector<128x128xf32> to vector<128xf32>
    %375 = vector.shape_cast %374 : vector<128xf32> to vector<128x1xf32>
    %376 = tpu.reciprocal %375 {approx = true} : vector<128x1xf32> -> vector<128x1xf32>
    %377 = arith.truncf %373 : vector<128x128xf32> to vector<128x128xbf16>
    %378 = vector.extract_strided_slice %269 {offsets = [0, 0], sizes = [128, 8], strides = [1, 1]} : vector<128x16xf32> to vector<128x8xf32>
    %379 = arith.truncf %378 : vector<128x8xf32> to vector<128x8xbf16>
    %cst_105 = arith.constant dense<0.000000e+00> : vector<128x8xf32>
    %380 = tpu.matmul %377, %379, %cst_105 {dimension_numbers = #tpu.dot_dimension_numbers<[1], [0], [0], [1], [0, 0, 1, 1], [], []>} : vector<128x128xbf16>, vector<128x8xbf16>, vector<128x8xf32> -> vector<128x8xf32>
    %381 = vector.broadcast %376 : vector<128x1xf32> to vector<128x8xf32>
    %382 = arith.mulf %380, %381 : vector<128x8xf32>
    %c0_106 = arith.constant 0 : index
    %c0_107 = arith.constant 0 : index
    %383 = vector.load %arg12[%c0_106, %c0_107] : memref<1x16xf32, #tpu.memory_space<vmem>>, vector<1x8xf32>
    %384 = vector.broadcast %383 : vector<1x8xf32> to vector<128x8xf32>
    %385 = arith.addf %382, %384 : vector<128x8xf32>
    %cst_108 = arith.constant 0.000000e+00 : f32
    %386 = vector.broadcast %cst_108 : f32 to vector<128x8xf32>
    %387 = arith.maximumf %385, %386 : vector<128x8xf32>
    %388 = arith.truncf %387 : vector<128x8xf32> to vector<128x8xbf16>
    %c0_109 = arith.constant 0 : index
    %c0_110 = arith.constant 0 : index
    %389 = vector.load %arg13[%c0_109, %c0_110] : memref<16x1xbf16, #tpu.memory_space<vmem>>, vector<8x1xbf16>
    %cst_111 = arith.constant dense<0.000000e+00> : vector<128x1xf32>
    %390 = tpu.matmul %388, %389, %cst_111 {dimension_numbers = #tpu.dot_dimension_numbers<[1], [0], [0], [1], [0, 0, 1, 1], [], []>} : vector<128x8xbf16>, vector<8x1xbf16>, vector<128x1xf32> -> vector<128x1xf32>
    %391 = arith.addf %272, %390 : vector<128x1xf32>
    %392 = vector.extract_strided_slice %270 {offsets = [0, 8], sizes = [128, 1], strides = [1, 1]} : vector<128x16xf32> to vector<128x1xf32>
    %393 = vector.extract_strided_slice %271 {offsets = [8, 0], sizes = [1, 128], strides = [1, 1]} : vector<16x128xf32> to vector<1x128xf32>
    %394 = vector.broadcast %392 : vector<128x1xf32> to vector<128x128xf32>
    %395 = vector.broadcast %393 : vector<1x128xf32> to vector<128x128xf32>
    %396 = arith.addf %394, %395 : vector<128x128xf32>
    %c1_112 = arith.constant 1 : index
    %c0_113 = arith.constant 0 : index
    %397 = memref.load %arg11[%c1_112, %c0_113] : memref<2x8xf32, #tpu.memory_space<smem>>
    %cst_114 = arith.constant 2.000000e-01 : f32
    %398 = vector.broadcast %cst_114 : f32 to vector<128x128xf32>
    %399 = arith.mulf %398, %396 : vector<128x128xf32>
    %400 = arith.maximumf %396, %399 : vector<128x128xf32>
    %401 = vector.broadcast %397 : f32 to vector<128x128xf32>
    %402 = arith.mulf %401, %400 : vector<128x128xf32>
    %403 = vector.extract_strided_slice %270 {offsets = [0, 9], sizes = [128, 1], strides = [1, 1]} : vector<128x16xf32> to vector<128x1xf32>
    %404 = vector.extract_strided_slice %271 {offsets = [9, 0], sizes = [1, 128], strides = [1, 1]} : vector<16x128xf32> to vector<1x128xf32>
    %405 = vector.broadcast %403 : vector<128x1xf32> to vector<128x128xf32>
    %406 = vector.broadcast %404 : vector<1x128xf32> to vector<128x128xf32>
    %407 = arith.addf %405, %406 : vector<128x128xf32>
    %c1_115 = arith.constant 1 : index
    %c1_116 = arith.constant 1 : index
    %408 = memref.load %arg11[%c1_115, %c1_116] : memref<2x8xf32, #tpu.memory_space<smem>>
    %cst_117 = arith.constant 2.000000e-01 : f32
    %409 = vector.broadcast %cst_117 : f32 to vector<128x128xf32>
    %410 = arith.mulf %409, %407 : vector<128x128xf32>
    %411 = arith.maximumf %407, %410 : vector<128x128xf32>
    %412 = vector.broadcast %408 : f32 to vector<128x128xf32>
    %413 = arith.mulf %412, %411 : vector<128x128xf32>
    %414 = vector.extract_strided_slice %270 {offsets = [0, 10], sizes = [128, 1], strides = [1, 1]} : vector<128x16xf32> to vector<128x1xf32>
    %415 = vector.extract_strided_slice %271 {offsets = [10, 0], sizes = [1, 128], strides = [1, 1]} : vector<16x128xf32> to vector<1x128xf32>
    %416 = vector.broadcast %414 : vector<128x1xf32> to vector<128x128xf32>
    %417 = vector.broadcast %415 : vector<1x128xf32> to vector<128x128xf32>
    %418 = arith.addf %416, %417 : vector<128x128xf32>
    %c1_118 = arith.constant 1 : index
    %c2_119 = arith.constant 2 : index
    %419 = memref.load %arg11[%c1_118, %c2_119] : memref<2x8xf32, #tpu.memory_space<smem>>
    %cst_120 = arith.constant 2.000000e-01 : f32
    %420 = vector.broadcast %cst_120 : f32 to vector<128x128xf32>
    %421 = arith.mulf %420, %418 : vector<128x128xf32>
    %422 = arith.maximumf %418, %421 : vector<128x128xf32>
    %423 = vector.broadcast %419 : f32 to vector<128x128xf32>
    %424 = arith.mulf %423, %422 : vector<128x128xf32>
    %425 = vector.extract_strided_slice %270 {offsets = [0, 11], sizes = [128, 1], strides = [1, 1]} : vector<128x16xf32> to vector<128x1xf32>
    %426 = vector.extract_strided_slice %271 {offsets = [11, 0], sizes = [1, 128], strides = [1, 1]} : vector<16x128xf32> to vector<1x128xf32>
    %427 = vector.broadcast %425 : vector<128x1xf32> to vector<128x128xf32>
    %428 = vector.broadcast %426 : vector<1x128xf32> to vector<128x128xf32>
    %429 = arith.addf %427, %428 : vector<128x128xf32>
    %c1_121 = arith.constant 1 : index
    %c3_122 = arith.constant 3 : index
    %430 = memref.load %arg11[%c1_121, %c3_122] : memref<2x8xf32, #tpu.memory_space<smem>>
    %cst_123 = arith.constant 2.000000e-01 : f32
    %431 = vector.broadcast %cst_123 : f32 to vector<128x128xf32>
    %432 = arith.mulf %431, %429 : vector<128x128xf32>
    %433 = arith.maximumf %429, %432 : vector<128x128xf32>
    %434 = vector.broadcast %430 : f32 to vector<128x128xf32>
    %435 = arith.mulf %434, %433 : vector<128x128xf32>
    %436 = vector.extract_strided_slice %270 {offsets = [0, 12], sizes = [128, 1], strides = [1, 1]} : vector<128x16xf32> to vector<128x1xf32>
    %437 = vector.extract_strided_slice %271 {offsets = [12, 0], sizes = [1, 128], strides = [1, 1]} : vector<16x128xf32> to vector<1x128xf32>
    %438 = vector.broadcast %436 : vector<128x1xf32> to vector<128x128xf32>
    %439 = vector.broadcast %437 : vector<1x128xf32> to vector<128x128xf32>
    %440 = arith.addf %438, %439 : vector<128x128xf32>
    %c1_124 = arith.constant 1 : index
    %c4_125 = arith.constant 4 : index
    %441 = memref.load %arg11[%c1_124, %c4_125] : memref<2x8xf32, #tpu.memory_space<smem>>
    %cst_126 = arith.constant 2.000000e-01 : f32
    %442 = vector.broadcast %cst_126 : f32 to vector<128x128xf32>
    %443 = arith.mulf %442, %440 : vector<128x128xf32>
    %444 = arith.maximumf %440, %443 : vector<128x128xf32>
    %445 = vector.broadcast %441 : f32 to vector<128x128xf32>
    %446 = arith.mulf %445, %444 : vector<128x128xf32>
    %447 = vector.extract_strided_slice %270 {offsets = [0, 13], sizes = [128, 1], strides = [1, 1]} : vector<128x16xf32> to vector<128x1xf32>
    %448 = vector.extract_strided_slice %271 {offsets = [13, 0], sizes = [1, 128], strides = [1, 1]} : vector<16x128xf32> to vector<1x128xf32>
    %449 = vector.broadcast %447 : vector<128x1xf32> to vector<128x128xf32>
    %450 = vector.broadcast %448 : vector<1x128xf32> to vector<128x128xf32>
    %451 = arith.addf %449, %450 : vector<128x128xf32>
    %c1_127 = arith.constant 1 : index
    %c5_128 = arith.constant 5 : index
    %452 = memref.load %arg11[%c1_127, %c5_128] : memref<2x8xf32, #tpu.memory_space<smem>>
    %cst_129 = arith.constant 2.000000e-01 : f32
    %453 = vector.broadcast %cst_129 : f32 to vector<128x128xf32>
    %454 = arith.mulf %453, %451 : vector<128x128xf32>
    %455 = arith.maximumf %451, %454 : vector<128x128xf32>
    %456 = vector.broadcast %452 : f32 to vector<128x128xf32>
    %457 = arith.mulf %456, %455 : vector<128x128xf32>
    %458 = vector.extract_strided_slice %270 {offsets = [0, 14], sizes = [128, 1], strides = [1, 1]} : vector<128x16xf32> to vector<128x1xf32>
    %459 = vector.extract_strided_slice %271 {offsets = [14, 0], sizes = [1, 128], strides = [1, 1]} : vector<16x128xf32> to vector<1x128xf32>
    %460 = vector.broadcast %458 : vector<128x1xf32> to vector<128x128xf32>
    %461 = vector.broadcast %459 : vector<1x128xf32> to vector<128x128xf32>
    %462 = arith.addf %460, %461 : vector<128x128xf32>
    %c1_130 = arith.constant 1 : index
    %c6_131 = arith.constant 6 : index
    %463 = memref.load %arg11[%c1_130, %c6_131] : memref<2x8xf32, #tpu.memory_space<smem>>
    %cst_132 = arith.constant 2.000000e-01 : f32
    %464 = vector.broadcast %cst_132 : f32 to vector<128x128xf32>
    %465 = arith.mulf %464, %462 : vector<128x128xf32>
    %466 = arith.maximumf %462, %465 : vector<128x128xf32>
    %467 = vector.broadcast %463 : f32 to vector<128x128xf32>
    %468 = arith.mulf %467, %466 : vector<128x128xf32>
    %469 = vector.extract_strided_slice %270 {offsets = [0, 15], sizes = [128, 1], strides = [1, 1]} : vector<128x16xf32> to vector<128x1xf32>
    %470 = vector.extract_strided_slice %271 {offsets = [15, 0], sizes = [1, 128], strides = [1, 1]} : vector<16x128xf32> to vector<1x128xf32>
    %471 = vector.broadcast %469 : vector<128x1xf32> to vector<128x128xf32>
    %472 = vector.broadcast %470 : vector<1x128xf32> to vector<128x128xf32>
    %473 = arith.addf %471, %472 : vector<128x128xf32>
    %c1_133 = arith.constant 1 : index
    %c7_134 = arith.constant 7 : index
    %474 = memref.load %arg11[%c1_133, %c7_134] : memref<2x8xf32, #tpu.memory_space<smem>>
    %cst_135 = arith.constant 2.000000e-01 : f32
    %475 = vector.broadcast %cst_135 : f32 to vector<128x128xf32>
    %476 = arith.mulf %475, %473 : vector<128x128xf32>
    %477 = arith.maximumf %473, %476 : vector<128x128xf32>
    %478 = vector.broadcast %474 : f32 to vector<128x128xf32>
    %479 = arith.mulf %478, %477 : vector<128x128xf32>
    %480 = arith.addf %402, %413 : vector<128x128xf32>
    %481 = arith.addf %424, %435 : vector<128x128xf32>
    %482 = arith.addf %446, %457 : vector<128x128xf32>
    %483 = arith.addf %468, %479 : vector<128x128xf32>
    %484 = arith.addf %480, %481 : vector<128x128xf32>
    %485 = arith.addf %482, %483 : vector<128x128xf32>
    %486 = arith.addf %484, %485 : vector<128x128xf32>
    %487 = arith.addf %486, %3 : vector<128x128xf32>
    %cst_136 = arith.constant dense<0xFF800000> : vector<128xf32>
    %488 = vector.multi_reduction <maximumf>, %487, %cst_136 [1] : vector<128x128xf32> to vector<128xf32>
    %489 = vector.shape_cast %488 : vector<128xf32> to vector<128x1xf32>
    %490 = vector.broadcast %489 : vector<128x1xf32> to vector<128x128xf32>
    %491 = arith.subf %487, %490 : vector<128x128xf32>
    %492 = math.exp %491 : vector<128x128xf32>
    %cst_137 = arith.constant dense<0.000000e+00> : vector<128xf32>
    %493 = vector.multi_reduction <add>, %492, %cst_137 [1] : vector<128x128xf32> to vector<128xf32>
    %494 = vector.shape_cast %493 : vector<128xf32> to vector<128x1xf32>
    %495 = tpu.reciprocal %494 {approx = true} : vector<128x1xf32> -> vector<128x1xf32>
    %496 = arith.truncf %492 : vector<128x128xf32> to vector<128x128xbf16>
    %497 = vector.extract_strided_slice %269 {offsets = [0, 8], sizes = [128, 8], strides = [1, 1]} : vector<128x16xf32> to vector<128x8xf32>
    %498 = arith.truncf %497 : vector<128x8xf32> to vector<128x8xbf16>
    %cst_138 = arith.constant dense<0.000000e+00> : vector<128x8xf32>
    %499 = tpu.matmul %496, %498, %cst_138 {dimension_numbers = #tpu.dot_dimension_numbers<[1], [0], [0], [1], [0, 0, 1, 1], [], []>} : vector<128x128xbf16>, vector<128x8xbf16>, vector<128x8xf32> -> vector<128x8xf32>
    %500 = vector.broadcast %495 : vector<128x1xf32> to vector<128x8xf32>
    %501 = arith.mulf %499, %500 : vector<128x8xf32>
    %c0_139 = arith.constant 0 : index
    %c8_140 = arith.constant 8 : index
    %502 = vector.load %arg12[%c0_139, %c8_140] : memref<1x16xf32, #tpu.memory_space<vmem>>, vector<1x8xf32>
    %503 = vector.broadcast %502 : vector<1x8xf32> to vector<128x8xf32>
    %504 = arith.addf %501, %503 : vector<128x8xf32>
    %cst_141 = arith.constant 0.000000e+00 : f32
    %505 = vector.broadcast %cst_141 : f32 to vector<128x8xf32>
    %506 = arith.maximumf %504, %505 : vector<128x8xf32>
    %507 = arith.truncf %506 : vector<128x8xf32> to vector<128x8xbf16>
    %c8_142 = arith.constant 8 : index
    %c0_143 = arith.constant 0 : index
    %508 = vector.load %arg13[%c8_142, %c0_143] : memref<16x1xbf16, #tpu.memory_space<vmem>>, vector<8x1xbf16>
    %cst_144 = arith.constant dense<0.000000e+00> : vector<128x1xf32>
    %509 = tpu.matmul %507, %508, %cst_144 {dimension_numbers = #tpu.dot_dimension_numbers<[1], [0], [0], [1], [0, 0, 1, 1], [], []>} : vector<128x8xbf16>, vector<8x1xbf16>, vector<128x1xf32> -> vector<128x1xf32>
    %510 = arith.addf %391, %509 : vector<128x1xf32>
    %c0_145 = arith.constant 0 : index
    %511 = memref.load %arg14[%c0_145] : memref<1xf32, #tpu.memory_space<smem>>
    %512 = vector.broadcast %511 : f32 to vector<128x1xf32>
    %513 = arith.addf %510, %512 : vector<128x1xf32>
    %514 = tpu.concatenate %7, %258, %513 in 1 : vector<128x1xf32>, vector<128x1xf32>, vector<128x1xf32> -> vector<128x3xf32>
    %515 = tpu.transpose %514, [1, 0] : vector<128x3xf32> -> vector<3x128xf32>
    %c0_146 = arith.constant 0 : index
    %c0_147 = arith.constant 0 : index
    %c0_148 = arith.constant 0 : index
    %516 = vector.load %arg15[%c0_146, %c0_147, %c0_148] : memref<1x3x128xf32, #tpu.memory_space<vmem>>, vector<1x3x128xf32>
    %517 = vector.shape_cast %516 : vector<1x3x128xf32> to vector<3x128xf32>
    %518 = vector.shape_cast %515 : vector<3x128xf32> to vector<1x3x128xf32>
    tpu.vector_store %arg15[%c0_146, %c0_147, %c0_148], %518 {strides = array<i32>} : memref<1x3x128xf32, #tpu.memory_space<vmem>>, vector<1x3x128xf32>,
    return
  }
  func.func @transform_0(%arg0: i32) -> (i32, i32) {
    %c0_i32 = arith.constant 0 : i32
    %c0_i32_0 = arith.constant 0 : i32
    return %arg0, %c0_i32 : i32, i32
  }
  func.func @transform_1(%arg0: i32) -> (i32, i32, i32) {
    %c0_i32 = arith.constant 0 : i32
    %c0_i32_0 = arith.constant 0 : i32
    %c0_i32_1 = arith.constant 0 : i32
    return %arg0, %c0_i32, %c0_i32_0 : i32, i32, i32
  }
  func.func @transform_2(%arg0: i32) -> (i32, i32) {
    %c0_i32 = arith.constant 0 : i32
    %c0_i32_0 = arith.constant 0 : i32
    %c0_i32_1 = arith.constant 0 : i32
    return %c0_i32, %c0_i32_0 : i32, i32
  }
  func.func @transform_3(%arg0: i32) -> (i32, i32) {
    %c0_i32 = arith.constant 0 : i32
    %c0_i32_0 = arith.constant 0 : i32
    %c0_i32_1 = arith.constant 0 : i32
    return %c0_i32, %c0_i32_0 : i32, i32
  }
  func.func @transform_4(%arg0: i32) -> (i32, i32) {
    %c0_i32 = arith.constant 0 : i32
    %c0_i32_0 = arith.constant 0 : i32
    %c0_i32_1 = arith.constant 0 : i32
    return %c0_i32, %c0_i32_0 : i32, i32
  }
  func.func @transform_5(%arg0: i32) -> (i32, i32) {
    %c0_i32 = arith.constant 0 : i32
    %c0_i32_0 = arith.constant 0 : i32
    %c0_i32_1 = arith.constant 0 : i32
    return %c0_i32, %c0_i32_0 : i32, i32
  }
  func.func @transform_6(%arg0: i32) -> (i32, i32) {
    %c0_i32 = arith.constant 0 : i32
    %c0_i32_0 = arith.constant 0 : i32
    %c0_i32_1 = arith.constant 0 : i32
    return %c0_i32, %c0_i32_0 : i32, i32
  }
  func.func @transform_7(%arg0: i32) -> i32 {
    %c0_i32 = arith.constant 0 : i32
    %c0_i32_0 = arith.constant 0 : i32
    return %c0_i32 : i32
  }
  func.func @transform_8(%arg0: i32) -> (i32, i32) {
    %c0_i32 = arith.constant 0 : i32
    %c0_i32_0 = arith.constant 0 : i32
    %c0_i32_1 = arith.constant 0 : i32
    return %c0_i32, %c0_i32_0 : i32, i32
  }
  func.func @transform_9(%arg0: i32) -> (i32, i32) {
    %c0_i32 = arith.constant 0 : i32
    %c0_i32_0 = arith.constant 0 : i32
    %c0_i32_1 = arith.constant 0 : i32
    return %c0_i32, %c0_i32_0 : i32, i32
  }
  func.func @transform_10(%arg0: i32) -> (i32, i32) {
    %c0_i32 = arith.constant 0 : i32
    %c0_i32_0 = arith.constant 0 : i32
    %c0_i32_1 = arith.constant 0 : i32
    return %c0_i32, %c0_i32_0 : i32, i32
  }
  func.func @transform_11(%arg0: i32) -> (i32, i32) {
    %c0_i32 = arith.constant 0 : i32
    %c0_i32_0 = arith.constant 0 : i32
    %c0_i32_1 = arith.constant 0 : i32
    return %c0_i32, %c0_i32_0 : i32, i32
  }
  func.func @transform_12(%arg0: i32) -> (i32, i32) {
    %c0_i32 = arith.constant 0 : i32
    %c0_i32_0 = arith.constant 0 : i32
    %c0_i32_1 = arith.constant 0 : i32
    return %c0_i32, %c0_i32_0 : i32, i32
  }
  func.func @transform_13(%arg0: i32) -> i32 {
    %c0_i32 = arith.constant 0 : i32
    %c0_i32_0 = arith.constant 0 : i32
    return %c0_i32 : i32
  }
  func.func @transform_14(%arg0: i32) -> (i32, i32, i32) {
    %c0_i32 = arith.constant 0 : i32
    %c0_i32_0 = arith.constant 0 : i32
    %c0_i32_1 = arith.constant 0 : i32
    return %arg0, %c0_i32, %c0_i32_0 : i32, i32, i32
  }
}

</mosaic_0001>

<llo_original>
// kernel: tpu_custom_call.1
$region0: #{tpu_custom_call.1}
  #allocation0 [shape = 'u32[]', space=smem, size = 0x4, offset = 0x4, fixed_abs, tag = 'smem constant byte address 0x4 - core index']
  #allocation1 [shape = 'u32[144,128]{1,0:T(1,128)}', space=vmem, size = 0x12000, scoped, tag = 'internal scratch']
  #allocation2 [shape = 'f32[1]{0:T(128)S(6)}', space=smem, size = 0x200, scoped, tag = 'scoped memory for tpu_custom_call.1']
  #allocation3 [shape = 'f32[1]{0:T(128)S(6)}', space=smem, size = 0x200, scoped, tag = 'scoped memory for tpu_custom_call.1']
  %s0 = inlined_call_operand.vmem [shape: f32[256,16], index: 0, kind: input, shape index: {}]
  %s1 = inlined_call_operand.vmem [shape: bf16[2,128,128], index: 1, kind: input, shape index: {}]
  %s2 = inlined_call_operand.vmem [shape: bf16[16,32], index: 2, kind: input, shape index: {}]
  %s3 = inlined_call_operand.vmem [shape: f32[1,32], index: 3, kind: input, shape index: {}]
  %s4 = inlined_call_operand.vmem [shape: f32[2,8], index: 4, kind: input, shape index: {}]
  %s5 = inlined_call_operand.vmem [shape: f32[1,16], index: 5, kind: input, shape index: {}]
  %s6 = inlined_call_operand.vmem [shape: bf16[16,1], index: 6, kind: input, shape index: {}]
  %s7 = inlined_call_operand.<no memory space> [shape: f32[1], index: 7, kind: input, shape index: {}]
  %s8 = inlined_call_operand.vmem [shape: bf16[16,32], index: 8, kind: input, shape index: {}]
  %s9 = inlined_call_operand.vmem [shape: f32[1,32], index: 9, kind: input, shape index: {}]
  %s10 = inlined_call_operand.vmem [shape: f32[2,8], index: 10, kind: input, shape index: {}]
  %s11 = inlined_call_operand.vmem [shape: f32[1,16], index: 11, kind: input, shape index: {}]
  %s12 = inlined_call_operand.vmem [shape: bf16[16,1], index: 12, kind: input, shape index: {}]
  %s13 = inlined_call_operand.<no memory space> [shape: f32[1], index: 13, kind: input, shape index: {}]
  %s14 = inlined_call_operand.vmem [shape: f32[2,3,128], index: 14, kind: output, shape index: {}]
  %s15 = sld [smem:[#allocation0]]
  $region97: #{tpu_custom_call.1} parent=0
    _
  %s17 = ssub.s32 1, %s15
  %s18 = scalar_select 0, %s17, %s15
  %19 = sst [smem:[#allocation2]] %s7
  %20 = sst [smem:[#allocation3]] %s13
  $region1: #{tpu_custom_call.1} parent=0
    #allocation4 [shape = 'u8[1024]{0}', space=smem, size = 0x400, scoped, tag = 'input window, operand 4, single buffered']
    #allocation5 [shape = 's32[2]{0}', space=sflag, size = 0x8, scoped, tag = 'scoped memory for tpu_custom_call.1']
    #allocation6 [shape = 'u8[1024]{0}', space=smem, size = 0x400, scoped, tag = 'input window, operand 10, single buffered']
    #allocation7 [shape = 's32[1]{0}', space=sflag, size = 0x4, scoped, tag = 'scoped memory for tpu_custom_call.1']
    %21 = vsyncpa [#allocation5], 0
    %22 = vsyncpa [#allocation7], 0
    loop: start=0, step=1, limit=4
    $region2: #{tpu_custom_call.1} parent=1 // loop_pre_header
      _
    $region3: #{tpu_custom_call.1} parent=1 // loop_header
      %s24 = sphi 0, %s28
      %p25 = scmp.ge.s32.totalorder %s24, 4
      %s34 = sphi 0, %s36
      %s37 = sphi 0, %s34
      %s38 = sphi 0, %s37
      %s54 = sphi 0, %s38
      %s60 = sphi 0, %s62
      %s63 = sphi 0, %s60
      %s64 = sphi 0, %s63
      %s80 = sphi 0, %s64
      %s84 = sphi 0, %s84
      %s86 = sphi 0, %s84
      %s87 = sphi 0, %s86
      %s101 = sphi 0, %s87
      %s105 = sphi 0, %s105
      %s107 = sphi 0, %s105
      %s108 = sphi 0, %s107
      %s122 = sphi 0, %s108
      %s126 = sphi 0, %s126
      %s128 = sphi 0, %s126
      %s129 = sphi 0, %s128
      %s143 = sphi 0, %s129
      %s147 = sphi 0, %s147
      %s149 = sphi 0, %s147
      %s150 = sphi 0, %s149
      %s164 = sphi 0, %s150
      %s168 = sphi 0, %s168
      %s170 = sphi 0, %s168
      %s171 = sphi 0, %s170
      %s185 = sphi 0, %s171
      %s189 = sphi 0, %s189
      %s191 = sphi 0, %s189
      %s192 = sphi 0, %s191
      %s206 = sphi 0, %s192
      %s210 = sphi 0, %s210
      %s212 = sphi 0, %s210
      %s213 = sphi 0, %s212
      %s227 = sphi 0, %s213
      %s231 = sphi 0, %s231
      %s233 = sphi 0, %s231
      %s234 = sphi 0, %s233
      %s248 = sphi 0, %s234
      %s252 = sphi 0, %s252
      %s254 = sphi 0, %s252
      %s255 = sphi 0, %s254
      %s269 = sphi 0, %s255
      %s273 = sphi 0, %s273
      %s275 = sphi 0, %s273
      %s276 = sphi 0, %s275
      %s290 = sphi 0, %s276
      %s294 = sphi 0, %s294
      %s296 = sphi 0, %s294
      %s297 = sphi 0, %s296
      %s311 = sphi 0, %s297
      %s315 = sphi 0, %s315
      %s317 = sphi 0, %s315
      %s318 = sphi 0, %s317
      %s332 = sphi 0, %s318
      %s338 = sphi 0, %s340
      %s341 = sphi 0, %s338
      %s342 = sphi 0, %s341
      %s358 = sphi 0, %s342
    $region4: #{tpu_custom_call.1} parent=1 // loop_header_branch
      %27 = sbr.rel (%p25) target = $region8
    $region5: #{tpu_custom_call.1} parent=1 // loop_body
      %s29 = ssub.s32 %s24, 1
      %s30 = ssub.s32 %s24, 2
      %s31 = sadd.s32 %s24, 1
      %s32 = ssub.s32 %s24, %s31
      %p33 = scmp.eq.s32.totalorder %s32, 0
      %s35 = sadd.s32 %s34, 1
      %s36 = scalar_select %p33, %s34, %s35
      %p39 = pneg %p33
      %p40 = scmp.eq.s32.totalorder %s24, 1
      %p41 = por %p39, %p40
      %p42 = scmp.ne.s32.totalorder %s34, %s37
      %p43 = scmp.eq.s32.totalorder %s24, 0
      %p44 = por %p42, %p43
      %p45 = scmp.ne.s32.totalorder %s34, %s37
      %p46 = scmp.eq.s32.totalorder %s29, 1
      %p47 = por %p45, %p46
      %p48 = scmp.ne.s32.totalorder %s37, %s38
      %p49 = scmp.eq.s32.totalorder %s29, 0
      %p50 = por %p48, %p49
      %p51 = scmp.ne.s32.totalorder %s37, %s38
      %p52 = scmp.eq.s32.totalorder %s30, 1
      %p53 = por %p51, %p52
      %p55 = scmp.ne.s32.totalorder %s38, %s54
      %p56 = scmp.eq.s32.totalorder %s30, 0
      %p57 = por %p55, %p56
      %s58 = ssub.s32 %s24, %s31
      %p59 = scmp.eq.s32.totalorder %s58, 0
      %s61 = sadd.s32 %s60, 1
      %s62 = scalar_select %p59, %s60, %s61
      %p65 = pneg %p59
      %p66 = scmp.eq.s32.totalorder %s24, 1
      %p67 = por %p65, %p66
      %p68 = scmp.ne.s32.totalorder %s60, %s63
      %p69 = scmp.eq.s32.totalorder %s24, 0
      %p70 = por %p68, %p69
      %p71 = scmp.ne.s32.totalorder %s60, %s63
      %p72 = scmp.eq.s32.totalorder %s29, 1
      %p73 = por %p71, %p72
      %p74 = scmp.ne.s32.totalorder %s63, %s64
      %p75 = scmp.eq.s32.totalorder %s29, 0
      %p76 = por %p74, %p75
      %p77 = scmp.ne.s32.totalorder %s63, %s64
      %p78 = scmp.eq.s32.totalorder %s30, 1
      %p79 = por %p77, %p78
      %p81 = scmp.ne.s32.totalorder %s64, %s80
      %p82 = scmp.eq.s32.totalorder %s30, 0
      %p83 = por %p81, %p82
      %s85 = sadd.s32 %s84, 1
      %p88 = scmp.eq.s32.totalorder %s24, 1
      %p89 = scmp.ne.s32.totalorder %s84, %s86
      %p90 = scmp.eq.s32.totalorder %s24, 0
      %p91 = por %p89, %p90
      %p92 = scmp.ne.s32.totalorder %s84, %s86
      %p93 = scmp.eq.s32.totalorder %s29, 1
      %p94 = por %p92, %p93
      %p95 = scmp.ne.s32.totalorder %s86, %s87
      %p96 = scmp.eq.s32.totalorder %s29, 0
      %p97 = por %p95, %p96
      %p98 = scmp.ne.s32.totalorder %s86, %s87
      %p99 = scmp.eq.s32.totalorder %s30, 1
      %p100 = por %p98, %p99
      %p102 = scmp.ne.s32.totalorder %s87, %s101
      %p103 = scmp.eq.s32.totalorder %s30, 0
      %p104 = por %p102, %p103
      %s106 = sadd.s32 %s105, 1
      %p109 = scmp.eq.s32.totalorder %s24, 1
      %p110 = scmp.ne.s32.totalorder %s105, %s107
      %p111 = scmp.eq.s32.totalorder %s24, 0
      %p112 = por %p110, %p111
      %p113 = scmp.ne.s32.totalorder %s105, %s107
      %p114 = scmp.eq.s32.totalorder %s29, 1
      %p115 = por %p113, %p114
      %p116 = scmp.ne.s32.totalorder %s107, %s108
      %p117 = scmp.eq.s32.totalorder %s29, 0
      %p118 = por %p116, %p117
      %p119 = scmp.ne.s32.totalorder %s107, %s108
      %p120 = scmp.eq.s32.totalorder %s30, 1
      %p121 = por %p119, %p120
      %p123 = scmp.ne.s32.totalorder %s108, %s122
      %p124 = scmp.eq.s32.totalorder %s30, 0
      %p125 = por %p123, %p124
      %s127 = sadd.s32 %s126, 1
      %p130 = scmp.eq.s32.totalorder %s24, 1
      %p131 = scmp.ne.s32.totalorder %s126, %s128
      %p132 = scmp.eq.s32.totalorder %s24, 0
      %p133 = por %p131, %p132
      %p134 = scmp.ne.s32.totalorder %s126, %s128
      %p135 = scmp.eq.s32.totalorder %s29, 1
      %p136 = por %p134, %p135
      %p137 = scmp.ne.s32.totalorder %s128, %s129
      %p138 = scmp.eq.s32.totalorder %s29, 0
      %p139 = por %p137, %p138
      %p140 = scmp.ne.s32.totalorder %s128, %s129
      %p141 = scmp.eq.s32.totalorder %s30, 1
      %p142 = por %p140, %p141
      %p144 = scmp.ne.s32.totalorder %s129, %s143
      %p145 = scmp.eq.s32.totalorder %s30, 0
      %p146 = por %p144, %p145
      %s148 = sadd.s32 %s147, 1
      %p151 = scmp.eq.s32.totalorder %s24, 1
      %p152 = scmp.ne.s32.totalorder %s147, %s149
      %p153 = scmp.eq.s32.totalorder %s24, 0
      %p154 = por %p152, %p153
      %p155 = scmp.ne.s32.totalorder %s147, %s149
      %p156 = scmp.eq.s32.totalorder %s29, 1
      %p157 = por %p155, %p156
      %p158 = scmp.ne.s32.totalorder %s149, %s150
      %p159 = scmp.eq.s32.totalorder %s29, 0
      %p160 = por %p158, %p159
      %p161 = scmp.ne.s32.totalorder %s149, %s150
      %p162 = scmp.eq.s32.totalorder %s30, 1
      %p163 = por %p161, %p162
      %p165 = scmp.ne.s32.totalorder %s150, %s164
      %p166 = scmp.eq.s32.totalorder %s30, 0
      %p167 = por %p165, %p166
      %s169 = sadd.s32 %s168, 1
      %p172 = scmp.eq.s32.totalorder %s24, 1
      %p173 = scmp.ne.s32.totalorder %s168, %s170
      %p174 = scmp.eq.s32.totalorder %s24, 0
      %p175 = por %p173, %p174
      %p176 = scmp.ne.s32.totalorder %s168, %s170
      %p177 = scmp.eq.s32.totalorder %s29, 1
      %p178 = por %p176, %p177
      %p179 = scmp.ne.s32.totalorder %s170, %s171
      %p180 = scmp.eq.s32.totalorder %s29, 0
      %p181 = por %p179, %p180
      %p182 = scmp.ne.s32.totalorder %s170, %s171
      %p183 = scmp.eq.s32.totalorder %s30, 1
      %p184 = por %p182, %p183
      %p186 = scmp.ne.s32.totalorder %s171, %s185
      %p187 = scmp.eq.s32.totalorder %s30, 0
      %p188 = por %p186, %p187
      %s190 = sadd.s32 %s189, 1
      %p193 = scmp.eq.s32.totalorder %s24, 1
      %p194 = scmp.ne.s32.totalorder %s189, %s191
      %p195 = scmp.eq.s32.totalorder %s24, 0
      %p196 = por %p194, %p195
      %p197 = scmp.ne.s32.totalorder %s189, %s191
      %p198 = scmp.eq.s32.totalorder %s29, 1
      %p199 = por %p197, %p198
      %p200 = scmp.ne.s32.totalorder %s191, %s192
      %p201 = scmp.eq.s32.totalorder %s29, 0
      %p202 = por %p200, %p201
      %p203 = scmp.ne.s32.totalorder %s191, %s192
      %p204 = scmp.eq.s32.totalorder %s30, 1
      %p205 = por %p203, %p204
      %p207 = scmp.ne.s32.totalorder %s192, %s206
      %p208 = scmp.eq.s32.totalorder %s30, 0
      %p209 = por %p207, %p208
      %s211 = sadd.s32 %s210, 1
      %p214 = scmp.eq.s32.totalorder %s24, 1
      %p215 = scmp.ne.s32.totalorder %s210, %s212
      %p216 = scmp.eq.s32.totalorder %s24, 0
      %p217 = por %p215, %p216
      %p218 = scmp.ne.s32.totalorder %s210, %s212
      %p219 = scmp.eq.s32.totalorder %s29, 1
      %p220 = por %p218, %p219
      %p221 = scmp.ne.s32.totalorder %s212, %s213
      %p222 = scmp.eq.s32.totalorder %s29, 0
      %p223 = por %p221, %p222
      %p224 = scmp.ne.s32.totalorder %s212, %s213
      %p225 = scmp.eq.s32.totalorder %s30, 1
      %p226 = por %p224, %p225
      %p228 = scmp.ne.s32.totalorder %s213, %s227
      %p229 = scmp.eq.s32.totalorder %s30, 0
      %p230 = por %p228, %p229
      %s232 = sadd.s32 %s231, 1
      %p235 = scmp.eq.s32.totalorder %s24, 1
      %p236 = scmp.ne.s32.totalorder %s231, %s233
      %p237 = scmp.eq.s32.totalorder %s24, 0
      %p238 = por %p236, %p237
      %p239 = scmp.ne.s32.totalorder %s231, %s233
      %p240 = scmp.eq.s32.totalorder %s29, 1
      %p241 = por %p239, %p240
      %p242 = scmp.ne.s32.totalorder %s233, %s234
      %p243 = scmp.eq.s32.totalorder %s29, 0
      %p244 = por %p242, %p243
      %p245 = scmp.ne.s32.totalorder %s233, %s234
      %p246 = scmp.eq.s32.totalorder %s30, 1
      %p247 = por %p245, %p246
      %p249 = scmp.ne.s32.totalorder %s234, %s248
      %p250 = scmp.eq.s32.totalorder %s30, 0
      %p251 = por %p249, %p250
      %s253 = sadd.s32 %s252, 1
      %p256 = scmp.eq.s32.totalorder %s24, 1
      %p257 = scmp.ne.s32.totalorder %s252, %s254
      %p258 = scmp.eq.s32.totalorder %s24, 0
      %p259 = por %p257, %p258
      %p260 = scmp.ne.s32.totalorder %s252, %s254
      %p261 = scmp.eq.s32.totalorder %s29, 1
      %p262 = por %p260, %p261
      %p263 = scmp.ne.s32.totalorder %s254, %s255
      %p264 = scmp.eq.s32.totalorder %s29, 0
      %p265 = por %p263, %p264
      %p266 = scmp.ne.s32.totalorder %s254, %s255
      %p267 = scmp.eq.s32.totalorder %s30, 1
      %p268 = por %p266, %p267
      %p270 = scmp.ne.s32.totalorder %s255, %s269
      %p271 = scmp.eq.s32.totalorder %s30, 0
      %p272 = por %p270, %p271
      %s274 = sadd.s32 %s273, 1
      %p277 = scmp.eq.s32.totalorder %s24, 1
      %p278 = scmp.ne.s32.totalorder %s273, %s275
      %p279 = scmp.eq.s32.totalorder %s24, 0
      %p280 = por %p278, %p279
      %p281 = scmp.ne.s32.totalorder %s273, %s275
      %p282 = scmp.eq.s32.totalorder %s29, 1
      %p283 = por %p281, %p282
      %p284 = scmp.ne.s32.totalorder %s275, %s276
      %p285 = scmp.eq.s32.totalorder %s29, 0
      %p286 = por %p284, %p285
      %p287 = scmp.ne.s32.totalorder %s275, %s276
      %p288 = scmp.eq.s32.totalorder %s30, 1
      %p289 = por %p287, %p288
      %p291 = scmp.ne.s32.totalorder %s276, %s290
      %p292 = scmp.eq.s32.totalorder %s30, 0
      %p293 = por %p291, %p292
      %s295 = sadd.s32 %s294, 1
      %p298 = scmp.eq.s32.totalorder %s24, 1
      %p299 = scmp.ne.s32.totalorder %s294, %s296
      %p300 = scmp.eq.s32.totalorder %s24, 0
      %p301 = por %p299, %p300
      %p302 = scmp.ne.s32.totalorder %s294, %s296
      %p303 = scmp.eq.s32.totalorder %s29, 1
      %p304 = por %p302, %p303
      %p305 = scmp.ne.s32.totalorder %s296, %s297
      %p306 = scmp.eq.s32.totalorder %s29, 0
      %p307 = por %p305, %p306
      %p308 = scmp.ne.s32.totalorder %s296, %s297
      %p309 = scmp.eq.s32.totalorder %s30, 1
      %p310 = por %p308, %p309
      %p312 = scmp.ne.s32.totalorder %s297, %s311
      %p313 = scmp.eq.s32.totalorder %s30, 0
      %p314 = por %p312, %p313
      %s316 = sadd.s32 %s315, 1
      %p319 = scmp.eq.s32.totalorder %s24, 1
      %p320 = scmp.ne.s32.totalorder %s315, %s317
      %p321 = scmp.eq.s32.totalorder %s24, 0
      %p322 = por %p320, %p321
      %p323 = scmp.ne.s32.totalorder %s315, %s317
      %p324 = scmp.eq.s32.totalorder %s29, 1
      %p325 = por %p323, %p324
      %p326 = scmp.ne.s32.totalorder %s317, %s318
      %p327 = scmp.eq.s32.totalorder %s29, 0
      %p328 = por %p326, %p327
      %p329 = scmp.ne.s32.totalorder %s317, %s318
      %p330 = scmp.eq.s32.totalorder %s30, 1
      %p331 = por %p329, %p330
      %p333 = scmp.ne.s32.totalorder %s318, %s332
      %p334 = scmp.eq.s32.totalorder %s30, 0
      %p335 = por %p333, %p334
      %s336 = ssub.s32 %s24, %s31
      %p337 = scmp.eq.s32.totalorder %s336, 0
      %s339 = sadd.s32 %s338, 1
      %s340 = scalar_select %p337, %s338, %s339
      %p343 = pneg %p337
      %p344 = scmp.eq.s32.totalorder %s24, 1
      %p345 = por %p343, %p344
      %p346 = scmp.ne.s32.totalorder %s338, %s341
      %p347 = scmp.eq.s32.totalorder %s24, 0
      %p348 = por %p346, %p347
      %p349 = scmp.ne.s32.totalorder %s338, %s341
      %p350 = scmp.eq.s32.totalorder %s29, 1
      %p351 = por %p349, %p350
      %p352 = scmp.ne.s32.totalorder %s341, %s342
      %p353 = scmp.eq.s32.totalorder %s29, 0
      %p354 = por %p352, %p353
      %p355 = scmp.ne.s32.totalorder %s341, %s342
      %p356 = scmp.eq.s32.totalorder %s30, 1
      %p357 = por %p355, %p356
      %p359 = scmp.ne.s32.totalorder %s342, %s358
      %p360 = scmp.eq.s32.totalorder %s30, 0
      %p361 = por %p359, %p360
      %p362 = scmp.le.s32.totalorder 1, %s24
      %p363 = scmp.lt.s32.totalorder %s24, 3
      %p364 = pnand %p362, %p363
      %p365 = pneg %p364
      // Predicated region
      $region9: #{tpu_custom_call.1} parent=5 // pred_check
        _
      $region10: #{tpu_custom_call.1} parent=5 // pred_check_branch
        %367 = sbr.rel (%p364) target = $region12
      $region11: #{tpu_custom_call.1} parent=5 // pred_region
        %s368 = ssub.s32 %s24, 1
        // Predicated region
        $region13: #{tpu_custom_call.1} parent=11 // pred_check
          %p369 = pneg %p97
        $region14: #{tpu_custom_call.1} parent=11 // pred_check_branch
          %371 = sbr.rel (%p369) target = $region16
        $region15: #{tpu_custom_call.1} parent=11 // pred_region
          _
        $region16: #{tpu_custom_call.1} parent=11 // pred_fallthru
          _
        // Predicated region
        $region17: #{tpu_custom_call.1} parent=11 // pred_check
          %p372 = pneg %p118
        $region18: #{tpu_custom_call.1} parent=11 // pred_check_branch
          %374 = sbr.rel (%p372) target = $region20
        $region19: #{tpu_custom_call.1} parent=11 // pred_region
          _
        $region20: #{tpu_custom_call.1} parent=11 // pred_fallthru
          _
        // Predicated region
        $region21: #{tpu_custom_call.1} parent=11 // pred_check
          %p375 = pneg %p139
        $region22: #{tpu_custom_call.1} parent=11 // pred_check_branch
          %377 = sbr.rel (%p375) target = $region24
        $region23: #{tpu_custom_call.1} parent=11 // pred_region
          %s379 = ssub.s32 32, 32
          %380 = vsyncadd [#allocation5], %s379
          %s382 = sshll.u32 %s4, 4
          %s383 = int_to_ptr.vmem [resolvable:$true] %s382
          %385 = dma.vmem_to_smem %s383, 32, [#allocation4], [#allocation5]
        $region24: #{tpu_custom_call.1} parent=11 // pred_fallthru
          _
        // Predicated region
        $region25: #{tpu_custom_call.1} parent=11 // pred_check
          %p386 = pneg %p160
        $region26: #{tpu_custom_call.1} parent=11 // pred_check_branch
          %388 = sbr.rel (%p386) target = $region28
        $region27: #{tpu_custom_call.1} parent=11 // pred_region
          _
        $region28: #{tpu_custom_call.1} parent=11 // pred_fallthru
          _
        // Predicated region
        $region29: #{tpu_custom_call.1} parent=11 // pred_check
          %p389 = pneg %p181
        $region30: #{tpu_custom_call.1} parent=11 // pred_check_branch
          %391 = sbr.rel (%p389) target = $region32
        $region31: #{tpu_custom_call.1} parent=11 // pred_region
          _
        $region32: #{tpu_custom_call.1} parent=11 // pred_fallthru
          _
        // Predicated region
        $region33: #{tpu_custom_call.1} parent=11 // pred_check
          %p392 = pneg %p202
        $region34: #{tpu_custom_call.1} parent=11 // pred_check_branch
          %394 = sbr.rel (%p392) target = $region36
        $region35: #{tpu_custom_call.1} parent=11 // pred_region
          _
        $region36: #{tpu_custom_call.1} parent=11 // pred_fallthru
          _
        // Predicated region
        $region37: #{tpu_custom_call.1} parent=11 // pred_check
          %p395 = pneg %p223
        $region38: #{tpu_custom_call.1} parent=11 // pred_check_branch
          %397 = sbr.rel (%p395) target = $region40
        $region39: #{tpu_custom_call.1} parent=11 // pred_region
          _
        $region40: #{tpu_custom_call.1} parent=11 // pred_fallthru
          _
        // Predicated region
        $region41: #{tpu_custom_call.1} parent=11 // pred_check
          %p398 = pneg %p244
        $region42: #{tpu_custom_call.1} parent=11 // pred_check_branch
          %400 = sbr.rel (%p398) target = $region44
        $region43: #{tpu_custom_call.1} parent=11 // pred_region
          _
        $region44: #{tpu_custom_call.1} parent=11 // pred_fallthru
          _
        // Predicated region
        $region45: #{tpu_custom_call.1} parent=11 // pred_check
          %p401 = pneg %p265
        $region46: #{tpu_custom_call.1} parent=11 // pred_check_branch
          %403 = sbr.rel (%p401) target = $region48
        $region47: #{tpu_custom_call.1} parent=11 // pred_region
          %s405 = ssub.s32 32, 32
          %406 = vsyncadd [#allocation7], %s405
          %s408 = sshll.u32 %s10, 4
          %s409 = int_to_ptr.vmem [resolvable:$true] %s408
          %411 = dma.vmem_to_smem %s409, 32, [#allocation6], [#allocation7]
        $region48: #{tpu_custom_call.1} parent=11 // pred_fallthru
          _
        // Predicated region
        $region49: #{tpu_custom_call.1} parent=11 // pred_check
          %p412 = pneg %p286
        $region50: #{tpu_custom_call.1} parent=11 // pred_check_branch
          %414 = sbr.rel (%p412) target = $region52
        $region51: #{tpu_custom_call.1} parent=11 // pred_region
          _
        $region52: #{tpu_custom_call.1} parent=11 // pred_fallthru
          _
        // Predicated region
        $region53: #{tpu_custom_call.1} parent=11 // pred_check
          %p415 = pneg %p307
        $region54: #{tpu_custom_call.1} parent=11 // pred_check_branch
          %417 = sbr.rel (%p415) target = $region56
        $region55: #{tpu_custom_call.1} parent=11 // pred_region
          _
        $region56: #{tpu_custom_call.1} parent=11 // pred_fallthru
          _
        // Predicated region
        $region57: #{tpu_custom_call.1} parent=11 // pred_check
          %p418 = pneg %p328
        $region58: #{tpu_custom_call.1} parent=11 // pred_check_branch
          %420 = sbr.rel (%p418) target = $region60
        $region59: #{tpu_custom_call.1} parent=11 // pred_region
          _
        $region60: #{tpu_custom_call.1} parent=11 // pred_fallthru
          _
      $region12: #{tpu_custom_call.1} parent=5 // pred_fallthru
        _
      %p421 = scmp.lt.s32.totalorder %s24, 2
      // Predicated region
      $region61: #{tpu_custom_call.1} parent=5 // pred_check
        %p422 = pneg %p421
      $region62: #{tpu_custom_call.1} parent=5 // pred_check_branch
        %424 = sbr.rel (%p422) target = $region64
      $region63: #{tpu_custom_call.1} parent=5 // pred_region
        // Predicated region
        $region65: #{tpu_custom_call.1} parent=63 // pred_check
          %p425 = pneg %p44
        $region66: #{tpu_custom_call.1} parent=63 // pred_check_branch
          %427 = sbr.rel (%p425) target = $region68
        $region67: #{tpu_custom_call.1} parent=63 // pred_region
          %s428 = smul.u32 16, %s24
          %p429 = scmp.lt.s32.totalorder %s428, 31
          %s430 = scalar_select %p429, %s428, 31
          %s431 = smul.addr %s430, 8
          %s432 = scalar_lea.vmem %s0, %s431
          %s433 = smul.u32 16, %s24
        $region68: #{tpu_custom_call.1} parent=63 // pred_fallthru
          _
        // Predicated region
        $region69: #{tpu_custom_call.1} parent=63 // pred_check
          %p434 = pneg %p70
        $region70: #{tpu_custom_call.1} parent=63 // pred_check_branch
          %436 = sbr.rel (%p434) target = $region72
        $region71: #{tpu_custom_call.1} parent=63 // pred_region
          %p437 = scmp.lt.s32.totalorder %s24, 1
          %s438 = scalar_select %p437, %s24, 1
          %s439 = smul.addr %s438, 16
          %s440 = smul.addr %s439, 4
          %s441 = scalar_lea.vmem %s1, %s440
        $region72: #{tpu_custom_call.1} parent=63 // pred_fallthru
          _
      $region64: #{tpu_custom_call.1} parent=5 // pred_fallthru
        _
      %p442 = scmp.le.s32.totalorder 1, %s24
      %p443 = scmp.lt.s32.totalorder %s24, 3
      %p444 = pnand %p442, %p443
      %p445 = pneg %p444
      // Predicated region
      $region73: #{tpu_custom_call.1} parent=5 // pred_check
        _
      $region74: #{tpu_custom_call.1} parent=5 // pred_check_branch
        %447 = sbr.rel (%p444) target = $region76
      $region75: #{tpu_custom_call.1} parent=5 // pred_region
        %s448 = ssub.s32 %s24, 1
        // Predicated region
        $region77: #{tpu_custom_call.1} parent=75 // pred_check
          %p449 = pneg %p139
        $region78: #{tpu_custom_call.1} parent=75 // pred_check_branch
          %451 = sbr.rel (%p449) target = $region80
        $region79: #{tpu_custom_call.1} parent=75 // pred_region
          %452 = dma.done [#allocation5], 32
        $region80: #{tpu_custom_call.1} parent=75 // pred_fallthru
          _
        // Predicated region
        $region81: #{tpu_custom_call.1} parent=75 // pred_check
          %p453 = pneg %p265
        $region82: #{tpu_custom_call.1} parent=75 // pred_check_branch
          %455 = sbr.rel (%p453) target = $region84
        $region83: #{tpu_custom_call.1} parent=75 // pred_region
          %456 = dma.done [#allocation7], 32
        $region84: #{tpu_custom_call.1} parent=75 // pred_fallthru
          _
        %457 = sfence
        %s458 = smul.u32 16, %s29
        %p459 = scmp.lt.s32.totalorder %s458, 31
        %s460 = scalar_select %p459, %s458, 31
        %s461 = smul.addr %s460, 8
        %s462 = scalar_lea.vmem %s0, %s461
        %p463 = pneg %p50
        %p464 = pneg %p47
        %p465 = scmp.lt.s32.totalorder %s29, 1
        %s466 = scalar_select %p465, %s29, 1
        %s467 = smul.addr %s466, 16
        %s468 = smul.addr %s467, 4
        %s469 = scalar_lea.vmem %s1, %s468
        %p470 = pneg %p76
        %p471 = pneg %p73
        %p472 = pneg %p97
        %p473 = pneg %p94
        %p474 = pneg %p118
        %p475 = pneg %p115
        %p476 = pneg %p139
        %p477 = pneg %p136
        %p478 = pneg %p160
        %p479 = pneg %p157
        %p480 = pneg %p181
        %p481 = pneg %p178
        %p482 = pneg %p202
        %p483 = pneg %p199
        %p484 = pneg %p223
        %p485 = pneg %p220
        %p486 = pneg %p244
        %p487 = pneg %p241
        %p488 = pneg %p265
        %p489 = pneg %p262
        %p490 = pneg %p286
        %p491 = pneg %p283
        %p492 = pneg %p307
        %p493 = pneg %p304
        %p494 = pneg %p328
        %p495 = pneg %p325
        %p496 = pneg %p354
        %p497 = pneg %p351
        %p498 = scmp.lt.s32.totalorder %s29, 1
        %s499 = scalar_select %p498, %s29, 1
        %s500 = smul.addr %s499, 4
        %s501 = scalar_lea.vmem %s14, %s500
        %s502 = smul.u32 16, %s29
        %p503 = scmp.lt.s32.totalorder %s502, 31
        %s504 = scalar_select %p503, %s502, 31
        %s505 = smul.addr %s504, 8
        %s506 = scalar_lea.vmem %s0, %s505
        %s507 = smul.u32 16, %s29
        %p508 = scmp.lt.s32.totalorder %s29, 1
        %s509 = scalar_select %p508, %s29, 1
        %s510 = smul.addr %s509, 16
        %s511 = smul.addr %s510, 4
        %s512 = scalar_lea.vmem %s1, %s511
        %p513 = scmp.lt.s32.totalorder %s29, 1
        %s514 = scalar_select %p513, %s29, 1
        %s515 = smul.addr %s514, 4
        %s516 = scalar_lea.vmem %s14, %s515
        %v518 = vld [vmem:[%s506] sm:$0xff]
        %v519 = vld [vmem:[%s506 + $0x8] sm:$0xff]
        %v520 = vld [vmem:[%s506 + $0x10] sm:$0xff]
        %v521 = vld [vmem:[%s506 + $0x18] sm:$0xff]
        %v522 = vld [vmem:[%s506 + $0x20] sm:$0xff]
        %v523 = vld [vmem:[%s506 + $0x28] sm:$0xff]
        %v524 = vld [vmem:[%s506 + $0x30] sm:$0xff]
        %v525 = vld [vmem:[%s506 + $0x38] sm:$0xff]
        %v526 = vld [vmem:[%s506 + $0x40] sm:$0xff]
        %v527 = vld [vmem:[%s506 + $0x48] sm:$0xff]
        %v528 = vld [vmem:[%s506 + $0x50] sm:$0xff]
        %v529 = vld [vmem:[%s506 + $0x58] sm:$0xff]
        %v530 = vld [vmem:[%s506 + $0x60] sm:$0xff]
        %v531 = vld [vmem:[%s506 + $0x68] sm:$0xff]
        %v532 = vld [vmem:[%s506 + $0x70] sm:$0xff]
        %v533 = vld [vmem:[%s506 + $0x78] sm:$0xff]
        %v534 = vld [vmem:[%s512] sm:$0xf]
        %v535 = vld [vmem:[%s512 + $0x4] sm:$0xf]
        %v536 = vld [vmem:[%s512 + $0x8] sm:$0xf]
        %v537 = vld [vmem:[%s512 + $0xc] sm:$0xf]
        %v538 = vld [vmem:[%s512 + $0x10] sm:$0xf]
        %v539 = vld [vmem:[%s512 + $0x14] sm:$0xf]
        %v540 = vld [vmem:[%s512 + $0x18] sm:$0xf]
        %v541 = vld [vmem:[%s512 + $0x1c] sm:$0xf]
        %v542 = vld [vmem:[%s512 + $0x20] sm:$0xf]
        %v543 = vld [vmem:[%s512 + $0x24] sm:$0xf]
        %v544 = vld [vmem:[%s512 + $0x28] sm:$0xf]
        %v545 = vld [vmem:[%s512 + $0x2c] sm:$0xf]
        %v546 = vld [vmem:[%s512 + $0x30] sm:$0xf]
        %v547 = vld [vmem:[%s512 + $0x34] sm:$0xf]
        %v548 = vld [vmem:[%s512 + $0x38] sm:$0xf]
        %v549 = vld [vmem:[%s512 + $0x3c] sm:$0xf]
        %v550 = vunpack.c.l.bf16 %v534
        %v551 = vunpack.c.l.bf16 %v535
        %v552 = vunpack.c.l.bf16 %v536
        %v553 = vunpack.c.l.bf16 %v537
        %v554 = vunpack.c.l.bf16 %v538
        %v555 = vunpack.c.l.bf16 %v539
        %v556 = vunpack.c.l.bf16 %v540
        %v557 = vunpack.c.l.bf16 %v541
        %v558 = vunpack.c.l.bf16 %v542
        %v559 = vunpack.c.l.bf16 %v543
        %v560 = vunpack.c.l.bf16 %v544
        %v561 = vunpack.c.l.bf16 %v545
        %v562 = vunpack.c.l.bf16 %v546
        %v563 = vunpack.c.l.bf16 %v547
        %v564 = vunpack.c.l.bf16 %v548
        %v565 = vunpack.c.l.bf16 %v549
        %vm566 = vcmask 130048
        %v567 = vsel %vm566, %v518, 0.0
        %568 = vadd.xlane.f32.xlu0 %v567
        %v569 = vpop.xlane.xlu0 %568
        %v570 = vsel %vm566, %v519, 0.0
        %571 = vadd.xlane.f32.xlu0 %v570
        %v572 = vpop.xlane.xlu0 %571
        %v573 = vsel %vm566, %v520, 0.0
        %574 = vadd.xlane.f32.xlu0 %v573
        %v575 = vpop.xlane.xlu0 %574
        %v576 = vsel %vm566, %v521, 0.0
        %577 = vadd.xlane.f32.xlu0 %v576
        %v578 = vpop.xlane.xlu0 %577
        %v579 = vsel %vm566, %v522, 0.0
        %580 = vadd.xlane.f32.xlu0 %v579
        %v581 = vpop.xlane.xlu0 %580
        %v582 = vsel %vm566, %v523, 0.0
        %583 = vadd.xlane.f32.xlu0 %v582
        %v584 = vpop.xlane.xlu0 %583
        %v585 = vsel %vm566, %v524, 0.0
        %586 = vadd.xlane.f32.xlu0 %v585
        %v587 = vpop.xlane.xlu0 %586
        %v588 = vsel %vm566, %v525, 0.0
        %589 = vadd.xlane.f32.xlu0 %v588
        %v590 = vpop.xlane.xlu0 %589
        %v591 = vsel %vm566, %v526, 0.0
        %592 = vadd.xlane.f32.xlu0 %v591
        %v593 = vpop.xlane.xlu0 %592
        %v594 = vsel %vm566, %v527, 0.0
        %595 = vadd.xlane.f32.xlu0 %v594
        %v596 = vpop.xlane.xlu0 %595
        %v597 = vsel %vm566, %v528, 0.0
        %598 = vadd.xlane.f32.xlu0 %v597
        %v599 = vpop.xlane.xlu0 %598
        %v600 = vsel %vm566, %v529, 0.0
        %601 = vadd.xlane.f32.xlu0 %v600
        %v602 = vpop.xlane.xlu0 %601
        %v603 = vsel %vm566, %v530, 0.0
        %604 = vadd.xlane.f32.xlu0 %v603
        %v605 = vpop.xlane.xlu0 %604
        %v606 = vsel %vm566, %v531, 0.0
        %607 = vadd.xlane.f32.xlu0 %v606
        %v608 = vpop.xlane.xlu0 %607
        %v609 = vsel %vm566, %v532, 0.0
        %610 = vadd.xlane.f32.xlu0 %v609
        %v611 = vpop.xlane.xlu0 %610
        %v612 = vsel %vm566, %v533, 0.0
        %613 = vadd.xlane.f32.xlu0 %v612
        %v614 = vpop.xlane.xlu0 %613
        %v615 = vrcp.pop 16.0
        %v616 = vmul.f32 %v569, %v615
        %v617 = vmul.f32 %v572, %v615
        %v618 = vmul.f32 %v575, %v615
        %v619 = vmul.f32 %v578, %v615
        %v620 = vmul.f32 %v581, %v615
        %v621 = vmul.f32 %v584, %v615
        %v622 = vmul.f32 %v587, %v615
        %v623 = vmul.f32 %v590, %v615
        %v624 = vmul.f32 %v593, %v615
        %v625 = vmul.f32 %v596, %v615
        %v626 = vmul.f32 %v599, %v615
        %v627 = vmul.f32 %v602, %v615
        %v628 = vmul.f32 %v605, %v615
        %v629 = vmul.f32 %v608, %v615
        %v630 = vmul.f32 %v611, %v615
        %v631 = vmul.f32 %v614, %v615
        %v632 = vpack.c.bf16 %v519, %v518
        %v633 = vpack.c.bf16 %v521, %v520
        %v634 = vpack.c.bf16 %v523, %v522
        %v635 = vpack.c.bf16 %v525, %v524
        %v636 = vpack.c.bf16 %v527, %v526
        %v637 = vpack.c.bf16 %v529, %v528
        %v638 = vpack.c.bf16 %v531, %v530
        %v639 = vpack.c.bf16 %v533, %v532
        %v640 = vld [vmem:[%s2] sm:$0xf]
        %v641 = vld [vmem:[%s2 + $0x4] sm:$0xf]
        %v642 = vld [vmem:[%s3] sm:$0x1]
        %v644 = vlaneseq
        %v645 = vshrl.u32 %v644, 7
        %v646 = vsub.s32 0, %v645
        %v647 = vrot.slane %v642, %v646
        %v651 = vunpack.c.l.b16 %v640
        %v652 = vunpack.c.l.b16 %v641
        %v653 = vpack.c.b16 %v652, %v651
        %v656 = vsel %vm566, %v632, 0
        %v659 = vsel %vm566, %v633, 0
        %v662 = vsel %vm566, %v634, 0
        %v665 = vsel %vm566, %v635, 0
        %v668 = vsel %vm566, %v636, 0
        %v671 = vsel %vm566, %v637, 0
        %v674 = vsel %vm566, %v638, 0
        %v677 = vsel %vm566, %v639, 0
        %679 = vmatprep.subr.bf16.mxu0 0
        %680 = vmatpush1.bf16.msra.mxu0 %v653
        %681 = vmatprep.subr.bf16.mxu0 0
        %682 = vmatpush1.bf16.msra.mxu0 0
        %683 = vmatprep.subr.bf16.mxu0 0
        %684 = vmatpush1.bf16.msra.mxu0 0
        %685 = vmatprep.subr.bf16.mxu0 0
        %686 = vmatpush1.bf16.msra.mxu0 0
        %687 = vmatprep.subr.bf16.mxu0 0
        %688 = vmatpush1.bf16.msra.mxu0 0
        %689 = vmatprep.subr.bf16.mxu0 0
        %690 = vmatpush1.bf16.msra.mxu0 0
        %691 = vmatprep.subr.bf16.mxu0 0
        %692 = vmatpush1.bf16.msra.mxu0 0
        %693 = vmatprep.subr.bf16.mxu0 0
        %694 = vmatpush1.bf16.msra.mxu0 0
        %695 = vmatprep.subr.bf16.mxu0 0
        %696 = vmatpush1.bf16.msra.mxu0 0
        %697 = vmatprep.subr.bf16.mxu0 0
        %698 = vmatpush1.bf16.msra.mxu0 0
        %699 = vmatprep.subr.bf16.mxu0 0
        %700 = vmatpush1.bf16.msra.mxu0 0
        %701 = vmatprep.subr.bf16.mxu0 0
        %702 = vmatpush1.bf16.msra.mxu0 0
        %703 = vmatprep.subr.bf16.mxu0 0
        %704 = vmatpush1.bf16.msra.mxu0 0
        %705 = vmatprep.subr.bf16.mxu0 0
        %706 = vmatpush1.bf16.msra.mxu0 0
        %707 = vmatprep.subr.bf16.mxu0 0
        %708 = vmatpush1.bf16.msra.mxu0 0
        %709 = vmatprep.subr.bf16.mxu0 0
        %710 = vmatpush1.bf16.msra.mxu0 0
        %711 = vmatprep.mubr.bf16.mxu0 0
        %712 = vmatmul.mubr.bf16.gmra.mrb[0].mxu0 %v656
        %v713 = vpop.f32.mrb[0].mxu0
        %v714 = vadd.f32 %v647, %v713
        %v715 = vpop.f32.mrb[0].mxu0
        %v716 = vpop.f32.mrb[0].mxu0
        %v717 = vadd.f32 %v647, %v716
        %v718 = vpop.f32.mrb[0].mxu0
        %719 = vmatprep.mubr.bf16.mxu0 0
        %720 = vmatmul.mubr.bf16.gmra.mrb[0].mxu0 %v659
        %v721 = vpop.f32.mrb[0].mxu0
        %v722 = vadd.f32 %v647, %v721
        %v723 = vpop.f32.mrb[0].mxu0
        %v724 = vpop.f32.mrb[0].mxu0
        %v725 = vadd.f32 %v647, %v724
        %v726 = vpop.f32.mrb[0].mxu0
        %727 = vmatprep.mubr.bf16.mxu0 0
        %728 = vmatmul.mubr.bf16.gmra.mrb[0].mxu0 %v662
        %v729 = vpop.f32.mrb[0].mxu0
        %v730 = vadd.f32 %v647, %v729
        %v731 = vpop.f32.mrb[0].mxu0
        %v732 = vpop.f32.mrb[0].mxu0
        %v733 = vadd.f32 %v647, %v732
        %v734 = vpop.f32.mrb[0].mxu0
        %735 = vmatprep.mubr.bf16.mxu0 0
        %736 = vmatmul.mubr.bf16.gmra.mrb[0].mxu0 %v665
        %v737 = vpop.f32.mrb[0].mxu0
        %v738 = vadd.f32 %v647, %v737
        %v739 = vpop.f32.mrb[0].mxu0
        %v740 = vpop.f32.mrb[0].mxu0
        %v741 = vadd.f32 %v647, %v740
        %v742 = vpop.f32.mrb[0].mxu0
        %743 = vmatprep.mubr.bf16.mxu0 0
        %744 = vmatmul.mubr.bf16.gmra.mrb[0].mxu0 %v668
        %v745 = vpop.f32.mrb[0].mxu0
        %v746 = vadd.f32 %v647, %v745
        %v747 = vpop.f32.mrb[0].mxu0
        %v748 = vpop.f32.mrb[0].mxu0
        %v749 = vadd.f32 %v647, %v748
        %v750 = vpop.f32.mrb[0].mxu0
        %751 = vmatprep.mubr.bf16.mxu0 0
        %752 = vmatmul.mubr.bf16.gmra.mrb[0].mxu0 %v671
        %v753 = vpop.f32.mrb[0].mxu0
        %v754 = vadd.f32 %v647, %v753
        %v755 = vpop.f32.mrb[0].mxu0
        %v756 = vpop.f32.mrb[0].mxu0
        %v757 = vadd.f32 %v647, %v756
        %v758 = vpop.f32.mrb[0].mxu0
        %759 = vmatprep.mubr.bf16.mxu0 0
        %760 = vmatmul.mubr.bf16.gmra.mrb[0].mxu0 %v674
        %v761 = vpop.f32.mrb[0].mxu0
        %v762 = vadd.f32 %v647, %v761
        %v763 = vpop.f32.mrb[0].mxu0
        %v764 = vpop.f32.mrb[0].mxu0
        %v765 = vadd.f32 %v647, %v764
        %v766 = vpop.f32.mrb[0].mxu0
        %767 = vmatprep.mubr.bf16.mxu0 0
        %768 = vmatmul.mubr.bf16.gmra.mrb[0].mxu0 %v677
        %v769 = vpop.f32.mrb[0].mxu0
        %v770 = vadd.f32 %v647, %v769
        %v771 = vpop.f32.mrb[0].mxu0
        %v772 = vpop.f32.mrb[0].mxu0
        %v773 = vadd.f32 %v647, %v772
        %v774 = vpop.f32.mrb[0].mxu0
        %775 = vdwg.mxu0
        %776 = vxpose.xlu0.b32.start [1/16] %v714, 128
        %777 = vxpose.xlu0.b32.cont [2/16] %v717, 128
        %778 = vxpose.xlu0.b32.cont [3/16] %v722, 128
        %779 = vxpose.xlu0.b32.cont [4/16] %v725, 128
        %780 = vxpose.xlu0.b32.cont [5/16] %v730, 128
        %781 = vxpose.xlu0.b32.cont [6/16] %v733, 128
        %782 = vxpose.xlu0.b32.cont [7/16] %v738, 128
        %783 = vxpose.xlu0.b32.cont [8/16] %v741, 128
        %784 = vxpose.xlu0.b32.cont [9/16] %v746, 128
        %785 = vxpose.xlu0.b32.cont [10/16] %v749, 128
        %786 = vxpose.xlu0.b32.cont [11/16] %v754, 128
        %787 = vxpose.xlu0.b32.cont [12/16] %v757, 128
        %788 = vxpose.xlu0.b32.cont [13/16] %v762, 128
        %789 = vxpose.xlu0.b32.cont [14/16] %v765, 128
        %790 = vxpose.xlu0.b32.cont [15/16] %v770, 128
        %791 = vxpose.xlu0.b32.end [16/16] %v773, 128
        %v792 = vpop.trf.xlu0
        %v793 = vpop.trf.xlu0
        %v794 = vpop.trf.xlu0
        %v795 = vpop.trf.xlu0
        %v796 = vpop.trf.xlu0
        %v797 = vpop.trf.xlu0
        %v798 = vpop.trf.xlu0
        %v799 = vpop.trf.xlu0
        %v800 = vpop.trf.xlu0
        %v801 = vpop.trf.xlu0
        %v802 = vpop.trf.xlu0
        %v803 = vpop.trf.xlu0
        %v804 = vpop.trf.xlu0
        %v805 = vpop.trf.xlu0
        %v806 = vpop.trf.xlu0
        %v807 = vpop.trf.xlu0
        %809 = vset.pattern.permute.xlu0 16
        %810 = vperm.xlu0 %809, %v714
        %v811 = vpop.permute.xlu0 %810
        %814 = vset.pattern.permute.xlu0 16
        %815 = vperm.xlu0 %814, %v717
        %v816 = vpop.permute.xlu0 %815
        %819 = vset.pattern.permute.xlu0 16
        %820 = vperm.xlu0 %819, %v722
        %v821 = vpop.permute.xlu0 %820
        %824 = vset.pattern.permute.xlu0 16
        %825 = vperm.xlu0 %824, %v725
        %v826 = vpop.permute.xlu0 %825
        %829 = vset.pattern.permute.xlu0 16
        %830 = vperm.xlu0 %829, %v730
        %v831 = vpop.permute.xlu0 %830
        %834 = vset.pattern.permute.xlu0 16
        %835 = vperm.xlu0 %834, %v733
        %v836 = vpop.permute.xlu0 %835
        %839 = vset.pattern.permute.xlu0 16
        %840 = vperm.xlu0 %839, %v738
        %v841 = vpop.permute.xlu0 %840
        %844 = vset.pattern.permute.xlu0 16
        %845 = vperm.xlu0 %844, %v741
        %v846 = vpop.permute.xlu0 %845
        %849 = vset.pattern.permute.xlu0 16
        %850 = vperm.xlu0 %849, %v746
        %v851 = vpop.permute.xlu0 %850
        %854 = vset.pattern.permute.xlu0 16
        %855 = vperm.xlu0 %854, %v749
        %v856 = vpop.permute.xlu0 %855
        %859 = vset.pattern.permute.xlu0 16
        %860 = vperm.xlu0 %859, %v754
        %v861 = vpop.permute.xlu0 %860
        %864 = vset.pattern.permute.xlu0 16
        %865 = vperm.xlu0 %864, %v757
        %v866 = vpop.permute.xlu0 %865
        %869 = vset.pattern.permute.xlu0 16
        %870 = vperm.xlu0 %869, %v762
        %v871 = vpop.permute.xlu0 %870
        %874 = vset.pattern.permute.xlu0 16
        %875 = vperm.xlu0 %874, %v765
        %v876 = vpop.permute.xlu0 %875
        %879 = vset.pattern.permute.xlu0 16
        %880 = vperm.xlu0 %879, %v770
        %v881 = vpop.permute.xlu0 %880
        %884 = vset.pattern.permute.xlu0 16
        %885 = vperm.xlu0 %884, %v773
        %v886 = vpop.permute.xlu0 %885
        %v888 = vlaneseq
        %v889 = vshrl.u32 %v888, 7
        %v890 = vsub.s32 0, %v889
        %v891 = vrot.slane %v792, %v890
        %v892 = vadd.f32 %v811, %v891
        %v893 = vadd.f32 %v816, %v891
        %v894 = vadd.f32 %v821, %v891
        %v895 = vadd.f32 %v826, %v891
        %v896 = vadd.f32 %v831, %v891
        %v897 = vadd.f32 %v836, %v891
        %v898 = vadd.f32 %v841, %v891
        %v899 = vadd.f32 %v846, %v891
        %v900 = vadd.f32 %v851, %v891
        %v901 = vadd.f32 %v856, %v891
        %v902 = vadd.f32 %v861, %v891
        %v903 = vadd.f32 %v866, %v891
        %v904 = vadd.f32 %v871, %v891
        %v905 = vadd.f32 %v876, %v891
        %v906 = vadd.f32 %v881, %v891
        %v907 = vadd.f32 %v886, %v891
        %s908 = sld [smem:[#allocation4]]
        %v909 = vmul.f32 %v892, 0.2
        %v910 = vmul.f32 %v893, 0.2
        %v911 = vmul.f32 %v894, 0.2
        %v912 = vmul.f32 %v895, 0.2
        %v913 = vmul.f32 %v896, 0.2
        %v914 = vmul.f32 %v897, 0.2
        %v915 = vmul.f32 %v898, 0.2
        %v916 = vmul.f32 %v899, 0.2
        %v917 = vmul.f32 %v900, 0.2
        %v918 = vmul.f32 %v901, 0.2
        %v919 = vmul.f32 %v902, 0.2
        %v920 = vmul.f32 %v903, 0.2
        %v921 = vmul.f32 %v904, 0.2
        %v922 = vmul.f32 %v905, 0.2
        %v923 = vmul.f32 %v906, 0.2
        %v924 = vmul.f32 %v907, 0.2
        %v925 = vmax.f32 %v892, %v909
        %v926 = vmax.f32 %v893, %v910
        %v927 = vmax.f32 %v894, %v911
        %v928 = vmax.f32 %v895, %v912
        %v929 = vmax.f32 %v896, %v913
        %v930 = vmax.f32 %v897, %v914
        %v931 = vmax.f32 %v898, %v915
        %v932 = vmax.f32 %v899, %v916
        %v933 = vmax.f32 %v900, %v917
        %v934 = vmax.f32 %v901, %v918
        %v935 = vmax.f32 %v902, %v919
        %v936 = vmax.f32 %v903, %v920
        %v937 = vmax.f32 %v904, %v921
        %v938 = vmax.f32 %v905, %v922
        %v939 = vmax.f32 %v906, %v923
        %v940 = vmax.f32 %v907, %v924
        %v941 = vstv %s908
        %v942 = vmul.f32 %v941, %v925
        %v943 = vmul.f32 %v941, %v926
        %v944 = vmul.f32 %v941, %v927
        %v945 = vmul.f32 %v941, %v928
        %v946 = vmul.f32 %v941, %v929
        %v947 = vmul.f32 %v941, %v930
        %v948 = vmul.f32 %v941, %v931
        %v949 = vmul.f32 %v941, %v932
        %v950 = vmul.f32 %v941, %v933
        %v951 = vmul.f32 %v941, %v934
        %v952 = vmul.f32 %v941, %v935
        %v953 = vmul.f32 %v941, %v936
        %v954 = vmul.f32 %v941, %v937
        %v955 = vmul.f32 %v941, %v938
        %v956 = vmul.f32 %v941, %v939
        %v957 = vmul.f32 %v941, %v940
        %958 = vset.pattern.permute.xlu0 17
        %959 = vperm.xlu0 %958, %v714
        %v960 = vpop.permute.xlu0 %959
        %962 = vset.pattern.permute.xlu0 17
        %963 = vperm.xlu0 %962, %v717
        %v964 = vpop.permute.xlu0 %963
        %966 = vset.pattern.permute.xlu0 17
        %967 = vperm.xlu0 %966, %v722
        %v968 = vpop.permute.xlu0 %967
        %970 = vset.pattern.permute.xlu0 17
        %971 = vperm.xlu0 %970, %v725
        %v972 = vpop.permute.xlu0 %971
        %974 = vset.pattern.permute.xlu0 17
        %975 = vperm.xlu0 %974, %v730
        %v976 = vpop.permute.xlu0 %975
        %978 = vset.pattern.permute.xlu0 17
        %979 = vperm.xlu0 %978, %v733
        %v980 = vpop.permute.xlu0 %979
        %982 = vset.pattern.permute.xlu0 17
        %983 = vperm.xlu0 %982, %v738
        %v984 = vpop.permute.xlu0 %983
        %986 = vset.pattern.permute.xlu0 17
        %987 = vperm.xlu0 %986, %v741
        %v988 = vpop.permute.xlu0 %987
        %990 = vset.pattern.permute.xlu0 17
        %991 = vperm.xlu0 %990, %v746
        %v992 = vpop.permute.xlu0 %991
        %994 = vset.pattern.permute.xlu0 17
        %995 = vperm.xlu0 %994, %v749
        %v996 = vpop.permute.xlu0 %995
        %998 = vset.pattern.permute.xlu0 17
        %999 = vperm.xlu0 %998, %v754
        %v1000 = vpop.permute.xlu0 %999
        %1002 = vset.pattern.permute.xlu0 17
        %1003 = vperm.xlu0 %1002, %v757
        %v1004 = vpop.permute.xlu0 %1003
        %1006 = vset.pattern.permute.xlu0 17
        %1007 = vperm.xlu0 %1006, %v762
        %v1008 = vpop.permute.xlu0 %1007
        %1010 = vset.pattern.permute.xlu0 17
        %1011 = vperm.xlu0 %1010, %v765
        %v1012 = vpop.permute.xlu0 %1011
        %1014 = vset.pattern.permute.xlu0 17
        %1015 = vperm.xlu0 %1014, %v770
        %v1016 = vpop.permute.xlu0 %1015
        %1018 = vset.pattern.permute.xlu0 17
        %1019 = vperm.xlu0 %1018, %v773
        %v1020 = vpop.permute.xlu0 %1019
        %v1022 = vlaneseq
        %v1023 = vshrl.u32 %v1022, 7
        %v1024 = vsub.s32 1, %v1023
        %v1025 = vrot.slane %v792, %v1024
        %v1026 = vadd.f32 %v960, %v1025
        %v1027 = vadd.f32 %v964, %v1025
        %v1028 = vadd.f32 %v968, %v1025
        %v1029 = vadd.f32 %v972, %v1025
        %v1030 = vadd.f32 %v976, %v1025
        %v1031 = vadd.f32 %v980, %v1025
        %v1032 = vadd.f32 %v984, %v1025
        %v1033 = vadd.f32 %v988, %v1025
        %v1034 = vadd.f32 %v992, %v1025
        %v1035 = vadd.f32 %v996, %v1025
        %v1036 = vadd.f32 %v1000, %v1025
        %v1037 = vadd.f32 %v1004, %v1025
        %v1038 = vadd.f32 %v1008, %v1025
        %v1039 = vadd.f32 %v1012, %v1025
        %v1040 = vadd.f32 %v1016, %v1025
        %v1041 = vadd.f32 %v1020, %v1025
        %s1042 = sld [smem:[#allocation4 + $0x1]]
        %v1043 = vmul.f32 %v1026, 0.2
        %v1044 = vmul.f32 %v1027, 0.2
        %v1045 = vmul.f32 %v1028, 0.2
        %v1046 = vmul.f32 %v1029, 0.2
        %v1047 = vmul.f32 %v1030, 0.2
        %v1048 = vmul.f32 %v1031, 0.2
        %v1049 = vmul.f32 %v1032, 0.2
        %v1050 = vmul.f32 %v1033, 0.2
        %v1051 = vmul.f32 %v1034, 0.2
        %v1052 = vmul.f32 %v1035, 0.2
        %v1053 = vmul.f32 %v1036, 0.2
        %v1054 = vmul.f32 %v1037, 0.2
        %v1055 = vmul.f32 %v1038, 0.2
        %v1056 = vmul.f32 %v1039, 0.2
        %v1057 = vmul.f32 %v1040, 0.2
        %v1058 = vmul.f32 %v1041, 0.2
        %v1059 = vmax.f32 %v1026, %v1043
        %v1060 = vmax.f32 %v1027, %v1044
        %v1061 = vmax.f32 %v1028, %v1045
        %v1062 = vmax.f32 %v1029, %v1046
        %v1063 = vmax.f32 %v1030, %v1047
        %v1064 = vmax.f32 %v1031, %v1048
        %v1065 = vmax.f32 %v1032, %v1049
        %v1066 = vmax.f32 %v1033, %v1050
        %v1067 = vmax.f32 %v1034, %v1051
        %v1068 = vmax.f32 %v1035, %v1052
        %v1069 = vmax.f32 %v1036, %v1053
        %v1070 = vmax.f32 %v1037, %v1054
        %v1071 = vmax.f32 %v1038, %v1055
        %v1072 = vmax.f32 %v1039, %v1056
        %v1073 = vmax.f32 %v1040, %v1057
        %v1074 = vmax.f32 %v1041, %v1058
        %v1075 = vstv %s1042
        %v1076 = vmul.f32 %v1075, %v1059
        %v1077 = vmul.f32 %v1075, %v1060
        %v1078 = vmul.f32 %v1075, %v1061
        %v1079 = vmul.f32 %v1075, %v1062
        %v1080 = vmul.f32 %v1075, %v1063
        %v1081 = vmul.f32 %v1075, %v1064
        %v1082 = vmul.f32 %v1075, %v1065
        %v1083 = vmul.f32 %v1075, %v1066
        %v1084 = vmul.f32 %v1075, %v1067
        %v1085 = vmul.f32 %v1075, %v1068
        %v1086 = vmul.f32 %v1075, %v1069
        %v1087 = vmul.f32 %v1075, %v1070
        %v1088 = vmul.f32 %v1075, %v1071
        %v1089 = vmul.f32 %v1075, %v1072
        %v1090 = vmul.f32 %v1075, %v1073
        %v1091 = vmul.f32 %v1075, %v1074
        %1092 = vset.pattern.permute.xlu0 18
        %1093 = vperm.xlu0 %1092, %v714
        %v1094 = vpop.permute.xlu0 %1093
        %1096 = vset.pattern.permute.xlu0 18
        %1097 = vperm.xlu0 %1096, %v717
        %v1098 = vpop.permute.xlu0 %1097
        %1100 = vset.pattern.permute.xlu0 18
        %1101 = vperm.xlu0 %1100, %v722
        %v1102 = vpop.permute.xlu0 %1101
        %1104 = vset.pattern.permute.xlu0 18
        %1105 = vperm.xlu0 %1104, %v725
        %v1106 = vpop.permute.xlu0 %1105
        %1108 = vset.pattern.permute.xlu0 18
        %1109 = vperm.xlu0 %1108, %v730
        %v1110 = vpop.permute.xlu0 %1109
        %1112 = vset.pattern.permute.xlu0 18
        %1113 = vperm.xlu0 %1112, %v733
        %v1114 = vpop.permute.xlu0 %1113
        %1116 = vset.pattern.permute.xlu0 18
        %1117 = vperm.xlu0 %1116, %v738
        %v1118 = vpop.permute.xlu0 %1117
        %1120 = vset.pattern.permute.xlu0 18
        %1121 = vperm.xlu0 %1120, %v741
        %v1122 = vpop.permute.xlu0 %1121
        %1124 = vset.pattern.permute.xlu0 18
        %1125 = vperm.xlu0 %1124, %v746
        %v1126 = vpop.permute.xlu0 %1125
        %1128 = vset.pattern.permute.xlu0 18
        %1129 = vperm.xlu0 %1128, %v749
        %v1130 = vpop.permute.xlu0 %1129
        %1132 = vset.pattern.permute.xlu0 18
        %1133 = vperm.xlu0 %1132, %v754
        %v1134 = vpop.permute.xlu0 %1133
        %1136 = vset.pattern.permute.xlu0 18
        %1137 = vperm.xlu0 %1136, %v757
        %v1138 = vpop.permute.xlu0 %1137
        %1140 = vset.pattern.permute.xlu0 18
        %1141 = vperm.xlu0 %1140, %v762
        %v1142 = vpop.permute.xlu0 %1141
        %1144 = vset.pattern.permute.xlu0 18
        %1145 = vperm.xlu0 %1144, %v765
        %v1146 = vpop.permute.xlu0 %1145
        %1148 = vset.pattern.permute.xlu0 18
        %1149 = vperm.xlu0 %1148, %v770
        %v1150 = vpop.permute.xlu0 %1149
        %1152 = vset.pattern.permute.xlu0 18
        %1153 = vperm.xlu0 %1152, %v773
        %v1154 = vpop.permute.xlu0 %1153
        %v1156 = vlaneseq
        %v1157 = vshrl.u32 %v1156, 7
        %v1158 = vsub.s32 2, %v1157
        %v1159 = vrot.slane %v792, %v1158
        %v1160 = vadd.f32 %v1094, %v1159
        %v1161 = vadd.f32 %v1098, %v1159
        %v1162 = vadd.f32 %v1102, %v1159
        %v1163 = vadd.f32 %v1106, %v1159
        %v1164 = vadd.f32 %v1110, %v1159
        %v1165 = vadd.f32 %v1114, %v1159
        %v1166 = vadd.f32 %v1118, %v1159
        %v1167 = vadd.f32 %v1122, %v1159
        %v1168 = vadd.f32 %v1126, %v1159
        %v1169 = vadd.f32 %v1130, %v1159
        %v1170 = vadd.f32 %v1134, %v1159
        %v1171 = vadd.f32 %v1138, %v1159
        %v1172 = vadd.f32 %v1142, %v1159
        %v1173 = vadd.f32 %v1146, %v1159
        %v1174 = vadd.f32 %v1150, %v1159
        %v1175 = vadd.f32 %v1154, %v1159
        %s1176 = sld [smem:[#allocation4 + $0x2]]
        %v1177 = vmul.f32 %v1160, 0.2
        %v1178 = vmul.f32 %v1161, 0.2
        %v1179 = vmul.f32 %v1162, 0.2
        %v1180 = vmul.f32 %v1163, 0.2
        %v1181 = vmul.f32 %v1164, 0.2
        %v1182 = vmul.f32 %v1165, 0.2
        %v1183 = vmul.f32 %v1166, 0.2
        %v1184 = vmul.f32 %v1167, 0.2
        %v1185 = vmul.f32 %v1168, 0.2
        %v1186 = vmul.f32 %v1169, 0.2
        %v1187 = vmul.f32 %v1170, 0.2
        %v1188 = vmul.f32 %v1171, 0.2
        %v1189 = vmul.f32 %v1172, 0.2
        %v1190 = vmul.f32 %v1173, 0.2
        %v1191 = vmul.f32 %v1174, 0.2
        %v1192 = vmul.f32 %v1175, 0.2
        %v1193 = vmax.f32 %v1160, %v1177
        %v1194 = vmax.f32 %v1161, %v1178
        %v1195 = vmax.f32 %v1162, %v1179
        %v1196 = vmax.f32 %v1163, %v1180
        %v1197 = vmax.f32 %v1164, %v1181
        %v1198 = vmax.f32 %v1165, %v1182
        %v1199 = vmax.f32 %v1166, %v1183
        %v1200 = vmax.f32 %v1167, %v1184
        %v1201 = vmax.f32 %v1168, %v1185
        %v1202 = vmax.f32 %v1169, %v1186
        %v1203 = vmax.f32 %v1170, %v1187
        %v1204 = vmax.f32 %v1171, %v1188
        %v1205 = vmax.f32 %v1172, %v1189
        %v1206 = vmax.f32 %v1173, %v1190
        %v1207 = vmax.f32 %v1174, %v1191
        %v1208 = vmax.f32 %v1175, %v1192
        %v1209 = vstv %s1176
        %v1210 = vmul.f32 %v1209, %v1193
        %v1211 = vmul.f32 %v1209, %v1194
        %v1212 = vmul.f32 %v1209, %v1195
        %v1213 = vmul.f32 %v1209, %v1196
        %v1214 = vmul.f32 %v1209, %v1197
        %v1215 = vmul.f32 %v1209, %v1198
        %v1216 = vmul.f32 %v1209, %v1199
        %v1217 = vmul.f32 %v1209, %v1200
        %v1218 = vmul.f32 %v1209, %v1201
        %v1219 = vmul.f32 %v1209, %v1202
        %v1220 = vmul.f32 %v1209, %v1203
        %v1221 = vmul.f32 %v1209, %v1204
        %v1222 = vmul.f32 %v1209, %v1205
        %v1223 = vmul.f32 %v1209, %v1206
        %v1224 = vmul.f32 %v1209, %v1207
        %v1225 = vmul.f32 %v1209, %v1208
        %1226 = vset.pattern.permute.xlu0 19
        %1227 = vperm.xlu0 %1226, %v714
        %v1228 = vpop.permute.xlu0 %1227
        %1230 = vset.pattern.permute.xlu0 19
        %1231 = vperm.xlu0 %1230, %v717
        %v1232 = vpop.permute.xlu0 %1231
        %1234 = vset.pattern.permute.xlu0 19
        %1235 = vperm.xlu0 %1234, %v722
        %v1236 = vpop.permute.xlu0 %1235
        %1238 = vset.pattern.permute.xlu0 19
        %1239 = vperm.xlu0 %1238, %v725
        %v1240 = vpop.permute.xlu0 %1239
        %1242 = vset.pattern.permute.xlu0 19
        %1243 = vperm.xlu0 %1242, %v730
        %v1244 = vpop.permute.xlu0 %1243
        %1246 = vset.pattern.permute.xlu0 19
        %1247 = vperm.xlu0 %1246, %v733
        %v1248 = vpop.permute.xlu0 %1247
        %1250 = vset.pattern.permute.xlu0 19
        %1251 = vperm.xlu0 %1250, %v738
        %v1252 = vpop.permute.xlu0 %1251
        %1254 = vset.pattern.permute.xlu0 19
        %1255 = vperm.xlu0 %1254, %v741
        %v1256 = vpop.permute.xlu0 %1255
        %1258 = vset.pattern.permute.xlu0 19
        %1259 = vperm.xlu0 %1258, %v746
        %v1260 = vpop.permute.xlu0 %1259
        %1262 = vset.pattern.permute.xlu0 19
        %1263 = vperm.xlu0 %1262, %v749
        %v1264 = vpop.permute.xlu0 %1263
        %1266 = vset.pattern.permute.xlu0 19
        %1267 = vperm.xlu0 %1266, %v754
        %v1268 = vpop.permute.xlu0 %1267
        %1270 = vset.pattern.permute.xlu0 19
        %1271 = vperm.xlu0 %1270, %v757
        %v1272 = vpop.permute.xlu0 %1271
        %1274 = vset.pattern.permute.xlu0 19
        %1275 = vperm.xlu0 %1274, %v762
        %v1276 = vpop.permute.xlu0 %1275
        %1278 = vset.pattern.permute.xlu0 19
        %1279 = vperm.xlu0 %1278, %v765
        %v1280 = vpop.permute.xlu0 %1279
        %1282 = vset.pattern.permute.xlu0 19
        %1283 = vperm.xlu0 %1282, %v770
        %v1284 = vpop.permute.xlu0 %1283
        %1286 = vset.pattern.permute.xlu0 19
        %1287 = vperm.xlu0 %1286, %v773
        %v1288 = vpop.permute.xlu0 %1287
        %v1290 = vlaneseq
        %v1291 = vshrl.u32 %v1290, 7
        %v1292 = vsub.s32 3, %v1291
        %v1293 = vrot.slane %v792, %v1292
        %v1294 = vadd.f32 %v1228, %v1293
        %v1295 = vadd.f32 %v1232, %v1293
        %v1296 = vadd.f32 %v1236, %v1293
        %v1297 = vadd.f32 %v1240, %v1293
        %v1298 = vadd.f32 %v1244, %v1293
        %v1299 = vadd.f32 %v1248, %v1293
        %v1300 = vadd.f32 %v1252, %v1293
        %v1301 = vadd.f32 %v1256, %v1293
        %v1302 = vadd.f32 %v1260, %v1293
        %v1303 = vadd.f32 %v1264, %v1293
        %v1304 = vadd.f32 %v1268, %v1293
        %v1305 = vadd.f32 %v1272, %v1293
        %v1306 = vadd.f32 %v1276, %v1293
        %v1307 = vadd.f32 %v1280, %v1293
        %v1308 = vadd.f32 %v1284, %v1293
        %v1309 = vadd.f32 %v1288, %v1293
        %s1310 = sld [smem:[#allocation4 + $0x3]]
        %v1311 = vmul.f32 %v1294, 0.2
        %v1312 = vmul.f32 %v1295, 0.2
        %v1313 = vmul.f32 %v1296, 0.2
        %v1314 = vmul.f32 %v1297, 0.2
        %v1315 = vmul.f32 %v1298, 0.2
        %v1316 = vmul.f32 %v1299, 0.2
        %v1317 = vmul.f32 %v1300, 0.2
        %v1318 = vmul.f32 %v1301, 0.2
        %v1319 = vmul.f32 %v1302, 0.2
        %v1320 = vmul.f32 %v1303, 0.2
        %v1321 = vmul.f32 %v1304, 0.2
        %v1322 = vmul.f32 %v1305, 0.2
        %v1323 = vmul.f32 %v1306, 0.2
        %v1324 = vmul.f32 %v1307, 0.2
        %v1325 = vmul.f32 %v1308, 0.2
        %v1326 = vmul.f32 %v1309, 0.2
        %v1327 = vmax.f32 %v1294, %v1311
        %v1328 = vmax.f32 %v1295, %v1312
        %v1329 = vmax.f32 %v1296, %v1313
        %v1330 = vmax.f32 %v1297, %v1314
        %v1331 = vmax.f32 %v1298, %v1315
        %v1332 = vmax.f32 %v1299, %v1316
        %v1333 = vmax.f32 %v1300, %v1317
        %v1334 = vmax.f32 %v1301, %v1318
        %v1335 = vmax.f32 %v1302, %v1319
        %v1336 = vmax.f32 %v1303, %v1320
        %v1337 = vmax.f32 %v1304, %v1321
        %v1338 = vmax.f32 %v1305, %v1322
        %v1339 = vmax.f32 %v1306, %v1323
        %v1340 = vmax.f32 %v1307, %v1324
        %v1341 = vmax.f32 %v1308, %v1325
        %v1342 = vmax.f32 %v1309, %v1326
        %v1343 = vstv %s1310
        %v1344 = vmul.f32 %v1343, %v1327
        %v1345 = vmul.f32 %v1343, %v1328
        %v1346 = vmul.f32 %v1343, %v1329
        %v1347 = vmul.f32 %v1343, %v1330
        %v1348 = vmul.f32 %v1343, %v1331
        %v1349 = vmul.f32 %v1343, %v1332
        %v1350 = vmul.f32 %v1343, %v1333
        %v1351 = vmul.f32 %v1343, %v1334
        %v1352 = vmul.f32 %v1343, %v1335
        %v1353 = vmul.f32 %v1343, %v1336
        %v1354 = vmul.f32 %v1343, %v1337
        %v1355 = vmul.f32 %v1343, %v1338
        %v1356 = vmul.f32 %v1343, %v1339
        %v1357 = vmul.f32 %v1343, %v1340
        %v1358 = vmul.f32 %v1343, %v1341
        %v1359 = vmul.f32 %v1343, %v1342
        %1360 = vset.pattern.permute.xlu0 20
        %1361 = vperm.xlu0 %1360, %v714
        %v1362 = vpop.permute.xlu0 %1361
        %1364 = vset.pattern.permute.xlu0 20
        %1365 = vperm.xlu0 %1364, %v717
        %v1366 = vpop.permute.xlu0 %1365
        %1368 = vset.pattern.permute.xlu0 20
        %1369 = vperm.xlu0 %1368, %v722
        %v1370 = vpop.permute.xlu0 %1369
        %1372 = vset.pattern.permute.xlu0 20
        %1373 = vperm.xlu0 %1372, %v725
        %v1374 = vpop.permute.xlu0 %1373
        %1376 = vset.pattern.permute.xlu0 20
        %1377 = vperm.xlu0 %1376, %v730
        %v1378 = vpop.permute.xlu0 %1377
        %1380 = vset.pattern.permute.xlu0 20
        %1381 = vperm.xlu0 %1380, %v733
        %v1382 = vpop.permute.xlu0 %1381
        %1384 = vset.pattern.permute.xlu0 20
        %1385 = vperm.xlu0 %1384, %v738
        %v1386 = vpop.permute.xlu0 %1385
        %1388 = vset.pattern.permute.xlu0 20
        %1389 = vperm.xlu0 %1388, %v741
        %v1390 = vpop.permute.xlu0 %1389
        %1392 = vset.pattern.permute.xlu0 20
        %1393 = vperm.xlu0 %1392, %v746
        %v1394 = vpop.permute.xlu0 %1393
        %1396 = vset.pattern.permute.xlu0 20
        %1397 = vperm.xlu0 %1396, %v749
        %v1398 = vpop.permute.xlu0 %1397
        %1400 = vset.pattern.permute.xlu0 20
        %1401 = vperm.xlu0 %1400, %v754
        %v1402 = vpop.permute.xlu0 %1401
        %1404 = vset.pattern.permute.xlu0 20
        %1405 = vperm.xlu0 %1404, %v757
        %v1406 = vpop.permute.xlu0 %1405
        %1408 = vset.pattern.permute.xlu0 20
        %1409 = vperm.xlu0 %1408, %v762
        %v1410 = vpop.permute.xlu0 %1409
        %1412 = vset.pattern.permute.xlu0 20
        %1413 = vperm.xlu0 %1412, %v765
        %v1414 = vpop.permute.xlu0 %1413
        %1416 = vset.pattern.permute.xlu0 20
        %1417 = vperm.xlu0 %1416, %v770
        %v1418 = vpop.permute.xlu0 %1417
        %1420 = vset.pattern.permute.xlu0 20
        %1421 = vperm.xlu0 %1420, %v773
        %v1422 = vpop.permute.xlu0 %1421
        %v1424 = vlaneseq
        %v1425 = vshrl.u32 %v1424, 7
        %v1426 = vsub.s32 4, %v1425
        %v1427 = vrot.slane %v792, %v1426
        %v1428 = vadd.f32 %v1362, %v1427
        %v1429 = vadd.f32 %v1366, %v1427
        %v1430 = vadd.f32 %v1370, %v1427
        %v1431 = vadd.f32 %v1374, %v1427
        %v1432 = vadd.f32 %v1378, %v1427
        %v1433 = vadd.f32 %v1382, %v1427
        %v1434 = vadd.f32 %v1386, %v1427
        %v1435 = vadd.f32 %v1390, %v1427
        %v1436 = vadd.f32 %v1394, %v1427
        %v1437 = vadd.f32 %v1398, %v1427
        %v1438 = vadd.f32 %v1402, %v1427
        %v1439 = vadd.f32 %v1406, %v1427
        %v1440 = vadd.f32 %v1410, %v1427
        %v1441 = vadd.f32 %v1414, %v1427
        %v1442 = vadd.f32 %v1418, %v1427
        %v1443 = vadd.f32 %v1422, %v1427
        %s1444 = sld [smem:[#allocation4 + $0x4]]
        %v1445 = vmul.f32 %v1428, 0.2
        %v1446 = vmul.f32 %v1429, 0.2
        %v1447 = vmul.f32 %v1430, 0.2
        %v1448 = vmul.f32 %v1431, 0.2
        %v1449 = vmul.f32 %v1432, 0.2
        %v1450 = vmul.f32 %v1433, 0.2
        %v1451 = vmul.f32 %v1434, 0.2
        %v1452 = vmul.f32 %v1435, 0.2
        %v1453 = vmul.f32 %v1436, 0.2
        %v1454 = vmul.f32 %v1437, 0.2
        %v1455 = vmul.f32 %v1438, 0.2
        %v1456 = vmul.f32 %v1439, 0.2
        %v1457 = vmul.f32 %v1440, 0.2
        %v1458 = vmul.f32 %v1441, 0.2
        %v1459 = vmul.f32 %v1442, 0.2
        %v1460 = vmul.f32 %v1443, 0.2
        %v1461 = vmax.f32 %v1428, %v1445
        %v1462 = vmax.f32 %v1429, %v1446
        %v1463 = vmax.f32 %v1430, %v1447
        %v1464 = vmax.f32 %v1431, %v1448
        %v1465 = vmax.f32 %v1432, %v1449
        %v1466 = vmax.f32 %v1433, %v1450
        %v1467 = vmax.f32 %v1434, %v1451
        %v1468 = vmax.f32 %v1435, %v1452
        %v1469 = vmax.f32 %v1436, %v1453
        %v1470 = vmax.f32 %v1437, %v1454
        %v1471 = vmax.f32 %v1438, %v1455
        %v1472 = vmax.f32 %v1439, %v1456
        %v1473 = vmax.f32 %v1440, %v1457
        %v1474 = vmax.f32 %v1441, %v1458
        %v1475 = vmax.f32 %v1442, %v1459
        %v1476 = vmax.f32 %v1443, %v1460
        %v1477 = vstv %s1444
        %v1478 = vmul.f32 %v1477, %v1461
        %v1479 = vmul.f32 %v1477, %v1462
        %v1480 = vmul.f32 %v1477, %v1463
        %v1481 = vmul.f32 %v1477, %v1464
        %v1482 = vmul.f32 %v1477, %v1465
        %v1483 = vmul.f32 %v1477, %v1466
        %v1484 = vmul.f32 %v1477, %v1467
        %v1485 = vmul.f32 %v1477, %v1468
        %v1486 = vmul.f32 %v1477, %v1469
        %v1487 = vmul.f32 %v1477, %v1470
        %v1488 = vmul.f32 %v1477, %v1471
        %v1489 = vmul.f32 %v1477, %v1472
        %v1490 = vmul.f32 %v1477, %v1473
        %v1491 = vmul.f32 %v1477, %v1474
        %v1492 = vmul.f32 %v1477, %v1475
        %v1493 = vmul.f32 %v1477, %v1476
        %1494 = vset.pattern.permute.xlu0 21
        %1495 = vperm.xlu0 %1494, %v714
        %v1496 = vpop.permute.xlu0 %1495
        %1498 = vset.pattern.permute.xlu0 21
        %1499 = vperm.xlu0 %1498, %v717
        %v1500 = vpop.permute.xlu0 %1499
        %1502 = vset.pattern.permute.xlu0 21
        %1503 = vperm.xlu0 %1502, %v722
        %v1504 = vpop.permute.xlu0 %1503
        %1506 = vset.pattern.permute.xlu0 21
        %1507 = vperm.xlu0 %1506, %v725
        %v1508 = vpop.permute.xlu0 %1507
        %1510 = vset.pattern.permute.xlu0 21
        %1511 = vperm.xlu0 %1510, %v730
        %v1512 = vpop.permute.xlu0 %1511
        %1514 = vset.pattern.permute.xlu0 21
        %1515 = vperm.xlu0 %1514, %v733
        %v1516 = vpop.permute.xlu0 %1515
        %1518 = vset.pattern.permute.xlu0 21
        %1519 = vperm.xlu0 %1518, %v738
        %v1520 = vpop.permute.xlu0 %1519
        %1522 = vset.pattern.permute.xlu0 21
        %1523 = vperm.xlu0 %1522, %v741
        %v1524 = vpop.permute.xlu0 %1523
        %1526 = vset.pattern.permute.xlu0 21
        %1527 = vperm.xlu0 %1526, %v746
        %v1528 = vpop.permute.xlu0 %1527
        %1530 = vset.pattern.permute.xlu0 21
        %1531 = vperm.xlu0 %1530, %v749
        %v1532 = vpop.permute.xlu0 %1531
        %1534 = vset.pattern.permute.xlu0 21
        %1535 = vperm.xlu0 %1534, %v754
        %v1536 = vpop.permute.xlu0 %1535
        %1538 = vset.pattern.permute.xlu0 21
        %1539 = vperm.xlu0 %1538, %v757
        %v1540 = vpop.permute.xlu0 %1539
        %1542 = vset.pattern.permute.xlu0 21
        %1543 = vperm.xlu0 %1542, %v762
        %v1544 = vpop.permute.xlu0 %1543
        %1546 = vset.pattern.permute.xlu0 21
        %1547 = vperm.xlu0 %1546, %v765
        %v1548 = vpop.permute.xlu0 %1547
        %1550 = vset.pattern.permute.xlu0 21
        %1551 = vperm.xlu0 %1550, %v770
        %v1552 = vpop.permute.xlu0 %1551
        %1554 = vset.pattern.permute.xlu0 21
        %1555 = vperm.xlu0 %1554, %v773
        %v1556 = vpop.permute.xlu0 %1555
        %v1558 = vlaneseq
        %v1559 = vshrl.u32 %v1558, 7
        %v1560 = vsub.s32 5, %v1559
        %v1561 = vrot.slane %v792, %v1560
        %v1562 = vadd.f32 %v1496, %v1561
        %v1563 = vadd.f32 %v1500, %v1561
        %v1564 = vadd.f32 %v1504, %v1561
        %v1565 = vadd.f32 %v1508, %v1561
        %v1566 = vadd.f32 %v1512, %v1561
        %v1567 = vadd.f32 %v1516, %v1561
        %v1568 = vadd.f32 %v1520, %v1561
        %v1569 = vadd.f32 %v1524, %v1561
        %v1570 = vadd.f32 %v1528, %v1561
        %v1571 = vadd.f32 %v1532, %v1561
        %v1572 = vadd.f32 %v1536, %v1561
        %v1573 = vadd.f32 %v1540, %v1561
        %v1574 = vadd.f32 %v1544, %v1561
        %v1575 = vadd.f32 %v1548, %v1561
        %v1576 = vadd.f32 %v1552, %v1561
        %v1577 = vadd.f32 %v1556, %v1561
        %s1578 = sld [smem:[#allocation4 + $0x5]]
        %v1579 = vmul.f32 %v1562, 0.2
        %v1580 = vmul.f32 %v1563, 0.2
        %v1581 = vmul.f32 %v1564, 0.2
        %v1582 = vmul.f32 %v1565, 0.2
        %v1583 = vmul.f32 %v1566, 0.2
        %v1584 = vmul.f32 %v1567, 0.2
        %v1585 = vmul.f32 %v1568, 0.2
        %v1586 = vmul.f32 %v1569, 0.2
        %v1587 = vmul.f32 %v1570, 0.2
        %v1588 = vmul.f32 %v1571, 0.2
        %v1589 = vmul.f32 %v1572, 0.2
        %v1590 = vmul.f32 %v1573, 0.2
        %v1591 = vmul.f32 %v1574, 0.2
        %v1592 = vmul.f32 %v1575, 0.2
        %v1593 = vmul.f32 %v1576, 0.2
        %v1594 = vmul.f32 %v1577, 0.2
        %v1595 = vmax.f32 %v1562, %v1579
        %v1596 = vmax.f32 %v1563, %v1580
        %v1597 = vmax.f32 %v1564, %v1581
        %v1598 = vmax.f32 %v1565, %v1582
        %v1599 = vmax.f32 %v1566, %v1583
        %v1600 = vmax.f32 %v1567, %v1584
        %v1601 = vmax.f32 %v1568, %v1585
        %v1602 = vmax.f32 %v1569, %v1586
        %v1603 = vmax.f32 %v1570, %v1587
        %v1604 = vmax.f32 %v1571, %v1588
        %v1605 = vmax.f32 %v1572, %v1589
        %v1606 = vmax.f32 %v1573, %v1590
        %v1607 = vmax.f32 %v1574, %v1591
        %v1608 = vmax.f32 %v1575, %v1592
        %v1609 = vmax.f32 %v1576, %v1593
        %v1610 = vmax.f32 %v1577, %v1594
        %v1611 = vstv %s1578
        %v1612 = vmul.f32 %v1611, %v1595
        %v1613 = vmul.f32 %v1611, %v1596
        %v1614 = vmul.f32 %v1611, %v1597
        %v1615 = vmul.f32 %v1611, %v1598
        %v1616 = vmul.f32 %v1611, %v1599
        %v1617 = vmul.f32 %v1611, %v1600
        %v1618 = vmul.f32 %v1611, %v1601
        %v1619 = vmul.f32 %v1611, %v1602
        %v1620 = vmul.f32 %v1611, %v1603
        %v1621 = vmul.f32 %v1611, %v1604
        %v1622 = vmul.f32 %v1611, %v1605
        %v1623 = vmul.f32 %v1611, %v1606
        %v1624 = vmul.f32 %v1611, %v1607
        %v1625 = vmul.f32 %v1611, %v1608
        %v1626 = vmul.f32 %v1611, %v1609
        %v1627 = vmul.f32 %v1611, %v1610
        %1628 = vset.pattern.permute.xlu0 22
        %1629 = vperm.xlu0 %1628, %v714
        %v1630 = vpop.permute.xlu0 %1629
        %1632 = vset.pattern.permute.xlu0 22
        %1633 = vperm.xlu0 %1632, %v717
        %v1634 = vpop.permute.xlu0 %1633
        %1636 = vset.pattern.permute.xlu0 22
        %1637 = vperm.xlu0 %1636, %v722
        %v1638 = vpop.permute.xlu0 %1637
        %1640 = vset.pattern.permute.xlu0 22
        %1641 = vperm.xlu0 %1640, %v725
        %v1642 = vpop.permute.xlu0 %1641
        %1644 = vset.pattern.permute.xlu0 22
        %1645 = vperm.xlu0 %1644, %v730
        %v1646 = vpop.permute.xlu0 %1645
        %1648 = vset.pattern.permute.xlu0 22
        %1649 = vperm.xlu0 %1648, %v733
        %v1650 = vpop.permute.xlu0 %1649
        %1652 = vset.pattern.permute.xlu0 22
        %1653 = vperm.xlu0 %1652, %v738
        %v1654 = vpop.permute.xlu0 %1653
        %1656 = vset.pattern.permute.xlu0 22
        %1657 = vperm.xlu0 %1656, %v741
        %v1658 = vpop.permute.xlu0 %1657
        %1660 = vset.pattern.permute.xlu0 22
        %1661 = vperm.xlu0 %1660, %v746
        %v1662 = vpop.permute.xlu0 %1661
        %1664 = vset.pattern.permute.xlu0 22
        %1665 = vperm.xlu0 %1664, %v749
        %v1666 = vpop.permute.xlu0 %1665
        %1668 = vset.pattern.permute.xlu0 22
        %1669 = vperm.xlu0 %1668, %v754
        %v1670 = vpop.permute.xlu0 %1669
        %1672 = vset.pattern.permute.xlu0 22
        %1673 = vperm.xlu0 %1672, %v757
        %v1674 = vpop.permute.xlu0 %1673
        %1676 = vset.pattern.permute.xlu0 22
        %1677 = vperm.xlu0 %1676, %v762
        %v1678 = vpop.permute.xlu0 %1677
        %1680 = vset.pattern.permute.xlu0 22
        %1681 = vperm.xlu0 %1680, %v765
        %v1682 = vpop.permute.xlu0 %1681
        %1684 = vset.pattern.permute.xlu0 22
        %1685 = vperm.xlu0 %1684, %v770
        %v1686 = vpop.permute.xlu0 %1685
        %1688 = vset.pattern.permute.xlu0 22
        %1689 = vperm.xlu0 %1688, %v773
        %v1690 = vpop.permute.xlu0 %1689
        %v1692 = vlaneseq
        %v1693 = vshrl.u32 %v1692, 7
        %v1694 = vsub.s32 6, %v1693
        %v1695 = vrot.slane %v792, %v1694
        %v1696 = vadd.f32 %v1630, %v1695
        %v1697 = vadd.f32 %v1634, %v1695
        %v1698 = vadd.f32 %v1638, %v1695
        %v1699 = vadd.f32 %v1642, %v1695
        %v1700 = vadd.f32 %v1646, %v1695
        %v1701 = vadd.f32 %v1650, %v1695
        %v1702 = vadd.f32 %v1654, %v1695
        %v1703 = vadd.f32 %v1658, %v1695
        %v1704 = vadd.f32 %v1662, %v1695
        %v1705 = vadd.f32 %v1666, %v1695
        %v1706 = vadd.f32 %v1670, %v1695
        %v1707 = vadd.f32 %v1674, %v1695
        %v1708 = vadd.f32 %v1678, %v1695
        %v1709 = vadd.f32 %v1682, %v1695
        %v1710 = vadd.f32 %v1686, %v1695
        %v1711 = vadd.f32 %v1690, %v1695
        %s1712 = sld [smem:[#allocation4 + $0x6]]
        %v1713 = vmul.f32 %v1696, 0.2
        %v1714 = vmul.f32 %v1697, 0.2
        %v1715 = vmul.f32 %v1698, 0.2
        %v1716 = vmul.f32 %v1699, 0.2
        %v1717 = vmul.f32 %v1700, 0.2
        %v1718 = vmul.f32 %v1701, 0.2
        %v1719 = vmul.f32 %v1702, 0.2
        %v1720 = vmul.f32 %v1703, 0.2
        %v1721 = vmul.f32 %v1704, 0.2
        %v1722 = vmul.f32 %v1705, 0.2
        %v1723 = vmul.f32 %v1706, 0.2
        %v1724 = vmul.f32 %v1707, 0.2
        %v1725 = vmul.f32 %v1708, 0.2
        %v1726 = vmul.f32 %v1709, 0.2
        %v1727 = vmul.f32 %v1710, 0.2
        %v1728 = vmul.f32 %v1711, 0.2
        %v1729 = vmax.f32 %v1696, %v1713
        %v1730 = vmax.f32 %v1697, %v1714
        %v1731 = vmax.f32 %v1698, %v1715
        %v1732 = vmax.f32 %v1699, %v1716
        %v1733 = vmax.f32 %v1700, %v1717
        %v1734 = vmax.f32 %v1701, %v1718
        %v1735 = vmax.f32 %v1702, %v1719
        %v1736 = vmax.f32 %v1703, %v1720
        %v1737 = vmax.f32 %v1704, %v1721
        %v1738 = vmax.f32 %v1705, %v1722
        %v1739 = vmax.f32 %v1706, %v1723
        %v1740 = vmax.f32 %v1707, %v1724
        %v1741 = vmax.f32 %v1708, %v1725
        %v1742 = vmax.f32 %v1709, %v1726
        %v1743 = vmax.f32 %v1710, %v1727
        %v1744 = vmax.f32 %v1711, %v1728
        %v1745 = vstv %s1712
        %v1746 = vmul.f32 %v1745, %v1729
        %v1747 = vmul.f32 %v1745, %v1730
        %v1748 = vmul.f32 %v1745, %v1731
        %v1749 = vmul.f32 %v1745, %v1732
        %v1750 = vmul.f32 %v1745, %v1733
        %v1751 = vmul.f32 %v1745, %v1734
        %v1752 = vmul.f32 %v1745, %v1735
        %v1753 = vmul.f32 %v1745, %v1736
        %v1754 = vmul.f32 %v1745, %v1737
        %v1755 = vmul.f32 %v1745, %v1738
        %v1756 = vmul.f32 %v1745, %v1739
        %v1757 = vmul.f32 %v1745, %v1740
        %v1758 = vmul.f32 %v1745, %v1741
        %v1759 = vmul.f32 %v1745, %v1742
        %v1760 = vmul.f32 %v1745, %v1743
        %v1761 = vmul.f32 %v1745, %v1744
        %1762 = vset.pattern.permute.xlu0 23
        %1763 = vperm.xlu0 %1762, %v714
        %v1764 = vpop.permute.xlu0 %1763
        %1766 = vset.pattern.permute.xlu0 23
        %1767 = vperm.xlu0 %1766, %v717
        %v1768 = vpop.permute.xlu0 %1767
        %1770 = vset.pattern.permute.xlu0 23
        %1771 = vperm.xlu0 %1770, %v722
        %v1772 = vpop.permute.xlu0 %1771
        %1774 = vset.pattern.permute.xlu0 23
        %1775 = vperm.xlu0 %1774, %v725
        %v1776 = vpop.permute.xlu0 %1775
        %1778 = vset.pattern.permute.xlu0 23
        %1779 = vperm.xlu0 %1778, %v730
        %v1780 = vpop.permute.xlu0 %1779
        %1782 = vset.pattern.permute.xlu0 23
        %1783 = vperm.xlu0 %1782, %v733
        %v1784 = vpop.permute.xlu0 %1783
        %1786 = vset.pattern.permute.xlu0 23
        %1787 = vperm.xlu0 %1786, %v738
        %v1788 = vpop.permute.xlu0 %1787
        %1790 = vset.pattern.permute.xlu0 23
        %1791 = vperm.xlu0 %1790, %v741
        %v1792 = vpop.permute.xlu0 %1791
        %1794 = vset.pattern.permute.xlu0 23
        %1795 = vperm.xlu0 %1794, %v746
        %v1796 = vpop.permute.xlu0 %1795
        %1798 = vset.pattern.permute.xlu0 23
        %1799 = vperm.xlu0 %1798, %v749
        %v1800 = vpop.permute.xlu0 %1799
        %1802 = vset.pattern.permute.xlu0 23
        %1803 = vperm.xlu0 %1802, %v754
        %v1804 = vpop.permute.xlu0 %1803
        %1806 = vset.pattern.permute.xlu0 23
        %1807 = vperm.xlu0 %1806, %v757
        %v1808 = vpop.permute.xlu0 %1807
        %1810 = vset.pattern.permute.xlu0 23
        %1811 = vperm.xlu0 %1810, %v762
        %v1812 = vpop.permute.xlu0 %1811
        %1814 = vset.pattern.permute.xlu0 23
        %1815 = vperm.xlu0 %1814, %v765
        %v1816 = vpop.permute.xlu0 %1815
        %1818 = vset.pattern.permute.xlu0 23
        %1819 = vperm.xlu0 %1818, %v770
        %v1820 = vpop.permute.xlu0 %1819
        %1822 = vset.pattern.permute.xlu0 23
        %1823 = vperm.xlu0 %1822, %v773
        %v1824 = vpop.permute.xlu0 %1823
        %v1826 = vlaneseq
        %v1827 = vshrl.u32 %v1826, 7
        %v1828 = vsub.s32 7, %v1827
        %v1829 = vrot.slane %v792, %v1828
        %v1830 = vadd.f32 %v1764, %v1829
        %v1831 = vadd.f32 %v1768, %v1829
        %v1832 = vadd.f32 %v1772, %v1829
        %v1833 = vadd.f32 %v1776, %v1829
        %v1834 = vadd.f32 %v1780, %v1829
        %v1835 = vadd.f32 %v1784, %v1829
        %v1836 = vadd.f32 %v1788, %v1829
        %v1837 = vadd.f32 %v1792, %v1829
        %v1838 = vadd.f32 %v1796, %v1829
        %v1839 = vadd.f32 %v1800, %v1829
        %v1840 = vadd.f32 %v1804, %v1829
        %v1841 = vadd.f32 %v1808, %v1829
        %v1842 = vadd.f32 %v1812, %v1829
        %v1843 = vadd.f32 %v1816, %v1829
        %v1844 = vadd.f32 %v1820, %v1829
        %v1845 = vadd.f32 %v1824, %v1829
        %s1846 = sld [smem:[#allocation4 + $0x7]]
        %v1847 = vmul.f32 %v1830, 0.2
        %v1848 = vmul.f32 %v1831, 0.2
        %v1849 = vmul.f32 %v1832, 0.2
        %v1850 = vmul.f32 %v1833, 0.2
        %v1851 = vmul.f32 %v1834, 0.2
        %v1852 = vmul.f32 %v1835, 0.2
        %v1853 = vmul.f32 %v1836, 0.2
        %v1854 = vmul.f32 %v1837, 0.2
        %v1855 = vmul.f32 %v1838, 0.2
        %v1856 = vmul.f32 %v1839, 0.2
        %v1857 = vmul.f32 %v1840, 0.2
        %v1858 = vmul.f32 %v1841, 0.2
        %v1859 = vmul.f32 %v1842, 0.2
        %v1860 = vmul.f32 %v1843, 0.2
        %v1861 = vmul.f32 %v1844, 0.2
        %v1862 = vmul.f32 %v1845, 0.2
        %v1863 = vmax.f32 %v1830, %v1847
        %v1864 = vmax.f32 %v1831, %v1848
        %v1865 = vmax.f32 %v1832, %v1849
        %v1866 = vmax.f32 %v1833, %v1850
        %v1867 = vmax.f32 %v1834, %v1851
        %v1868 = vmax.f32 %v1835, %v1852
        %v1869 = vmax.f32 %v1836, %v1853
        %v1870 = vmax.f32 %v1837, %v1854
        %v1871 = vmax.f32 %v1838, %v1855
        %v1872 = vmax.f32 %v1839, %v1856
        %v1873 = vmax.f32 %v1840, %v1857
        %v1874 = vmax.f32 %v1841, %v1858
        %v1875 = vmax.f32 %v1842, %v1859
        %v1876 = vmax.f32 %v1843, %v1860
        %v1877 = vmax.f32 %v1844, %v1861
        %v1878 = vmax.f32 %v1845, %v1862
        %v1879 = vstv %s1846
        %v1880 = vmul.f32 %v1879, %v1863
        %v1881 = vmul.f32 %v1879, %v1864
        %v1882 = vmul.f32 %v1879, %v1865
        %v1883 = vmul.f32 %v1879, %v1866
        %v1884 = vmul.f32 %v1879, %v1867
        %v1885 = vmul.f32 %v1879, %v1868
        %v1886 = vmul.f32 %v1879, %v1869
        %v1887 = vmul.f32 %v1879, %v1870
        %v1888 = vmul.f32 %v1879, %v1871
        %v1889 = vmul.f32 %v1879, %v1872
        %v1890 = vmul.f32 %v1879, %v1873
        %v1891 = vmul.f32 %v1879, %v1874
        %v1892 = vmul.f32 %v1879, %v1875
        %v1893 = vmul.f32 %v1879, %v1876
        %v1894 = vmul.f32 %v1879, %v1877
        %v1895 = vmul.f32 %v1879, %v1878
        %v1896 = vadd.f32 %v942, %v1076
        %v1897 = vadd.f32 %v943, %v1077
        %v1898 = vadd.f32 %v944, %v1078
        %v1899 = vadd.f32 %v945, %v1079
        %v1900 = vadd.f32 %v946, %v1080
        %v1901 = vadd.f32 %v947, %v1081
        %v1902 = vadd.f32 %v948, %v1082
        %v1903 = vadd.f32 %v949, %v1083
        %v1904 = vadd.f32 %v950, %v1084
        %v1905 = vadd.f32 %v951, %v1085
        %v1906 = vadd.f32 %v952, %v1086
        %v1907 = vadd.f32 %v953, %v1087
        %v1908 = vadd.f32 %v954, %v1088
        %v1909 = vadd.f32 %v955, %v1089
        %v1910 = vadd.f32 %v956, %v1090
        %v1911 = vadd.f32 %v957, %v1091
        %v1912 = vadd.f32 %v1210, %v1344
        %v1913 = vadd.f32 %v1211, %v1345
        %v1914 = vadd.f32 %v1212, %v1346
        %v1915 = vadd.f32 %v1213, %v1347
        %v1916 = vadd.f32 %v1214, %v1348
        %v1917 = vadd.f32 %v1215, %v1349
        %v1918 = vadd.f32 %v1216, %v1350
        %v1919 = vadd.f32 %v1217, %v1351
        %v1920 = vadd.f32 %v1218, %v1352
        %v1921 = vadd.f32 %v1219, %v1353
        %v1922 = vadd.f32 %v1220, %v1354
        %v1923 = vadd.f32 %v1221, %v1355
        %v1924 = vadd.f32 %v1222, %v1356
        %v1925 = vadd.f32 %v1223, %v1357
        %v1926 = vadd.f32 %v1224, %v1358
        %v1927 = vadd.f32 %v1225, %v1359
        %v1928 = vadd.f32 %v1478, %v1612
        %v1929 = vadd.f32 %v1479, %v1613
        %v1930 = vadd.f32 %v1480, %v1614
        %v1931 = vadd.f32 %v1481, %v1615
        %v1932 = vadd.f32 %v1482, %v1616
        %v1933 = vadd.f32 %v1483, %v1617
        %v1934 = vadd.f32 %v1484, %v1618
        %v1935 = vadd.f32 %v1485, %v1619
        %v1936 = vadd.f32 %v1486, %v1620
        %v1937 = vadd.f32 %v1487, %v1621
        %v1938 = vadd.f32 %v1488, %v1622
        %v1939 = vadd.f32 %v1489, %v1623
        %v1940 = vadd.f32 %v1490, %v1624
        %v1941 = vadd.f32 %v1491, %v1625
        %v1942 = vadd.f32 %v1492, %v1626
        %v1943 = vadd.f32 %v1493, %v1627
        %v1944 = vadd.f32 %v1746, %v1880
        %v1945 = vadd.f32 %v1747, %v1881
        %v1946 = vadd.f32 %v1748, %v1882
        %v1947 = vadd.f32 %v1749, %v1883
        %v1948 = vadd.f32 %v1750, %v1884
        %v1949 = vadd.f32 %v1751, %v1885
        %v1950 = vadd.f32 %v1752, %v1886
        %v1951 = vadd.f32 %v1753, %v1887
        %v1952 = vadd.f32 %v1754, %v1888
        %v1953 = vadd.f32 %v1755, %v1889
        %v1954 = vadd.f32 %v1756, %v1890
        %v1955 = vadd.f32 %v1757, %v1891
        %v1956 = vadd.f32 %v1758, %v1892
        %v1957 = vadd.f32 %v1759, %v1893
        %v1958 = vadd.f32 %v1760, %v1894
        %v1959 = vadd.f32 %v1761, %v1895
        %v1960 = vadd.f32 %v1896, %v1912
        %v1961 = vadd.f32 %v1897, %v1913
        %v1962 = vadd.f32 %v1898, %v1914
        %v1963 = vadd.f32 %v1899, %v1915
        %v1964 = vadd.f32 %v1900, %v1916
        %v1965 = vadd.f32 %v1901, %v1917
        %v1966 = vadd.f32 %v1902, %v1918
        %v1967 = vadd.f32 %v1903, %v1919
        %v1968 = vadd.f32 %v1904, %v1920
        %v1969 = vadd.f32 %v1905, %v1921
        %v1970 = vadd.f32 %v1906, %v1922
        %v1971 = vadd.f32 %v1907, %v1923
        %v1972 = vadd.f32 %v1908, %v1924
        %v1973 = vadd.f32 %v1909, %v1925
        %v1974 = vadd.f32 %v1910, %v1926
        %v1975 = vadd.f32 %v1911, %v1927
        %v1976 = vadd.f32 %v1928, %v1944
        %v1977 = vadd.f32 %v1929, %v1945
        %v1978 = vadd.f32 %v1930, %v1946
        %v1979 = vadd.f32 %v1931, %v1947
        %v1980 = vadd.f32 %v1932, %v1948
        %v1981 = vadd.f32 %v1933, %v1949
        %v1982 = vadd.f32 %v1934, %v1950
        %v1983 = vadd.f32 %v1935, %v1951
        %v1984 = vadd.f32 %v1936, %v1952
        %v1985 = vadd.f32 %v1937, %v1953
        %v1986 = vadd.f32 %v1938, %v1954
        %v1987 = vadd.f32 %v1939, %v1955
        %v1988 = vadd.f32 %v1940, %v1956
        %v1989 = vadd.f32 %v1941, %v1957
        %v1990 = vadd.f32 %v1942, %v1958
        %v1991 = vadd.f32 %v1943, %v1959
        %v1992 = vadd.f32 %v1960, %v1976
        %v1993 = vadd.f32 %v1961, %v1977
        %v1994 = vadd.f32 %v1962, %v1978
        %v1995 = vadd.f32 %v1963, %v1979
        %v1996 = vadd.f32 %v1964, %v1980
        %v1997 = vadd.f32 %v1965, %v1981
        %v1998 = vadd.f32 %v1966, %v1982
        %v1999 = vadd.f32 %v1967, %v1983
        %v2000 = vadd.f32 %v1968, %v1984
        %v2001 = vadd.f32 %v1969, %v1985
        %v2002 = vadd.f32 %v1970, %v1986
        %v2003 = vadd.f32 %v1971, %v1987
        %v2004 = vadd.f32 %v1972, %v1988
        %v2005 = vadd.f32 %v1973, %v1989
        %v2006 = vadd.f32 %v1974, %v1990
        %v2007 = vadd.f32 %v1975, %v1991
        %v2008 = vadd.f32 %v1992, %v550
        %v2009 = vadd.f32 %v1993, %v551
        %v2010 = vadd.f32 %v1994, %v552
        %v2011 = vadd.f32 %v1995, %v553
        %v2012 = vadd.f32 %v1996, %v554
        %v2013 = vadd.f32 %v1997, %v555
        %v2014 = vadd.f32 %v1998, %v556
        %v2015 = vadd.f32 %v1999, %v557
        %v2016 = vadd.f32 %v2000, %v558
        %v2017 = vadd.f32 %v2001, %v559
        %v2018 = vadd.f32 %v2002, %v560
        %v2019 = vadd.f32 %v2003, %v561
        %v2020 = vadd.f32 %v2004, %v562
        %v2021 = vadd.f32 %v2005, %v563
        %v2022 = vadd.f32 %v2006, %v564
        %v2023 = vadd.f32 %v2007, %v565
        %2024 = vmax.xlane.f32.xlu0 %v2008
        %v2025 = vpop.xlane.xlu0 %2024
        %2026 = vmax.xlane.f32.xlu0 %v2009
        %v2027 = vpop.xlane.xlu0 %2026
        %2028 = vmax.xlane.f32.xlu0 %v2010
        %v2029 = vpop.xlane.xlu0 %2028
        %2030 = vmax.xlane.f32.xlu0 %v2011
        %v2031 = vpop.xlane.xlu0 %2030
        %2032 = vmax.xlane.f32.xlu0 %v2012
        %v2033 = vpop.xlane.xlu0 %2032
        %2034 = vmax.xlane.f32.xlu0 %v2013
        %v2035 = vpop.xlane.xlu0 %2034
        %2036 = vmax.xlane.f32.xlu0 %v2014
        %v2037 = vpop.xlane.xlu0 %2036
        %2038 = vmax.xlane.f32.xlu0 %v2015
        %v2039 = vpop.xlane.xlu0 %2038
        %2040 = vmax.xlane.f32.xlu0 %v2016
        %v2041 = vpop.xlane.xlu0 %2040
        %2042 = vmax.xlane.f32.xlu0 %v2017
        %v2043 = vpop.xlane.xlu0 %2042
        %2044 = vmax.xlane.f32.xlu0 %v2018
        %v2045 = vpop.xlane.xlu0 %2044
        %2046 = vmax.xlane.f32.xlu0 %v2019
        %v2047 = vpop.xlane.xlu0 %2046
        %2048 = vmax.xlane.f32.xlu0 %v2020
        %v2049 = vpop.xlane.xlu0 %2048
        %2050 = vmax.xlane.f32.xlu0 %v2021
        %v2051 = vpop.xlane.xlu0 %2050
        %2052 = vmax.xlane.f32.xlu0 %v2022
        %v2053 = vpop.xlane.xlu0 %2052
        %2054 = vmax.xlane.f32.xlu0 %v2023
        %v2055 = vpop.xlane.xlu0 %2054
        %v2056 = vsub.f32 %v2008, %v2025
        %v2057 = vsub.f32 %v2009, %v2027
        %v2058 = vsub.f32 %v2010, %v2029
        %v2059 = vsub.f32 %v2011, %v2031
        %v2060 = vsub.f32 %v2012, %v2033
        %v2061 = vsub.f32 %v2013, %v2035
        %v2062 = vsub.f32 %v2014, %v2037
        %v2063 = vsub.f32 %v2015, %v2039
        %v2064 = vsub.f32 %v2016, %v2041
        %v2065 = vsub.f32 %v2017, %v2043
        %v2066 = vsub.f32 %v2018, %v2045
        %v2067 = vsub.f32 %v2019, %v2047
        %v2068 = vsub.f32 %v2020, %v2049
        %v2069 = vsub.f32 %v2021, %v2051
        %v2070 = vsub.f32 %v2022, %v2053
        %v2071 = vsub.f32 %v2023, %v2055
        %v2072 = vmul.f32 %v2056, 1.442695
        %v2073 = vpow.pop %v2072
        %v2074 = vmul.f32 %v2057, 1.442695
        %v2075 = vpow.pop %v2074
        %v2076 = vmul.f32 %v2058, 1.442695
        %v2077 = vpow.pop %v2076
        %v2078 = vmul.f32 %v2059, 1.442695
        %v2079 = vpow.pop %v2078
        %v2080 = vmul.f32 %v2060, 1.442695
        %v2081 = vpow.pop %v2080
        %v2082 = vmul.f32 %v2061, 1.442695
        %v2083 = vpow.pop %v2082
        %v2084 = vmul.f32 %v2062, 1.442695
        %v2085 = vpow.pop %v2084
        %v2086 = vmul.f32 %v2063, 1.442695
        %v2087 = vpow.pop %v2086
        %v2088 = vmul.f32 %v2064, 1.442695
        %v2089 = vpow.pop %v2088
        %v2090 = vmul.f32 %v2065, 1.442695
        %v2091 = vpow.pop %v2090
        %v2092 = vmul.f32 %v2066, 1.442695
        %v2093 = vpow.pop %v2092
        %v2094 = vmul.f32 %v2067, 1.442695
        %v2095 = vpow.pop %v2094
        %v2096 = vmul.f32 %v2068, 1.442695
        %v2097 = vpow.pop %v2096
        %v2098 = vmul.f32 %v2069, 1.442695
        %v2099 = vpow.pop %v2098
        %v2100 = vmul.f32 %v2070, 1.442695
        %v2101 = vpow.pop %v2100
        %v2102 = vmul.f32 %v2071, 1.442695
        %v2103 = vpow.pop %v2102
        %2104 = vadd.xlane.f32.xlu0 %v2073
        %v2105 = vpop.xlane.xlu0 %2104
        %2106 = vadd.xlane.f32.xlu0 %v2075
        %v2107 = vpop.xlane.xlu0 %2106
        %2108 = vadd.xlane.f32.xlu0 %v2077
        %v2109 = vpop.xlane.xlu0 %2108
        %2110 = vadd.xlane.f32.xlu0 %v2079
        %v2111 = vpop.xlane.xlu0 %2110
        %2112 = vadd.xlane.f32.xlu0 %v2081
        %v2113 = vpop.xlane.xlu0 %2112
        %2114 = vadd.xlane.f32.xlu0 %v2083
        %v2115 = vpop.xlane.xlu0 %2114
        %2116 = vadd.xlane.f32.xlu0 %v2085
        %v2117 = vpop.xlane.xlu0 %2116
        %2118 = vadd.xlane.f32.xlu0 %v2087
        %v2119 = vpop.xlane.xlu0 %2118
        %2120 = vadd.xlane.f32.xlu0 %v2089
        %v2121 = vpop.xlane.xlu0 %2120
        %2122 = vadd.xlane.f32.xlu0 %v2091
        %v2123 = vpop.xlane.xlu0 %2122
        %2124 = vadd.xlane.f32.xlu0 %v2093
        %v2125 = vpop.xlane.xlu0 %2124
        %2126 = vadd.xlane.f32.xlu0 %v2095
        %v2127 = vpop.xlane.xlu0 %2126
        %2128 = vadd.xlane.f32.xlu0 %v2097
        %v2129 = vpop.xlane.xlu0 %2128
        %2130 = vadd.xlane.f32.xlu0 %v2099
        %v2131 = vpop.xlane.xlu0 %2130
        %2132 = vadd.xlane.f32.xlu0 %v2101
        %v2133 = vpop.xlane.xlu0 %2132
        %2134 = vadd.xlane.f32.xlu0 %v2103
        %v2135 = vpop.xlane.xlu0 %2134
        %v2136 = vrcp.pop %v2105
        %v2137 = vrcp.pop %v2107
        %v2138 = vrcp.pop %v2109
        %v2139 = vrcp.pop %v2111
        %v2140 = vrcp.pop %v2113
        %v2141 = vrcp.pop %v2115
        %v2142 = vrcp.pop %v2117
        %v2143 = vrcp.pop %v2119
        %v2144 = vrcp.pop %v2121
        %v2145 = vrcp.pop %v2123
        %v2146 = vrcp.pop %v2125
        %v2147 = vrcp.pop %v2127
        %v2148 = vrcp.pop %v2129
        %v2149 = vrcp.pop %v2131
        %v2150 = vrcp.pop %v2133
        %v2151 = vrcp.pop %v2135
        %v2152 = vpack.c.bf16 %v2075, %v2073
        %v2153 = vpack.c.bf16 %v2079, %v2077
        %v2154 = vpack.c.bf16 %v2083, %v2081
        %v2155 = vpack.c.bf16 %v2087, %v2085
        %v2156 = vpack.c.bf16 %v2091, %v2089
        %v2157 = vpack.c.bf16 %v2095, %v2093
        %v2158 = vpack.c.bf16 %v2099, %v2097
        %v2159 = vpack.c.bf16 %v2103, %v2101
        %v2160 = vpack.c.bf16 %v717, %v714
        %v2161 = vpack.c.bf16 %v725, %v722
        %v2162 = vpack.c.bf16 %v733, %v730
        %v2163 = vpack.c.bf16 %v741, %v738
        %v2164 = vpack.c.bf16 %v749, %v746
        %v2165 = vpack.c.bf16 %v757, %v754
        %v2166 = vpack.c.bf16 %v765, %v762
        %v2167 = vpack.c.bf16 %v773, %v770
        %2168 = vmatprep.subr.bf16.mxu0 0
        %2169 = vmatpush1.bf16.msra.mxu0 %v2160
        %2170 = vmatprep.subr.bf16.mxu0 0
        %2171 = vmatpush1.bf16.msra.mxu0 %v2161
        %2172 = vmatprep.subr.bf16.mxu0 0
        %2173 = vmatpush1.bf16.msra.mxu0 %v2162
        %2174 = vmatprep.subr.bf16.mxu0 0
        %2175 = vmatpush1.bf16.msra.mxu0 %v2163
        %2176 = vmatprep.subr.bf16.mxu0 0
        %2177 = vmatpush1.bf16.msra.mxu0 %v2164
        %2178 = vmatprep.subr.bf16.mxu0 0
        %2179 = vmatpush1.bf16.msra.mxu0 %v2165
        %2180 = vmatprep.subr.bf16.mxu0 0
        %2181 = vmatpush1.bf16.msra.mxu0 %v2166
        %2182 = vmatprep.subr.bf16.mxu0 0
        %2183 = vmatpush1.bf16.msra.mxu0 %v2167
        %2184 = vmatprep.subr.bf16.mxu0 0
        %2185 = vmatpush1.bf16.msra.mxu0 0
        %2186 = vmatprep.subr.bf16.mxu0 0
        %2187 = vmatpush1.bf16.msra.mxu0 0
        %2188 = vmatprep.subr.bf16.mxu0 0
        %2189 = vmatpush1.bf16.msra.mxu0 0
        %2190 = vmatprep.subr.bf16.mxu0 0
        %2191 = vmatpush1.bf16.msra.mxu0 0
        %2192 = vmatprep.subr.bf16.mxu0 0
        %2193 = vmatpush1.bf16.msra.mxu0 0
        %2194 = vmatprep.subr.bf16.mxu0 0
        %2195 = vmatpush1.bf16.msra.mxu0 0
        %2196 = vmatprep.subr.bf16.mxu0 0
        %2197 = vmatpush1.bf16.msra.mxu0 0
        %2198 = vmatprep.subr.bf16.mxu0 0
        %2199 = vmatpush1.bf16.msra.mxu0 0
        %2200 = vmatprep.mubr.bf16.mxu0 0
        %2201 = vmatmul.mubr.bf16.gmra.mrb[0].mxu0 %v2152
        %v2202 = vpop.f32.mrb[0].mxu0
        %v2203 = vadd.f32 0.0, %v2202
        %v2204 = vpop.f32.mrb[0].mxu0
        %v2205 = vpop.f32.mrb[0].mxu0
        %v2206 = vadd.f32 0.0, %v2205
        %v2207 = vpop.f32.mrb[0].mxu0
        %2208 = vmatprep.mubr.bf16.mxu0 0
        %2209 = vmatmul.mubr.bf16.gmra.mrb[0].mxu0 %v2153
        %v2210 = vpop.f32.mrb[0].mxu0
        %v2211 = vadd.f32 0.0, %v2210
        %v2212 = vpop.f32.mrb[0].mxu0
        %v2213 = vpop.f32.mrb[0].mxu0
        %v2214 = vadd.f32 0.0, %v2213
        %v2215 = vpop.f32.mrb[0].mxu0
        %2216 = vmatprep.mubr.bf16.mxu0 0
        %2217 = vmatmul.mubr.bf16.gmra.mrb[0].mxu0 %v2154
        %v2218 = vpop.f32.mrb[0].mxu0
        %v2219 = vadd.f32 0.0, %v2218
        %v2220 = vpop.f32.mrb[0].mxu0
        %v2221 = vpop.f32.mrb[0].mxu0
        %v2222 = vadd.f32 0.0, %v2221
        %v2223 = vpop.f32.mrb[0].mxu0
        %2224 = vmatprep.mubr.bf16.mxu0 0
        %2225 = vmatmul.mubr.bf16.gmra.mrb[0].mxu0 %v2155
        %v2226 = vpop.f32.mrb[0].mxu0
        %v2227 = vadd.f32 0.0, %v2226
        %v2228 = vpop.f32.mrb[0].mxu0
        %v2229 = vpop.f32.mrb[0].mxu0
        %v2230 = vadd.f32 0.0, %v2229
        %v2231 = vpop.f32.mrb[0].mxu0
        %2232 = vmatprep.mubr.bf16.mxu0 0
        %2233 = vmatmul.mubr.bf16.gmra.mrb[0].mxu0 %v2156
        %v2234 = vpop.f32.mrb[0].mxu0
        %v2235 = vadd.f32 0.0, %v2234
        %v2236 = vpop.f32.mrb[0].mxu0
        %v2237 = vpop.f32.mrb[0].mxu0
        %v2238 = vadd.f32 0.0, %v2237
        %v2239 = vpop.f32.mrb[0].mxu0
        %2240 = vmatprep.mubr.bf16.mxu0 0
        %2241 = vmatmul.mubr.bf16.gmra.mrb[0].mxu0 %v2157
        %v2242 = vpop.f32.mrb[0].mxu0
        %v2243 = vadd.f32 0.0, %v2242
        %v2244 = vpop.f32.mrb[0].mxu0
        %v2245 = vpop.f32.mrb[0].mxu0
        %v2246 = vadd.f32 0.0, %v2245
        %v2247 = vpop.f32.mrb[0].mxu0
        %2248 = vmatprep.mubr.bf16.mxu0 0
        %2249 = vmatmul.mubr.bf16.gmra.mrb[0].mxu0 %v2158
        %v2250 = vpop.f32.mrb[0].mxu0
        %v2251 = vadd.f32 0.0, %v2250
        %v2252 = vpop.f32.mrb[0].mxu0
        %v2253 = vpop.f32.mrb[0].mxu0
        %v2254 = vadd.f32 0.0, %v2253
        %v2255 = vpop.f32.mrb[0].mxu0
        %2256 = vmatprep.mubr.bf16.mxu0 0
        %2257 = vmatmul.mubr.bf16.gmra.mrb[0].mxu0 %v2159
        %v2258 = vpop.f32.mrb[0].mxu0
        %v2259 = vadd.f32 0.0, %v2258
        %v2260 = vpop.f32.mrb[0].mxu0
        %v2261 = vpop.f32.mrb[0].mxu0
        %v2262 = vadd.f32 0.0, %v2261
        %v2263 = vpop.f32.mrb[0].mxu0
        %2264 = vdwg.mxu0
        %v2265 = vmul.f32 %v2203, %v2136
        %v2266 = vmul.f32 %v2206, %v2137
        %v2267 = vmul.f32 %v2211, %v2138
        %v2268 = vmul.f32 %v2214, %v2139
        %v2269 = vmul.f32 %v2219, %v2140
        %v2270 = vmul.f32 %v2222, %v2141
        %v2271 = vmul.f32 %v2227, %v2142
        %v2272 = vmul.f32 %v2230, %v2143
        %v2273 = vmul.f32 %v2235, %v2144
        %v2274 = vmul.f32 %v2238, %v2145
        %v2275 = vmul.f32 %v2243, %v2146
        %v2276 = vmul.f32 %v2246, %v2147
        %v2277 = vmul.f32 %v2251, %v2148
        %v2278 = vmul.f32 %v2254, %v2149
        %v2279 = vmul.f32 %v2259, %v2150
        %v2280 = vmul.f32 %v2262, %v2151
        %v2281 = vld [vmem:[%s5] sm:$0x1]
        %v2283 = vlaneseq
        %v2284 = vshrl.u32 %v2283, 7
        %v2285 = vsub.s32 0, %v2284
        %v2286 = vrot.slane %v2281, %v2285
        %v2288 = vadd.f32 %v2265, %v2286
        %v2289 = vadd.f32 %v2266, %v2286
        %v2290 = vadd.f32 %v2267, %v2286
        %v2291 = vadd.f32 %v2268, %v2286
        %v2292 = vadd.f32 %v2269, %v2286
        %v2293 = vadd.f32 %v2270, %v2286
        %v2294 = vadd.f32 %v2271, %v2286
        %v2295 = vadd.f32 %v2272, %v2286
        %v2296 = vadd.f32 %v2273, %v2286
        %v2297 = vadd.f32 %v2274, %v2286
        %v2298 = vadd.f32 %v2275, %v2286
        %v2299 = vadd.f32 %v2276, %v2286
        %v2300 = vadd.f32 %v2277, %v2286
        %v2301 = vadd.f32 %v2278, %v2286
        %v2302 = vadd.f32 %v2279, %v2286
        %v2303 = vadd.f32 %v2280, %v2286
        %v2304 = vmax.f32 %v2288, 0.0
        %v2305 = vmax.f32 %v2289, 0.0
        %v2306 = vmax.f32 %v2290, 0.0
        %v2307 = vmax.f32 %v2291, 0.0
        %v2308 = vmax.f32 %v2292, 0.0
        %v2309 = vmax.f32 %v2293, 0.0
        %v2310 = vmax.f32 %v2294, 0.0
        %v2311 = vmax.f32 %v2295, 0.0
        %v2312 = vmax.f32 %v2296, 0.0
        %v2313 = vmax.f32 %v2297, 0.0
        %v2314 = vmax.f32 %v2298, 0.0
        %v2315 = vmax.f32 %v2299, 0.0
        %v2316 = vmax.f32 %v2300, 0.0
        %v2317 = vmax.f32 %v2301, 0.0
        %v2318 = vmax.f32 %v2302, 0.0
        %v2319 = vmax.f32 %v2303, 0.0
        %v2320 = vpack.c.bf16 %v2305, %v2304
        %v2321 = vpack.c.bf16 %v2307, %v2306
        %v2322 = vpack.c.bf16 %v2309, %v2308
        %v2323 = vpack.c.bf16 %v2311, %v2310
        %v2324 = vpack.c.bf16 %v2313, %v2312
        %v2325 = vpack.c.bf16 %v2315, %v2314
        %v2326 = vpack.c.bf16 %v2317, %v2316
        %v2327 = vpack.c.bf16 %v2319, %v2318
        %v2328 = vld [vmem:[%s6] sm:$0xf]
        %2329 = vset.pattern.permute.xlu0 24
        %2330 = vperm.xlu0 %2329, %v714
        %v2331 = vpop.permute.xlu0 %2330
        %2333 = vset.pattern.permute.xlu0 24
        %2334 = vperm.xlu0 %2333, %v717
        %v2335 = vpop.permute.xlu0 %2334
        %2337 = vset.pattern.permute.xlu0 24
        %2338 = vperm.xlu0 %2337, %v722
        %v2339 = vpop.permute.xlu0 %2338
        %2341 = vset.pattern.permute.xlu0 24
        %2342 = vperm.xlu0 %2341, %v725
        %v2343 = vpop.permute.xlu0 %2342
        %2345 = vset.pattern.permute.xlu0 24
        %2346 = vperm.xlu0 %2345, %v730
        %v2347 = vpop.permute.xlu0 %2346
        %2349 = vset.pattern.permute.xlu0 24
        %2350 = vperm.xlu0 %2349, %v733
        %v2351 = vpop.permute.xlu0 %2350
        %2353 = vset.pattern.permute.xlu0 24
        %2354 = vperm.xlu0 %2353, %v738
        %v2355 = vpop.permute.xlu0 %2354
        %2357 = vset.pattern.permute.xlu0 24
        %2358 = vperm.xlu0 %2357, %v741
        %v2359 = vpop.permute.xlu0 %2358
        %2361 = vset.pattern.permute.xlu0 24
        %2362 = vperm.xlu0 %2361, %v746
        %v2363 = vpop.permute.xlu0 %2362
        %2365 = vset.pattern.permute.xlu0 24
        %2366 = vperm.xlu0 %2365, %v749
        %v2367 = vpop.permute.xlu0 %2366
        %2369 = vset.pattern.permute.xlu0 24
        %2370 = vperm.xlu0 %2369, %v754
        %v2371 = vpop.permute.xlu0 %2370
        %2373 = vset.pattern.permute.xlu0 24
        %2374 = vperm.xlu0 %2373, %v757
        %v2375 = vpop.permute.xlu0 %2374
        %2377 = vset.pattern.permute.xlu0 24
        %2378 = vperm.xlu0 %2377, %v762
        %v2379 = vpop.permute.xlu0 %2378
        %2381 = vset.pattern.permute.xlu0 24
        %2382 = vperm.xlu0 %2381, %v765
        %v2383 = vpop.permute.xlu0 %2382
        %2385 = vset.pattern.permute.xlu0 24
        %2386 = vperm.xlu0 %2385, %v770
        %v2387 = vpop.permute.xlu0 %2386
        %2389 = vset.pattern.permute.xlu0 24
        %2390 = vperm.xlu0 %2389, %v773
        %v2391 = vpop.permute.xlu0 %2390
        %v2393 = vlaneseq
        %v2394 = vshrl.u32 %v2393, 7
        %v2395 = vsub.s32 0, %v2394
        %v2396 = vrot.slane %v793, %v2395
        %v2397 = vadd.f32 %v2331, %v2396
        %v2398 = vadd.f32 %v2335, %v2396
        %v2399 = vadd.f32 %v2339, %v2396
        %v2400 = vadd.f32 %v2343, %v2396
        %v2401 = vadd.f32 %v2347, %v2396
        %v2402 = vadd.f32 %v2351, %v2396
        %v2403 = vadd.f32 %v2355, %v2396
        %v2404 = vadd.f32 %v2359, %v2396
        %v2405 = vadd.f32 %v2363, %v2396
        %v2406 = vadd.f32 %v2367, %v2396
        %v2407 = vadd.f32 %v2371, %v2396
        %v2408 = vadd.f32 %v2375, %v2396
        %v2409 = vadd.f32 %v2379, %v2396
        %v2410 = vadd.f32 %v2383, %v2396
        %v2411 = vadd.f32 %v2387, %v2396
        %v2412 = vadd.f32 %v2391, %v2396
        %s2413 = sld [smem:[#allocation4 + $0x80]]
        %v2414 = vmul.f32 %v2397, 0.2
        %v2415 = vmul.f32 %v2398, 0.2
        %v2416 = vmul.f32 %v2399, 0.2
        %v2417 = vmul.f32 %v2400, 0.2
        %v2418 = vmul.f32 %v2401, 0.2
        %v2419 = vmul.f32 %v2402, 0.2
        %v2420 = vmul.f32 %v2403, 0.2
        %v2421 = vmul.f32 %v2404, 0.2
        %v2422 = vmul.f32 %v2405, 0.2
        %v2423 = vmul.f32 %v2406, 0.2
        %v2424 = vmul.f32 %v2407, 0.2
        %v2425 = vmul.f32 %v2408, 0.2
        %v2426 = vmul.f32 %v2409, 0.2
        %v2427 = vmul.f32 %v2410, 0.2
        %v2428 = vmul.f32 %v2411, 0.2
        %v2429 = vmul.f32 %v2412, 0.2
        %v2430 = vmax.f32 %v2397, %v2414
        %v2431 = vmax.f32 %v2398, %v2415
        %v2432 = vmax.f32 %v2399, %v2416
        %v2433 = vmax.f32 %v2400, %v2417
        %v2434 = vmax.f32 %v2401, %v2418
        %v2435 = vmax.f32 %v2402, %v2419
        %v2436 = vmax.f32 %v2403, %v2420
        %v2437 = vmax.f32 %v2404, %v2421
        %v2438 = vmax.f32 %v2405, %v2422
        %v2439 = vmax.f32 %v2406, %v2423
        %v2440 = vmax.f32 %v2407, %v2424
        %v2441 = vmax.f32 %v2408, %v2425
        %v2442 = vmax.f32 %v2409, %v2426
        %v2443 = vmax.f32 %v2410, %v2427
        %v2444 = vmax.f32 %v2411, %v2428
        %v2445 = vmax.f32 %v2412, %v2429
        %v2446 = vstv %s2413
        %v2447 = vmul.f32 %v2446, %v2430
        %v2448 = vmul.f32 %v2446, %v2431
        %v2449 = vmul.f32 %v2446, %v2432
        %v2450 = vmul.f32 %v2446, %v2433
        %v2451 = vmul.f32 %v2446, %v2434
        %v2452 = vmul.f32 %v2446, %v2435
        %v2453 = vmul.f32 %v2446, %v2436
        %v2454 = vmul.f32 %v2446, %v2437
        %v2455 = vmul.f32 %v2446, %v2438
        %v2456 = vmul.f32 %v2446, %v2439
        %v2457 = vmul.f32 %v2446, %v2440
        %v2458 = vmul.f32 %v2446, %v2441
        %v2459 = vmul.f32 %v2446, %v2442
        %v2460 = vmul.f32 %v2446, %v2443
        %v2461 = vmul.f32 %v2446, %v2444
        %v2462 = vmul.f32 %v2446, %v2445
        %2463 = vset.pattern.permute.xlu0 25
        %2464 = vperm.xlu0 %2463, %v714
        %v2465 = vpop.permute.xlu0 %2464
        %2467 = vset.pattern.permute.xlu0 25
        %2468 = vperm.xlu0 %2467, %v717
        %v2469 = vpop.permute.xlu0 %2468
        %2471 = vset.pattern.permute.xlu0 25
        %2472 = vperm.xlu0 %2471, %v722
        %v2473 = vpop.permute.xlu0 %2472
        %2475 = vset.pattern.permute.xlu0 25
        %2476 = vperm.xlu0 %2475, %v725
        %v2477 = vpop.permute.xlu0 %2476
        %2479 = vset.pattern.permute.xlu0 25
        %2480 = vperm.xlu0 %2479, %v730
        %v2481 = vpop.permute.xlu0 %2480
        %2483 = vset.pattern.permute.xlu0 25
        %2484 = vperm.xlu0 %2483, %v733
        %v2485 = vpop.permute.xlu0 %2484
        %2487 = vset.pattern.permute.xlu0 25
        %2488 = vperm.xlu0 %2487, %v738
        %v2489 = vpop.permute.xlu0 %2488
        %2491 = vset.pattern.permute.xlu0 25
        %2492 = vperm.xlu0 %2491, %v741
        %v2493 = vpop.permute.xlu0 %2492
        %2495 = vset.pattern.permute.xlu0 25
        %2496 = vperm.xlu0 %2495, %v746
        %v2497 = vpop.permute.xlu0 %2496
        %2499 = vset.pattern.permute.xlu0 25
        %2500 = vperm.xlu0 %2499, %v749
        %v2501 = vpop.permute.xlu0 %2500
        %2503 = vset.pattern.permute.xlu0 25
        %2504 = vperm.xlu0 %2503, %v754
        %v2505 = vpop.permute.xlu0 %2504
        %2507 = vset.pattern.permute.xlu0 25
        %2508 = vperm.xlu0 %2507, %v757
        %v2509 = vpop.permute.xlu0 %2508
        %2511 = vset.pattern.permute.xlu0 25
        %2512 = vperm.xlu0 %2511, %v762
        %v2513 = vpop.permute.xlu0 %2512
        %2515 = vset.pattern.permute.xlu0 25
        %2516 = vperm.xlu0 %2515, %v765
        %v2517 = vpop.permute.xlu0 %2516
        %2519 = vset.pattern.permute.xlu0 25
        %2520 = vperm.xlu0 %2519, %v770
        %v2521 = vpop.permute.xlu0 %2520
        %2523 = vset.pattern.permute.xlu0 25
        %2524 = vperm.xlu0 %2523, %v773
        %v2525 = vpop.permute.xlu0 %2524
        %v2527 = vlaneseq
        %v2528 = vshrl.u32 %v2527, 7
        %v2529 = vsub.s32 1, %v2528
        %v2530 = vrot.slane %v793, %v2529
        %v2531 = vadd.f32 %v2465, %v2530
        %v2532 = vadd.f32 %v2469, %v2530
        %v2533 = vadd.f32 %v2473, %v2530
        %v2534 = vadd.f32 %v2477, %v2530
        %v2535 = vadd.f32 %v2481, %v2530
        %v2536 = vadd.f32 %v2485, %v2530
        %v2537 = vadd.f32 %v2489, %v2530
        %v2538 = vadd.f32 %v2493, %v2530
        %v2539 = vadd.f32 %v2497, %v2530
        %v2540 = vadd.f32 %v2501, %v2530
        %v2541 = vadd.f32 %v2505, %v2530
        %v2542 = vadd.f32 %v2509, %v2530
        %v2543 = vadd.f32 %v2513, %v2530
        %v2544 = vadd.f32 %v2517, %v2530
        %v2545 = vadd.f32 %v2521, %v2530
        %v2546 = vadd.f32 %v2525, %v2530
        %s2547 = sld [smem:[#allocation4 + $0x81]]
        %v2548 = vmul.f32 %v2531, 0.2
        %v2549 = vmul.f32 %v2532, 0.2
        %v2550 = vmul.f32 %v2533, 0.2
        %v2551 = vmul.f32 %v2534, 0.2
        %v2552 = vmul.f32 %v2535, 0.2
        %v2553 = vmul.f32 %v2536, 0.2
        %v2554 = vmul.f32 %v2537, 0.2
        %v2555 = vmul.f32 %v2538, 0.2
        %v2556 = vmul.f32 %v2539, 0.2
        %v2557 = vmul.f32 %v2540, 0.2
        %v2558 = vmul.f32 %v2541, 0.2
        %v2559 = vmul.f32 %v2542, 0.2
        %v2560 = vmul.f32 %v2543, 0.2
        %v2561 = vmul.f32 %v2544, 0.2
        %v2562 = vmul.f32 %v2545, 0.2
        %v2563 = vmul.f32 %v2546, 0.2
        %v2564 = vmax.f32 %v2531, %v2548
        %v2565 = vmax.f32 %v2532, %v2549
        %v2566 = vmax.f32 %v2533, %v2550
        %v2567 = vmax.f32 %v2534, %v2551
        %v2568 = vmax.f32 %v2535, %v2552
        %v2569 = vmax.f32 %v2536, %v2553
        %v2570 = vmax.f32 %v2537, %v2554
        %v2571 = vmax.f32 %v2538, %v2555
        %v2572 = vmax.f32 %v2539, %v2556
        %v2573 = vmax.f32 %v2540, %v2557
        %v2574 = vmax.f32 %v2541, %v2558
        %v2575 = vmax.f32 %v2542, %v2559
        %v2576 = vmax.f32 %v2543, %v2560
        %v2577 = vmax.f32 %v2544, %v2561
        %v2578 = vmax.f32 %v2545, %v2562
        %v2579 = vmax.f32 %v2546, %v2563
        %v2580 = vstv %s2547
        %v2581 = vmul.f32 %v2580, %v2564
        %v2582 = vmul.f32 %v2580, %v2565
        %v2583 = vmul.f32 %v2580, %v2566
        %v2584 = vmul.f32 %v2580, %v2567
        %v2585 = vmul.f32 %v2580, %v2568
        %v2586 = vmul.f32 %v2580, %v2569
        %v2587 = vmul.f32 %v2580, %v2570
        %v2588 = vmul.f32 %v2580, %v2571
        %v2589 = vmul.f32 %v2580, %v2572
        %v2590 = vmul.f32 %v2580, %v2573
        %v2591 = vmul.f32 %v2580, %v2574
        %v2592 = vmul.f32 %v2580, %v2575
        %v2593 = vmul.f32 %v2580, %v2576
        %v2594 = vmul.f32 %v2580, %v2577
        %v2595 = vmul.f32 %v2580, %v2578
        %v2596 = vmul.f32 %v2580, %v2579
        %2597 = vset.pattern.permute.xlu0 26
        %2598 = vperm.xlu0 %2597, %v714
        %v2599 = vpop.permute.xlu0 %2598
        %2601 = vset.pattern.permute.xlu0 26
        %2602 = vperm.xlu0 %2601, %v717
        %v2603 = vpop.permute.xlu0 %2602
        %2605 = vset.pattern.permute.xlu0 26
        %2606 = vperm.xlu0 %2605, %v722
        %v2607 = vpop.permute.xlu0 %2606
        %2609 = vset.pattern.permute.xlu0 26
        %2610 = vperm.xlu0 %2609, %v725
        %v2611 = vpop.permute.xlu0 %2610
        %2613 = vset.pattern.permute.xlu0 26
        %2614 = vperm.xlu0 %2613, %v730
        %v2615 = vpop.permute.xlu0 %2614
        %2617 = vset.pattern.permute.xlu0 26
        %2618 = vperm.xlu0 %2617, %v733
        %v2619 = vpop.permute.xlu0 %2618
        %2621 = vset.pattern.permute.xlu0 26
        %2622 = vperm.xlu0 %2621, %v738
        %v2623 = vpop.permute.xlu0 %2622
        %2625 = vset.pattern.permute.xlu0 26
        %2626 = vperm.xlu0 %2625, %v741
        %v2627 = vpop.permute.xlu0 %2626
        %2629 = vset.pattern.permute.xlu0 26
        %2630 = vperm.xlu0 %2629, %v746
        %v2631 = vpop.permute.xlu0 %2630
        %2633 = vset.pattern.permute.xlu0 26
        %2634 = vperm.xlu0 %2633, %v749
        %v2635 = vpop.permute.xlu0 %2634
        %2637 = vset.pattern.permute.xlu0 26
        %2638 = vperm.xlu0 %2637, %v754
        %v2639 = vpop.permute.xlu0 %2638
        %2641 = vset.pattern.permute.xlu0 26
        %2642 = vperm.xlu0 %2641, %v757
        %v2643 = vpop.permute.xlu0 %2642
        %2645 = vset.pattern.permute.xlu0 26
        %2646 = vperm.xlu0 %2645, %v762
        %v2647 = vpop.permute.xlu0 %2646
        %2649 = vset.pattern.permute.xlu0 26
        %2650 = vperm.xlu0 %2649, %v765
        %v2651 = vpop.permute.xlu0 %2650
        %2653 = vset.pattern.permute.xlu0 26
        %2654 = vperm.xlu0 %2653, %v770
        %v2655 = vpop.permute.xlu0 %2654
        %2657 = vset.pattern.permute.xlu0 26
        %2658 = vperm.xlu0 %2657, %v773
        %v2659 = vpop.permute.xlu0 %2658
        %v2661 = vlaneseq
        %v2662 = vshrl.u32 %v2661, 7
        %v2663 = vsub.s32 2, %v2662
        %v2664 = vrot.slane %v793, %v2663
        %v2665 = vadd.f32 %v2599, %v2664
        %v2666 = vadd.f32 %v2603, %v2664
        %v2667 = vadd.f32 %v2607, %v2664
        %v2668 = vadd.f32 %v2611, %v2664
        %v2669 = vadd.f32 %v2615, %v2664
        %v2670 = vadd.f32 %v2619, %v2664
        %v2671 = vadd.f32 %v2623, %v2664
        %v2672 = vadd.f32 %v2627, %v2664
        %v2673 = vadd.f32 %v2631, %v2664
        %v2674 = vadd.f32 %v2635, %v2664
        %v2675 = vadd.f32 %v2639, %v2664
        %v2676 = vadd.f32 %v2643, %v2664
        %v2677 = vadd.f32 %v2647, %v2664
        %v2678 = vadd.f32 %v2651, %v2664
        %v2679 = vadd.f32 %v2655, %v2664
        %v2680 = vadd.f32 %v2659, %v2664
        %s2681 = sld [smem:[#allocation4 + $0x82]]
        %v2682 = vmul.f32 %v2665, 0.2
        %v2683 = vmul.f32 %v2666, 0.2
        %v2684 = vmul.f32 %v2667, 0.2
        %v2685 = vmul.f32 %v2668, 0.2
        %v2686 = vmul.f32 %v2669, 0.2
        %v2687 = vmul.f32 %v2670, 0.2
        %v2688 = vmul.f32 %v2671, 0.2
        %v2689 = vmul.f32 %v2672, 0.2
        %v2690 = vmul.f32 %v2673, 0.2
        %v2691 = vmul.f32 %v2674, 0.2
        %v2692 = vmul.f32 %v2675, 0.2
        %v2693 = vmul.f32 %v2676, 0.2
        %v2694 = vmul.f32 %v2677, 0.2
        %v2695 = vmul.f32 %v2678, 0.2
        %v2696 = vmul.f32 %v2679, 0.2
        %v2697 = vmul.f32 %v2680, 0.2
        %v2698 = vmax.f32 %v2665, %v2682
        %v2699 = vmax.f32 %v2666, %v2683
        %v2700 = vmax.f32 %v2667, %v2684
        %v2701 = vmax.f32 %v2668, %v2685
        %v2702 = vmax.f32 %v2669, %v2686
        %v2703 = vmax.f32 %v2670, %v2687
        %v2704 = vmax.f32 %v2671, %v2688
        %v2705 = vmax.f32 %v2672, %v2689
        %v2706 = vmax.f32 %v2673, %v2690
        %v2707 = vmax.f32 %v2674, %v2691
        %v2708 = vmax.f32 %v2675, %v2692
        %v2709 = vmax.f32 %v2676, %v2693
        %v2710 = vmax.f32 %v2677, %v2694
        %v2711 = vmax.f32 %v2678, %v2695
        %v2712 = vmax.f32 %v2679, %v2696
        %v2713 = vmax.f32 %v2680, %v2697
        %v2714 = vstv %s2681
        %v2715 = vmul.f32 %v2714, %v2698
        %v2716 = vmul.f32 %v2714, %v2699
        %v2717 = vmul.f32 %v2714, %v2700
        %v2718 = vmul.f32 %v2714, %v2701
        %v2719 = vmul.f32 %v2714, %v2702
        %v2720 = vmul.f32 %v2714, %v2703
        %v2721 = vmul.f32 %v2714, %v2704
        %v2722 = vmul.f32 %v2714, %v2705
        %v2723 = vmul.f32 %v2714, %v2706
        %v2724 = vmul.f32 %v2714, %v2707
        %v2725 = vmul.f32 %v2714, %v2708
        %v2726 = vmul.f32 %v2714, %v2709
        %v2727 = vmul.f32 %v2714, %v2710
        %v2728 = vmul.f32 %v2714, %v2711
        %v2729 = vmul.f32 %v2714, %v2712
        %v2730 = vmul.f32 %v2714, %v2713
        %2731 = vset.pattern.permute.xlu0 27
        %2732 = vperm.xlu0 %2731, %v714
        %v2733 = vpop.permute.xlu0 %2732
        %2735 = vset.pattern.permute.xlu0 27
        %2736 = vperm.xlu0 %2735, %v717
        %v2737 = vpop.permute.xlu0 %2736
        %2739 = vset.pattern.permute.xlu0 27
        %2740 = vperm.xlu0 %2739, %v722
        %v2741 = vpop.permute.xlu0 %2740
        %2743 = vset.pattern.permute.xlu0 27
        %2744 = vperm.xlu0 %2743, %v725
        %v2745 = vpop.permute.xlu0 %2744
        %2747 = vset.pattern.permute.xlu0 27
        %2748 = vperm.xlu0 %2747, %v730
        %v2749 = vpop.permute.xlu0 %2748
        %2751 = vset.pattern.permute.xlu0 27
        %2752 = vperm.xlu0 %2751, %v733
        %v2753 = vpop.permute.xlu0 %2752
        %2755 = vset.pattern.permute.xlu0 27
        %2756 = vperm.xlu0 %2755, %v738
        %v2757 = vpop.permute.xlu0 %2756
        %2759 = vset.pattern.permute.xlu0 27
        %2760 = vperm.xlu0 %2759, %v741
        %v2761 = vpop.permute.xlu0 %2760
        %2763 = vset.pattern.permute.xlu0 27
        %2764 = vperm.xlu0 %2763, %v746
        %v2765 = vpop.permute.xlu0 %2764
        %2767 = vset.pattern.permute.xlu0 27
        %2768 = vperm.xlu0 %2767, %v749
        %v2769 = vpop.permute.xlu0 %2768
        %2771 = vset.pattern.permute.xlu0 27
        %2772 = vperm.xlu0 %2771, %v754
        %v2773 = vpop.permute.xlu0 %2772
        %2775 = vset.pattern.permute.xlu0 27
        %2776 = vperm.xlu0 %2775, %v757
        %v2777 = vpop.permute.xlu0 %2776
        %2779 = vset.pattern.permute.xlu0 27
        %2780 = vperm.xlu0 %2779, %v762
        %v2781 = vpop.permute.xlu0 %2780
        %2783 = vset.pattern.permute.xlu0 27
        %2784 = vperm.xlu0 %2783, %v765
        %v2785 = vpop.permute.xlu0 %2784
        %2787 = vset.pattern.permute.xlu0 27
        %2788 = vperm.xlu0 %2787, %v770
        %v2789 = vpop.permute.xlu0 %2788
        %2791 = vset.pattern.permute.xlu0 27
        %2792 = vperm.xlu0 %2791, %v773
        %v2793 = vpop.permute.xlu0 %2792
        %v2795 = vlaneseq
        %v2796 = vshrl.u32 %v2795, 7
        %v2797 = vsub.s32 3, %v2796
        %v2798 = vrot.slane %v793, %v2797
        %v2799 = vadd.f32 %v2733, %v2798
        %v2800 = vadd.f32 %v2737, %v2798
        %v2801 = vadd.f32 %v2741, %v2798
        %v2802 = vadd.f32 %v2745, %v2798
        %v2803 = vadd.f32 %v2749, %v2798
        %v2804 = vadd.f32 %v2753, %v2798
        %v2805 = vadd.f32 %v2757, %v2798
        %v2806 = vadd.f32 %v2761, %v2798
        %v2807 = vadd.f32 %v2765, %v2798
        %v2808 = vadd.f32 %v2769, %v2798
        %v2809 = vadd.f32 %v2773, %v2798
        %v2810 = vadd.f32 %v2777, %v2798
        %v2811 = vadd.f32 %v2781, %v2798
        %v2812 = vadd.f32 %v2785, %v2798
        %v2813 = vadd.f32 %v2789, %v2798
        %v2814 = vadd.f32 %v2793, %v2798
        %s2815 = sld [smem:[#allocation4 + $0x83]]
        %v2816 = vmul.f32 %v2799, 0.2
        %v2817 = vmul.f32 %v2800, 0.2
        %v2818 = vmul.f32 %v2801, 0.2
        %v2819 = vmul.f32 %v2802, 0.2
        %v2820 = vmul.f32 %v2803, 0.2
        %v2821 = vmul.f32 %v2804, 0.2
        %v2822 = vmul.f32 %v2805, 0.2
        %v2823 = vmul.f32 %v2806, 0.2
        %v2824 = vmul.f32 %v2807, 0.2
        %v2825 = vmul.f32 %v2808, 0.2
        %v2826 = vmul.f32 %v2809, 0.2
        %v2827 = vmul.f32 %v2810, 0.2
        %v2828 = vmul.f32 %v2811, 0.2
        %v2829 = vmul.f32 %v2812, 0.2
        %v2830 = vmul.f32 %v2813, 0.2
        %v2831 = vmul.f32 %v2814, 0.2
        %v2832 = vmax.f32 %v2799, %v2816
        %v2833 = vmax.f32 %v2800, %v2817
        %v2834 = vmax.f32 %v2801, %v2818
        %v2835 = vmax.f32 %v2802, %v2819
        %v2836 = vmax.f32 %v2803, %v2820
        %v2837 = vmax.f32 %v2804, %v2821
        %v2838 = vmax.f32 %v2805, %v2822
        %v2839 = vmax.f32 %v2806, %v2823
        %v2840 = vmax.f32 %v2807, %v2824
        %v2841 = vmax.f32 %v2808, %v2825
        %v2842 = vmax.f32 %v2809, %v2826
        %v2843 = vmax.f32 %v2810, %v2827
        %v2844 = vmax.f32 %v2811, %v2828
        %v2845 = vmax.f32 %v2812, %v2829
        %v2846 = vmax.f32 %v2813, %v2830
        %v2847 = vmax.f32 %v2814, %v2831
        %v2848 = vstv %s2815
        %v2849 = vmul.f32 %v2848, %v2832
        %v2850 = vmul.f32 %v2848, %v2833
        %v2851 = vmul.f32 %v2848, %v2834
        %v2852 = vmul.f32 %v2848, %v2835
        %v2853 = vmul.f32 %v2848, %v2836
        %v2854 = vmul.f32 %v2848, %v2837
        %v2855 = vmul.f32 %v2848, %v2838
        %v2856 = vmul.f32 %v2848, %v2839
        %v2857 = vmul.f32 %v2848, %v2840
        %v2858 = vmul.f32 %v2848, %v2841
        %v2859 = vmul.f32 %v2848, %v2842
        %v2860 = vmul.f32 %v2848, %v2843
        %v2861 = vmul.f32 %v2848, %v2844
        %v2862 = vmul.f32 %v2848, %v2845
        %v2863 = vmul.f32 %v2848, %v2846
        %v2864 = vmul.f32 %v2848, %v2847
        %2865 = vset.pattern.permute.xlu0 28
        %2866 = vperm.xlu0 %2865, %v714
        %v2867 = vpop.permute.xlu0 %2866
        %2869 = vset.pattern.permute.xlu0 28
        %2870 = vperm.xlu0 %2869, %v717
        %v2871 = vpop.permute.xlu0 %2870
        %2873 = vset.pattern.permute.xlu0 28
        %2874 = vperm.xlu0 %2873, %v722
        %v2875 = vpop.permute.xlu0 %2874
        %2877 = vset.pattern.permute.xlu0 28
        %2878 = vperm.xlu0 %2877, %v725
        %v2879 = vpop.permute.xlu0 %2878
        %2881 = vset.pattern.permute.xlu0 28
        %2882 = vperm.xlu0 %2881, %v730
        %v2883 = vpop.permute.xlu0 %2882
        %2885 = vset.pattern.permute.xlu0 28
        %2886 = vperm.xlu0 %2885, %v733
        %v2887 = vpop.permute.xlu0 %2886
        %2889 = vset.pattern.permute.xlu0 28
        %2890 = vperm.xlu0 %2889, %v738
        %v2891 = vpop.permute.xlu0 %2890
        %2893 = vset.pattern.permute.xlu0 28
        %2894 = vperm.xlu0 %2893, %v741
        %v2895 = vpop.permute.xlu0 %2894
        %2897 = vset.pattern.permute.xlu0 28
        %2898 = vperm.xlu0 %2897, %v746
        %v2899 = vpop.permute.xlu0 %2898
        %2901 = vset.pattern.permute.xlu0 28
        %2902 = vperm.xlu0 %2901, %v749
        %v2903 = vpop.permute.xlu0 %2902
        %2905 = vset.pattern.permute.xlu0 28
        %2906 = vperm.xlu0 %2905, %v754
        %v2907 = vpop.permute.xlu0 %2906
        %2909 = vset.pattern.permute.xlu0 28
        %2910 = vperm.xlu0 %2909, %v757
        %v2911 = vpop.permute.xlu0 %2910
        %2913 = vset.pattern.permute.xlu0 28
        %2914 = vperm.xlu0 %2913, %v762
        %v2915 = vpop.permute.xlu0 %2914
        %2917 = vset.pattern.permute.xlu0 28
        %2918 = vperm.xlu0 %2917, %v765
        %v2919 = vpop.permute.xlu0 %2918
        %2921 = vset.pattern.permute.xlu0 28
        %2922 = vperm.xlu0 %2921, %v770
        %v2923 = vpop.permute.xlu0 %2922
        %2925 = vset.pattern.permute.xlu0 28
        %2926 = vperm.xlu0 %2925, %v773
        %v2927 = vpop.permute.xlu0 %2926
        %v2929 = vlaneseq
        %v2930 = vshrl.u32 %v2929, 7
        %v2931 = vsub.s32 4, %v2930
        %v2932 = vrot.slane %v793, %v2931
        %v2933 = vadd.f32 %v2867, %v2932
        %v2934 = vadd.f32 %v2871, %v2932
        %v2935 = vadd.f32 %v2875, %v2932
        %v2936 = vadd.f32 %v2879, %v2932
        %v2937 = vadd.f32 %v2883, %v2932
        %v2938 = vadd.f32 %v2887, %v2932
        %v2939 = vadd.f32 %v2891, %v2932
        %v2940 = vadd.f32 %v2895, %v2932
        %v2941 = vadd.f32 %v2899, %v2932
        %v2942 = vadd.f32 %v2903, %v2932
        %v2943 = vadd.f32 %v2907, %v2932
        %v2944 = vadd.f32 %v2911, %v2932
        %v2945 = vadd.f32 %v2915, %v2932
        %v2946 = vadd.f32 %v2919, %v2932
        %v2947 = vadd.f32 %v2923, %v2932
        %v2948 = vadd.f32 %v2927, %v2932
        %s2949 = sld [smem:[#allocation4 + $0x84]]
        %v2950 = vmul.f32 %v2933, 0.2
        %v2951 = vmul.f32 %v2934, 0.2
        %v2952 = vmul.f32 %v2935, 0.2
        %v2953 = vmul.f32 %v2936, 0.2
        %v2954 = vmul.f32 %v2937, 0.2
        %v2955 = vmul.f32 %v2938, 0.2
        %v2956 = vmul.f32 %v2939, 0.2
        %v2957 = vmul.f32 %v2940, 0.2
        %v2958 = vmul.f32 %v2941, 0.2
        %v2959 = vmul.f32 %v2942, 0.2
        %v2960 = vmul.f32 %v2943, 0.2
        %v2961 = vmul.f32 %v2944, 0.2
        %v2962 = vmul.f32 %v2945, 0.2
        %v2963 = vmul.f32 %v2946, 0.2
        %v2964 = vmul.f32 %v2947, 0.2
        %v2965 = vmul.f32 %v2948, 0.2
        %v2966 = vmax.f32 %v2933, %v2950
        %v2967 = vmax.f32 %v2934, %v2951
        %v2968 = vmax.f32 %v2935, %v2952
        %v2969 = vmax.f32 %v2936, %v2953
        %v2970 = vmax.f32 %v2937, %v2954
        %v2971 = vmax.f32 %v2938, %v2955
        %v2972 = vmax.f32 %v2939, %v2956
        %v2973 = vmax.f32 %v2940, %v2957
        %v2974 = vmax.f32 %v2941, %v2958
        %v2975 = vmax.f32 %v2942, %v2959
        %v2976 = vmax.f32 %v2943, %v2960
        %v2977 = vmax.f32 %v2944, %v2961
        %v2978 = vmax.f32 %v2945, %v2962
        %v2979 = vmax.f32 %v2946, %v2963
        %v2980 = vmax.f32 %v2947, %v2964
        %v2981 = vmax.f32 %v2948, %v2965
        %v2982 = vstv %s2949
        %v2983 = vmul.f32 %v2982, %v2966
        %v2984 = vmul.f32 %v2982, %v2967
        %v2985 = vmul.f32 %v2982, %v2968
        %v2986 = vmul.f32 %v2982, %v2969
        %v2987 = vmul.f32 %v2982, %v2970
        %v2988 = vmul.f32 %v2982, %v2971
        %v2989 = vmul.f32 %v2982, %v2972
        %v2990 = vmul.f32 %v2982, %v2973
        %v2991 = vmul.f32 %v2982, %v2974
        %v2992 = vmul.f32 %v2982, %v2975
        %v2993 = vmul.f32 %v2982, %v2976
        %v2994 = vmul.f32 %v2982, %v2977
        %v2995 = vmul.f32 %v2982, %v2978
        %v2996 = vmul.f32 %v2982, %v2979
        %v2997 = vmul.f32 %v2982, %v2980
        %v2998 = vmul.f32 %v2982, %v2981
        %2999 = vset.pattern.permute.xlu0 29
        %3000 = vperm.xlu0 %2999, %v714
        %v3001 = vpop.permute.xlu0 %3000
        %3003 = vset.pattern.permute.xlu0 29
        %3004 = vperm.xlu0 %3003, %v717
        %v3005 = vpop.permute.xlu0 %3004
        %3007 = vset.pattern.permute.xlu0 29
        %3008 = vperm.xlu0 %3007, %v722
        %v3009 = vpop.permute.xlu0 %3008
        %3011 = vset.pattern.permute.xlu0 29
        %3012 = vperm.xlu0 %3011, %v725
        %v3013 = vpop.permute.xlu0 %3012
        %3015 = vset.pattern.permute.xlu0 29
        %3016 = vperm.xlu0 %3015, %v730
        %v3017 = vpop.permute.xlu0 %3016
        %3019 = vset.pattern.permute.xlu0 29
        %3020 = vperm.xlu0 %3019, %v733
        %v3021 = vpop.permute.xlu0 %3020
        %3023 = vset.pattern.permute.xlu0 29
        %3024 = vperm.xlu0 %3023, %v738
        %v3025 = vpop.permute.xlu0 %3024
        %3027 = vset.pattern.permute.xlu0 29
        %3028 = vperm.xlu0 %3027, %v741
        %v3029 = vpop.permute.xlu0 %3028
        %3031 = vset.pattern.permute.xlu0 29
        %3032 = vperm.xlu0 %3031, %v746
        %v3033 = vpop.permute.xlu0 %3032
        %3035 = vset.pattern.permute.xlu0 29
        %3036 = vperm.xlu0 %3035, %v749
        %v3037 = vpop.permute.xlu0 %3036
        %3039 = vset.pattern.permute.xlu0 29
        %3040 = vperm.xlu0 %3039, %v754
        %v3041 = vpop.permute.xlu0 %3040
        %3043 = vset.pattern.permute.xlu0 29
        %3044 = vperm.xlu0 %3043, %v757
        %v3045 = vpop.permute.xlu0 %3044
        %3047 = vset.pattern.permute.xlu0 29
        %3048 = vperm.xlu0 %3047, %v762
        %v3049 = vpop.permute.xlu0 %3048
        %3051 = vset.pattern.permute.xlu0 29
        %3052 = vperm.xlu0 %3051, %v765
        %v3053 = vpop.permute.xlu0 %3052
        %3055 = vset.pattern.permute.xlu0 29
        %3056 = vperm.xlu0 %3055, %v770
        %v3057 = vpop.permute.xlu0 %3056
        %3059 = vset.pattern.permute.xlu0 29
        %3060 = vperm.xlu0 %3059, %v773
        %v3061 = vpop.permute.xlu0 %3060
        %v3063 = vlaneseq
        %v3064 = vshrl.u32 %v3063, 7
        %v3065 = vsub.s32 5, %v3064
        %v3066 = vrot.slane %v793, %v3065
        %v3067 = vadd.f32 %v3001, %v3066
        %v3068 = vadd.f32 %v3005, %v3066
        %v3069 = vadd.f32 %v3009, %v3066
        %v3070 = vadd.f32 %v3013, %v3066
        %v3071 = vadd.f32 %v3017, %v3066
        %v3072 = vadd.f32 %v3021, %v3066
        %v3073 = vadd.f32 %v3025, %v3066
        %v3074 = vadd.f32 %v3029, %v3066
        %v3075 = vadd.f32 %v3033, %v3066
        %v3076 = vadd.f32 %v3037, %v3066
        %v3077 = vadd.f32 %v3041, %v3066
        %v3078 = vadd.f32 %v3045, %v3066
        %v3079 = vadd.f32 %v3049, %v3066
        %v3080 = vadd.f32 %v3053, %v3066
        %v3081 = vadd.f32 %v3057, %v3066
        %v3082 = vadd.f32 %v3061, %v3066
        %s3083 = sld [smem:[#allocation4 + $0x85]]
        %v3084 = vmul.f32 %v3067, 0.2
        %v3085 = vmul.f32 %v3068, 0.2
        %v3086 = vmul.f32 %v3069, 0.2
        %v3087 = vmul.f32 %v3070, 0.2
        %v3088 = vmul.f32 %v3071, 0.2
        %v3089 = vmul.f32 %v3072, 0.2
        %v3090 = vmul.f32 %v3073, 0.2
        %v3091 = vmul.f32 %v3074, 0.2
        %v3092 = vmul.f32 %v3075, 0.2
        %v3093 = vmul.f32 %v3076, 0.2
        %v3094 = vmul.f32 %v3077, 0.2
        %v3095 = vmul.f32 %v3078, 0.2
        %v3096 = vmul.f32 %v3079, 0.2
        %v3097 = vmul.f32 %v3080, 0.2
        %v3098 = vmul.f32 %v3081, 0.2
        %v3099 = vmul.f32 %v3082, 0.2
        %v3100 = vmax.f32 %v3067, %v3084
        %v3101 = vmax.f32 %v3068, %v3085
        %v3102 = vmax.f32 %v3069, %v3086
        %v3103 = vmax.f32 %v3070, %v3087
        %v3104 = vmax.f32 %v3071, %v3088
        %v3105 = vmax.f32 %v3072, %v3089
        %v3106 = vmax.f32 %v3073, %v3090
        %v3107 = vmax.f32 %v3074, %v3091
        %v3108 = vmax.f32 %v3075, %v3092
        %v3109 = vmax.f32 %v3076, %v3093
        %v3110 = vmax.f32 %v3077, %v3094
        %v3111 = vmax.f32 %v3078, %v3095
        %v3112 = vmax.f32 %v3079, %v3096
        %v3113 = vmax.f32 %v3080, %v3097
        %v3114 = vmax.f32 %v3081, %v3098
        %v3115 = vmax.f32 %v3082, %v3099
        %v3116 = vstv %s3083
        %v3117 = vmul.f32 %v3116, %v3100
        %v3118 = vmul.f32 %v3116, %v3101
        %v3119 = vmul.f32 %v3116, %v3102
        %v3120 = vmul.f32 %v3116, %v3103
        %v3121 = vmul.f32 %v3116, %v3104
        %v3122 = vmul.f32 %v3116, %v3105
        %v3123 = vmul.f32 %v3116, %v3106
        %v3124 = vmul.f32 %v3116, %v3107
        %v3125 = vmul.f32 %v3116, %v3108
        %v3126 = vmul.f32 %v3116, %v3109
        %v3127 = vmul.f32 %v3116, %v3110
        %v3128 = vmul.f32 %v3116, %v3111
        %v3129 = vmul.f32 %v3116, %v3112
        %v3130 = vmul.f32 %v3116, %v3113
        %v3131 = vmul.f32 %v3116, %v3114
        %v3132 = vmul.f32 %v3116, %v3115
        %3133 = vset.pattern.permute.xlu0 30
        %3134 = vperm.xlu0 %3133, %v714
        %v3135 = vpop.permute.xlu0 %3134
        %3137 = vset.pattern.permute.xlu0 30
        %3138 = vperm.xlu0 %3137, %v717
        %v3139 = vpop.permute.xlu0 %3138
        %3141 = vset.pattern.permute.xlu0 30
        %3142 = vperm.xlu0 %3141, %v722
        %v3143 = vpop.permute.xlu0 %3142
        %3145 = vset.pattern.permute.xlu0 30
        %3146 = vperm.xlu0 %3145, %v725
        %v3147 = vpop.permute.xlu0 %3146
        %3149 = vset.pattern.permute.xlu0 30
        %3150 = vperm.xlu0 %3149, %v730
        %v3151 = vpop.permute.xlu0 %3150
        %3153 = vset.pattern.permute.xlu0 30
        %3154 = vperm.xlu0 %3153, %v733
        %v3155 = vpop.permute.xlu0 %3154
        %3157 = vset.pattern.permute.xlu0 30
        %3158 = vperm.xlu0 %3157, %v738
        %v3159 = vpop.permute.xlu0 %3158
        %3161 = vset.pattern.permute.xlu0 30
        %3162 = vperm.xlu0 %3161, %v741
        %v3163 = vpop.permute.xlu0 %3162
        %3165 = vset.pattern.permute.xlu0 30
        %3166 = vperm.xlu0 %3165, %v746
        %v3167 = vpop.permute.xlu0 %3166
        %3169 = vset.pattern.permute.xlu0 30
        %3170 = vperm.xlu0 %3169, %v749
        %v3171 = vpop.permute.xlu0 %3170
        %3173 = vset.pattern.permute.xlu0 30
        %3174 = vperm.xlu0 %3173, %v754
        %v3175 = vpop.permute.xlu0 %3174
        %3177 = vset.pattern.permute.xlu0 30
        %3178 = vperm.xlu0 %3177, %v757
        %v3179 = vpop.permute.xlu0 %3178
        %3181 = vset.pattern.permute.xlu0 30
        %3182 = vperm.xlu0 %3181, %v762
        %v3183 = vpop.permute.xlu0 %3182
        %3185 = vset.pattern.permute.xlu0 30
        %3186 = vperm.xlu0 %3185, %v765
        %v3187 = vpop.permute.xlu0 %3186
        %3189 = vset.pattern.permute.xlu0 30
        %3190 = vperm.xlu0 %3189, %v770
        %v3191 = vpop.permute.xlu0 %3190
        %3193 = vset.pattern.permute.xlu0 30
        %3194 = vperm.xlu0 %3193, %v773
        %v3195 = vpop.permute.xlu0 %3194
        %v3197 = vlaneseq
        %v3198 = vshrl.u32 %v3197, 7
        %v3199 = vsub.s32 6, %v3198
        %v3200 = vrot.slane %v793, %v3199
        %v3201 = vadd.f32 %v3135, %v3200
        %v3202 = vadd.f32 %v3139, %v3200
        %v3203 = vadd.f32 %v3143, %v3200
        %v3204 = vadd.f32 %v3147, %v3200
        %v3205 = vadd.f32 %v3151, %v3200
        %v3206 = vadd.f32 %v3155, %v3200
        %v3207 = vadd.f32 %v3159, %v3200
        %v3208 = vadd.f32 %v3163, %v3200
        %v3209 = vadd.f32 %v3167, %v3200
        %v3210 = vadd.f32 %v3171, %v3200
        %v3211 = vadd.f32 %v3175, %v3200
        %v3212 = vadd.f32 %v3179, %v3200
        %v3213 = vadd.f32 %v3183, %v3200
        %v3214 = vadd.f32 %v3187, %v3200
        %v3215 = vadd.f32 %v3191, %v3200
        %v3216 = vadd.f32 %v3195, %v3200
        %s3217 = sld [smem:[#allocation4 + $0x86]]
        %v3218 = vmul.f32 %v3201, 0.2
        %v3219 = vmul.f32 %v3202, 0.2
        %v3220 = vmul.f32 %v3203, 0.2
        %v3221 = vmul.f32 %v3204, 0.2
        %v3222 = vmul.f32 %v3205, 0.2
        %v3223 = vmul.f32 %v3206, 0.2
        %v3224 = vmul.f32 %v3207, 0.2
        %v3225 = vmul.f32 %v3208, 0.2
        %v3226 = vmul.f32 %v3209, 0.2
        %v3227 = vmul.f32 %v3210, 0.2
        %v3228 = vmul.f32 %v3211, 0.2
        %v3229 = vmul.f32 %v3212, 0.2
        %v3230 = vmul.f32 %v3213, 0.2
        %v3231 = vmul.f32 %v3214, 0.2
        %v3232 = vmul.f32 %v3215, 0.2
        %v3233 = vmul.f32 %v3216, 0.2
        %v3234 = vmax.f32 %v3201, %v3218
        %v3235 = vmax.f32 %v3202, %v3219
        %v3236 = vmax.f32 %v3203, %v3220
        %v3237 = vmax.f32 %v3204, %v3221
        %v3238 = vmax.f32 %v3205, %v3222
        %v3239 = vmax.f32 %v3206, %v3223
        %v3240 = vmax.f32 %v3207, %v3224
        %v3241 = vmax.f32 %v3208, %v3225
        %v3242 = vmax.f32 %v3209, %v3226
        %v3243 = vmax.f32 %v3210, %v3227
        %v3244 = vmax.f32 %v3211, %v3228
        %v3245 = vmax.f32 %v3212, %v3229
        %v3246 = vmax.f32 %v3213, %v3230
        %v3247 = vmax.f32 %v3214, %v3231
        %v3248 = vmax.f32 %v3215, %v3232
        %v3249 = vmax.f32 %v3216, %v3233
        %v3250 = vstv %s3217
        %v3251 = vmul.f32 %v3250, %v3234
        %v3252 = vmul.f32 %v3250, %v3235
        %v3253 = vmul.f32 %v3250, %v3236
        %v3254 = vmul.f32 %v3250, %v3237
        %v3255 = vmul.f32 %v3250, %v3238
        %v3256 = vmul.f32 %v3250, %v3239
        %v3257 = vmul.f32 %v3250, %v3240
        %v3258 = vmul.f32 %v3250, %v3241
        %v3259 = vmul.f32 %v3250, %v3242
        %v3260 = vmul.f32 %v3250, %v3243
        %v3261 = vmul.f32 %v3250, %v3244
        %v3262 = vmul.f32 %v3250, %v3245
        %v3263 = vmul.f32 %v3250, %v3246
        %v3264 = vmul.f32 %v3250, %v3247
        %v3265 = vmul.f32 %v3250, %v3248
        %v3266 = vmul.f32 %v3250, %v3249
        %3267 = vset.pattern.permute.xlu0 31
        %3268 = vperm.xlu0 %3267, %v714
        %v3269 = vpop.permute.xlu0 %3268
        %3271 = vset.pattern.permute.xlu0 31
        %3272 = vperm.xlu0 %3271, %v717
        %v3273 = vpop.permute.xlu0 %3272
        %3275 = vset.pattern.permute.xlu0 31
        %3276 = vperm.xlu0 %3275, %v722
        %v3277 = vpop.permute.xlu0 %3276
        %3279 = vset.pattern.permute.xlu0 31
        %3280 = vperm.xlu0 %3279, %v725
        %v3281 = vpop.permute.xlu0 %3280
        %3283 = vset.pattern.permute.xlu0 31
        %3284 = vperm.xlu0 %3283, %v730
        %v3285 = vpop.permute.xlu0 %3284
        %3287 = vset.pattern.permute.xlu0 31
        %3288 = vperm.xlu0 %3287, %v733
        %v3289 = vpop.permute.xlu0 %3288
        %3291 = vset.pattern.permute.xlu0 31
        %3292 = vperm.xlu0 %3291, %v738
        %v3293 = vpop.permute.xlu0 %3292
        %3295 = vset.pattern.permute.xlu0 31
        %3296 = vperm.xlu0 %3295, %v741
        %v3297 = vpop.permute.xlu0 %3296
        %3299 = vset.pattern.permute.xlu0 31
        %3300 = vperm.xlu0 %3299, %v746
        %v3301 = vpop.permute.xlu0 %3300
        %3303 = vset.pattern.permute.xlu0 31
        %3304 = vperm.xlu0 %3303, %v749
        %v3305 = vpop.permute.xlu0 %3304
        %3307 = vset.pattern.permute.xlu0 31
        %3308 = vperm.xlu0 %3307, %v754
        %v3309 = vpop.permute.xlu0 %3308
        %3311 = vset.pattern.permute.xlu0 31
        %3312 = vperm.xlu0 %3311, %v757
        %v3313 = vpop.permute.xlu0 %3312
        %3315 = vset.pattern.permute.xlu0 31
        %3316 = vperm.xlu0 %3315, %v762
        %v3317 = vpop.permute.xlu0 %3316
        %3319 = vset.pattern.permute.xlu0 31
        %3320 = vperm.xlu0 %3319, %v765
        %v3321 = vpop.permute.xlu0 %3320
        %3323 = vset.pattern.permute.xlu0 31
        %3324 = vperm.xlu0 %3323, %v770
        %v3325 = vpop.permute.xlu0 %3324
        %3327 = vset.pattern.permute.xlu0 31
        %3328 = vperm.xlu0 %3327, %v773
        %v3329 = vpop.permute.xlu0 %3328
        %v3331 = vlaneseq
        %v3332 = vshrl.u32 %v3331, 7
        %v3333 = vsub.s32 7, %v3332
        %v3334 = vrot.slane %v793, %v3333
        %v3335 = vadd.f32 %v3269, %v3334
        %v3336 = vadd.f32 %v3273, %v3334
        %v3337 = vadd.f32 %v3277, %v3334
        %v3338 = vadd.f32 %v3281, %v3334
        %v3339 = vadd.f32 %v3285, %v3334
        %v3340 = vadd.f32 %v3289, %v3334
        %v3341 = vadd.f32 %v3293, %v3334
        %v3342 = vadd.f32 %v3297, %v3334
        %v3343 = vadd.f32 %v3301, %v3334
        %v3344 = vadd.f32 %v3305, %v3334
        %v3345 = vadd.f32 %v3309, %v3334
        %v3346 = vadd.f32 %v3313, %v3334
        %v3347 = vadd.f32 %v3317, %v3334
        %v3348 = vadd.f32 %v3321, %v3334
        %v3349 = vadd.f32 %v3325, %v3334
        %v3350 = vadd.f32 %v3329, %v3334
        %s3351 = sld [smem:[#allocation4 + $0x87]]
        %v3352 = vmul.f32 %v3335, 0.2
        %v3353 = vmul.f32 %v3336, 0.2
        %v3354 = vmul.f32 %v3337, 0.2
        %v3355 = vmul.f32 %v3338, 0.2
        %v3356 = vmul.f32 %v3339, 0.2
        %v3357 = vmul.f32 %v3340, 0.2
        %v3358 = vmul.f32 %v3341, 0.2
        %v3359 = vmul.f32 %v3342, 0.2
        %v3360 = vmul.f32 %v3343, 0.2
        %v3361 = vmul.f32 %v3344, 0.2
        %v3362 = vmul.f32 %v3345, 0.2
        %v3363 = vmul.f32 %v3346, 0.2
        %v3364 = vmul.f32 %v3347, 0.2
        %v3365 = vmul.f32 %v3348, 0.2
        %v3366 = vmul.f32 %v3349, 0.2
        %v3367 = vmul.f32 %v3350, 0.2
        %v3368 = vmax.f32 %v3335, %v3352
        %v3369 = vmax.f32 %v3336, %v3353
        %v3370 = vmax.f32 %v3337, %v3354
        %v3371 = vmax.f32 %v3338, %v3355
        %v3372 = vmax.f32 %v3339, %v3356
        %v3373 = vmax.f32 %v3340, %v3357
        %v3374 = vmax.f32 %v3341, %v3358
        %v3375 = vmax.f32 %v3342, %v3359
        %v3376 = vmax.f32 %v3343, %v3360
        %v3377 = vmax.f32 %v3344, %v3361
        %v3378 = vmax.f32 %v3345, %v3362
        %v3379 = vmax.f32 %v3346, %v3363
        %v3380 = vmax.f32 %v3347, %v3364
        %v3381 = vmax.f32 %v3348, %v3365
        %v3382 = vmax.f32 %v3349, %v3366
        %v3383 = vmax.f32 %v3350, %v3367
        %v3384 = vstv %s3351
        %v3385 = vmul.f32 %v3384, %v3368
        %v3386 = vmul.f32 %v3384, %v3369
        %v3387 = vmul.f32 %v3384, %v3370
        %v3388 = vmul.f32 %v3384, %v3371
        %v3389 = vmul.f32 %v3384, %v3372
        %v3390 = vmul.f32 %v3384, %v3373
        %v3391 = vmul.f32 %v3384, %v3374
        %v3392 = vmul.f32 %v3384, %v3375
        %v3393 = vmul.f32 %v3384, %v3376
        %v3394 = vmul.f32 %v3384, %v3377
        %v3395 = vmul.f32 %v3384, %v3378
        %v3396 = vmul.f32 %v3384, %v3379
        %v3397 = vmul.f32 %v3384, %v3380
        %v3398 = vmul.f32 %v3384, %v3381
        %v3399 = vmul.f32 %v3384, %v3382
        %v3400 = vmul.f32 %v3384, %v3383
        %v3401 = vadd.f32 %v2447, %v2581
        %v3402 = vadd.f32 %v2448, %v2582
        %v3403 = vadd.f32 %v2449, %v2583
        %v3404 = vadd.f32 %v2450, %v2584
        %v3405 = vadd.f32 %v2451, %v2585
        %v3406 = vadd.f32 %v2452, %v2586
        %v3407 = vadd.f32 %v2453, %v2587
        %v3408 = vadd.f32 %v2454, %v2588
        %v3409 = vadd.f32 %v2455, %v2589
        %v3410 = vadd.f32 %v2456, %v2590
        %v3411 = vadd.f32 %v2457, %v2591
        %v3412 = vadd.f32 %v2458, %v2592
        %v3413 = vadd.f32 %v2459, %v2593
        %v3414 = vadd.f32 %v2460, %v2594
        %v3415 = vadd.f32 %v2461, %v2595
        %v3416 = vadd.f32 %v2462, %v2596
        %v3417 = vadd.f32 %v2715, %v2849
        %v3418 = vadd.f32 %v2716, %v2850
        %v3419 = vadd.f32 %v2717, %v2851
        %v3420 = vadd.f32 %v2718, %v2852
        %v3421 = vadd.f32 %v2719, %v2853
        %v3422 = vadd.f32 %v2720, %v2854
        %v3423 = vadd.f32 %v2721, %v2855
        %v3424 = vadd.f32 %v2722, %v2856
        %v3425 = vadd.f32 %v2723, %v2857
        %v3426 = vadd.f32 %v2724, %v2858
        %v3427 = vadd.f32 %v2725, %v2859
        %v3428 = vadd.f32 %v2726, %v2860
        %v3429 = vadd.f32 %v2727, %v2861
        %v3430 = vadd.f32 %v2728, %v2862
        %v3431 = vadd.f32 %v2729, %v2863
        %v3432 = vadd.f32 %v2730, %v2864
        %v3433 = vadd.f32 %v2983, %v3117
        %v3434 = vadd.f32 %v2984, %v3118
        %v3435 = vadd.f32 %v2985, %v3119
        %v3436 = vadd.f32 %v2986, %v3120
        %v3437 = vadd.f32 %v2987, %v3121
        %v3438 = vadd.f32 %v2988, %v3122
        %v3439 = vadd.f32 %v2989, %v3123
        %v3440 = vadd.f32 %v2990, %v3124
        %v3441 = vadd.f32 %v2991, %v3125
        %v3442 = vadd.f32 %v2992, %v3126
        %v3443 = vadd.f32 %v2993, %v3127
        %v3444 = vadd.f32 %v2994, %v3128
        %v3445 = vadd.f32 %v2995, %v3129
        %v3446 = vadd.f32 %v2996, %v3130
        %v3447 = vadd.f32 %v2997, %v3131
        %v3448 = vadd.f32 %v2998, %v3132
        %v3449 = vadd.f32 %v3251, %v3385
        %v3450 = vadd.f32 %v3252, %v3386
        %v3451 = vadd.f32 %v3253, %v3387
        %v3452 = vadd.f32 %v3254, %v3388
        %v3453 = vadd.f32 %v3255, %v3389
        %v3454 = vadd.f32 %v3256, %v3390
        %v3455 = vadd.f32 %v3257, %v3391
        %v3456 = vadd.f32 %v3258, %v3392
        %v3457 = vadd.f32 %v3259, %v3393
        %v3458 = vadd.f32 %v3260, %v3394
        %v3459 = vadd.f32 %v3261, %v3395
        %v3460 = vadd.f32 %v3262, %v3396
        %v3461 = vadd.f32 %v3263, %v3397
        %v3462 = vadd.f32 %v3264, %v3398
        %v3463 = vadd.f32 %v3265, %v3399
        %v3464 = vadd.f32 %v3266, %v3400
        %v3465 = vadd.f32 %v3401, %v3417
        %v3466 = vadd.f32 %v3402, %v3418
        %v3467 = vadd.f32 %v3403, %v3419
        %v3468 = vadd.f32 %v3404, %v3420
        %v3469 = vadd.f32 %v3405, %v3421
        %v3470 = vadd.f32 %v3406, %v3422
        %v3471 = vadd.f32 %v3407, %v3423
        %v3472 = vadd.f32 %v3408, %v3424
        %v3473 = vadd.f32 %v3409, %v3425
        %v3474 = vadd.f32 %v3410, %v3426
        %v3475 = vadd.f32 %v3411, %v3427
        %v3476 = vadd.f32 %v3412, %v3428
        %v3477 = vadd.f32 %v3413, %v3429
        %v3478 = vadd.f32 %v3414, %v3430
        %v3479 = vadd.f32 %v3415, %v3431
        %v3480 = vadd.f32 %v3416, %v3432
        %v3481 = vadd.f32 %v3433, %v3449
        %v3482 = vadd.f32 %v3434, %v3450
        %v3483 = vadd.f32 %v3435, %v3451
        %v3484 = vadd.f32 %v3436, %v3452
        %v3485 = vadd.f32 %v3437, %v3453
        %v3486 = vadd.f32 %v3438, %v3454
        %v3487 = vadd.f32 %v3439, %v3455
        %v3488 = vadd.f32 %v3440, %v3456
        %v3489 = vadd.f32 %v3441, %v3457
        %v3490 = vadd.f32 %v3442, %v3458
        %v3491 = vadd.f32 %v3443, %v3459
        %v3492 = vadd.f32 %v3444, %v3460
        %v3493 = vadd.f32 %v3445, %v3461
        %v3494 = vadd.f32 %v3446, %v3462
        %v3495 = vadd.f32 %v3447, %v3463
        %v3496 = vadd.f32 %v3448, %v3464
        %v3497 = vadd.f32 %v3465, %v3481
        %v3498 = vadd.f32 %v3466, %v3482
        %v3499 = vadd.f32 %v3467, %v3483
        %v3500 = vadd.f32 %v3468, %v3484
        %v3501 = vadd.f32 %v3469, %v3485
        %v3502 = vadd.f32 %v3470, %v3486
        %v3503 = vadd.f32 %v3471, %v3487
        %v3504 = vadd.f32 %v3472, %v3488
        %v3505 = vadd.f32 %v3473, %v3489
        %v3506 = vadd.f32 %v3474, %v3490
        %v3507 = vadd.f32 %v3475, %v3491
        %v3508 = vadd.f32 %v3476, %v3492
        %v3509 = vadd.f32 %v3477, %v3493
        %v3510 = vadd.f32 %v3478, %v3494
        %v3511 = vadd.f32 %v3479, %v3495
        %v3512 = vadd.f32 %v3480, %v3496
        %v3513 = vadd.f32 %v3497, %v550
        %v3514 = vadd.f32 %v3498, %v551
        %v3515 = vadd.f32 %v3499, %v552
        %v3516 = vadd.f32 %v3500, %v553
        %v3517 = vadd.f32 %v3501, %v554
        %v3518 = vadd.f32 %v3502, %v555
        %v3519 = vadd.f32 %v3503, %v556
        %v3520 = vadd.f32 %v3504, %v557
        %v3521 = vadd.f32 %v3505, %v558
        %v3522 = vadd.f32 %v3506, %v559
        %v3523 = vadd.f32 %v3507, %v560
        %v3524 = vadd.f32 %v3508, %v561
        %v3525 = vadd.f32 %v3509, %v562
        %v3526 = vadd.f32 %v3510, %v563
        %v3527 = vadd.f32 %v3511, %v564
        %v3528 = vadd.f32 %v3512, %v565
        %3529 = vmax.xlane.f32.xlu0 %v3513
        %v3530 = vpop.xlane.xlu0 %3529
        %3531 = vmax.xlane.f32.xlu0 %v3514
        %v3532 = vpop.xlane.xlu0 %3531
        %3533 = vmax.xlane.f32.xlu0 %v3515
        %v3534 = vpop.xlane.xlu0 %3533
        %3535 = vmax.xlane.f32.xlu0 %v3516
        %v3536 = vpop.xlane.xlu0 %3535
        %3537 = vmax.xlane.f32.xlu0 %v3517
        %v3538 = vpop.xlane.xlu0 %3537
        %3539 = vmax.xlane.f32.xlu0 %v3518
        %v3540 = vpop.xlane.xlu0 %3539
        %3541 = vmax.xlane.f32.xlu0 %v3519
        %v3542 = vpop.xlane.xlu0 %3541
        %3543 = vmax.xlane.f32.xlu0 %v3520
        %v3544 = vpop.xlane.xlu0 %3543
        %3545 = vmax.xlane.f32.xlu0 %v3521
        %v3546 = vpop.xlane.xlu0 %3545
        %3547 = vmax.xlane.f32.xlu0 %v3522
        %v3548 = vpop.xlane.xlu0 %3547
        %3549 = vmax.xlane.f32.xlu0 %v3523
        %v3550 = vpop.xlane.xlu0 %3549
        %3551 = vmax.xlane.f32.xlu0 %v3524
        %v3552 = vpop.xlane.xlu0 %3551
        %3553 = vmax.xlane.f32.xlu0 %v3525
        %v3554 = vpop.xlane.xlu0 %3553
        %3555 = vmax.xlane.f32.xlu0 %v3526
        %v3556 = vpop.xlane.xlu0 %3555
        %3557 = vmax.xlane.f32.xlu0 %v3527
        %v3558 = vpop.xlane.xlu0 %3557
        %3559 = vmax.xlane.f32.xlu0 %v3528
        %v3560 = vpop.xlane.xlu0 %3559
        %v3561 = vsub.f32 %v3513, %v3530
        %v3562 = vsub.f32 %v3514, %v3532
        %v3563 = vsub.f32 %v3515, %v3534
        %v3564 = vsub.f32 %v3516, %v3536
        %v3565 = vsub.f32 %v3517, %v3538
        %v3566 = vsub.f32 %v3518, %v3540
        %v3567 = vsub.f32 %v3519, %v3542
        %v3568 = vsub.f32 %v3520, %v3544
        %v3569 = vsub.f32 %v3521, %v3546
        %v3570 = vsub.f32 %v3522, %v3548
        %v3571 = vsub.f32 %v3523, %v3550
        %v3572 = vsub.f32 %v3524, %v3552
        %v3573 = vsub.f32 %v3525, %v3554
        %v3574 = vsub.f32 %v3526, %v3556
        %v3575 = vsub.f32 %v3527, %v3558
        %v3576 = vsub.f32 %v3528, %v3560
        %v3577 = vmul.f32 %v3561, 1.442695
        %v3578 = vpow.pop %v3577
        %v3579 = vmul.f32 %v3562, 1.442695
        %v3580 = vpow.pop %v3579
        %v3581 = vmul.f32 %v3563, 1.442695
        %v3582 = vpow.pop %v3581
        %v3583 = vmul.f32 %v3564, 1.442695
        %v3584 = vpow.pop %v3583
        %v3585 = vmul.f32 %v3565, 1.442695
        %v3586 = vpow.pop %v3585
        %v3587 = vmul.f32 %v3566, 1.442695
        %v3588 = vpow.pop %v3587
        %v3589 = vmul.f32 %v3567, 1.442695
        %v3590 = vpow.pop %v3589
        %v3591 = vmul.f32 %v3568, 1.442695
        %v3592 = vpow.pop %v3591
        %v3593 = vmul.f32 %v3569, 1.442695
        %v3594 = vpow.pop %v3593
        %v3595 = vmul.f32 %v3570, 1.442695
        %v3596 = vpow.pop %v3595
        %v3597 = vmul.f32 %v3571, 1.442695
        %v3598 = vpow.pop %v3597
        %v3599 = vmul.f32 %v3572, 1.442695
        %v3600 = vpow.pop %v3599
        %v3601 = vmul.f32 %v3573, 1.442695
        %v3602 = vpow.pop %v3601
        %v3603 = vmul.f32 %v3574, 1.442695
        %v3604 = vpow.pop %v3603
        %v3605 = vmul.f32 %v3575, 1.442695
        %v3606 = vpow.pop %v3605
        %v3607 = vmul.f32 %v3576, 1.442695
        %v3608 = vpow.pop %v3607
        %3609 = vadd.xlane.f32.xlu0 %v3578
        %v3610 = vpop.xlane.xlu0 %3609
        %3611 = vadd.xlane.f32.xlu0 %v3580
        %v3612 = vpop.xlane.xlu0 %3611
        %3613 = vadd.xlane.f32.xlu0 %v3582
        %v3614 = vpop.xlane.xlu0 %3613
        %3615 = vadd.xlane.f32.xlu0 %v3584
        %v3616 = vpop.xlane.xlu0 %3615
        %3617 = vadd.xlane.f32.xlu0 %v3586
        %v3618 = vpop.xlane.xlu0 %3617
        %3619 = vadd.xlane.f32.xlu0 %v3588
        %v3620 = vpop.xlane.xlu0 %3619
        %3621 = vadd.xlane.f32.xlu0 %v3590
        %v3622 = vpop.xlane.xlu0 %3621
        %3623 = vadd.xlane.f32.xlu0 %v3592
        %v3624 = vpop.xlane.xlu0 %3623
        %3625 = vadd.xlane.f32.xlu0 %v3594
        %v3626 = vpop.xlane.xlu0 %3625
        %3627 = vadd.xlane.f32.xlu0 %v3596
        %v3628 = vpop.xlane.xlu0 %3627
        %3629 = vadd.xlane.f32.xlu0 %v3598
        %v3630 = vpop.xlane.xlu0 %3629
        %3631 = vadd.xlane.f32.xlu0 %v3600
        %v3632 = vpop.xlane.xlu0 %3631
        %3633 = vadd.xlane.f32.xlu0 %v3602
        %v3634 = vpop.xlane.xlu0 %3633
        %3635 = vadd.xlane.f32.xlu0 %v3604
        %v3636 = vpop.xlane.xlu0 %3635
        %3637 = vadd.xlane.f32.xlu0 %v3606
        %v3638 = vpop.xlane.xlu0 %3637
        %3639 = vadd.xlane.f32.xlu0 %v3608
        %v3640 = vpop.xlane.xlu0 %3639
        %v3641 = vrcp.pop %v3610
        %v3642 = vrcp.pop %v3612
        %v3643 = vrcp.pop %v3614
        %v3644 = vrcp.pop %v3616
        %v3645 = vrcp.pop %v3618
        %v3646 = vrcp.pop %v3620
        %v3647 = vrcp.pop %v3622
        %v3648 = vrcp.pop %v3624
        %v3649 = vrcp.pop %v3626
        %v3650 = vrcp.pop %v3628
        %v3651 = vrcp.pop %v3630
        %v3652 = vrcp.pop %v3632
        %v3653 = vrcp.pop %v3634
        %v3654 = vrcp.pop %v3636
        %v3655 = vrcp.pop %v3638
        %v3656 = vrcp.pop %v3640
        %v3657 = vpack.c.bf16 %v3580, %v3578
        %v3658 = vpack.c.bf16 %v3584, %v3582
        %v3659 = vpack.c.bf16 %v3588, %v3586
        %v3660 = vpack.c.bf16 %v3592, %v3590
        %v3661 = vpack.c.bf16 %v3596, %v3594
        %v3662 = vpack.c.bf16 %v3600, %v3598
        %v3663 = vpack.c.bf16 %v3604, %v3602
        %v3664 = vpack.c.bf16 %v3608, %v3606
        %3673 = vrot.lane.b32.xlu0 %v2160, 120
        %v3674 = vpop.permute.xlu0 %3673
        %3675 = vrot.lane.b32.xlu0 %v2161, 120
        %v3676 = vpop.permute.xlu0 %3675
        %3677 = vrot.lane.b32.xlu0 %v2162, 120
        %v3678 = vpop.permute.xlu0 %3677
        %3679 = vrot.lane.b32.xlu0 %v2163, 120
        %v3680 = vpop.permute.xlu0 %3679
        %3681 = vrot.lane.b32.xlu0 %v2164, 120
        %v3682 = vpop.permute.xlu0 %3681
        %3683 = vrot.lane.b32.xlu0 %v2165, 120
        %v3684 = vpop.permute.xlu0 %3683
        %3685 = vrot.lane.b32.xlu0 %v2166, 120
        %v3686 = vpop.permute.xlu0 %3685
        %3687 = vrot.lane.b32.xlu0 %v2167, 120
        %v3688 = vpop.permute.xlu0 %3687
        %3697 = vmatprep.subr.bf16.mxu0 0
        %3698 = vmatpush1.bf16.msra.mxu0 %v3674
        %3699 = vmatprep.subr.bf16.mxu0 0
        %3700 = vmatpush1.bf16.msra.mxu0 %v3676
        %3701 = vmatprep.subr.bf16.mxu0 0
        %3702 = vmatpush1.bf16.msra.mxu0 %v3678
        %3703 = vmatprep.subr.bf16.mxu0 0
        %3704 = vmatpush1.bf16.msra.mxu0 %v3680
        %3705 = vmatprep.subr.bf16.mxu0 0
        %3706 = vmatpush1.bf16.msra.mxu0 %v3682
        %3707 = vmatprep.subr.bf16.mxu0 0
        %3708 = vmatpush1.bf16.msra.mxu0 %v3684
        %3709 = vmatprep.subr.bf16.mxu0 0
        %3710 = vmatpush1.bf16.msra.mxu0 %v3686
        %3711 = vmatprep.subr.bf16.mxu0 0
        %3712 = vmatpush1.bf16.msra.mxu0 %v3688
        %3713 = vmatprep.subr.bf16.mxu0 0
        %3714 = vmatpush1.bf16.msra.mxu0 0
        %3715 = vmatprep.subr.bf16.mxu0 0
        %3716 = vmatpush1.bf16.msra.mxu0 0
        %3717 = vmatprep.subr.bf16.mxu0 0
        %3718 = vmatpush1.bf16.msra.mxu0 0
        %3719 = vmatprep.subr.bf16.mxu0 0
        %3720 = vmatpush1.bf16.msra.mxu0 0
        %3721 = vmatprep.subr.bf16.mxu0 0
        %3722 = vmatpush1.bf16.msra.mxu0 0
        %3723 = vmatprep.subr.bf16.mxu0 0
        %3724 = vmatpush1.bf16.msra.mxu0 0
        %3725 = vmatprep.subr.bf16.mxu0 0
        %3726 = vmatpush1.bf16.msra.mxu0 0
        %3727 = vmatprep.subr.bf16.mxu0 0
        %3728 = vmatpush1.bf16.msra.mxu0 0
        %3729 = vmatprep.mubr.bf16.mxu0 0
        %3730 = vmatmul.mubr.bf16.gmra.mrb[0].mxu0 %v3657
        %v3731 = vpop.f32.mrb[0].mxu0
        %v3732 = vadd.f32 0.0, %v3731
        %v3733 = vpop.f32.mrb[0].mxu0
        %v3734 = vpop.f32.mrb[0].mxu0
        %v3735 = vadd.f32 0.0, %v3734
        %v3736 = vpop.f32.mrb[0].mxu0
        %3737 = vmatprep.mubr.bf16.mxu0 0
        %3738 = vmatmul.mubr.bf16.gmra.mrb[0].mxu0 %v3658
        %v3739 = vpop.f32.mrb[0].mxu0
        %v3740 = vadd.f32 0.0, %v3739
        %v3741 = vpop.f32.mrb[0].mxu0
        %v3742 = vpop.f32.mrb[0].mxu0
        %v3743 = vadd.f32 0.0, %v3742
        %v3744 = vpop.f32.mrb[0].mxu0
        %3745 = vmatprep.mubr.bf16.mxu0 0
        %3746 = vmatmul.mubr.bf16.gmra.mrb[0].mxu0 %v3659
        %v3747 = vpop.f32.mrb[0].mxu0
        %v3748 = vadd.f32 0.0, %v3747
        %v3749 = vpop.f32.mrb[0].mxu0
        %v3750 = vpop.f32.mrb[0].mxu0
        %v3751 = vadd.f32 0.0, %v3750
        %v3752 = vpop.f32.mrb[0].mxu0
        %3753 = vmatprep.mubr.bf16.mxu0 0
        %3754 = vmatmul.mubr.bf16.gmra.mrb[0].mxu0 %v3660
        %v3755 = vpop.f32.mrb[0].mxu0
        %v3756 = vadd.f32 0.0, %v3755
        %v3757 = vpop.f32.mrb[0].mxu0
        %v3758 = vpop.f32.mrb[0].mxu0
        %v3759 = vadd.f32 0.0, %v3758
        %v3760 = vpop.f32.mrb[0].mxu0
        %3761 = vmatprep.mubr.bf16.mxu0 0
        %3762 = vmatmul.mubr.bf16.gmra.mrb[0].mxu0 %v3661
        %v3763 = vpop.f32.mrb[0].mxu0
        %v3764 = vadd.f32 0.0, %v3763
        %v3765 = vpop.f32.mrb[0].mxu0
        %v3766 = vpop.f32.mrb[0].mxu0
        %v3767 = vadd.f32 0.0, %v3766
        %v3768 = vpop.f32.mrb[0].mxu0
        %3769 = vmatprep.mubr.bf16.mxu0 0
        %3770 = vmatmul.mubr.bf16.gmra.mrb[0].mxu0 %v3662
        %v3771 = vpop.f32.mrb[0].mxu0
        %v3772 = vadd.f32 0.0, %v3771
        %v3773 = vpop.f32.mrb[0].mxu0
        %v3774 = vpop.f32.mrb[0].mxu0
        %v3775 = vadd.f32 0.0, %v3774
        %v3776 = vpop.f32.mrb[0].mxu0
        %3777 = vmatprep.mubr.bf16.mxu0 0
        %3778 = vmatmul.mubr.bf16.gmra.mrb[0].mxu0 %v3663
        %v3779 = vpop.f32.mrb[0].mxu0
        %v3780 = vadd.f32 0.0, %v3779
        %v3781 = vpop.f32.mrb[0].mxu0
        %v3782 = vpop.f32.mrb[0].mxu0
        %v3783 = vadd.f32 0.0, %v3782
        %v3784 = vpop.f32.mrb[0].mxu0
        %3785 = vmatprep.mubr.bf16.mxu0 0
        %3786 = vmatmul.mubr.bf16.gmra.mrb[0].mxu0 %v3664
        %v3787 = vpop.f32.mrb[0].mxu0
        %v3788 = vadd.f32 0.0, %v3787
        %v3789 = vpop.f32.mrb[0].mxu0
        %v3790 = vpop.f32.mrb[0].mxu0
        %v3791 = vadd.f32 0.0, %v3790
        %v3792 = vpop.f32.mrb[0].mxu0
        %3793 = vdwg.mxu0
        %v3794 = vmul.f32 %v3732, %v3641
        %v3795 = vmul.f32 %v3735, %v3642
        %v3796 = vmul.f32 %v3740, %v3643
        %v3797 = vmul.f32 %v3743, %v3644
        %v3798 = vmul.f32 %v3748, %v3645
        %v3799 = vmul.f32 %v3751, %v3646
        %v3800 = vmul.f32 %v3756, %v3647
        %v3801 = vmul.f32 %v3759, %v3648
        %v3802 = vmul.f32 %v3764, %v3649
        %v3803 = vmul.f32 %v3767, %v3650
        %v3804 = vmul.f32 %v3772, %v3651
        %v3805 = vmul.f32 %v3775, %v3652
        %v3806 = vmul.f32 %v3780, %v3653
        %v3807 = vmul.f32 %v3783, %v3654
        %v3808 = vmul.f32 %v3788, %v3655
        %v3809 = vmul.f32 %v3791, %v3656
        %3810 = vrot.lane.b32.xlu0 %v2286, 120
        %v3811 = vpop.permute.xlu0 %3810
        %v3813 = vadd.f32 %v3794, %v3811
        %v3814 = vadd.f32 %v3795, %v3811
        %v3815 = vadd.f32 %v3796, %v3811
        %v3816 = vadd.f32 %v3797, %v3811
        %v3817 = vadd.f32 %v3798, %v3811
        %v3818 = vadd.f32 %v3799, %v3811
        %v3819 = vadd.f32 %v3800, %v3811
        %v3820 = vadd.f32 %v3801, %v3811
        %v3821 = vadd.f32 %v3802, %v3811
        %v3822 = vadd.f32 %v3803, %v3811
        %v3823 = vadd.f32 %v3804, %v3811
        %v3824 = vadd.f32 %v3805, %v3811
        %v3825 = vadd.f32 %v3806, %v3811
        %v3826 = vadd.f32 %v3807, %v3811
        %v3827 = vadd.f32 %v3808, %v3811
        %v3828 = vadd.f32 %v3809, %v3811
        %v3829 = vmax.f32 %v3813, 0.0
        %v3830 = vmax.f32 %v3814, 0.0
        %v3831 = vmax.f32 %v3815, 0.0
        %v3832 = vmax.f32 %v3816, 0.0
        %v3833 = vmax.f32 %v3817, 0.0
        %v3834 = vmax.f32 %v3818, 0.0
        %v3835 = vmax.f32 %v3819, 0.0
        %v3836 = vmax.f32 %v3820, 0.0
        %v3837 = vmax.f32 %v3821, 0.0
        %v3838 = vmax.f32 %v3822, 0.0
        %v3839 = vmax.f32 %v3823, 0.0
        %v3840 = vmax.f32 %v3824, 0.0
        %v3841 = vmax.f32 %v3825, 0.0
        %v3842 = vmax.f32 %v3826, 0.0
        %v3843 = vmax.f32 %v3827, 0.0
        %v3844 = vmax.f32 %v3828, 0.0
        %v3845 = vpack.c.bf16 %v3830, %v3829
        %v3846 = vpack.c.bf16 %v3832, %v3831
        %v3847 = vpack.c.bf16 %v3834, %v3833
        %v3848 = vpack.c.bf16 %v3836, %v3835
        %v3849 = vpack.c.bf16 %v3838, %v3837
        %v3850 = vpack.c.bf16 %v3840, %v3839
        %v3851 = vpack.c.bf16 %v3842, %v3841
        %v3852 = vpack.c.bf16 %v3844, %v3843
        %v3853 = vld [vmem:[%s6 + $0x4] sm:$0xf]
        %vm3854 = vcmask 64512
        %v3856 = vsel %vm3854, %v3845, 0
        %v3859 = vsel %vm3854, %v3846, 0
        %v3862 = vsel %vm3854, %v3847, 0
        %v3865 = vsel %vm3854, %v3848, 0
        %v3868 = vsel %vm3854, %v3849, 0
        %v3871 = vsel %vm3854, %v3850, 0
        %v3874 = vsel %vm3854, %v3851, 0
        %v3877 = vsel %vm3854, %v3852, 0
        %vm3879 = vcmask 1043456
        %v3881 = vsel %vm3879, %v3853, 0
        %3883 = vmatprep.subr.bf16.mxu0 0
        %3884 = vmatpush1.bf16.msra.mxu0 %v3881
        %3885 = vmatprep.subr.bf16.mxu0 0
        %3886 = vmatpush1.bf16.msra.mxu0 0
        %3887 = vmatprep.subr.bf16.mxu0 0
        %3888 = vmatpush1.bf16.msra.mxu0 0
        %3889 = vmatprep.subr.bf16.mxu0 0
        %3890 = vmatpush1.bf16.msra.mxu0 0
        %3891 = vmatprep.subr.bf16.mxu0 0
        %3892 = vmatpush1.bf16.msra.mxu0 0
        %3893 = vmatprep.subr.bf16.mxu0 0
        %3894 = vmatpush1.bf16.msra.mxu0 0
        %3895 = vmatprep.subr.bf16.mxu0 0
        %3896 = vmatpush1.bf16.msra.mxu0 0
        %3897 = vmatprep.subr.bf16.mxu0 0
        %3898 = vmatpush1.bf16.msra.mxu0 0
        %3899 = vmatprep.subr.bf16.mxu0 0
        %3900 = vmatpush1.bf16.msra.mxu0 0
        %3901 = vmatprep.subr.bf16.mxu0 0
        %3902 = vmatpush1.bf16.msra.mxu0 0
        %3903 = vmatprep.subr.bf16.mxu0 0
        %3904 = vmatpush1.bf16.msra.mxu0 0
        %3905 = vmatprep.subr.bf16.mxu0 0
        %3906 = vmatpush1.bf16.msra.mxu0 0
        %3907 = vmatprep.subr.bf16.mxu0 0
        %3908 = vmatpush1.bf16.msra.mxu0 0
        %3909 = vmatprep.subr.bf16.mxu0 0
        %3910 = vmatpush1.bf16.msra.mxu0 0
        %3911 = vmatprep.subr.bf16.mxu0 0
        %3912 = vmatpush1.bf16.msra.mxu0 0
        %3913 = vmatprep.subr.bf16.mxu0 0
        %3914 = vmatpush1.bf16.msra.mxu0 0
        %3915 = vmatprep.mubr.bf16.mxu0 0
        %3916 = vmatmul.mubr.bf16.gmra.mrb[0].mxu0 %v3856
        %v3917 = vpop.f32.mrb[0].mxu0
        %v3918 = vadd.f32 0.0, %v3917
        %v3919 = vpop.f32.mrb[0].mxu0
        %v3920 = vpop.f32.mrb[0].mxu0
        %v3921 = vadd.f32 0.0, %v3920
        %v3922 = vpop.f32.mrb[0].mxu0
        %3923 = vmatprep.mubr.bf16.mxu0 0
        %3924 = vmatmul.mubr.bf16.gmra.mrb[0].mxu0 %v3859
        %v3925 = vpop.f32.mrb[0].mxu0
        %v3926 = vadd.f32 0.0, %v3925
        %v3927 = vpop.f32.mrb[0].mxu0
        %v3928 = vpop.f32.mrb[0].mxu0
        %v3929 = vadd.f32 0.0, %v3928
        %v3930 = vpop.f32.mrb[0].mxu0
        %3931 = vmatprep.mubr.bf16.mxu0 0
        %3932 = vmatmul.mubr.bf16.gmra.mrb[0].mxu0 %v3862
        %v3933 = vpop.f32.mrb[0].mxu0
        %v3934 = vadd.f32 0.0, %v3933
        %v3935 = vpop.f32.mrb[0].mxu0
        %v3936 = vpop.f32.mrb[0].mxu0
        %v3937 = vadd.f32 0.0, %v3936
        %v3938 = vpop.f32.mrb[0].mxu0
        %3939 = vmatprep.mubr.bf16.mxu0 0
        %3940 = vmatmul.mubr.bf16.gmra.mrb[0].mxu0 %v3865
        %v3941 = vpop.f32.mrb[0].mxu0
        %v3942 = vadd.f32 0.0, %v3941
        %v3943 = vpop.f32.mrb[0].mxu0
        %v3944 = vpop.f32.mrb[0].mxu0
        %v3945 = vadd.f32 0.0, %v3944
        %v3946 = vpop.f32.mrb[0].mxu0
        %3947 = vmatprep.mubr.bf16.mxu0 0
        %3948 = vmatmul.mubr.bf16.gmra.mrb[0].mxu0 %v3868
        %v3949 = vpop.f32.mrb[0].mxu0
        %v3950 = vadd.f32 0.0, %v3949
        %v3951 = vpop.f32.mrb[0].mxu0
        %v3952 = vpop.f32.mrb[0].mxu0
        %v3953 = vadd.f32 0.0, %v3952
        %v3954 = vpop.f32.mrb[0].mxu0
        %3955 = vmatprep.mubr.bf16.mxu0 0
        %3956 = vmatmul.mubr.bf16.gmra.mrb[0].mxu0 %v3871
        %v3957 = vpop.f32.mrb[0].mxu0
        %v3958 = vadd.f32 0.0, %v3957
        %v3959 = vpop.f32.mrb[0].mxu0
        %v3960 = vpop.f32.mrb[0].mxu0
        %v3961 = vadd.f32 0.0, %v3960
        %v3962 = vpop.f32.mrb[0].mxu0
        %3963 = vmatprep.mubr.bf16.mxu0 0
        %3964 = vmatmul.mubr.bf16.gmra.mrb[0].mxu0 %v3874
        %v3965 = vpop.f32.mrb[0].mxu0
        %v3966 = vadd.f32 0.0, %v3965
        %v3967 = vpop.f32.mrb[0].mxu0
        %v3968 = vpop.f32.mrb[0].mxu0
        %v3969 = vadd.f32 0.0, %v3968
        %v3970 = vpop.f32.mrb[0].mxu0
        %3971 = vmatprep.mubr.bf16.mxu0 0
        %3972 = vmatmul.mubr.bf16.gmra.mrb[0].mxu0 %v3877
        %v3973 = vpop.f32.mrb[0].mxu0
        %v3974 = vadd.f32 0.0, %v3973
        %v3975 = vpop.f32.mrb[0].mxu0
        %v3976 = vpop.f32.mrb[0].mxu0
        %v3977 = vadd.f32 0.0, %v3976
        %v3978 = vpop.f32.mrb[0].mxu0
        %3979 = vdwg.mxu0
        %v3981 = vsel %vm3854, %v2320, 0
        %v3984 = vsel %vm3854, %v2321, 0
        %v3987 = vsel %vm3854, %v2322, 0
        %v3990 = vsel %vm3854, %v2323, 0
        %v3993 = vsel %vm3854, %v2324, 0
        %v3996 = vsel %vm3854, %v2325, 0
        %v3999 = vsel %vm3854, %v2326, 0
        %v4002 = vsel %vm3854, %v2327, 0
        %v4005 = vsel %vm3879, %v2328, 0
        %4007 = vmatprep.subr.bf16.mxu0 0
        %4008 = vmatpush1.bf16.msra.mxu0 %v4005
        %4009 = vmatprep.subr.bf16.mxu0 0
        %4010 = vmatpush1.bf16.msra.mxu0 0
        %4011 = vmatprep.subr.bf16.mxu0 0
        %4012 = vmatpush1.bf16.msra.mxu0 0
        %4013 = vmatprep.subr.bf16.mxu0 0
        %4014 = vmatpush1.bf16.msra.mxu0 0
        %4015 = vmatprep.subr.bf16.mxu0 0
        %4016 = vmatpush1.bf16.msra.mxu0 0
        %4017 = vmatprep.subr.bf16.mxu0 0
        %4018 = vmatpush1.bf16.msra.mxu0 0
        %4019 = vmatprep.subr.bf16.mxu0 0
        %4020 = vmatpush1.bf16.msra.mxu0 0
        %4021 = vmatprep.subr.bf16.mxu0 0
        %4022 = vmatpush1.bf16.msra.mxu0 0
        %4023 = vmatprep.subr.bf16.mxu0 0
        %4024 = vmatpush1.bf16.msra.mxu0 0
        %4025 = vmatprep.subr.bf16.mxu0 0
        %4026 = vmatpush1.bf16.msra.mxu0 0
        %4027 = vmatprep.subr.bf16.mxu0 0
        %4028 = vmatpush1.bf16.msra.mxu0 0
        %4029 = vmatprep.subr.bf16.mxu0 0
        %4030 = vmatpush1.bf16.msra.mxu0 0
        %4031 = vmatprep.subr.bf16.mxu0 0
        %4032 = vmatpush1.bf16.msra.mxu0 0
        %4033 = vmatprep.subr.bf16.mxu0 0
        %4034 = vmatpush1.bf16.msra.mxu0 0
        %4035 = vmatprep.subr.bf16.mxu0 0
        %4036 = vmatpush1.bf16.msra.mxu0 0
        %4037 = vmatprep.subr.bf16.mxu0 0
        %4038 = vmatpush1.bf16.msra.mxu0 0
        %4039 = vmatprep.mubr.bf16.mxu0 0
        %4040 = vmatmul.mubr.bf16.gmra.mrb[0].mxu0 %v3981
        %v4041 = vpop.f32.mrb[0].mxu0
        %v4042 = vadd.f32 %v3918, %v4041
        %v4043 = vpop.f32.mrb[0].mxu0
        %v4044 = vpop.f32.mrb[0].mxu0
        %v4045 = vadd.f32 %v3921, %v4044
        %v4046 = vpop.f32.mrb[0].mxu0
        %4047 = vmatprep.mubr.bf16.mxu0 0
        %4048 = vmatmul.mubr.bf16.gmra.mrb[0].mxu0 %v3984
        %v4049 = vpop.f32.mrb[0].mxu0
        %v4050 = vadd.f32 %v3926, %v4049
        %v4051 = vpop.f32.mrb[0].mxu0
        %v4052 = vpop.f32.mrb[0].mxu0
        %v4053 = vadd.f32 %v3929, %v4052
        %v4054 = vpop.f32.mrb[0].mxu0
        %4055 = vmatprep.mubr.bf16.mxu0 0
        %4056 = vmatmul.mubr.bf16.gmra.mrb[0].mxu0 %v3987
        %v4057 = vpop.f32.mrb[0].mxu0
        %v4058 = vadd.f32 %v3934, %v4057
        %v4059 = vpop.f32.mrb[0].mxu0
        %v4060 = vpop.f32.mrb[0].mxu0
        %v4061 = vadd.f32 %v3937, %v4060
        %v4062 = vpop.f32.mrb[0].mxu0
        %4063 = vmatprep.mubr.bf16.mxu0 0
        %4064 = vmatmul.mubr.bf16.gmra.mrb[0].mxu0 %v3990
        %v4065 = vpop.f32.mrb[0].mxu0
        %v4066 = vadd.f32 %v3942, %v4065
        %v4067 = vpop.f32.mrb[0].mxu0
        %v4068 = vpop.f32.mrb[0].mxu0
        %v4069 = vadd.f32 %v3945, %v4068
        %v4070 = vpop.f32.mrb[0].mxu0
        %4071 = vmatprep.mubr.bf16.mxu0 0
        %4072 = vmatmul.mubr.bf16.gmra.mrb[0].mxu0 %v3993
        %v4073 = vpop.f32.mrb[0].mxu0
        %v4074 = vadd.f32 %v3950, %v4073
        %v4075 = vpop.f32.mrb[0].mxu0
        %v4076 = vpop.f32.mrb[0].mxu0
        %v4077 = vadd.f32 %v3953, %v4076
        %v4078 = vpop.f32.mrb[0].mxu0
        %4079 = vmatprep.mubr.bf16.mxu0 0
        %4080 = vmatmul.mubr.bf16.gmra.mrb[0].mxu0 %v3996
        %v4081 = vpop.f32.mrb[0].mxu0
        %v4082 = vadd.f32 %v3958, %v4081
        %v4083 = vpop.f32.mrb[0].mxu0
        %v4084 = vpop.f32.mrb[0].mxu0
        %v4085 = vadd.f32 %v3961, %v4084
        %v4086 = vpop.f32.mrb[0].mxu0
        %4087 = vmatprep.mubr.bf16.mxu0 0
        %4088 = vmatmul.mubr.bf16.gmra.mrb[0].mxu0 %v3999
        %v4089 = vpop.f32.mrb[0].mxu0
        %v4090 = vadd.f32 %v3966, %v4089
        %v4091 = vpop.f32.mrb[0].mxu0
        %v4092 = vpop.f32.mrb[0].mxu0
        %v4093 = vadd.f32 %v3969, %v4092
        %v4094 = vpop.f32.mrb[0].mxu0
        %4095 = vmatprep.mubr.bf16.mxu0 0
        %4096 = vmatmul.mubr.bf16.gmra.mrb[0].mxu0 %v4002
        %v4097 = vpop.f32.mrb[0].mxu0
        %v4098 = vadd.f32 %v3974, %v4097
        %v4099 = vpop.f32.mrb[0].mxu0
        %v4100 = vpop.f32.mrb[0].mxu0
        %v4101 = vadd.f32 %v3977, %v4100
        %v4102 = vpop.f32.mrb[0].mxu0
        %4103 = vdwg.mxu0
        %s4104 = sld [smem:[#allocation2]]
        %v4105 = vstv %s4104
        %v4106 = vadd.f32 %v4042, %v4105
        %v4107 = vadd.f32 %v4045, %v4105
        %v4108 = vadd.f32 %v4050, %v4105
        %v4109 = vadd.f32 %v4053, %v4105
        %v4110 = vadd.f32 %v4058, %v4105
        %v4111 = vadd.f32 %v4061, %v4105
        %v4112 = vadd.f32 %v4066, %v4105
        %v4113 = vadd.f32 %v4069, %v4105
        %v4114 = vadd.f32 %v4074, %v4105
        %v4115 = vadd.f32 %v4077, %v4105
        %v4116 = vadd.f32 %v4082, %v4105
        %v4117 = vadd.f32 %v4085, %v4105
        %v4118 = vadd.f32 %v4090, %v4105
        %v4119 = vadd.f32 %v4093, %v4105
        %v4120 = vadd.f32 %v4098, %v4105
        %v4121 = vadd.f32 %v4101, %v4105
        %v4122 = vld [vmem:[%s9] sm:$0x1]
        %v4123 = vld [vmem:[%s8] sm:$0xf]
        %v4125 = vsel %vm3879, %v4123, 0
        %4127 = vmatprep.subr.bf16.mxu0 0
        %4128 = vmatpush1.bf16.msra.mxu0 %v4125
        %4129 = vmatprep.subr.bf16.mxu0 0
        %4130 = vmatpush1.bf16.msra.mxu0 0
        %4131 = vmatprep.subr.bf16.mxu0 0
        %4132 = vmatpush1.bf16.msra.mxu0 0
        %4133 = vmatprep.subr.bf16.mxu0 0
        %4134 = vmatpush1.bf16.msra.mxu0 0
        %4135 = vmatprep.subr.bf16.mxu0 0
        %4136 = vmatpush1.bf16.msra.mxu0 0
        %4137 = vmatprep.subr.bf16.mxu0 0
        %4138 = vmatpush1.bf16.msra.mxu0 0
        %4139 = vmatprep.subr.bf16.mxu0 0
        %4140 = vmatpush1.bf16.msra.mxu0 0
        %4141 = vmatprep.subr.bf16.mxu0 0
        %4142 = vmatpush1.bf16.msra.mxu0 0
        %4143 = vmatprep.subr.bf16.mxu0 0
        %4144 = vmatpush1.bf16.msra.mxu0 0
        %4145 = vmatprep.subr.bf16.mxu0 0
        %4146 = vmatpush1.bf16.msra.mxu0 0
        %4147 = vmatprep.subr.bf16.mxu0 0
        %4148 = vmatpush1.bf16.msra.mxu0 0
        %4149 = vmatprep.subr.bf16.mxu0 0
        %4150 = vmatpush1.bf16.msra.mxu0 0
        %4151 = vmatprep.subr.bf16.mxu0 0
        %4152 = vmatpush1.bf16.msra.mxu0 0
        %4153 = vmatprep.subr.bf16.mxu0 0
        %4154 = vmatpush1.bf16.msra.mxu0 0
        %4155 = vmatprep.subr.bf16.mxu0 0
        %4156 = vmatpush1.bf16.msra.mxu0 0
        %4157 = vmatprep.subr.bf16.mxu0 0
        %4158 = vmatpush1.bf16.msra.mxu0 0
        %4159 = vmatprep.mubr.bf16.mxu0 0
        %4160 = vmatmul.mubr.bf16.gmra.mrb[0].mxu0 %v3981
        %v4161 = vpop.f32.mrb[0].mxu0
        %v4162 = vadd.f32 0.0, %v4161
        %v4163 = vpop.f32.mrb[0].mxu0
        %v4164 = vpop.f32.mrb[0].mxu0
        %v4165 = vadd.f32 0.0, %v4164
        %v4166 = vpop.f32.mrb[0].mxu0
        %4167 = vmatprep.mubr.bf16.mxu0 0
        %4168 = vmatmul.mubr.bf16.gmra.mrb[0].mxu0 %v3984
        %v4169 = vpop.f32.mrb[0].mxu0
        %v4170 = vadd.f32 0.0, %v4169
        %v4171 = vpop.f32.mrb[0].mxu0
        %v4172 = vpop.f32.mrb[0].mxu0
        %v4173 = vadd.f32 0.0, %v4172
        %v4174 = vpop.f32.mrb[0].mxu0
        %4175 = vmatprep.mubr.bf16.mxu0 0
        %4176 = vmatmul.mubr.bf16.gmra.mrb[0].mxu0 %v3987
        %v4177 = vpop.f32.mrb[0].mxu0
        %v4178 = vadd.f32 0.0, %v4177
        %v4179 = vpop.f32.mrb[0].mxu0
        %v4180 = vpop.f32.mrb[0].mxu0
        %v4181 = vadd.f32 0.0, %v4180
        %v4182 = vpop.f32.mrb[0].mxu0
        %4183 = vmatprep.mubr.bf16.mxu0 0
        %4184 = vmatmul.mubr.bf16.gmra.mrb[0].mxu0 %v3990
        %v4185 = vpop.f32.mrb[0].mxu0
        %v4186 = vadd.f32 0.0, %v4185
        %v4187 = vpop.f32.mrb[0].mxu0
        %v4188 = vpop.f32.mrb[0].mxu0
        %v4189 = vadd.f32 0.0, %v4188
        %v4190 = vpop.f32.mrb[0].mxu0
        %4191 = vmatprep.mubr.bf16.mxu0 0
        %4192 = vmatmul.mubr.bf16.gmra.mrb[0].mxu0 %v3993
        %v4193 = vpop.f32.mrb[0].mxu0
        %v4194 = vadd.f32 0.0, %v4193
        %v4195 = vpop.f32.mrb[0].mxu0
        %v4196 = vpop.f32.mrb[0].mxu0
        %v4197 = vadd.f32 0.0, %v4196
        %v4198 = vpop.f32.mrb[0].mxu0
        %4199 = vmatprep.mubr.bf16.mxu0 0
        %4200 = vmatmul.mubr.bf16.gmra.mrb[0].mxu0 %v3996
        %v4201 = vpop.f32.mrb[0].mxu0
        %v4202 = vadd.f32 0.0, %v4201
        %v4203 = vpop.f32.mrb[0].mxu0
        %v4204 = vpop.f32.mrb[0].mxu0
        %v4205 = vadd.f32 0.0, %v4204
        %v4206 = vpop.f32.mrb[0].mxu0
        %4207 = vmatprep.mubr.bf16.mxu0 0
        %4208 = vmatmul.mubr.bf16.gmra.mrb[0].mxu0 %v3999
        %v4209 = vpop.f32.mrb[0].mxu0
        %v4210 = vadd.f32 0.0, %v4209
        %v4211 = vpop.f32.mrb[0].mxu0
        %v4212 = vpop.f32.mrb[0].mxu0
        %v4213 = vadd.f32 0.0, %v4212
        %v4214 = vpop.f32.mrb[0].mxu0
        %4215 = vmatprep.mubr.bf16.mxu0 0
        %4216 = vmatmul.mubr.bf16.gmra.mrb[0].mxu0 %v4002
        %v4217 = vpop.f32.mrb[0].mxu0
        %v4218 = vadd.f32 0.0, %v4217
        %v4219 = vpop.f32.mrb[0].mxu0
        %v4220 = vpop.f32.mrb[0].mxu0
        %v4221 = vadd.f32 0.0, %v4220
        %v4222 = vpop.f32.mrb[0].mxu0
        %4223 = vdwg.mxu0
        %v4225 = vlaneseq
        %v4226 = vshrl.u32 %v4225, 7
        %v4227 = vsub.s32 0, %v4226
        %v4228 = vrot.slane %v4122, %v4227
        %v4230 = vadd.f32 %v4228, %v4162
        %v4231 = vadd.f32 %v4228, %v4165
        %v4232 = vadd.f32 %v4228, %v4170
        %v4233 = vadd.f32 %v4228, %v4173
        %v4234 = vadd.f32 %v4228, %v4178
        %v4235 = vadd.f32 %v4228, %v4181
        %v4236 = vadd.f32 %v4228, %v4186
        %v4237 = vadd.f32 %v4228, %v4189
        %v4238 = vadd.f32 %v4228, %v4194
        %v4239 = vadd.f32 %v4228, %v4197
        %v4240 = vadd.f32 %v4228, %v4202
        %v4241 = vadd.f32 %v4228, %v4205
        %v4242 = vadd.f32 %v4228, %v4210
        %v4243 = vadd.f32 %v4228, %v4213
        %v4244 = vadd.f32 %v4228, %v4218
        %v4245 = vadd.f32 %v4228, %v4221
        %v4246 = vld [vmem:[%s8 + $0x4] sm:$0xf]
        %v4248 = vsel %vm3879, %v4246, 0
        %4250 = vmatprep.subr.bf16.mxu0 0
        %4251 = vmatpush1.bf16.msra.mxu0 %v4248
        %4252 = vmatprep.subr.bf16.mxu0 0
        %4253 = vmatpush1.bf16.msra.mxu0 0
        %4254 = vmatprep.subr.bf16.mxu0 0
        %4255 = vmatpush1.bf16.msra.mxu0 0
        %4256 = vmatprep.subr.bf16.mxu0 0
        %4257 = vmatpush1.bf16.msra.mxu0 0
        %4258 = vmatprep.subr.bf16.mxu0 0
        %4259 = vmatpush1.bf16.msra.mxu0 0
        %4260 = vmatprep.subr.bf16.mxu0 0
        %4261 = vmatpush1.bf16.msra.mxu0 0
        %4262 = vmatprep.subr.bf16.mxu0 0
        %4263 = vmatpush1.bf16.msra.mxu0 0
        %4264 = vmatprep.subr.bf16.mxu0 0
        %4265 = vmatpush1.bf16.msra.mxu0 0
        %4266 = vmatprep.subr.bf16.mxu0 0
        %4267 = vmatpush1.bf16.msra.mxu0 0
        %4268 = vmatprep.subr.bf16.mxu0 0
        %4269 = vmatpush1.bf16.msra.mxu0 0
        %4270 = vmatprep.subr.bf16.mxu0 0
        %4271 = vmatpush1.bf16.msra.mxu0 0
        %4272 = vmatprep.subr.bf16.mxu0 0
        %4273 = vmatpush1.bf16.msra.mxu0 0
        %4274 = vmatprep.subr.bf16.mxu0 0
        %4275 = vmatpush1.bf16.msra.mxu0 0
        %4276 = vmatprep.subr.bf16.mxu0 0
        %4277 = vmatpush1.bf16.msra.mxu0 0
        %4278 = vmatprep.subr.bf16.mxu0 0
        %4279 = vmatpush1.bf16.msra.mxu0 0
        %4280 = vmatprep.subr.bf16.mxu0 0
        %4281 = vmatpush1.bf16.msra.mxu0 0
        %4282 = vmatprep.mubr.bf16.mxu0 0
        %4283 = vmatmul.mubr.bf16.gmra.mrb[0].mxu0 %v3856
        %v4284 = vpop.f32.mrb[0].mxu0
        %v4285 = vadd.f32 0.0, %v4284
        %v4286 = vpop.f32.mrb[0].mxu0
        %v4287 = vpop.f32.mrb[0].mxu0
        %v4288 = vadd.f32 0.0, %v4287
        %v4289 = vpop.f32.mrb[0].mxu0
        %4290 = vmatprep.mubr.bf16.mxu0 0
        %4291 = vmatmul.mubr.bf16.gmra.mrb[0].mxu0 %v3859
        %v4292 = vpop.f32.mrb[0].mxu0
        %v4293 = vadd.f32 0.0, %v4292
        %v4294 = vpop.f32.mrb[0].mxu0
        %v4295 = vpop.f32.mrb[0].mxu0
        %v4296 = vadd.f32 0.0, %v4295
        %v4297 = vpop.f32.mrb[0].mxu0
        %4298 = vmatprep.mubr.bf16.mxu0 0
        %4299 = vmatmul.mubr.bf16.gmra.mrb[0].mxu0 %v3862
        %v4300 = vpop.f32.mrb[0].mxu0
        %v4301 = vadd.f32 0.0, %v4300
        %v4302 = vpop.f32.mrb[0].mxu0
        %v4303 = vpop.f32.mrb[0].mxu0
        %v4304 = vadd.f32 0.0, %v4303
        %v4305 = vpop.f32.mrb[0].mxu0
        %4306 = vmatprep.mubr.bf16.mxu0 0
        %4307 = vmatmul.mubr.bf16.gmra.mrb[0].mxu0 %v3865
        %v4308 = vpop.f32.mrb[0].mxu0
        %v4309 = vadd.f32 0.0, %v4308
        %v4310 = vpop.f32.mrb[0].mxu0
        %v4311 = vpop.f32.mrb[0].mxu0
        %v4312 = vadd.f32 0.0, %v4311
        %v4313 = vpop.f32.mrb[0].mxu0
        %4314 = vmatprep.mubr.bf16.mxu0 0
        %4315 = vmatmul.mubr.bf16.gmra.mrb[0].mxu0 %v3868
        %v4316 = vpop.f32.mrb[0].mxu0
        %v4317 = vadd.f32 0.0, %v4316
        %v4318 = vpop.f32.mrb[0].mxu0
        %v4319 = vpop.f32.mrb[0].mxu0
        %v4320 = vadd.f32 0.0, %v4319
        %v4321 = vpop.f32.mrb[0].mxu0
        %4322 = vmatprep.mubr.bf16.mxu0 0
        %4323 = vmatmul.mubr.bf16.gmra.mrb[0].mxu0 %v3871
        %v4324 = vpop.f32.mrb[0].mxu0
        %v4325 = vadd.f32 0.0, %v4324
        %v4326 = vpop.f32.mrb[0].mxu0
        %v4327 = vpop.f32.mrb[0].mxu0
        %v4328 = vadd.f32 0.0, %v4327
        %v4329 = vpop.f32.mrb[0].mxu0
        %4330 = vmatprep.mubr.bf16.mxu0 0
        %4331 = vmatmul.mubr.bf16.gmra.mrb[0].mxu0 %v3874
        %v4332 = vpop.f32.mrb[0].mxu0
        %v4333 = vadd.f32 0.0, %v4332
        %v4334 = vpop.f32.mrb[0].mxu0
        %v4335 = vpop.f32.mrb[0].mxu0
        %v4336 = vadd.f32 0.0, %v4335
        %v4337 = vpop.f32.mrb[0].mxu0
        %4338 = vmatprep.mubr.bf16.mxu0 0
        %4339 = vmatmul.mubr.bf16.gmra.mrb[0].mxu0 %v3877
        %v4340 = vpop.f32.mrb[0].mxu0
        %v4341 = vadd.f32 0.0, %v4340
        %v4342 = vpop.f32.mrb[0].mxu0
        %v4343 = vpop.f32.mrb[0].mxu0
        %v4344 = vadd.f32 0.0, %v4343
        %v4345 = vpop.f32.mrb[0].mxu0
        %4346 = vdwg.mxu0
        %v4347 = vadd.f32 %v4230, %v4285
        %v4348 = vadd.f32 %v4231, %v4288
        %v4349 = vadd.f32 %v4232, %v4293
        %v4350 = vadd.f32 %v4233, %v4296
        %v4351 = vadd.f32 %v4234, %v4301
        %v4352 = vadd.f32 %v4235, %v4304
        %v4353 = vadd.f32 %v4236, %v4309
        %v4354 = vadd.f32 %v4237, %v4312
        %v4355 = vadd.f32 %v4238, %v4317
        %v4356 = vadd.f32 %v4239, %v4320
        %v4357 = vadd.f32 %v4240, %v4325
        %v4358 = vadd.f32 %v4241, %v4328
        %v4359 = vadd.f32 %v4242, %v4333
        %v4360 = vadd.f32 %v4243, %v4336
        %v4361 = vadd.f32 %v4244, %v4341
        %v4362 = vadd.f32 %v4245, %v4344
        %4363 = vxpose.xlu0.b32.start [1/16] %v4347, 128
        %4364 = vxpose.xlu0.b32.cont [2/16] %v4348, 128
        %4365 = vxpose.xlu0.b32.cont [3/16] %v4349, 128
        %4366 = vxpose.xlu0.b32.cont [4/16] %v4350, 128
        %4367 = vxpose.xlu0.b32.cont [5/16] %v4351, 128
        %4368 = vxpose.xlu0.b32.cont [6/16] %v4352, 128
        %4369 = vxpose.xlu0.b32.cont [7/16] %v4353, 128
        %4370 = vxpose.xlu0.b32.cont [8/16] %v4354, 128
        %4371 = vxpose.xlu0.b32.cont [9/16] %v4355, 128
        %4372 = vxpose.xlu0.b32.cont [10/16] %v4356, 128
        %4373 = vxpose.xlu0.b32.cont [11/16] %v4357, 128
        %4374 = vxpose.xlu0.b32.cont [12/16] %v4358, 128
        %4375 = vxpose.xlu0.b32.cont [13/16] %v4359, 128
        %4376 = vxpose.xlu0.b32.cont [14/16] %v4360, 128
        %4377 = vxpose.xlu0.b32.cont [15/16] %v4361, 128
        %4378 = vxpose.xlu0.b32.end [16/16] %v4362, 128
        %v4379 = vpop.trf.xlu0
        %v4380 = vpop.trf.xlu0
        %v4381 = vpop.trf.xlu0
        %v4382 = vpop.trf.xlu0
        %v4383 = vpop.trf.xlu0
        %v4384 = vpop.trf.xlu0
        %v4385 = vpop.trf.xlu0
        %v4386 = vpop.trf.xlu0
        %v4387 = vpop.trf.xlu0
        %v4388 = vpop.trf.xlu0
        %v4389 = vpop.trf.xlu0
        %v4390 = vpop.trf.xlu0
        %v4391 = vpop.trf.xlu0
        %v4392 = vpop.trf.xlu0
        %v4393 = vpop.trf.xlu0
        %v4394 = vpop.trf.xlu0
        %4396 = vset.pattern.permute.xlu0 16
        %4397 = vperm.xlu0 %4396, %v4347
        %v4398 = vpop.permute.xlu0 %4397
        %4401 = vset.pattern.permute.xlu0 16
        %4402 = vperm.xlu0 %4401, %v4348
        %v4403 = vpop.permute.xlu0 %4402
        %4406 = vset.pattern.permute.xlu0 16
        %4407 = vperm.xlu0 %4406, %v4349
        %v4408 = vpop.permute.xlu0 %4407
        %4411 = vset.pattern.permute.xlu0 16
        %4412 = vperm.xlu0 %4411, %v4350
        %v4413 = vpop.permute.xlu0 %4412
        %4416 = vset.pattern.permute.xlu0 16
        %4417 = vperm.xlu0 %4416, %v4351
        %v4418 = vpop.permute.xlu0 %4417
        %4421 = vset.pattern.permute.xlu0 16
        %4422 = vperm.xlu0 %4421, %v4352
        %v4423 = vpop.permute.xlu0 %4422
        %4426 = vset.pattern.permute.xlu0 16
        %4427 = vperm.xlu0 %4426, %v4353
        %v4428 = vpop.permute.xlu0 %4427
        %4431 = vset.pattern.permute.xlu0 16
        %4432 = vperm.xlu0 %4431, %v4354
        %v4433 = vpop.permute.xlu0 %4432
        %4436 = vset.pattern.permute.xlu0 16
        %4437 = vperm.xlu0 %4436, %v4355
        %v4438 = vpop.permute.xlu0 %4437
        %4441 = vset.pattern.permute.xlu0 16
        %4442 = vperm.xlu0 %4441, %v4356
        %v4443 = vpop.permute.xlu0 %4442
        %4446 = vset.pattern.permute.xlu0 16
        %4447 = vperm.xlu0 %4446, %v4357
        %v4448 = vpop.permute.xlu0 %4447
        %4451 = vset.pattern.permute.xlu0 16
        %4452 = vperm.xlu0 %4451, %v4358
        %v4453 = vpop.permute.xlu0 %4452
        %4456 = vset.pattern.permute.xlu0 16
        %4457 = vperm.xlu0 %4456, %v4359
        %v4458 = vpop.permute.xlu0 %4457
        %4461 = vset.pattern.permute.xlu0 16
        %4462 = vperm.xlu0 %4461, %v4360
        %v4463 = vpop.permute.xlu0 %4462
        %4466 = vset.pattern.permute.xlu0 16
        %4467 = vperm.xlu0 %4466, %v4361
        %v4468 = vpop.permute.xlu0 %4467
        %4471 = vset.pattern.permute.xlu0 16
        %4472 = vperm.xlu0 %4471, %v4362
        %v4473 = vpop.permute.xlu0 %4472
        %v4475 = vlaneseq
        %v4476 = vshrl.u32 %v4475, 7
        %v4477 = vsub.s32 0, %v4476
        %v4478 = vrot.slane %v4379, %v4477
        %v4479 = vadd.f32 %v4398, %v4478
        %v4480 = vadd.f32 %v4403, %v4478
        %v4481 = vadd.f32 %v4408, %v4478
        %v4482 = vadd.f32 %v4413, %v4478
        %v4483 = vadd.f32 %v4418, %v4478
        %v4484 = vadd.f32 %v4423, %v4478
        %v4485 = vadd.f32 %v4428, %v4478
        %v4486 = vadd.f32 %v4433, %v4478
        %v4487 = vadd.f32 %v4438, %v4478
        %v4488 = vadd.f32 %v4443, %v4478
        %v4489 = vadd.f32 %v4448, %v4478
        %v4490 = vadd.f32 %v4453, %v4478
        %v4491 = vadd.f32 %v4458, %v4478
        %v4492 = vadd.f32 %v4463, %v4478
        %v4493 = vadd.f32 %v4468, %v4478
        %v4494 = vadd.f32 %v4473, %v4478
        %s4495 = sld [smem:[#allocation6]]
        %v4496 = vmul.f32 %v4479, 0.2
        %v4497 = vmul.f32 %v4480, 0.2
        %v4498 = vmul.f32 %v4481, 0.2
        %v4499 = vmul.f32 %v4482, 0.2
        %v4500 = vmul.f32 %v4483, 0.2
        %v4501 = vmul.f32 %v4484, 0.2
        %v4502 = vmul.f32 %v4485, 0.2
        %v4503 = vmul.f32 %v4486, 0.2
        %v4504 = vmul.f32 %v4487, 0.2
        %v4505 = vmul.f32 %v4488, 0.2
        %v4506 = vmul.f32 %v4489, 0.2
        %v4507 = vmul.f32 %v4490, 0.2
        %v4508 = vmul.f32 %v4491, 0.2
        %v4509 = vmul.f32 %v4492, 0.2
        %v4510 = vmul.f32 %v4493, 0.2
        %v4511 = vmul.f32 %v4494, 0.2
        %v4512 = vmax.f32 %v4479, %v4496
        %v4513 = vmax.f32 %v4480, %v4497
        %v4514 = vmax.f32 %v4481, %v4498
        %v4515 = vmax.f32 %v4482, %v4499
        %v4516 = vmax.f32 %v4483, %v4500
        %v4517 = vmax.f32 %v4484, %v4501
        %v4518 = vmax.f32 %v4485, %v4502
        %v4519 = vmax.f32 %v4486, %v4503
        %v4520 = vmax.f32 %v4487, %v4504
        %v4521 = vmax.f32 %v4488, %v4505
        %v4522 = vmax.f32 %v4489, %v4506
        %v4523 = vmax.f32 %v4490, %v4507
        %v4524 = vmax.f32 %v4491, %v4508
        %v4525 = vmax.f32 %v4492, %v4509
        %v4526 = vmax.f32 %v4493, %v4510
        %v4527 = vmax.f32 %v4494, %v4511
        %v4528 = vstv %s4495
        %v4529 = vmul.f32 %v4528, %v4512
        %v4530 = vmul.f32 %v4528, %v4513
        %v4531 = vmul.f32 %v4528, %v4514
        %v4532 = vmul.f32 %v4528, %v4515
        %v4533 = vmul.f32 %v4528, %v4516
        %v4534 = vmul.f32 %v4528, %v4517
        %v4535 = vmul.f32 %v4528, %v4518
        %v4536 = vmul.f32 %v4528, %v4519
        %v4537 = vmul.f32 %v4528, %v4520
        %v4538 = vmul.f32 %v4528, %v4521
        %v4539 = vmul.f32 %v4528, %v4522
        %v4540 = vmul.f32 %v4528, %v4523
        %v4541 = vmul.f32 %v4528, %v4524
        %v4542 = vmul.f32 %v4528, %v4525
        %v4543 = vmul.f32 %v4528, %v4526
        %v4544 = vmul.f32 %v4528, %v4527
        %4545 = vset.pattern.permute.xlu0 17
        %4546 = vperm.xlu0 %4545, %v4347
        %v4547 = vpop.permute.xlu0 %4546
        %4549 = vset.pattern.permute.xlu0 17
        %4550 = vperm.xlu0 %4549, %v4348
        %v4551 = vpop.permute.xlu0 %4550
        %4553 = vset.pattern.permute.xlu0 17
        %4554 = vperm.xlu0 %4553, %v4349
        %v4555 = vpop.permute.xlu0 %4554
        %4557 = vset.pattern.permute.xlu0 17
        %4558 = vperm.xlu0 %4557, %v4350
        %v4559 = vpop.permute.xlu0 %4558
        %4561 = vset.pattern.permute.xlu0 17
        %4562 = vperm.xlu0 %4561, %v4351
        %v4563 = vpop.permute.xlu0 %4562
        %4565 = vset.pattern.permute.xlu0 17
        %4566 = vperm.xlu0 %4565, %v4352
        %v4567 = vpop.permute.xlu0 %4566
        %4569 = vset.pattern.permute.xlu0 17
        %4570 = vperm.xlu0 %4569, %v4353
        %v4571 = vpop.permute.xlu0 %4570
        %4573 = vset.pattern.permute.xlu0 17
        %4574 = vperm.xlu0 %4573, %v4354
        %v4575 = vpop.permute.xlu0 %4574
        %4577 = vset.pattern.permute.xlu0 17
        %4578 = vperm.xlu0 %4577, %v4355
        %v4579 = vpop.permute.xlu0 %4578
        %4581 = vset.pattern.permute.xlu0 17
        %4582 = vperm.xlu0 %4581, %v4356
        %v4583 = vpop.permute.xlu0 %4582
        %4585 = vset.pattern.permute.xlu0 17
        %4586 = vperm.xlu0 %4585, %v4357
        %v4587 = vpop.permute.xlu0 %4586
        %4589 = vset.pattern.permute.xlu0 17
        %4590 = vperm.xlu0 %4589, %v4358
        %v4591 = vpop.permute.xlu0 %4590
        %4593 = vset.pattern.permute.xlu0 17
        %4594 = vperm.xlu0 %4593, %v4359
        %v4595 = vpop.permute.xlu0 %4594
        %4597 = vset.pattern.permute.xlu0 17
        %4598 = vperm.xlu0 %4597, %v4360
        %v4599 = vpop.permute.xlu0 %4598
        %4601 = vset.pattern.permute.xlu0 17
        %4602 = vperm.xlu0 %4601, %v4361
        %v4603 = vpop.permute.xlu0 %4602
        %4605 = vset.pattern.permute.xlu0 17
        %4606 = vperm.xlu0 %4605, %v4362
        %v4607 = vpop.permute.xlu0 %4606
        %v4609 = vlaneseq
        %v4610 = vshrl.u32 %v4609, 7
        %v4611 = vsub.s32 1, %v4610
        %v4612 = vrot.slane %v4379, %v4611
        %v4613 = vadd.f32 %v4547, %v4612
        %v4614 = vadd.f32 %v4551, %v4612
        %v4615 = vadd.f32 %v4555, %v4612
        %v4616 = vadd.f32 %v4559, %v4612
        %v4617 = vadd.f32 %v4563, %v4612
        %v4618 = vadd.f32 %v4567, %v4612
        %v4619 = vadd.f32 %v4571, %v4612
        %v4620 = vadd.f32 %v4575, %v4612
        %v4621 = vadd.f32 %v4579, %v4612
        %v4622 = vadd.f32 %v4583, %v4612
        %v4623 = vadd.f32 %v4587, %v4612
        %v4624 = vadd.f32 %v4591, %v4612
        %v4625 = vadd.f32 %v4595, %v4612
        %v4626 = vadd.f32 %v4599, %v4612
        %v4627 = vadd.f32 %v4603, %v4612
        %v4628 = vadd.f32 %v4607, %v4612
        %s4629 = sld [smem:[#allocation6 + $0x1]]
        %v4630 = vmul.f32 %v4613, 0.2
        %v4631 = vmul.f32 %v4614, 0.2
        %v4632 = vmul.f32 %v4615, 0.2
        %v4633 = vmul.f32 %v4616, 0.2
        %v4634 = vmul.f32 %v4617, 0.2
        %v4635 = vmul.f32 %v4618, 0.2
        %v4636 = vmul.f32 %v4619, 0.2
        %v4637 = vmul.f32 %v4620, 0.2
        %v4638 = vmul.f32 %v4621, 0.2
        %v4639 = vmul.f32 %v4622, 0.2
        %v4640 = vmul.f32 %v4623, 0.2
        %v4641 = vmul.f32 %v4624, 0.2
        %v4642 = vmul.f32 %v4625, 0.2
        %v4643 = vmul.f32 %v4626, 0.2
        %v4644 = vmul.f32 %v4627, 0.2
        %v4645 = vmul.f32 %v4628, 0.2
        %v4646 = vmax.f32 %v4613, %v4630
        %v4647 = vmax.f32 %v4614, %v4631
        %v4648 = vmax.f32 %v4615, %v4632
        %v4649 = vmax.f32 %v4616, %v4633
        %v4650 = vmax.f32 %v4617, %v4634
        %v4651 = vmax.f32 %v4618, %v4635
        %v4652 = vmax.f32 %v4619, %v4636
        %v4653 = vmax.f32 %v4620, %v4637
        %v4654 = vmax.f32 %v4621, %v4638
        %v4655 = vmax.f32 %v4622, %v4639
        %v4656 = vmax.f32 %v4623, %v4640
        %v4657 = vmax.f32 %v4624, %v4641
        %v4658 = vmax.f32 %v4625, %v4642
        %v4659 = vmax.f32 %v4626, %v4643
        %v4660 = vmax.f32 %v4627, %v4644
        %v4661 = vmax.f32 %v4628, %v4645
        %v4662 = vstv %s4629
        %v4663 = vmul.f32 %v4662, %v4646
        %v4664 = vmul.f32 %v4662, %v4647
        %v4665 = vmul.f32 %v4662, %v4648
        %v4666 = vmul.f32 %v4662, %v4649
        %v4667 = vmul.f32 %v4662, %v4650
        %v4668 = vmul.f32 %v4662, %v4651
        %v4669 = vmul.f32 %v4662, %v4652
        %v4670 = vmul.f32 %v4662, %v4653
        %v4671 = vmul.f32 %v4662, %v4654
        %v4672 = vmul.f32 %v4662, %v4655
        %v4673 = vmul.f32 %v4662, %v4656
        %v4674 = vmul.f32 %v4662, %v4657
        %v4675 = vmul.f32 %v4662, %v4658
        %v4676 = vmul.f32 %v4662, %v4659
        %v4677 = vmul.f32 %v4662, %v4660
        %v4678 = vmul.f32 %v4662, %v4661
        %4679 = vset.pattern.permute.xlu0 18
        %4680 = vperm.xlu0 %4679, %v4347
        %v4681 = vpop.permute.xlu0 %4680
        %4683 = vset.pattern.permute.xlu0 18
        %4684 = vperm.xlu0 %4683, %v4348
        %v4685 = vpop.permute.xlu0 %4684
        %4687 = vset.pattern.permute.xlu0 18
        %4688 = vperm.xlu0 %4687, %v4349
        %v4689 = vpop.permute.xlu0 %4688
        %4691 = vset.pattern.permute.xlu0 18
        %4692 = vperm.xlu0 %4691, %v4350
        %v4693 = vpop.permute.xlu0 %4692
        %4695 = vset.pattern.permute.xlu0 18
        %4696 = vperm.xlu0 %4695, %v4351
        %v4697 = vpop.permute.xlu0 %4696
        %4699 = vset.pattern.permute.xlu0 18
        %4700 = vperm.xlu0 %4699, %v4352
        %v4701 = vpop.permute.xlu0 %4700
        %4703 = vset.pattern.permute.xlu0 18
        %4704 = vperm.xlu0 %4703, %v4353
        %v4705 = vpop.permute.xlu0 %4704
        %4707 = vset.pattern.permute.xlu0 18
        %4708 = vperm.xlu0 %4707, %v4354
        %v4709 = vpop.permute.xlu0 %4708
        %4711 = vset.pattern.permute.xlu0 18
        %4712 = vperm.xlu0 %4711, %v4355
        %v4713 = vpop.permute.xlu0 %4712
        %4715 = vset.pattern.permute.xlu0 18
        %4716 = vperm.xlu0 %4715, %v4356
        %v4717 = vpop.permute.xlu0 %4716
        %4719 = vset.pattern.permute.xlu0 18
        %4720 = vperm.xlu0 %4719, %v4357
        %v4721 = vpop.permute.xlu0 %4720
        %4723 = vset.pattern.permute.xlu0 18
        %4724 = vperm.xlu0 %4723, %v4358
        %v4725 = vpop.permute.xlu0 %4724
        %4727 = vset.pattern.permute.xlu0 18
        %4728 = vperm.xlu0 %4727, %v4359
        %v4729 = vpop.permute.xlu0 %4728
        %4731 = vset.pattern.permute.xlu0 18
        %4732 = vperm.xlu0 %4731, %v4360
        %v4733 = vpop.permute.xlu0 %4732
        %4735 = vset.pattern.permute.xlu0 18
        %4736 = vperm.xlu0 %4735, %v4361
        %v4737 = vpop.permute.xlu0 %4736
        %4739 = vset.pattern.permute.xlu0 18
        %4740 = vperm.xlu0 %4739, %v4362
        %v4741 = vpop.permute.xlu0 %4740
        %v4743 = vlaneseq
        %v4744 = vshrl.u32 %v4743, 7
        %v4745 = vsub.s32 2, %v4744
        %v4746 = vrot.slane %v4379, %v4745
        %v4747 = vadd.f32 %v4681, %v4746
        %v4748 = vadd.f32 %v4685, %v4746
        %v4749 = vadd.f32 %v4689, %v4746
        %v4750 = vadd.f32 %v4693, %v4746
        %v4751 = vadd.f32 %v4697, %v4746
        %v4752 = vadd.f32 %v4701, %v4746
        %v4753 = vadd.f32 %v4705, %v4746
        %v4754 = vadd.f32 %v4709, %v4746
        %v4755 = vadd.f32 %v4713, %v4746
        %v4756 = vadd.f32 %v4717, %v4746
        %v4757 = vadd.f32 %v4721, %v4746
        %v4758 = vadd.f32 %v4725, %v4746
        %v4759 = vadd.f32 %v4729, %v4746
        %v4760 = vadd.f32 %v4733, %v4746
        %v4761 = vadd.f32 %v4737, %v4746
        %v4762 = vadd.f32 %v4741, %v4746
        %s4763 = sld [smem:[#allocation6 + $0x2]]
        %v4764 = vmul.f32 %v4747, 0.2
        %v4765 = vmul.f32 %v4748, 0.2
        %v4766 = vmul.f32 %v4749, 0.2
        %v4767 = vmul.f32 %v4750, 0.2
        %v4768 = vmul.f32 %v4751, 0.2
        %v4769 = vmul.f32 %v4752, 0.2
        %v4770 = vmul.f32 %v4753, 0.2
        %v4771 = vmul.f32 %v4754, 0.2
        %v4772 = vmul.f32 %v4755, 0.2
        %v4773 = vmul.f32 %v4756, 0.2
        %v4774 = vmul.f32 %v4757, 0.2
        %v4775 = vmul.f32 %v4758, 0.2
        %v4776 = vmul.f32 %v4759, 0.2
        %v4777 = vmul.f32 %v4760, 0.2
        %v4778 = vmul.f32 %v4761, 0.2
        %v4779 = vmul.f32 %v4762, 0.2
        %v4780 = vmax.f32 %v4747, %v4764
        %v4781 = vmax.f32 %v4748, %v4765
        %v4782 = vmax.f32 %v4749, %v4766
        %v4783 = vmax.f32 %v4750, %v4767
        %v4784 = vmax.f32 %v4751, %v4768
        %v4785 = vmax.f32 %v4752, %v4769
        %v4786 = vmax.f32 %v4753, %v4770
        %v4787 = vmax.f32 %v4754, %v4771
        %v4788 = vmax.f32 %v4755, %v4772
        %v4789 = vmax.f32 %v4756, %v4773
        %v4790 = vmax.f32 %v4757, %v4774
        %v4791 = vmax.f32 %v4758, %v4775
        %v4792 = vmax.f32 %v4759, %v4776
        %v4793 = vmax.f32 %v4760, %v4777
        %v4794 = vmax.f32 %v4761, %v4778
        %v4795 = vmax.f32 %v4762, %v4779
        %v4796 = vstv %s4763
        %v4797 = vmul.f32 %v4796, %v4780
        %v4798 = vmul.f32 %v4796, %v4781
        %v4799 = vmul.f32 %v4796, %v4782
        %v4800 = vmul.f32 %v4796, %v4783
        %v4801 = vmul.f32 %v4796, %v4784
        %v4802 = vmul.f32 %v4796, %v4785
        %v4803 = vmul.f32 %v4796, %v4786
        %v4804 = vmul.f32 %v4796, %v4787
        %v4805 = vmul.f32 %v4796, %v4788
        %v4806 = vmul.f32 %v4796, %v4789
        %v4807 = vmul.f32 %v4796, %v4790
        %v4808 = vmul.f32 %v4796, %v4791
        %v4809 = vmul.f32 %v4796, %v4792
        %v4810 = vmul.f32 %v4796, %v4793
        %v4811 = vmul.f32 %v4796, %v4794
        %v4812 = vmul.f32 %v4796, %v4795
        %4813 = vset.pattern.permute.xlu0 19
        %4814 = vperm.xlu0 %4813, %v4347
        %v4815 = vpop.permute.xlu0 %4814
        %4817 = vset.pattern.permute.xlu0 19
        %4818 = vperm.xlu0 %4817, %v4348
        %v4819 = vpop.permute.xlu0 %4818
        %4821 = vset.pattern.permute.xlu0 19
        %4822 = vperm.xlu0 %4821, %v4349
        %v4823 = vpop.permute.xlu0 %4822
        %4825 = vset.pattern.permute.xlu0 19
        %4826 = vperm.xlu0 %4825, %v4350
        %v4827 = vpop.permute.xlu0 %4826
        %4829 = vset.pattern.permute.xlu0 19
        %4830 = vperm.xlu0 %4829, %v4351
        %v4831 = vpop.permute.xlu0 %4830
        %4833 = vset.pattern.permute.xlu0 19
        %4834 = vperm.xlu0 %4833, %v4352
        %v4835 = vpop.permute.xlu0 %4834
        %4837 = vset.pattern.permute.xlu0 19
        %4838 = vperm.xlu0 %4837, %v4353
        %v4839 = vpop.permute.xlu0 %4838
        %4841 = vset.pattern.permute.xlu0 19
        %4842 = vperm.xlu0 %4841, %v4354
        %v4843 = vpop.permute.xlu0 %4842
        %4845 = vset.pattern.permute.xlu0 19
        %4846 = vperm.xlu0 %4845, %v4355
        %v4847 = vpop.permute.xlu0 %4846
        %4849 = vset.pattern.permute.xlu0 19
        %4850 = vperm.xlu0 %4849, %v4356
        %v4851 = vpop.permute.xlu0 %4850
        %4853 = vset.pattern.permute.xlu0 19
        %4854 = vperm.xlu0 %4853, %v4357
        %v4855 = vpop.permute.xlu0 %4854
        %4857 = vset.pattern.permute.xlu0 19
        %4858 = vperm.xlu0 %4857, %v4358
        %v4859 = vpop.permute.xlu0 %4858
        %4861 = vset.pattern.permute.xlu0 19
        %4862 = vperm.xlu0 %4861, %v4359
        %v4863 = vpop.permute.xlu0 %4862
        %4865 = vset.pattern.permute.xlu0 19
        %4866 = vperm.xlu0 %4865, %v4360
        %v4867 = vpop.permute.xlu0 %4866
        %4869 = vset.pattern.permute.xlu0 19
        %4870 = vperm.xlu0 %4869, %v4361
        %v4871 = vpop.permute.xlu0 %4870
        %4873 = vset.pattern.permute.xlu0 19
        %4874 = vperm.xlu0 %4873, %v4362
        %v4875 = vpop.permute.xlu0 %4874
        %v4877 = vlaneseq
        %v4878 = vshrl.u32 %v4877, 7
        %v4879 = vsub.s32 3, %v4878
        %v4880 = vrot.slane %v4379, %v4879
        %v4881 = vadd.f32 %v4815, %v4880
        %v4882 = vadd.f32 %v4819, %v4880
        %v4883 = vadd.f32 %v4823, %v4880
        %v4884 = vadd.f32 %v4827, %v4880
        %v4885 = vadd.f32 %v4831, %v4880
        %v4886 = vadd.f32 %v4835, %v4880
        %v4887 = vadd.f32 %v4839, %v4880
        %v4888 = vadd.f32 %v4843, %v4880
        %v4889 = vadd.f32 %v4847, %v4880
        %v4890 = vadd.f32 %v4851, %v4880
        %v4891 = vadd.f32 %v4855, %v4880
        %v4892 = vadd.f32 %v4859, %v4880
        %v4893 = vadd.f32 %v4863, %v4880
        %v4894 = vadd.f32 %v4867, %v4880
        %v4895 = vadd.f32 %v4871, %v4880
        %v4896 = vadd.f32 %v4875, %v4880
        %s4897 = sld [smem:[#allocation6 + $0x3]]
        %v4898 = vmul.f32 %v4881, 0.2
        %v4899 = vmul.f32 %v4882, 0.2
        %v4900 = vmul.f32 %v4883, 0.2
        %v4901 = vmul.f32 %v4884, 0.2
        %v4902 = vmul.f32 %v4885, 0.2
        %v4903 = vmul.f32 %v4886, 0.2
        %v4904 = vmul.f32 %v4887, 0.2
        %v4905 = vmul.f32 %v4888, 0.2
        %v4906 = vmul.f32 %v4889, 0.2
        %v4907 = vmul.f32 %v4890, 0.2
        %v4908 = vmul.f32 %v4891, 0.2
        %v4909 = vmul.f32 %v4892, 0.2
        %v4910 = vmul.f32 %v4893, 0.2
        %v4911 = vmul.f32 %v4894, 0.2
        %v4912 = vmul.f32 %v4895, 0.2
        %v4913 = vmul.f32 %v4896, 0.2
        %v4914 = vmax.f32 %v4881, %v4898
        %v4915 = vmax.f32 %v4882, %v4899
        %v4916 = vmax.f32 %v4883, %v4900
        %v4917 = vmax.f32 %v4884, %v4901
        %v4918 = vmax.f32 %v4885, %v4902
        %v4919 = vmax.f32 %v4886, %v4903
        %v4920 = vmax.f32 %v4887, %v4904
        %v4921 = vmax.f32 %v4888, %v4905
        %v4922 = vmax.f32 %v4889, %v4906
        %v4923 = vmax.f32 %v4890, %v4907
        %v4924 = vmax.f32 %v4891, %v4908
        %v4925 = vmax.f32 %v4892, %v4909
        %v4926 = vmax.f32 %v4893, %v4910
        %v4927 = vmax.f32 %v4894, %v4911
        %v4928 = vmax.f32 %v4895, %v4912
        %v4929 = vmax.f32 %v4896, %v4913
        %v4930 = vstv %s4897
        %v4931 = vmul.f32 %v4930, %v4914
        %v4932 = vmul.f32 %v4930, %v4915
        %v4933 = vmul.f32 %v4930, %v4916
        %v4934 = vmul.f32 %v4930, %v4917
        %v4935 = vmul.f32 %v4930, %v4918
        %v4936 = vmul.f32 %v4930, %v4919
        %v4937 = vmul.f32 %v4930, %v4920
        %v4938 = vmul.f32 %v4930, %v4921
        %v4939 = vmul.f32 %v4930, %v4922
        %v4940 = vmul.f32 %v4930, %v4923
        %v4941 = vmul.f32 %v4930, %v4924
        %v4942 = vmul.f32 %v4930, %v4925
        %v4943 = vmul.f32 %v4930, %v4926
        %v4944 = vmul.f32 %v4930, %v4927
        %v4945 = vmul.f32 %v4930, %v4928
        %v4946 = vmul.f32 %v4930, %v4929
        %4947 = vset.pattern.permute.xlu0 20
        %4948 = vperm.xlu0 %4947, %v4347
        %v4949 = vpop.permute.xlu0 %4948
        %4951 = vset.pattern.permute.xlu0 20
        %4952 = vperm.xlu0 %4951, %v4348
        %v4953 = vpop.permute.xlu0 %4952
        %4955 = vset.pattern.permute.xlu0 20
        %4956 = vperm.xlu0 %4955, %v4349
        %v4957 = vpop.permute.xlu0 %4956
        %4959 = vset.pattern.permute.xlu0 20
        %4960 = vperm.xlu0 %4959, %v4350
        %v4961 = vpop.permute.xlu0 %4960
        %4963 = vset.pattern.permute.xlu0 20
        %4964 = vperm.xlu0 %4963, %v4351
        %v4965 = vpop.permute.xlu0 %4964
        %4967 = vset.pattern.permute.xlu0 20
        %4968 = vperm.xlu0 %4967, %v4352
        %v4969 = vpop.permute.xlu0 %4968
        %4971 = vset.pattern.permute.xlu0 20
        %4972 = vperm.xlu0 %4971, %v4353
        %v4973 = vpop.permute.xlu0 %4972
        %4975 = vset.pattern.permute.xlu0 20
        %4976 = vperm.xlu0 %4975, %v4354
        %v4977 = vpop.permute.xlu0 %4976
        %4979 = vset.pattern.permute.xlu0 20
        %4980 = vperm.xlu0 %4979, %v4355
        %v4981 = vpop.permute.xlu0 %4980
        %4983 = vset.pattern.permute.xlu0 20
        %4984 = vperm.xlu0 %4983, %v4356
        %v4985 = vpop.permute.xlu0 %4984
        %4987 = vset.pattern.permute.xlu0 20
        %4988 = vperm.xlu0 %4987, %v4357
        %v4989 = vpop.permute.xlu0 %4988
        %4991 = vset.pattern.permute.xlu0 20
        %4992 = vperm.xlu0 %4991, %v4358
        %v4993 = vpop.permute.xlu0 %4992
        %4995 = vset.pattern.permute.xlu0 20
        %4996 = vperm.xlu0 %4995, %v4359
        %v4997 = vpop.permute.xlu0 %4996
        %4999 = vset.pattern.permute.xlu0 20
        %5000 = vperm.xlu0 %4999, %v4360
        %v5001 = vpop.permute.xlu0 %5000
        %5003 = vset.pattern.permute.xlu0 20
        %5004 = vperm.xlu0 %5003, %v4361
        %v5005 = vpop.permute.xlu0 %5004
        %5007 = vset.pattern.permute.xlu0 20
        %5008 = vperm.xlu0 %5007, %v4362
        %v5009 = vpop.permute.xlu0 %5008
        %v5011 = vlaneseq
        %v5012 = vshrl.u32 %v5011, 7
        %v5013 = vsub.s32 4, %v5012
        %v5014 = vrot.slane %v4379, %v5013
        %v5015 = vadd.f32 %v4949, %v5014
        %v5016 = vadd.f32 %v4953, %v5014
        %v5017 = vadd.f32 %v4957, %v5014
        %v5018 = vadd.f32 %v4961, %v5014
        %v5019 = vadd.f32 %v4965, %v5014
        %v5020 = vadd.f32 %v4969, %v5014
        %v5021 = vadd.f32 %v4973, %v5014
        %v5022 = vadd.f32 %v4977, %v5014
        %v5023 = vadd.f32 %v4981, %v5014
        %v5024 = vadd.f32 %v4985, %v5014
        %v5025 = vadd.f32 %v4989, %v5014
        %v5026 = vadd.f32 %v4993, %v5014
        %v5027 = vadd.f32 %v4997, %v5014
        %v5028 = vadd.f32 %v5001, %v5014
        %v5029 = vadd.f32 %v5005, %v5014
        %v5030 = vadd.f32 %v5009, %v5014
        %s5031 = sld [smem:[#allocation6 + $0x4]]
        %v5032 = vmul.f32 %v5015, 0.2
        %v5033 = vmul.f32 %v5016, 0.2
        %v5034 = vmul.f32 %v5017, 0.2
        %v5035 = vmul.f32 %v5018, 0.2
        %v5036 = vmul.f32 %v5019, 0.2
        %v5037 = vmul.f32 %v5020, 0.2
        %v5038 = vmul.f32 %v5021, 0.2
        %v5039 = vmul.f32 %v5022, 0.2
        %v5040 = vmul.f32 %v5023, 0.2
        %v5041 = vmul.f32 %v5024, 0.2
        %v5042 = vmul.f32 %v5025, 0.2
        %v5043 = vmul.f32 %v5026, 0.2
        %v5044 = vmul.f32 %v5027, 0.2
        %v5045 = vmul.f32 %v5028, 0.2
        %v5046 = vmul.f32 %v5029, 0.2
        %v5047 = vmul.f32 %v5030, 0.2
        %v5048 = vmax.f32 %v5015, %v5032
        %v5049 = vmax.f32 %v5016, %v5033
        %v5050 = vmax.f32 %v5017, %v5034
        %v5051 = vmax.f32 %v5018, %v5035
        %v5052 = vmax.f32 %v5019, %v5036
        %v5053 = vmax.f32 %v5020, %v5037
        %v5054 = vmax.f32 %v5021, %v5038
        %v5055 = vmax.f32 %v5022, %v5039
        %v5056 = vmax.f32 %v5023, %v5040
        %v5057 = vmax.f32 %v5024, %v5041
        %v5058 = vmax.f32 %v5025, %v5042
        %v5059 = vmax.f32 %v5026, %v5043
        %v5060 = vmax.f32 %v5027, %v5044
        %v5061 = vmax.f32 %v5028, %v5045
        %v5062 = vmax.f32 %v5029, %v5046
        %v5063 = vmax.f32 %v5030, %v5047
        %v5064 = vstv %s5031
        %v5065 = vmul.f32 %v5064, %v5048
        %v5066 = vmul.f32 %v5064, %v5049
        %v5067 = vmul.f32 %v5064, %v5050
        %v5068 = vmul.f32 %v5064, %v5051
        %v5069 = vmul.f32 %v5064, %v5052
        %v5070 = vmul.f32 %v5064, %v5053
        %v5071 = vmul.f32 %v5064, %v5054
        %v5072 = vmul.f32 %v5064, %v5055
        %v5073 = vmul.f32 %v5064, %v5056
        %v5074 = vmul.f32 %v5064, %v5057
        %v5075 = vmul.f32 %v5064, %v5058
        %v5076 = vmul.f32 %v5064, %v5059
        %v5077 = vmul.f32 %v5064, %v5060
        %v5078 = vmul.f32 %v5064, %v5061
        %v5079 = vmul.f32 %v5064, %v5062
        %v5080 = vmul.f32 %v5064, %v5063
        %5081 = vset.pattern.permute.xlu0 21
        %5082 = vperm.xlu0 %5081, %v4347
        %v5083 = vpop.permute.xlu0 %5082
        %5085 = vset.pattern.permute.xlu0 21
        %5086 = vperm.xlu0 %5085, %v4348
        %v5087 = vpop.permute.xlu0 %5086
        %5089 = vset.pattern.permute.xlu0 21
        %5090 = vperm.xlu0 %5089, %v4349
        %v5091 = vpop.permute.xlu0 %5090
        %5093 = vset.pattern.permute.xlu0 21
        %5094 = vperm.xlu0 %5093, %v4350
        %v5095 = vpop.permute.xlu0 %5094
        %5097 = vset.pattern.permute.xlu0 21
        %5098 = vperm.xlu0 %5097, %v4351
        %v5099 = vpop.permute.xlu0 %5098
        %5101 = vset.pattern.permute.xlu0 21
        %5102 = vperm.xlu0 %5101, %v4352
        %v5103 = vpop.permute.xlu0 %5102
        %5105 = vset.pattern.permute.xlu0 21
        %5106 = vperm.xlu0 %5105, %v4353
        %v5107 = vpop.permute.xlu0 %5106
        %5109 = vset.pattern.permute.xlu0 21
        %5110 = vperm.xlu0 %5109, %v4354
        %v5111 = vpop.permute.xlu0 %5110
        %5113 = vset.pattern.permute.xlu0 21
        %5114 = vperm.xlu0 %5113, %v4355
        %v5115 = vpop.permute.xlu0 %5114
        %5117 = vset.pattern.permute.xlu0 21
        %5118 = vperm.xlu0 %5117, %v4356
        %v5119 = vpop.permute.xlu0 %5118
        %5121 = vset.pattern.permute.xlu0 21
        %5122 = vperm.xlu0 %5121, %v4357
        %v5123 = vpop.permute.xlu0 %5122
        %5125 = vset.pattern.permute.xlu0 21
        %5126 = vperm.xlu0 %5125, %v4358
        %v5127 = vpop.permute.xlu0 %5126
        %5129 = vset.pattern.permute.xlu0 21
        %5130 = vperm.xlu0 %5129, %v4359
        %v5131 = vpop.permute.xlu0 %5130
        %5133 = vset.pattern.permute.xlu0 21
        %5134 = vperm.xlu0 %5133, %v4360
        %v5135 = vpop.permute.xlu0 %5134
        %5137 = vset.pattern.permute.xlu0 21
        %5138 = vperm.xlu0 %5137, %v4361
        %v5139 = vpop.permute.xlu0 %5138
        %5141 = vset.pattern.permute.xlu0 21
        %5142 = vperm.xlu0 %5141, %v4362
        %v5143 = vpop.permute.xlu0 %5142
        %v5145 = vlaneseq
        %v5146 = vshrl.u32 %v5145, 7
        %v5147 = vsub.s32 5, %v5146
        %v5148 = vrot.slane %v4379, %v5147
        %v5149 = vadd.f32 %v5083, %v5148
        %v5150 = vadd.f32 %v5087, %v5148
        %v5151 = vadd.f32 %v5091, %v5148
        %v5152 = vadd.f32 %v5095, %v5148
        %v5153 = vadd.f32 %v5099, %v5148
        %v5154 = vadd.f32 %v5103, %v5148
        %v5155 = vadd.f32 %v5107, %v5148
        %v5156 = vadd.f32 %v5111, %v5148
        %v5157 = vadd.f32 %v5115, %v5148
        %v5158 = vadd.f32 %v5119, %v5148
        %v5159 = vadd.f32 %v5123, %v5148
        %v5160 = vadd.f32 %v5127, %v5148
        %v5161 = vadd.f32 %v5131, %v5148
        %v5162 = vadd.f32 %v5135, %v5148
        %v5163 = vadd.f32 %v5139, %v5148
        %v5164 = vadd.f32 %v5143, %v5148
        %s5165 = sld [smem:[#allocation6 + $0x5]]
        %v5166 = vmul.f32 %v5149, 0.2
        %v5167 = vmul.f32 %v5150, 0.2
        %v5168 = vmul.f32 %v5151, 0.2
        %v5169 = vmul.f32 %v5152, 0.2
        %v5170 = vmul.f32 %v5153, 0.2
        %v5171 = vmul.f32 %v5154, 0.2
        %v5172 = vmul.f32 %v5155, 0.2
        %v5173 = vmul.f32 %v5156, 0.2
        %v5174 = vmul.f32 %v5157, 0.2
        %v5175 = vmul.f32 %v5158, 0.2
        %v5176 = vmul.f32 %v5159, 0.2
        %v5177 = vmul.f32 %v5160, 0.2
        %v5178 = vmul.f32 %v5161, 0.2
        %v5179 = vmul.f32 %v5162, 0.2
        %v5180 = vmul.f32 %v5163, 0.2
        %v5181 = vmul.f32 %v5164, 0.2
        %v5182 = vmax.f32 %v5149, %v5166
        %v5183 = vmax.f32 %v5150, %v5167
        %v5184 = vmax.f32 %v5151, %v5168
        %v5185 = vmax.f32 %v5152, %v5169
        %v5186 = vmax.f32 %v5153, %v5170
        %v5187 = vmax.f32 %v5154, %v5171
        %v5188 = vmax.f32 %v5155, %v5172
        %v5189 = vmax.f32 %v5156, %v5173
        %v5190 = vmax.f32 %v5157, %v5174
        %v5191 = vmax.f32 %v5158, %v5175
        %v5192 = vmax.f32 %v5159, %v5176
        %v5193 = vmax.f32 %v5160, %v5177
        %v5194 = vmax.f32 %v5161, %v5178
        %v5195 = vmax.f32 %v5162, %v5179
        %v5196 = vmax.f32 %v5163, %v5180
        %v5197 = vmax.f32 %v5164, %v5181
        %v5198 = vstv %s5165
        %v5199 = vmul.f32 %v5198, %v5182
        %v5200 = vmul.f32 %v5198, %v5183
        %v5201 = vmul.f32 %v5198, %v5184
        %v5202 = vmul.f32 %v5198, %v5185
        %v5203 = vmul.f32 %v5198, %v5186
        %v5204 = vmul.f32 %v5198, %v5187
        %v5205 = vmul.f32 %v5198, %v5188
        %v5206 = vmul.f32 %v5198, %v5189
        %v5207 = vmul.f32 %v5198, %v5190
        %v5208 = vmul.f32 %v5198, %v5191
        %v5209 = vmul.f32 %v5198, %v5192
        %v5210 = vmul.f32 %v5198, %v5193
        %v5211 = vmul.f32 %v5198, %v5194
        %v5212 = vmul.f32 %v5198, %v5195
        %v5213 = vmul.f32 %v5198, %v5196
        %v5214 = vmul.f32 %v5198, %v5197
        %5215 = vset.pattern.permute.xlu0 22
        %5216 = vperm.xlu0 %5215, %v4347
        %v5217 = vpop.permute.xlu0 %5216
        %5219 = vset.pattern.permute.xlu0 22
        %5220 = vperm.xlu0 %5219, %v4348
        %v5221 = vpop.permute.xlu0 %5220
        %5223 = vset.pattern.permute.xlu0 22
        %5224 = vperm.xlu0 %5223, %v4349
        %v5225 = vpop.permute.xlu0 %5224
        %5227 = vset.pattern.permute.xlu0 22
        %5228 = vperm.xlu0 %5227, %v4350
        %v5229 = vpop.permute.xlu0 %5228
        %5231 = vset.pattern.permute.xlu0 22
        %5232 = vperm.xlu0 %5231, %v4351
        %v5233 = vpop.permute.xlu0 %5232
        %5235 = vset.pattern.permute.xlu0 22
        %5236 = vperm.xlu0 %5235, %v4352
        %v5237 = vpop.permute.xlu0 %5236
        %5239 = vset.pattern.permute.xlu0 22
        %5240 = vperm.xlu0 %5239, %v4353
        %v5241 = vpop.permute.xlu0 %5240
        %5243 = vset.pattern.permute.xlu0 22
        %5244 = vperm.xlu0 %5243, %v4354
        %v5245 = vpop.permute.xlu0 %5244
        %5247 = vset.pattern.permute.xlu0 22
        %5248 = vperm.xlu0 %5247, %v4355
        %v5249 = vpop.permute.xlu0 %5248
        %5251 = vset.pattern.permute.xlu0 22
        %5252 = vperm.xlu0 %5251, %v4356
        %v5253 = vpop.permute.xlu0 %5252
        %5255 = vset.pattern.permute.xlu0 22
        %5256 = vperm.xlu0 %5255, %v4357
        %v5257 = vpop.permute.xlu0 %5256
        %5259 = vset.pattern.permute.xlu0 22
        %5260 = vperm.xlu0 %5259, %v4358
        %v5261 = vpop.permute.xlu0 %5260
        %5263 = vset.pattern.permute.xlu0 22
        %5264 = vperm.xlu0 %5263, %v4359
        %v5265 = vpop.permute.xlu0 %5264
        %5267 = vset.pattern.permute.xlu0 22
        %5268 = vperm.xlu0 %5267, %v4360
        %v5269 = vpop.permute.xlu0 %5268
        %5271 = vset.pattern.permute.xlu0 22
        %5272 = vperm.xlu0 %5271, %v4361
        %v5273 = vpop.permute.xlu0 %5272
        %5275 = vset.pattern.permute.xlu0 22
        %5276 = vperm.xlu0 %5275, %v4362
        %v5277 = vpop.permute.xlu0 %5276
        %v5279 = vlaneseq
        %v5280 = vshrl.u32 %v5279, 7
        %v5281 = vsub.s32 6, %v5280
        %v5282 = vrot.slane %v4379, %v5281
        %v5283 = vadd.f32 %v5217, %v5282
        %v5284 = vadd.f32 %v5221, %v5282
        %v5285 = vadd.f32 %v5225, %v5282
        %v5286 = vadd.f32 %v5229, %v5282
        %v5287 = vadd.f32 %v5233, %v5282
        %v5288 = vadd.f32 %v5237, %v5282
        %v5289 = vadd.f32 %v5241, %v5282
        %v5290 = vadd.f32 %v5245, %v5282
        %v5291 = vadd.f32 %v5249, %v5282
        %v5292 = vadd.f32 %v5253, %v5282
        %v5293 = vadd.f32 %v5257, %v5282
        %v5294 = vadd.f32 %v5261, %v5282
        %v5295 = vadd.f32 %v5265, %v5282
        %v5296 = vadd.f32 %v5269, %v5282
        %v5297 = vadd.f32 %v5273, %v5282
        %v5298 = vadd.f32 %v5277, %v5282
        %s5299 = sld [smem:[#allocation6 + $0x6]]
        %v5300 = vmul.f32 %v5283, 0.2
        %v5301 = vmul.f32 %v5284, 0.2
        %v5302 = vmul.f32 %v5285, 0.2
        %v5303 = vmul.f32 %v5286, 0.2
        %v5304 = vmul.f32 %v5287, 0.2
        %v5305 = vmul.f32 %v5288, 0.2
        %v5306 = vmul.f32 %v5289, 0.2
        %v5307 = vmul.f32 %v5290, 0.2
        %v5308 = vmul.f32 %v5291, 0.2
        %v5309 = vmul.f32 %v5292, 0.2
        %v5310 = vmul.f32 %v5293, 0.2
        %v5311 = vmul.f32 %v5294, 0.2
        %v5312 = vmul.f32 %v5295, 0.2
        %v5313 = vmul.f32 %v5296, 0.2
        %v5314 = vmul.f32 %v5297, 0.2
        %v5315 = vmul.f32 %v5298, 0.2
        %v5316 = vmax.f32 %v5283, %v5300
        %v5317 = vmax.f32 %v5284, %v5301
        %v5318 = vmax.f32 %v5285, %v5302
        %v5319 = vmax.f32 %v5286, %v5303
        %v5320 = vmax.f32 %v5287, %v5304
        %v5321 = vmax.f32 %v5288, %v5305
        %v5322 = vmax.f32 %v5289, %v5306
        %v5323 = vmax.f32 %v5290, %v5307
        %v5324 = vmax.f32 %v5291, %v5308
        %v5325 = vmax.f32 %v5292, %v5309
        %v5326 = vmax.f32 %v5293, %v5310
        %v5327 = vmax.f32 %v5294, %v5311
        %v5328 = vmax.f32 %v5295, %v5312
        %v5329 = vmax.f32 %v5296, %v5313
        %v5330 = vmax.f32 %v5297, %v5314
        %v5331 = vmax.f32 %v5298, %v5315
        %v5332 = vstv %s5299
        %v5333 = vmul.f32 %v5332, %v5316
        %v5334 = vmul.f32 %v5332, %v5317
        %v5335 = vmul.f32 %v5332, %v5318
        %v5336 = vmul.f32 %v5332, %v5319
        %v5337 = vmul.f32 %v5332, %v5320
        %v5338 = vmul.f32 %v5332, %v5321
        %v5339 = vmul.f32 %v5332, %v5322
        %v5340 = vmul.f32 %v5332, %v5323
        %v5341 = vmul.f32 %v5332, %v5324
        %v5342 = vmul.f32 %v5332, %v5325
        %v5343 = vmul.f32 %v5332, %v5326
        %v5344 = vmul.f32 %v5332, %v5327
        %v5345 = vmul.f32 %v5332, %v5328
        %v5346 = vmul.f32 %v5332, %v5329
        %v5347 = vmul.f32 %v5332, %v5330
        %v5348 = vmul.f32 %v5332, %v5331
        %5349 = vset.pattern.permute.xlu0 23
        %5350 = vperm.xlu0 %5349, %v4347
        %v5351 = vpop.permute.xlu0 %5350
        %5353 = vset.pattern.permute.xlu0 23
        %5354 = vperm.xlu0 %5353, %v4348
        %v5355 = vpop.permute.xlu0 %5354
        %5357 = vset.pattern.permute.xlu0 23
        %5358 = vperm.xlu0 %5357, %v4349
        %v5359 = vpop.permute.xlu0 %5358
        %5361 = vset.pattern.permute.xlu0 23
        %5362 = vperm.xlu0 %5361, %v4350
        %v5363 = vpop.permute.xlu0 %5362
        %5365 = vset.pattern.permute.xlu0 23
        %5366 = vperm.xlu0 %5365, %v4351
        %v5367 = vpop.permute.xlu0 %5366
        %5369 = vset.pattern.permute.xlu0 23
        %5370 = vperm.xlu0 %5369, %v4352
        %v5371 = vpop.permute.xlu0 %5370
        %5373 = vset.pattern.permute.xlu0 23
        %5374 = vperm.xlu0 %5373, %v4353
        %v5375 = vpop.permute.xlu0 %5374
        %5377 = vset.pattern.permute.xlu0 23
        %5378 = vperm.xlu0 %5377, %v4354
        %v5379 = vpop.permute.xlu0 %5378
        %5381 = vset.pattern.permute.xlu0 23
        %5382 = vperm.xlu0 %5381, %v4355
        %v5383 = vpop.permute.xlu0 %5382
        %5385 = vset.pattern.permute.xlu0 23
        %5386 = vperm.xlu0 %5385, %v4356
        %v5387 = vpop.permute.xlu0 %5386
        %5389 = vset.pattern.permute.xlu0 23
        %5390 = vperm.xlu0 %5389, %v4357
        %v5391 = vpop.permute.xlu0 %5390
        %5393 = vset.pattern.permute.xlu0 23
        %5394 = vperm.xlu0 %5393, %v4358
        %v5395 = vpop.permute.xlu0 %5394
        %5397 = vset.pattern.permute.xlu0 23
        %5398 = vperm.xlu0 %5397, %v4359
        %v5399 = vpop.permute.xlu0 %5398
        %5401 = vset.pattern.permute.xlu0 23
        %5402 = vperm.xlu0 %5401, %v4360
        %v5403 = vpop.permute.xlu0 %5402
        %5405 = vset.pattern.permute.xlu0 23
        %5406 = vperm.xlu0 %5405, %v4361
        %v5407 = vpop.permute.xlu0 %5406
        %5409 = vset.pattern.permute.xlu0 23
        %5410 = vperm.xlu0 %5409, %v4362
        %v5411 = vpop.permute.xlu0 %5410
        %v5413 = vlaneseq
        %v5414 = vshrl.u32 %v5413, 7
        %v5415 = vsub.s32 7, %v5414
        %v5416 = vrot.slane %v4379, %v5415
        %v5417 = vadd.f32 %v5351, %v5416
        %v5418 = vadd.f32 %v5355, %v5416
        %v5419 = vadd.f32 %v5359, %v5416
        %v5420 = vadd.f32 %v5363, %v5416
        %v5421 = vadd.f32 %v5367, %v5416
        %v5422 = vadd.f32 %v5371, %v5416
        %v5423 = vadd.f32 %v5375, %v5416
        %v5424 = vadd.f32 %v5379, %v5416
        %v5425 = vadd.f32 %v5383, %v5416
        %v5426 = vadd.f32 %v5387, %v5416
        %v5427 = vadd.f32 %v5391, %v5416
        %v5428 = vadd.f32 %v5395, %v5416
        %v5429 = vadd.f32 %v5399, %v5416
        %v5430 = vadd.f32 %v5403, %v5416
        %v5431 = vadd.f32 %v5407, %v5416
        %v5432 = vadd.f32 %v5411, %v5416
        %s5433 = sld [smem:[#allocation6 + $0x7]]
        %v5434 = vmul.f32 %v5417, 0.2
        %v5435 = vmul.f32 %v5418, 0.2
        %v5436 = vmul.f32 %v5419, 0.2
        %v5437 = vmul.f32 %v5420, 0.2
        %v5438 = vmul.f32 %v5421, 0.2
        %v5439 = vmul.f32 %v5422, 0.2
        %v5440 = vmul.f32 %v5423, 0.2
        %v5441 = vmul.f32 %v5424, 0.2
        %v5442 = vmul.f32 %v5425, 0.2
        %v5443 = vmul.f32 %v5426, 0.2
        %v5444 = vmul.f32 %v5427, 0.2
        %v5445 = vmul.f32 %v5428, 0.2
        %v5446 = vmul.f32 %v5429, 0.2
        %v5447 = vmul.f32 %v5430, 0.2
        %v5448 = vmul.f32 %v5431, 0.2
        %v5449 = vmul.f32 %v5432, 0.2
        %v5450 = vmax.f32 %v5417, %v5434
        %v5451 = vmax.f32 %v5418, %v5435
        %v5452 = vmax.f32 %v5419, %v5436
        %v5453 = vmax.f32 %v5420, %v5437
        %v5454 = vmax.f32 %v5421, %v5438
        %v5455 = vmax.f32 %v5422, %v5439
        %v5456 = vmax.f32 %v5423, %v5440
        %v5457 = vmax.f32 %v5424, %v5441
        %v5458 = vmax.f32 %v5425, %v5442
        %v5459 = vmax.f32 %v5426, %v5443
        %v5460 = vmax.f32 %v5427, %v5444
        %v5461 = vmax.f32 %v5428, %v5445
        %v5462 = vmax.f32 %v5429, %v5446
        %v5463 = vmax.f32 %v5430, %v5447
        %v5464 = vmax.f32 %v5431, %v5448
        %v5465 = vmax.f32 %v5432, %v5449
        %v5466 = vstv %s5433
        %v5467 = vmul.f32 %v5466, %v5450
        %v5468 = vmul.f32 %v5466, %v5451
        %v5469 = vmul.f32 %v5466, %v5452
        %v5470 = vmul.f32 %v5466, %v5453
        %v5471 = vmul.f32 %v5466, %v5454
        %v5472 = vmul.f32 %v5466, %v5455
        %v5473 = vmul.f32 %v5466, %v5456
        %v5474 = vmul.f32 %v5466, %v5457
        %v5475 = vmul.f32 %v5466, %v5458
        %v5476 = vmul.f32 %v5466, %v5459
        %v5477 = vmul.f32 %v5466, %v5460
        %v5478 = vmul.f32 %v5466, %v5461
        %v5479 = vmul.f32 %v5466, %v5462
        %v5480 = vmul.f32 %v5466, %v5463
        %v5481 = vmul.f32 %v5466, %v5464
        %v5482 = vmul.f32 %v5466, %v5465
        %v5483 = vadd.f32 %v4529, %v4663
        %v5484 = vadd.f32 %v4530, %v4664
        %v5485 = vadd.f32 %v4531, %v4665
        %v5486 = vadd.f32 %v4532, %v4666
        %v5487 = vadd.f32 %v4533, %v4667
        %v5488 = vadd.f32 %v4534, %v4668
        %v5489 = vadd.f32 %v4535, %v4669
        %v5490 = vadd.f32 %v4536, %v4670
        %v5491 = vadd.f32 %v4537, %v4671
        %v5492 = vadd.f32 %v4538, %v4672
        %v5493 = vadd.f32 %v4539, %v4673
        %v5494 = vadd.f32 %v4540, %v4674
        %v5495 = vadd.f32 %v4541, %v4675
        %v5496 = vadd.f32 %v4542, %v4676
        %v5497 = vadd.f32 %v4543, %v4677
        %v5498 = vadd.f32 %v4544, %v4678
        %v5499 = vadd.f32 %v4797, %v4931
        %v5500 = vadd.f32 %v4798, %v4932
        %v5501 = vadd.f32 %v4799, %v4933
        %v5502 = vadd.f32 %v4800, %v4934
        %v5503 = vadd.f32 %v4801, %v4935
        %v5504 = vadd.f32 %v4802, %v4936
        %v5505 = vadd.f32 %v4803, %v4937
        %v5506 = vadd.f32 %v4804, %v4938
        %v5507 = vadd.f32 %v4805, %v4939
        %v5508 = vadd.f32 %v4806, %v4940
        %v5509 = vadd.f32 %v4807, %v4941
        %v5510 = vadd.f32 %v4808, %v4942
        %v5511 = vadd.f32 %v4809, %v4943
        %v5512 = vadd.f32 %v4810, %v4944
        %v5513 = vadd.f32 %v4811, %v4945
        %v5514 = vadd.f32 %v4812, %v4946
        %v5515 = vadd.f32 %v5065, %v5199
        %v5516 = vadd.f32 %v5066, %v5200
        %v5517 = vadd.f32 %v5067, %v5201
        %v5518 = vadd.f32 %v5068, %v5202
        %v5519 = vadd.f32 %v5069, %v5203
        %v5520 = vadd.f32 %v5070, %v5204
        %v5521 = vadd.f32 %v5071, %v5205
        %v5522 = vadd.f32 %v5072, %v5206
        %v5523 = vadd.f32 %v5073, %v5207
        %v5524 = vadd.f32 %v5074, %v5208
        %v5525 = vadd.f32 %v5075, %v5209
        %v5526 = vadd.f32 %v5076, %v5210
        %v5527 = vadd.f32 %v5077, %v5211
        %v5528 = vadd.f32 %v5078, %v5212
        %v5529 = vadd.f32 %v5079, %v5213
        %v5530 = vadd.f32 %v5080, %v5214
        %v5531 = vadd.f32 %v5333, %v5467
        %v5532 = vadd.f32 %v5334, %v5468
        %v5533 = vadd.f32 %v5335, %v5469
        %v5534 = vadd.f32 %v5336, %v5470
        %v5535 = vadd.f32 %v5337, %v5471
        %v5536 = vadd.f32 %v5338, %v5472
        %v5537 = vadd.f32 %v5339, %v5473
        %v5538 = vadd.f32 %v5340, %v5474
        %v5539 = vadd.f32 %v5341, %v5475
        %v5540 = vadd.f32 %v5342, %v5476
        %v5541 = vadd.f32 %v5343, %v5477
        %v5542 = vadd.f32 %v5344, %v5478
        %v5543 = vadd.f32 %v5345, %v5479
        %v5544 = vadd.f32 %v5346, %v5480
        %v5545 = vadd.f32 %v5347, %v5481
        %v5546 = vadd.f32 %v5348, %v5482
        %v5547 = vadd.f32 %v5483, %v5499
        %v5548 = vadd.f32 %v5484, %v5500
        %v5549 = vadd.f32 %v5485, %v5501
        %v5550 = vadd.f32 %v5486, %v5502
        %v5551 = vadd.f32 %v5487, %v5503
        %v5552 = vadd.f32 %v5488, %v5504
        %v5553 = vadd.f32 %v5489, %v5505
        %v5554 = vadd.f32 %v5490, %v5506
        %v5555 = vadd.f32 %v5491, %v5507
        %v5556 = vadd.f32 %v5492, %v5508
        %v5557 = vadd.f32 %v5493, %v5509
        %v5558 = vadd.f32 %v5494, %v5510
        %v5559 = vadd.f32 %v5495, %v5511
        %v5560 = vadd.f32 %v5496, %v5512
        %v5561 = vadd.f32 %v5497, %v5513
        %v5562 = vadd.f32 %v5498, %v5514
        %v5563 = vadd.f32 %v5515, %v5531
        %v5564 = vadd.f32 %v5516, %v5532
        %v5565 = vadd.f32 %v5517, %v5533
        %v5566 = vadd.f32 %v5518, %v5534
        %v5567 = vadd.f32 %v5519, %v5535
        %v5568 = vadd.f32 %v5520, %v5536
        %v5569 = vadd.f32 %v5521, %v5537
        %v5570 = vadd.f32 %v5522, %v5538
        %v5571 = vadd.f32 %v5523, %v5539
        %v5572 = vadd.f32 %v5524, %v5540
        %v5573 = vadd.f32 %v5525, %v5541
        %v5574 = vadd.f32 %v5526, %v5542
        %v5575 = vadd.f32 %v5527, %v5543
        %v5576 = vadd.f32 %v5528, %v5544
        %v5577 = vadd.f32 %v5529, %v5545
        %v5578 = vadd.f32 %v5530, %v5546
        %v5579 = vadd.f32 %v5547, %v5563
        %v5580 = vadd.f32 %v5548, %v5564
        %v5581 = vadd.f32 %v5549, %v5565
        %v5582 = vadd.f32 %v5550, %v5566
        %v5583 = vadd.f32 %v5551, %v5567
        %v5584 = vadd.f32 %v5552, %v5568
        %v5585 = vadd.f32 %v5553, %v5569
        %v5586 = vadd.f32 %v5554, %v5570
        %v5587 = vadd.f32 %v5555, %v5571
        %v5588 = vadd.f32 %v5556, %v5572
        %v5589 = vadd.f32 %v5557, %v5573
        %v5590 = vadd.f32 %v5558, %v5574
        %v5591 = vadd.f32 %v5559, %v5575
        %v5592 = vadd.f32 %v5560, %v5576
        %v5593 = vadd.f32 %v5561, %v5577
        %v5594 = vadd.f32 %v5562, %v5578
        %v5595 = vadd.f32 %v5579, %v550
        %v5596 = vadd.f32 %v5580, %v551
        %v5597 = vadd.f32 %v5581, %v552
        %v5598 = vadd.f32 %v5582, %v553
        %v5599 = vadd.f32 %v5583, %v554
        %v5600 = vadd.f32 %v5584, %v555
        %v5601 = vadd.f32 %v5585, %v556
        %v5602 = vadd.f32 %v5586, %v557
        %v5603 = vadd.f32 %v5587, %v558
        %v5604 = vadd.f32 %v5588, %v559
        %v5605 = vadd.f32 %v5589, %v560
        %v5606 = vadd.f32 %v5590, %v561
        %v5607 = vadd.f32 %v5591, %v562
        %v5608 = vadd.f32 %v5592, %v563
        %v5609 = vadd.f32 %v5593, %v564
        %v5610 = vadd.f32 %v5594, %v565
        %5611 = vmax.xlane.f32.xlu0 %v5595
        %v5612 = vpop.xlane.xlu0 %5611
        %5613 = vmax.xlane.f32.xlu0 %v5596
        %v5614 = vpop.xlane.xlu0 %5613
        %5615 = vmax.xlane.f32.xlu0 %v5597
        %v5616 = vpop.xlane.xlu0 %5615
        %5617 = vmax.xlane.f32.xlu0 %v5598
        %v5618 = vpop.xlane.xlu0 %5617
        %5619 = vmax.xlane.f32.xlu0 %v5599
        %v5620 = vpop.xlane.xlu0 %5619
        %5621 = vmax.xlane.f32.xlu0 %v5600
        %v5622 = vpop.xlane.xlu0 %5621
        %5623 = vmax.xlane.f32.xlu0 %v5601
        %v5624 = vpop.xlane.xlu0 %5623
        %5625 = vmax.xlane.f32.xlu0 %v5602
        %v5626 = vpop.xlane.xlu0 %5625
        %5627 = vmax.xlane.f32.xlu0 %v5603
        %v5628 = vpop.xlane.xlu0 %5627
        %5629 = vmax.xlane.f32.xlu0 %v5604
        %v5630 = vpop.xlane.xlu0 %5629
        %5631 = vmax.xlane.f32.xlu0 %v5605
        %v5632 = vpop.xlane.xlu0 %5631
        %5633 = vmax.xlane.f32.xlu0 %v5606
        %v5634 = vpop.xlane.xlu0 %5633
        %5635 = vmax.xlane.f32.xlu0 %v5607
        %v5636 = vpop.xlane.xlu0 %5635
        %5637 = vmax.xlane.f32.xlu0 %v5608
        %v5638 = vpop.xlane.xlu0 %5637
        %5639 = vmax.xlane.f32.xlu0 %v5609
        %v5640 = vpop.xlane.xlu0 %5639
        %5641 = vmax.xlane.f32.xlu0 %v5610
        %v5642 = vpop.xlane.xlu0 %5641
        %v5643 = vsub.f32 %v5595, %v5612
        %v5644 = vsub.f32 %v5596, %v5614
        %v5645 = vsub.f32 %v5597, %v5616
        %v5646 = vsub.f32 %v5598, %v5618
        %v5647 = vsub.f32 %v5599, %v5620
        %v5648 = vsub.f32 %v5600, %v5622
        %v5649 = vsub.f32 %v5601, %v5624
        %v5650 = vsub.f32 %v5602, %v5626
        %v5651 = vsub.f32 %v5603, %v5628
        %v5652 = vsub.f32 %v5604, %v5630
        %v5653 = vsub.f32 %v5605, %v5632
        %v5654 = vsub.f32 %v5606, %v5634
        %v5655 = vsub.f32 %v5607, %v5636
        %v5656 = vsub.f32 %v5608, %v5638
        %v5657 = vsub.f32 %v5609, %v5640
        %v5658 = vsub.f32 %v5610, %v5642
        %v5659 = vmul.f32 %v5643, 1.442695
        %v5660 = vpow.pop %v5659
        %v5661 = vmul.f32 %v5644, 1.442695
        %v5662 = vpow.pop %v5661
        %v5663 = vmul.f32 %v5645, 1.442695
        %v5664 = vpow.pop %v5663
        %v5665 = vmul.f32 %v5646, 1.442695
        %v5666 = vpow.pop %v5665
        %v5667 = vmul.f32 %v5647, 1.442695
        %v5668 = vpow.pop %v5667
        %v5669 = vmul.f32 %v5648, 1.442695
        %v5670 = vpow.pop %v5669
        %v5671 = vmul.f32 %v5649, 1.442695
        %v5672 = vpow.pop %v5671
        %v5673 = vmul.f32 %v5650, 1.442695
        %v5674 = vpow.pop %v5673
        %v5675 = vmul.f32 %v5651, 1.442695
        %v5676 = vpow.pop %v5675
        %v5677 = vmul.f32 %v5652, 1.442695
        %v5678 = vpow.pop %v5677
        %v5679 = vmul.f32 %v5653, 1.442695
        %v5680 = vpow.pop %v5679
        %v5681 = vmul.f32 %v5654, 1.442695
        %v5682 = vpow.pop %v5681
        %v5683 = vmul.f32 %v5655, 1.442695
        %v5684 = vpow.pop %v5683
        %v5685 = vmul.f32 %v5656, 1.442695
        %v5686 = vpow.pop %v5685
        %v5687 = vmul.f32 %v5657, 1.442695
        %v5688 = vpow.pop %v5687
        %v5689 = vmul.f32 %v5658, 1.442695
        %v5690 = vpow.pop %v5689
        %5691 = vadd.xlane.f32.xlu0 %v5660
        %v5692 = vpop.xlane.xlu0 %5691
        %5693 = vadd.xlane.f32.xlu0 %v5662
        %v5694 = vpop.xlane.xlu0 %5693
        %5695 = vadd.xlane.f32.xlu0 %v5664
        %v5696 = vpop.xlane.xlu0 %5695
        %5697 = vadd.xlane.f32.xlu0 %v5666
        %v5698 = vpop.xlane.xlu0 %5697
        %5699 = vadd.xlane.f32.xlu0 %v5668
        %v5700 = vpop.xlane.xlu0 %5699
        %5701 = vadd.xlane.f32.xlu0 %v5670
        %v5702 = vpop.xlane.xlu0 %5701
        %5703 = vadd.xlane.f32.xlu0 %v5672
        %v5704 = vpop.xlane.xlu0 %5703
        %5705 = vadd.xlane.f32.xlu0 %v5674
        %v5706 = vpop.xlane.xlu0 %5705
        %5707 = vadd.xlane.f32.xlu0 %v5676
        %v5708 = vpop.xlane.xlu0 %5707
        %5709 = vadd.xlane.f32.xlu0 %v5678
        %v5710 = vpop.xlane.xlu0 %5709
        %5711 = vadd.xlane.f32.xlu0 %v5680
        %v5712 = vpop.xlane.xlu0 %5711
        %5713 = vadd.xlane.f32.xlu0 %v5682
        %v5714 = vpop.xlane.xlu0 %5713
        %5715 = vadd.xlane.f32.xlu0 %v5684
        %v5716 = vpop.xlane.xlu0 %5715
        %5717 = vadd.xlane.f32.xlu0 %v5686
        %v5718 = vpop.xlane.xlu0 %5717
        %5719 = vadd.xlane.f32.xlu0 %v5688
        %v5720 = vpop.xlane.xlu0 %5719
        %5721 = vadd.xlane.f32.xlu0 %v5690
        %v5722 = vpop.xlane.xlu0 %5721
        %v5723 = vrcp.pop %v5692
        %v5724 = vrcp.pop %v5694
        %v5725 = vrcp.pop %v5696
        %v5726 = vrcp.pop %v5698
        %v5727 = vrcp.pop %v5700
        %v5728 = vrcp.pop %v5702
        %v5729 = vrcp.pop %v5704
        %v5730 = vrcp.pop %v5706
        %v5731 = vrcp.pop %v5708
        %v5732 = vrcp.pop %v5710
        %v5733 = vrcp.pop %v5712
        %v5734 = vrcp.pop %v5714
        %v5735 = vrcp.pop %v5716
        %v5736 = vrcp.pop %v5718
        %v5737 = vrcp.pop %v5720
        %v5738 = vrcp.pop %v5722
        %v5739 = vpack.c.bf16 %v5662, %v5660
        %v5740 = vpack.c.bf16 %v5666, %v5664
        %v5741 = vpack.c.bf16 %v5670, %v5668
        %v5742 = vpack.c.bf16 %v5674, %v5672
        %v5743 = vpack.c.bf16 %v5678, %v5676
        %v5744 = vpack.c.bf16 %v5682, %v5680
        %v5745 = vpack.c.bf16 %v5686, %v5684
        %v5746 = vpack.c.bf16 %v5690, %v5688
        %v5747 = vpack.c.bf16 %v4348, %v4347
        %v5748 = vpack.c.bf16 %v4350, %v4349
        %v5749 = vpack.c.bf16 %v4352, %v4351
        %v5750 = vpack.c.bf16 %v4354, %v4353
        %v5751 = vpack.c.bf16 %v4356, %v4355
        %v5752 = vpack.c.bf16 %v4358, %v4357
        %v5753 = vpack.c.bf16 %v4360, %v4359
        %v5754 = vpack.c.bf16 %v4362, %v4361
        %5755 = vmatprep.subr.bf16.mxu0 0
        %5756 = vmatpush1.bf16.msra.mxu0 %v5747
        %5757 = vmatprep.subr.bf16.mxu0 0
        %5758 = vmatpush1.bf16.msra.mxu0 %v5748
        %5759 = vmatprep.subr.bf16.mxu0 0
        %5760 = vmatpush1.bf16.msra.mxu0 %v5749
        %5761 = vmatprep.subr.bf16.mxu0 0
        %5762 = vmatpush1.bf16.msra.mxu0 %v5750
        %5763 = vmatprep.subr.bf16.mxu0 0
        %5764 = vmatpush1.bf16.msra.mxu0 %v5751
        %5765 = vmatprep.subr.bf16.mxu0 0
        %5766 = vmatpush1.bf16.msra.mxu0 %v5752
        %5767 = vmatprep.subr.bf16.mxu0 0
        %5768 = vmatpush1.bf16.msra.mxu0 %v5753
        %5769 = vmatprep.subr.bf16.mxu0 0
        %5770 = vmatpush1.bf16.msra.mxu0 %v5754
        %5771 = vmatprep.subr.bf16.mxu0 0
        %5772 = vmatpush1.bf16.msra.mxu0 0
        %5773 = vmatprep.subr.bf16.mxu0 0
        %5774 = vmatpush1.bf16.msra.mxu0 0
        %5775 = vmatprep.subr.bf16.mxu0 0
        %5776 = vmatpush1.bf16.msra.mxu0 0
        %5777 = vmatprep.subr.bf16.mxu0 0
        %5778 = vmatpush1.bf16.msra.mxu0 0
        %5779 = vmatprep.subr.bf16.mxu0 0
        %5780 = vmatpush1.bf16.msra.mxu0 0
        %5781 = vmatprep.subr.bf16.mxu0 0
        %5782 = vmatpush1.bf16.msra.mxu0 0
        %5783 = vmatprep.subr.bf16.mxu0 0
        %5784 = vmatpush1.bf16.msra.mxu0 0
        %5785 = vmatprep.subr.bf16.mxu0 0
        %5786 = vmatpush1.bf16.msra.mxu0 0
        %5787 = vmatprep.mubr.bf16.mxu0 0
        %5788 = vmatmul.mubr.bf16.gmra.mrb[0].mxu0 %v5739
        %v5789 = vpop.f32.mrb[0].mxu0
        %v5790 = vadd.f32 0.0, %v5789
        %v5791 = vpop.f32.mrb[0].mxu0
        %v5792 = vpop.f32.mrb[0].mxu0
        %v5793 = vadd.f32 0.0, %v5792
        %v5794 = vpop.f32.mrb[0].mxu0
        %5795 = vmatprep.mubr.bf16.mxu0 0
        %5796 = vmatmul.mubr.bf16.gmra.mrb[0].mxu0 %v5740
        %v5797 = vpop.f32.mrb[0].mxu0
        %v5798 = vadd.f32 0.0, %v5797
        %v5799 = vpop.f32.mrb[0].mxu0
        %v5800 = vpop.f32.mrb[0].mxu0
        %v5801 = vadd.f32 0.0, %v5800
        %v5802 = vpop.f32.mrb[0].mxu0
        %5803 = vmatprep.mubr.bf16.mxu0 0
        %5804 = vmatmul.mubr.bf16.gmra.mrb[0].mxu0 %v5741
        %v5805 = vpop.f32.mrb[0].mxu0
        %v5806 = vadd.f32 0.0, %v5805
        %v5807 = vpop.f32.mrb[0].mxu0
        %v5808 = vpop.f32.mrb[0].mxu0
        %v5809 = vadd.f32 0.0, %v5808
        %v5810 = vpop.f32.mrb[0].mxu0
        %5811 = vmatprep.mubr.bf16.mxu0 0
        %5812 = vmatmul.mubr.bf16.gmra.mrb[0].mxu0 %v5742
        %v5813 = vpop.f32.mrb[0].mxu0
        %v5814 = vadd.f32 0.0, %v5813
        %v5815 = vpop.f32.mrb[0].mxu0
        %v5816 = vpop.f32.mrb[0].mxu0
        %v5817 = vadd.f32 0.0, %v5816
        %v5818 = vpop.f32.mrb[0].mxu0
        %5819 = vmatprep.mubr.bf16.mxu0 0
        %5820 = vmatmul.mubr.bf16.gmra.mrb[0].mxu0 %v5743
        %v5821 = vpop.f32.mrb[0].mxu0
        %v5822 = vadd.f32 0.0, %v5821
        %v5823 = vpop.f32.mrb[0].mxu0
        %v5824 = vpop.f32.mrb[0].mxu0
        %v5825 = vadd.f32 0.0, %v5824
        %v5826 = vpop.f32.mrb[0].mxu0
        %5827 = vmatprep.mubr.bf16.mxu0 0
        %5828 = vmatmul.mubr.bf16.gmra.mrb[0].mxu0 %v5744
        %v5829 = vpop.f32.mrb[0].mxu0
        %v5830 = vadd.f32 0.0, %v5829
        %v5831 = vpop.f32.mrb[0].mxu0
        %v5832 = vpop.f32.mrb[0].mxu0
        %v5833 = vadd.f32 0.0, %v5832
        %v5834 = vpop.f32.mrb[0].mxu0
        %5835 = vmatprep.mubr.bf16.mxu0 0
        %5836 = vmatmul.mubr.bf16.gmra.mrb[0].mxu0 %v5745
        %v5837 = vpop.f32.mrb[0].mxu0
        %v5838 = vadd.f32 0.0, %v5837
        %v5839 = vpop.f32.mrb[0].mxu0
        %v5840 = vpop.f32.mrb[0].mxu0
        %v5841 = vadd.f32 0.0, %v5840
        %v5842 = vpop.f32.mrb[0].mxu0
        %5843 = vmatprep.mubr.bf16.mxu0 0
        %5844 = vmatmul.mubr.bf16.gmra.mrb[0].mxu0 %v5746
        %v5845 = vpop.f32.mrb[0].mxu0
        %v5846 = vadd.f32 0.0, %v5845
        %v5847 = vpop.f32.mrb[0].mxu0
        %v5848 = vpop.f32.mrb[0].mxu0
        %v5849 = vadd.f32 0.0, %v5848
        %v5850 = vpop.f32.mrb[0].mxu0
        %5851 = vdwg.mxu0
        %v5852 = vmul.f32 %v5790, %v5723
        %v5853 = vmul.f32 %v5793, %v5724
        %v5854 = vmul.f32 %v5798, %v5725
        %v5855 = vmul.f32 %v5801, %v5726
        %v5856 = vmul.f32 %v5806, %v5727
        %v5857 = vmul.f32 %v5809, %v5728
        %v5858 = vmul.f32 %v5814, %v5729
        %v5859 = vmul.f32 %v5817, %v5730
        %v5860 = vmul.f32 %v5822, %v5731
        %v5861 = vmul.f32 %v5825, %v5732
        %v5862 = vmul.f32 %v5830, %v5733
        %v5863 = vmul.f32 %v5833, %v5734
        %v5864 = vmul.f32 %v5838, %v5735
        %v5865 = vmul.f32 %v5841, %v5736
        %v5866 = vmul.f32 %v5846, %v5737
        %v5867 = vmul.f32 %v5849, %v5738
        %v5868 = vld [vmem:[%s11] sm:$0x1]
        %v5870 = vlaneseq
        %v5871 = vshrl.u32 %v5870, 7
        %v5872 = vsub.s32 0, %v5871
        %v5873 = vrot.slane %v5868, %v5872
        %v5875 = vadd.f32 %v5852, %v5873
        %v5876 = vadd.f32 %v5853, %v5873
        %v5877 = vadd.f32 %v5854, %v5873
        %v5878 = vadd.f32 %v5855, %v5873
        %v5879 = vadd.f32 %v5856, %v5873
        %v5880 = vadd.f32 %v5857, %v5873
        %v5881 = vadd.f32 %v5858, %v5873
        %v5882 = vadd.f32 %v5859, %v5873
        %v5883 = vadd.f32 %v5860, %v5873
        %v5884 = vadd.f32 %v5861, %v5873
        %v5885 = vadd.f32 %v5862, %v5873
        %v5886 = vadd.f32 %v5863, %v5873
        %v5887 = vadd.f32 %v5864, %v5873
        %v5888 = vadd.f32 %v5865, %v5873
        %v5889 = vadd.f32 %v5866, %v5873
        %v5890 = vadd.f32 %v5867, %v5873
        %v5891 = vmax.f32 %v5875, 0.0
        %v5892 = vmax.f32 %v5876, 0.0
        %v5893 = vmax.f32 %v5877, 0.0
        %v5894 = vmax.f32 %v5878, 0.0
        %v5895 = vmax.f32 %v5879, 0.0
        %v5896 = vmax.f32 %v5880, 0.0
        %v5897 = vmax.f32 %v5881, 0.0
        %v5898 = vmax.f32 %v5882, 0.0
        %v5899 = vmax.f32 %v5883, 0.0
        %v5900 = vmax.f32 %v5884, 0.0
        %v5901 = vmax.f32 %v5885, 0.0
        %v5902 = vmax.f32 %v5886, 0.0
        %v5903 = vmax.f32 %v5887, 0.0
        %v5904 = vmax.f32 %v5888, 0.0
        %v5905 = vmax.f32 %v5889, 0.0
        %v5906 = vmax.f32 %v5890, 0.0
        %v5907 = vpack.c.bf16 %v5892, %v5891
        %v5908 = vpack.c.bf16 %v5894, %v5893
        %v5909 = vpack.c.bf16 %v5896, %v5895
        %v5910 = vpack.c.bf16 %v5898, %v5897
        %v5911 = vpack.c.bf16 %v5900, %v5899
        %v5912 = vpack.c.bf16 %v5902, %v5901
        %v5913 = vpack.c.bf16 %v5904, %v5903
        %v5914 = vpack.c.bf16 %v5906, %v5905
        %v5915 = vld [vmem:[%s12] sm:$0xf]
        %5916 = vset.pattern.permute.xlu0 24
        %5917 = vperm.xlu0 %5916, %v4347
        %v5918 = vpop.permute.xlu0 %5917
        %5920 = vset.pattern.permute.xlu0 24
        %5921 = vperm.xlu0 %5920, %v4348
        %v5922 = vpop.permute.xlu0 %5921
        %5924 = vset.pattern.permute.xlu0 24
        %5925 = vperm.xlu0 %5924, %v4349
        %v5926 = vpop.permute.xlu0 %5925
        %5928 = vset.pattern.permute.xlu0 24
        %5929 = vperm.xlu0 %5928, %v4350
        %v5930 = vpop.permute.xlu0 %5929
        %5932 = vset.pattern.permute.xlu0 24
        %5933 = vperm.xlu0 %5932, %v4351
        %v5934 = vpop.permute.xlu0 %5933
        %5936 = vset.pattern.permute.xlu0 24
        %5937 = vperm.xlu0 %5936, %v4352
        %v5938 = vpop.permute.xlu0 %5937
        %5940 = vset.pattern.permute.xlu0 24
        %5941 = vperm.xlu0 %5940, %v4353
        %v5942 = vpop.permute.xlu0 %5941
        %5944 = vset.pattern.permute.xlu0 24
        %5945 = vperm.xlu0 %5944, %v4354
        %v5946 = vpop.permute.xlu0 %5945
        %5948 = vset.pattern.permute.xlu0 24
        %5949 = vperm.xlu0 %5948, %v4355
        %v5950 = vpop.permute.xlu0 %5949
        %5952 = vset.pattern.permute.xlu0 24
        %5953 = vperm.xlu0 %5952, %v4356
        %v5954 = vpop.permute.xlu0 %5953
        %5956 = vset.pattern.permute.xlu0 24
        %5957 = vperm.xlu0 %5956, %v4357
        %v5958 = vpop.permute.xlu0 %5957
        %5960 = vset.pattern.permute.xlu0 24
        %5961 = vperm.xlu0 %5960, %v4358
        %v5962 = vpop.permute.xlu0 %5961
        %5964 = vset.pattern.permute.xlu0 24
        %5965 = vperm.xlu0 %5964, %v4359
        %v5966 = vpop.permute.xlu0 %5965
        %5968 = vset.pattern.permute.xlu0 24
        %5969 = vperm.xlu0 %5968, %v4360
        %v5970 = vpop.permute.xlu0 %5969
        %5972 = vset.pattern.permute.xlu0 24
        %5973 = vperm.xlu0 %5972, %v4361
        %v5974 = vpop.permute.xlu0 %5973
        %5976 = vset.pattern.permute.xlu0 24
        %5977 = vperm.xlu0 %5976, %v4362
        %v5978 = vpop.permute.xlu0 %5977
        %v5980 = vlaneseq
        %v5981 = vshrl.u32 %v5980, 7
        %v5982 = vsub.s32 0, %v5981
        %v5983 = vrot.slane %v4380, %v5982
        %v5984 = vadd.f32 %v5918, %v5983
        %v5985 = vadd.f32 %v5922, %v5983
        %v5986 = vadd.f32 %v5926, %v5983
        %v5987 = vadd.f32 %v5930, %v5983
        %v5988 = vadd.f32 %v5934, %v5983
        %v5989 = vadd.f32 %v5938, %v5983
        %v5990 = vadd.f32 %v5942, %v5983
        %v5991 = vadd.f32 %v5946, %v5983
        %v5992 = vadd.f32 %v5950, %v5983
        %v5993 = vadd.f32 %v5954, %v5983
        %v5994 = vadd.f32 %v5958, %v5983
        %v5995 = vadd.f32 %v5962, %v5983
        %v5996 = vadd.f32 %v5966, %v5983
        %v5997 = vadd.f32 %v5970, %v5983
        %v5998 = vadd.f32 %v5974, %v5983
        %v5999 = vadd.f32 %v5978, %v5983
        %s6000 = sld [smem:[#allocation6 + $0x80]]
        %v6001 = vmul.f32 %v5984, 0.2
        %v6002 = vmul.f32 %v5985, 0.2
        %v6003 = vmul.f32 %v5986, 0.2
        %v6004 = vmul.f32 %v5987, 0.2
        %v6005 = vmul.f32 %v5988, 0.2
        %v6006 = vmul.f32 %v5989, 0.2
        %v6007 = vmul.f32 %v5990, 0.2
        %v6008 = vmul.f32 %v5991, 0.2
        %v6009 = vmul.f32 %v5992, 0.2
        %v6010 = vmul.f32 %v5993, 0.2
        %v6011 = vmul.f32 %v5994, 0.2
        %v6012 = vmul.f32 %v5995, 0.2
        %v6013 = vmul.f32 %v5996, 0.2
        %v6014 = vmul.f32 %v5997, 0.2
        %v6015 = vmul.f32 %v5998, 0.2
        %v6016 = vmul.f32 %v5999, 0.2
        %v6017 = vmax.f32 %v5984, %v6001
        %v6018 = vmax.f32 %v5985, %v6002
        %v6019 = vmax.f32 %v5986, %v6003
        %v6020 = vmax.f32 %v5987, %v6004
        %v6021 = vmax.f32 %v5988, %v6005
        %v6022 = vmax.f32 %v5989, %v6006
        %v6023 = vmax.f32 %v5990, %v6007
        %v6024 = vmax.f32 %v5991, %v6008
        %v6025 = vmax.f32 %v5992, %v6009
        %v6026 = vmax.f32 %v5993, %v6010
        %v6027 = vmax.f32 %v5994, %v6011
        %v6028 = vmax.f32 %v5995, %v6012
        %v6029 = vmax.f32 %v5996, %v6013
        %v6030 = vmax.f32 %v5997, %v6014
        %v6031 = vmax.f32 %v5998, %v6015
        %v6032 = vmax.f32 %v5999, %v6016
        %v6033 = vstv %s6000
        %v6034 = vmul.f32 %v6033, %v6017
        %v6035 = vmul.f32 %v6033, %v6018
        %v6036 = vmul.f32 %v6033, %v6019
        %v6037 = vmul.f32 %v6033, %v6020
        %v6038 = vmul.f32 %v6033, %v6021
        %v6039 = vmul.f32 %v6033, %v6022
        %v6040 = vmul.f32 %v6033, %v6023
        %v6041 = vmul.f32 %v6033, %v6024
        %v6042 = vmul.f32 %v6033, %v6025
        %v6043 = vmul.f32 %v6033, %v6026
        %v6044 = vmul.f32 %v6033, %v6027
        %v6045 = vmul.f32 %v6033, %v6028
        %v6046 = vmul.f32 %v6033, %v6029
        %v6047 = vmul.f32 %v6033, %v6030
        %v6048 = vmul.f32 %v6033, %v6031
        %v6049 = vmul.f32 %v6033, %v6032
        %6050 = vset.pattern.permute.xlu0 25
        %6051 = vperm.xlu0 %6050, %v4347
        %v6052 = vpop.permute.xlu0 %6051
        %6054 = vset.pattern.permute.xlu0 25
        %6055 = vperm.xlu0 %6054, %v4348
        %v6056 = vpop.permute.xlu0 %6055
        %6058 = vset.pattern.permute.xlu0 25
        %6059 = vperm.xlu0 %6058, %v4349
        %v6060 = vpop.permute.xlu0 %6059
        %6062 = vset.pattern.permute.xlu0 25
        %6063 = vperm.xlu0 %6062, %v4350
        %v6064 = vpop.permute.xlu0 %6063
        %6066 = vset.pattern.permute.xlu0 25
        %6067 = vperm.xlu0 %6066, %v4351
        %v6068 = vpop.permute.xlu0 %6067
        %6070 = vset.pattern.permute.xlu0 25
        %6071 = vperm.xlu0 %6070, %v4352
        %v6072 = vpop.permute.xlu0 %6071
        %6074 = vset.pattern.permute.xlu0 25
        %6075 = vperm.xlu0 %6074, %v4353
        %v6076 = vpop.permute.xlu0 %6075
        %6078 = vset.pattern.permute.xlu0 25
        %6079 = vperm.xlu0 %6078, %v4354
        %v6080 = vpop.permute.xlu0 %6079
        %6082 = vset.pattern.permute.xlu0 25
        %6083 = vperm.xlu0 %6082, %v4355
        %v6084 = vpop.permute.xlu0 %6083
        %6086 = vset.pattern.permute.xlu0 25
        %6087 = vperm.xlu0 %6086, %v4356
        %v6088 = vpop.permute.xlu0 %6087
        %6090 = vset.pattern.permute.xlu0 25
        %6091 = vperm.xlu0 %6090, %v4357
        %v6092 = vpop.permute.xlu0 %6091
        %6094 = vset.pattern.permute.xlu0 25
        %6095 = vperm.xlu0 %6094, %v4358
        %v6096 = vpop.permute.xlu0 %6095
        %6098 = vset.pattern.permute.xlu0 25
        %6099 = vperm.xlu0 %6098, %v4359
        %v6100 = vpop.permute.xlu0 %6099
        %6102 = vset.pattern.permute.xlu0 25
        %6103 = vperm.xlu0 %6102, %v4360
        %v6104 = vpop.permute.xlu0 %6103
        %6106 = vset.pattern.permute.xlu0 25
        %6107 = vperm.xlu0 %6106, %v4361
        %v6108 = vpop.permute.xlu0 %6107
        %6110 = vset.pattern.permute.xlu0 25
        %6111 = vperm.xlu0 %6110, %v4362
        %v6112 = vpop.permute.xlu0 %6111
        %v6114 = vlaneseq
        %v6115 = vshrl.u32 %v6114, 7
        %v6116 = vsub.s32 1, %v6115
        %v6117 = vrot.slane %v4380, %v6116
        %v6118 = vadd.f32 %v6052, %v6117
        %v6119 = vadd.f32 %v6056, %v6117
        %v6120 = vadd.f32 %v6060, %v6117
        %v6121 = vadd.f32 %v6064, %v6117
        %v6122 = vadd.f32 %v6068, %v6117
        %v6123 = vadd.f32 %v6072, %v6117
        %v6124 = vadd.f32 %v6076, %v6117
        %v6125 = vadd.f32 %v6080, %v6117
        %v6126 = vadd.f32 %v6084, %v6117
        %v6127 = vadd.f32 %v6088, %v6117
        %v6128 = vadd.f32 %v6092, %v6117
        %v6129 = vadd.f32 %v6096, %v6117
        %v6130 = vadd.f32 %v6100, %v6117
        %v6131 = vadd.f32 %v6104, %v6117
        %v6132 = vadd.f32 %v6108, %v6117
        %v6133 = vadd.f32 %v6112, %v6117
        %s6134 = sld [smem:[#allocation6 + $0x81]]
        %v6135 = vmul.f32 %v6118, 0.2
        %v6136 = vmul.f32 %v6119, 0.2
        %v6137 = vmul.f32 %v6120, 0.2
        %v6138 = vmul.f32 %v6121, 0.2
        %v6139 = vmul.f32 %v6122, 0.2
        %v6140 = vmul.f32 %v6123, 0.2
        %v6141 = vmul.f32 %v6124, 0.2
        %v6142 = vmul.f32 %v6125, 0.2
        %v6143 = vmul.f32 %v6126, 0.2
        %v6144 = vmul.f32 %v6127, 0.2
        %v6145 = vmul.f32 %v6128, 0.2
        %v6146 = vmul.f32 %v6129, 0.2
        %v6147 = vmul.f32 %v6130, 0.2
        %v6148 = vmul.f32 %v6131, 0.2
        %v6149 = vmul.f32 %v6132, 0.2
        %v6150 = vmul.f32 %v6133, 0.2
        %v6151 = vmax.f32 %v6118, %v6135
        %v6152 = vmax.f32 %v6119, %v6136
        %v6153 = vmax.f32 %v6120, %v6137
        %v6154 = vmax.f32 %v6121, %v6138
        %v6155 = vmax.f32 %v6122, %v6139
        %v6156 = vmax.f32 %v6123, %v6140
        %v6157 = vmax.f32 %v6124, %v6141
        %v6158 = vmax.f32 %v6125, %v6142
        %v6159 = vmax.f32 %v6126, %v6143
        %v6160 = vmax.f32 %v6127, %v6144
        %v6161 = vmax.f32 %v6128, %v6145
        %v6162 = vmax.f32 %v6129, %v6146
        %v6163 = vmax.f32 %v6130, %v6147
        %v6164 = vmax.f32 %v6131, %v6148
        %v6165 = vmax.f32 %v6132, %v6149
        %v6166 = vmax.f32 %v6133, %v6150
        %v6167 = vstv %s6134
        %v6168 = vmul.f32 %v6167, %v6151
        %v6169 = vmul.f32 %v6167, %v6152
        %v6170 = vmul.f32 %v6167, %v6153
        %v6171 = vmul.f32 %v6167, %v6154
        %v6172 = vmul.f32 %v6167, %v6155
        %v6173 = vmul.f32 %v6167, %v6156
        %v6174 = vmul.f32 %v6167, %v6157
        %v6175 = vmul.f32 %v6167, %v6158
        %v6176 = vmul.f32 %v6167, %v6159
        %v6177 = vmul.f32 %v6167, %v6160
        %v6178 = vmul.f32 %v6167, %v6161
        %v6179 = vmul.f32 %v6167, %v6162
        %v6180 = vmul.f32 %v6167, %v6163
        %v6181 = vmul.f32 %v6167, %v6164
        %v6182 = vmul.f32 %v6167, %v6165
        %v6183 = vmul.f32 %v6167, %v6166
        %6184 = vset.pattern.permute.xlu0 26
        %6185 = vperm.xlu0 %6184, %v4347
        %v6186 = vpop.permute.xlu0 %6185
        %6188 = vset.pattern.permute.xlu0 26
        %6189 = vperm.xlu0 %6188, %v4348
        %v6190 = vpop.permute.xlu0 %6189
        %6192 = vset.pattern.permute.xlu0 26
        %6193 = vperm.xlu0 %6192, %v4349
        %v6194 = vpop.permute.xlu0 %6193
        %6196 = vset.pattern.permute.xlu0 26
        %6197 = vperm.xlu0 %6196, %v4350
        %v6198 = vpop.permute.xlu0 %6197
        %6200 = vset.pattern.permute.xlu0 26
        %6201 = vperm.xlu0 %6200, %v4351
        %v6202 = vpop.permute.xlu0 %6201
        %6204 = vset.pattern.permute.xlu0 26
        %6205 = vperm.xlu0 %6204, %v4352
        %v6206 = vpop.permute.xlu0 %6205
        %6208 = vset.pattern.permute.xlu0 26
        %6209 = vperm.xlu0 %6208, %v4353
        %v6210 = vpop.permute.xlu0 %6209
        %6212 = vset.pattern.permute.xlu0 26
        %6213 = vperm.xlu0 %6212, %v4354
        %v6214 = vpop.permute.xlu0 %6213
        %6216 = vset.pattern.permute.xlu0 26
        %6217 = vperm.xlu0 %6216, %v4355
        %v6218 = vpop.permute.xlu0 %6217
        %6220 = vset.pattern.permute.xlu0 26
        %6221 = vperm.xlu0 %6220, %v4356
        %v6222 = vpop.permute.xlu0 %6221
        %6224 = vset.pattern.permute.xlu0 26
        %6225 = vperm.xlu0 %6224, %v4357
        %v6226 = vpop.permute.xlu0 %6225
        %6228 = vset.pattern.permute.xlu0 26
        %6229 = vperm.xlu0 %6228, %v4358
        %v6230 = vpop.permute.xlu0 %6229
        %6232 = vset.pattern.permute.xlu0 26
        %6233 = vperm.xlu0 %6232, %v4359
        %v6234 = vpop.permute.xlu0 %6233
        %6236 = vset.pattern.permute.xlu0 26
        %6237 = vperm.xlu0 %6236, %v4360
        %v6238 = vpop.permute.xlu0 %6237
        %6240 = vset.pattern.permute.xlu0 26
        %6241 = vperm.xlu0 %6240, %v4361
        %v6242 = vpop.permute.xlu0 %6241
        %6244 = vset.pattern.permute.xlu0 26
        %6245 = vperm.xlu0 %6244, %v4362
        %v6246 = vpop.permute.xlu0 %6245
        %v6248 = vlaneseq
        %v6249 = vshrl.u32 %v6248, 7
        %v6250 = vsub.s32 2, %v6249
        %v6251 = vrot.slane %v4380, %v6250
        %v6252 = vadd.f32 %v6186, %v6251
        %v6253 = vadd.f32 %v6190, %v6251
        %v6254 = vadd.f32 %v6194, %v6251
        %v6255 = vadd.f32 %v6198, %v6251
        %v6256 = vadd.f32 %v6202, %v6251
        %v6257 = vadd.f32 %v6206, %v6251
        %v6258 = vadd.f32 %v6210, %v6251
        %v6259 = vadd.f32 %v6214, %v6251
        %v6260 = vadd.f32 %v6218, %v6251
        %v6261 = vadd.f32 %v6222, %v6251
        %v6262 = vadd.f32 %v6226, %v6251
        %v6263 = vadd.f32 %v6230, %v6251
        %v6264 = vadd.f32 %v6234, %v6251
        %v6265 = vadd.f32 %v6238, %v6251
        %v6266 = vadd.f32 %v6242, %v6251
        %v6267 = vadd.f32 %v6246, %v6251
        %s6268 = sld [smem:[#allocation6 + $0x82]]
        %v6269 = vmul.f32 %v6252, 0.2
        %v6270 = vmul.f32 %v6253, 0.2
        %v6271 = vmul.f32 %v6254, 0.2
        %v6272 = vmul.f32 %v6255, 0.2
        %v6273 = vmul.f32 %v6256, 0.2
        %v6274 = vmul.f32 %v6257, 0.2
        %v6275 = vmul.f32 %v6258, 0.2
        %v6276 = vmul.f32 %v6259, 0.2
        %v6277 = vmul.f32 %v6260, 0.2
        %v6278 = vmul.f32 %v6261, 0.2
        %v6279 = vmul.f32 %v6262, 0.2
        %v6280 = vmul.f32 %v6263, 0.2
        %v6281 = vmul.f32 %v6264, 0.2
        %v6282 = vmul.f32 %v6265, 0.2
        %v6283 = vmul.f32 %v6266, 0.2
        %v6284 = vmul.f32 %v6267, 0.2
        %v6285 = vmax.f32 %v6252, %v6269
        %v6286 = vmax.f32 %v6253, %v6270
        %v6287 = vmax.f32 %v6254, %v6271
        %v6288 = vmax.f32 %v6255, %v6272
        %v6289 = vmax.f32 %v6256, %v6273
        %v6290 = vmax.f32 %v6257, %v6274
        %v6291 = vmax.f32 %v6258, %v6275
        %v6292 = vmax.f32 %v6259, %v6276
        %v6293 = vmax.f32 %v6260, %v6277
        %v6294 = vmax.f32 %v6261, %v6278
        %v6295 = vmax.f32 %v6262, %v6279
        %v6296 = vmax.f32 %v6263, %v6280
        %v6297 = vmax.f32 %v6264, %v6281
        %v6298 = vmax.f32 %v6265, %v6282
        %v6299 = vmax.f32 %v6266, %v6283
        %v6300 = vmax.f32 %v6267, %v6284
        %v6301 = vstv %s6268
        %v6302 = vmul.f32 %v6301, %v6285
        %v6303 = vmul.f32 %v6301, %v6286
        %v6304 = vmul.f32 %v6301, %v6287
        %v6305 = vmul.f32 %v6301, %v6288
        %v6306 = vmul.f32 %v6301, %v6289
        %v6307 = vmul.f32 %v6301, %v6290
        %v6308 = vmul.f32 %v6301, %v6291
        %v6309 = vmul.f32 %v6301, %v6292
        %v6310 = vmul.f32 %v6301, %v6293
        %v6311 = vmul.f32 %v6301, %v6294
        %v6312 = vmul.f32 %v6301, %v6295
        %v6313 = vmul.f32 %v6301, %v6296
        %v6314 = vmul.f32 %v6301, %v6297
        %v6315 = vmul.f32 %v6301, %v6298
        %v6316 = vmul.f32 %v6301, %v6299
        %v6317 = vmul.f32 %v6301, %v6300
        %6318 = vset.pattern.permute.xlu0 27
        %6319 = vperm.xlu0 %6318, %v4347
        %v6320 = vpop.permute.xlu0 %6319
        %6322 = vset.pattern.permute.xlu0 27
        %6323 = vperm.xlu0 %6322, %v4348
        %v6324 = vpop.permute.xlu0 %6323
        %6326 = vset.pattern.permute.xlu0 27
        %6327 = vperm.xlu0 %6326, %v4349
        %v6328 = vpop.permute.xlu0 %6327
        %6330 = vset.pattern.permute.xlu0 27
        %6331 = vperm.xlu0 %6330, %v4350
        %v6332 = vpop.permute.xlu0 %6331
        %6334 = vset.pattern.permute.xlu0 27
        %6335 = vperm.xlu0 %6334, %v4351
        %v6336 = vpop.permute.xlu0 %6335
        %6338 = vset.pattern.permute.xlu0 27
        %6339 = vperm.xlu0 %6338, %v4352
        %v6340 = vpop.permute.xlu0 %6339
        %6342 = vset.pattern.permute.xlu0 27
        %6343 = vperm.xlu0 %6342, %v4353
        %v6344 = vpop.permute.xlu0 %6343
        %6346 = vset.pattern.permute.xlu0 27
        %6347 = vperm.xlu0 %6346, %v4354
        %v6348 = vpop.permute.xlu0 %6347
        %6350 = vset.pattern.permute.xlu0 27
        %6351 = vperm.xlu0 %6350, %v4355
        %v6352 = vpop.permute.xlu0 %6351
        %6354 = vset.pattern.permute.xlu0 27
        %6355 = vperm.xlu0 %6354, %v4356
        %v6356 = vpop.permute.xlu0 %6355
        %6358 = vset.pattern.permute.xlu0 27
        %6359 = vperm.xlu0 %6358, %v4357
        %v6360 = vpop.permute.xlu0 %6359
        %6362 = vset.pattern.permute.xlu0 27
        %6363 = vperm.xlu0 %6362, %v4358
        %v6364 = vpop.permute.xlu0 %6363
        %6366 = vset.pattern.permute.xlu0 27
        %6367 = vperm.xlu0 %6366, %v4359
        %v6368 = vpop.permute.xlu0 %6367
        %6370 = vset.pattern.permute.xlu0 27
        %6371 = vperm.xlu0 %6370, %v4360
        %v6372 = vpop.permute.xlu0 %6371
        %6374 = vset.pattern.permute.xlu0 27
        %6375 = vperm.xlu0 %6374, %v4361
        %v6376 = vpop.permute.xlu0 %6375
        %6378 = vset.pattern.permute.xlu0 27
        %6379 = vperm.xlu0 %6378, %v4362
        %v6380 = vpop.permute.xlu0 %6379
        %v6382 = vlaneseq
        %v6383 = vshrl.u32 %v6382, 7
        %v6384 = vsub.s32 3, %v6383
        %v6385 = vrot.slane %v4380, %v6384
        %v6386 = vadd.f32 %v6320, %v6385
        %v6387 = vadd.f32 %v6324, %v6385
        %v6388 = vadd.f32 %v6328, %v6385
        %v6389 = vadd.f32 %v6332, %v6385
        %v6390 = vadd.f32 %v6336, %v6385
        %v6391 = vadd.f32 %v6340, %v6385
        %v6392 = vadd.f32 %v6344, %v6385
        %v6393 = vadd.f32 %v6348, %v6385
        %v6394 = vadd.f32 %v6352, %v6385
        %v6395 = vadd.f32 %v6356, %v6385
        %v6396 = vadd.f32 %v6360, %v6385
        %v6397 = vadd.f32 %v6364, %v6385
        %v6398 = vadd.f32 %v6368, %v6385
        %v6399 = vadd.f32 %v6372, %v6385
        %v6400 = vadd.f32 %v6376, %v6385
        %v6401 = vadd.f32 %v6380, %v6385
        %s6402 = sld [smem:[#allocation6 + $0x83]]
        %v6403 = vmul.f32 %v6386, 0.2
        %v6404 = vmul.f32 %v6387, 0.2
        %v6405 = vmul.f32 %v6388, 0.2
        %v6406 = vmul.f32 %v6389, 0.2
        %v6407 = vmul.f32 %v6390, 0.2
        %v6408 = vmul.f32 %v6391, 0.2
        %v6409 = vmul.f32 %v6392, 0.2
        %v6410 = vmul.f32 %v6393, 0.2
        %v6411 = vmul.f32 %v6394, 0.2
        %v6412 = vmul.f32 %v6395, 0.2
        %v6413 = vmul.f32 %v6396, 0.2
        %v6414 = vmul.f32 %v6397, 0.2
        %v6415 = vmul.f32 %v6398, 0.2
        %v6416 = vmul.f32 %v6399, 0.2
        %v6417 = vmul.f32 %v6400, 0.2
        %v6418 = vmul.f32 %v6401, 0.2
        %v6419 = vmax.f32 %v6386, %v6403
        %v6420 = vmax.f32 %v6387, %v6404
        %v6421 = vmax.f32 %v6388, %v6405
        %v6422 = vmax.f32 %v6389, %v6406
        %v6423 = vmax.f32 %v6390, %v6407
        %v6424 = vmax.f32 %v6391, %v6408
        %v6425 = vmax.f32 %v6392, %v6409
        %v6426 = vmax.f32 %v6393, %v6410
        %v6427 = vmax.f32 %v6394, %v6411
        %v6428 = vmax.f32 %v6395, %v6412
        %v6429 = vmax.f32 %v6396, %v6413
        %v6430 = vmax.f32 %v6397, %v6414
        %v6431 = vmax.f32 %v6398, %v6415
        %v6432 = vmax.f32 %v6399, %v6416
        %v6433 = vmax.f32 %v6400, %v6417
        %v6434 = vmax.f32 %v6401, %v6418
        %v6435 = vstv %s6402
        %v6436 = vmul.f32 %v6435, %v6419
        %v6437 = vmul.f32 %v6435, %v6420
        %v6438 = vmul.f32 %v6435, %v6421
        %v6439 = vmul.f32 %v6435, %v6422
        %v6440 = vmul.f32 %v6435, %v6423
        %v6441 = vmul.f32 %v6435, %v6424
        %v6442 = vmul.f32 %v6435, %v6425
        %v6443 = vmul.f32 %v6435, %v6426
        %v6444 = vmul.f32 %v6435, %v6427
        %v6445 = vmul.f32 %v6435, %v6428
        %v6446 = vmul.f32 %v6435, %v6429
        %v6447 = vmul.f32 %v6435, %v6430
        %v6448 = vmul.f32 %v6435, %v6431
        %v6449 = vmul.f32 %v6435, %v6432
        %v6450 = vmul.f32 %v6435, %v6433
        %v6451 = vmul.f32 %v6435, %v6434
        %6452 = vset.pattern.permute.xlu0 28
        %6453 = vperm.xlu0 %6452, %v4347
        %v6454 = vpop.permute.xlu0 %6453
        %6456 = vset.pattern.permute.xlu0 28
        %6457 = vperm.xlu0 %6456, %v4348
        %v6458 = vpop.permute.xlu0 %6457
        %6460 = vset.pattern.permute.xlu0 28
        %6461 = vperm.xlu0 %6460, %v4349
        %v6462 = vpop.permute.xlu0 %6461
        %6464 = vset.pattern.permute.xlu0 28
        %6465 = vperm.xlu0 %6464, %v4350
        %v6466 = vpop.permute.xlu0 %6465
        %6468 = vset.pattern.permute.xlu0 28
        %6469 = vperm.xlu0 %6468, %v4351
        %v6470 = vpop.permute.xlu0 %6469
        %6472 = vset.pattern.permute.xlu0 28
        %6473 = vperm.xlu0 %6472, %v4352
        %v6474 = vpop.permute.xlu0 %6473
        %6476 = vset.pattern.permute.xlu0 28
        %6477 = vperm.xlu0 %6476, %v4353
        %v6478 = vpop.permute.xlu0 %6477
        %6480 = vset.pattern.permute.xlu0 28
        %6481 = vperm.xlu0 %6480, %v4354
        %v6482 = vpop.permute.xlu0 %6481
        %6484 = vset.pattern.permute.xlu0 28
        %6485 = vperm.xlu0 %6484, %v4355
        %v6486 = vpop.permute.xlu0 %6485
        %6488 = vset.pattern.permute.xlu0 28
        %6489 = vperm.xlu0 %6488, %v4356
        %v6490 = vpop.permute.xlu0 %6489
        %6492 = vset.pattern.permute.xlu0 28
        %6493 = vperm.xlu0 %6492, %v4357
        %v6494 = vpop.permute.xlu0 %6493
        %6496 = vset.pattern.permute.xlu0 28
        %6497 = vperm.xlu0 %6496, %v4358
        %v6498 = vpop.permute.xlu0 %6497
        %6500 = vset.pattern.permute.xlu0 28
        %6501 = vperm.xlu0 %6500, %v4359
        %v6502 = vpop.permute.xlu0 %6501
        %6504 = vset.pattern.permute.xlu0 28
        %6505 = vperm.xlu0 %6504, %v4360
        %v6506 = vpop.permute.xlu0 %6505
        %6508 = vset.pattern.permute.xlu0 28
        %6509 = vperm.xlu0 %6508, %v4361
        %v6510 = vpop.permute.xlu0 %6509
        %6512 = vset.pattern.permute.xlu0 28
        %6513 = vperm.xlu0 %6512, %v4362
        %v6514 = vpop.permute.xlu0 %6513
        %v6516 = vlaneseq
        %v6517 = vshrl.u32 %v6516, 7
        %v6518 = vsub.s32 4, %v6517
        %v6519 = vrot.slane %v4380, %v6518
        %v6520 = vadd.f32 %v6454, %v6519
        %v6521 = vadd.f32 %v6458, %v6519
        %v6522 = vadd.f32 %v6462, %v6519
        %v6523 = vadd.f32 %v6466, %v6519
        %v6524 = vadd.f32 %v6470, %v6519
        %v6525 = vadd.f32 %v6474, %v6519
        %v6526 = vadd.f32 %v6478, %v6519
        %v6527 = vadd.f32 %v6482, %v6519
        %v6528 = vadd.f32 %v6486, %v6519
        %v6529 = vadd.f32 %v6490, %v6519
        %v6530 = vadd.f32 %v6494, %v6519
        %v6531 = vadd.f32 %v6498, %v6519
        %v6532 = vadd.f32 %v6502, %v6519
        %v6533 = vadd.f32 %v6506, %v6519
        %v6534 = vadd.f32 %v6510, %v6519
        %v6535 = vadd.f32 %v6514, %v6519
        %s6536 = sld [smem:[#allocation6 + $0x84]]
        %v6537 = vmul.f32 %v6520, 0.2
        %v6538 = vmul.f32 %v6521, 0.2
        %v6539 = vmul.f32 %v6522, 0.2
        %v6540 = vmul.f32 %v6523, 0.2
        %v6541 = vmul.f32 %v6524, 0.2
        %v6542 = vmul.f32 %v6525, 0.2
        %v6543 = vmul.f32 %v6526, 0.2
        %v6544 = vmul.f32 %v6527, 0.2
        %v6545 = vmul.f32 %v6528, 0.2
        %v6546 = vmul.f32 %v6529, 0.2
        %v6547 = vmul.f32 %v6530, 0.2
        %v6548 = vmul.f32 %v6531, 0.2
        %v6549 = vmul.f32 %v6532, 0.2
        %v6550 = vmul.f32 %v6533, 0.2
        %v6551 = vmul.f32 %v6534, 0.2
        %v6552 = vmul.f32 %v6535, 0.2
        %v6553 = vmax.f32 %v6520, %v6537
        %v6554 = vmax.f32 %v6521, %v6538
        %v6555 = vmax.f32 %v6522, %v6539
        %v6556 = vmax.f32 %v6523, %v6540
        %v6557 = vmax.f32 %v6524, %v6541
        %v6558 = vmax.f32 %v6525, %v6542
        %v6559 = vmax.f32 %v6526, %v6543
        %v6560 = vmax.f32 %v6527, %v6544
        %v6561 = vmax.f32 %v6528, %v6545
        %v6562 = vmax.f32 %v6529, %v6546
        %v6563 = vmax.f32 %v6530, %v6547
        %v6564 = vmax.f32 %v6531, %v6548
        %v6565 = vmax.f32 %v6532, %v6549
        %v6566 = vmax.f32 %v6533, %v6550
        %v6567 = vmax.f32 %v6534, %v6551
        %v6568 = vmax.f32 %v6535, %v6552
        %v6569 = vstv %s6536
        %v6570 = vmul.f32 %v6569, %v6553
        %v6571 = vmul.f32 %v6569, %v6554
        %v6572 = vmul.f32 %v6569, %v6555
        %v6573 = vmul.f32 %v6569, %v6556
        %v6574 = vmul.f32 %v6569, %v6557
        %v6575 = vmul.f32 %v6569, %v6558
        %v6576 = vmul.f32 %v6569, %v6559
        %v6577 = vmul.f32 %v6569, %v6560
        %v6578 = vmul.f32 %v6569, %v6561
        %v6579 = vmul.f32 %v6569, %v6562
        %v6580 = vmul.f32 %v6569, %v6563
        %v6581 = vmul.f32 %v6569, %v6564
        %v6582 = vmul.f32 %v6569, %v6565
        %v6583 = vmul.f32 %v6569, %v6566
        %v6584 = vmul.f32 %v6569, %v6567
        %v6585 = vmul.f32 %v6569, %v6568
        %6586 = vset.pattern.permute.xlu0 29
        %6587 = vperm.xlu0 %6586, %v4347
        %v6588 = vpop.permute.xlu0 %6587
        %6590 = vset.pattern.permute.xlu0 29
        %6591 = vperm.xlu0 %6590, %v4348
        %v6592 = vpop.permute.xlu0 %6591
        %6594 = vset.pattern.permute.xlu0 29
        %6595 = vperm.xlu0 %6594, %v4349
        %v6596 = vpop.permute.xlu0 %6595
        %6598 = vset.pattern.permute.xlu0 29
        %6599 = vperm.xlu0 %6598, %v4350
        %v6600 = vpop.permute.xlu0 %6599
        %6602 = vset.pattern.permute.xlu0 29
        %6603 = vperm.xlu0 %6602, %v4351
        %v6604 = vpop.permute.xlu0 %6603
        %6606 = vset.pattern.permute.xlu0 29
        %6607 = vperm.xlu0 %6606, %v4352
        %v6608 = vpop.permute.xlu0 %6607
        %6610 = vset.pattern.permute.xlu0 29
        %6611 = vperm.xlu0 %6610, %v4353
        %v6612 = vpop.permute.xlu0 %6611
        %6614 = vset.pattern.permute.xlu0 29
        %6615 = vperm.xlu0 %6614, %v4354
        %v6616 = vpop.permute.xlu0 %6615
        %6618 = vset.pattern.permute.xlu0 29
        %6619 = vperm.xlu0 %6618, %v4355
        %v6620 = vpop.permute.xlu0 %6619
        %6622 = vset.pattern.permute.xlu0 29
        %6623 = vperm.xlu0 %6622, %v4356
        %v6624 = vpop.permute.xlu0 %6623
        %6626 = vset.pattern.permute.xlu0 29
        %6627 = vperm.xlu0 %6626, %v4357
        %v6628 = vpop.permute.xlu0 %6627
        %6630 = vset.pattern.permute.xlu0 29
        %6631 = vperm.xlu0 %6630, %v4358
        %v6632 = vpop.permute.xlu0 %6631
        %6634 = vset.pattern.permute.xlu0 29
        %6635 = vperm.xlu0 %6634, %v4359
        %v6636 = vpop.permute.xlu0 %6635
        %6638 = vset.pattern.permute.xlu0 29
        %6639 = vperm.xlu0 %6638, %v4360
        %v6640 = vpop.permute.xlu0 %6639
        %6642 = vset.pattern.permute.xlu0 29
        %6643 = vperm.xlu0 %6642, %v4361
        %v6644 = vpop.permute.xlu0 %6643
        %6646 = vset.pattern.permute.xlu0 29
        %6647 = vperm.xlu0 %6646, %v4362
        %v6648 = vpop.permute.xlu0 %6647
        %v6650 = vlaneseq
        %v6651 = vshrl.u32 %v6650, 7
        %v6652 = vsub.s32 5, %v6651
        %v6653 = vrot.slane %v4380, %v6652
        %v6654 = vadd.f32 %v6588, %v6653
        %v6655 = vadd.f32 %v6592, %v6653
        %v6656 = vadd.f32 %v6596, %v6653
        %v6657 = vadd.f32 %v6600, %v6653
        %v6658 = vadd.f32 %v6604, %v6653
        %v6659 = vadd.f32 %v6608, %v6653
        %v6660 = vadd.f32 %v6612, %v6653
        %v6661 = vadd.f32 %v6616, %v6653
        %v6662 = vadd.f32 %v6620, %v6653
        %v6663 = vadd.f32 %v6624, %v6653
        %v6664 = vadd.f32 %v6628, %v6653
        %v6665 = vadd.f32 %v6632, %v6653
        %v6666 = vadd.f32 %v6636, %v6653
        %v6667 = vadd.f32 %v6640, %v6653
        %v6668 = vadd.f32 %v6644, %v6653
        %v6669 = vadd.f32 %v6648, %v6653
        %s6670 = sld [smem:[#allocation6 + $0x85]]
        %v6671 = vmul.f32 %v6654, 0.2
        %v6672 = vmul.f32 %v6655, 0.2
        %v6673 = vmul.f32 %v6656, 0.2
        %v6674 = vmul.f32 %v6657, 0.2
        %v6675 = vmul.f32 %v6658, 0.2
        %v6676 = vmul.f32 %v6659, 0.2
        %v6677 = vmul.f32 %v6660, 0.2
        %v6678 = vmul.f32 %v6661, 0.2
        %v6679 = vmul.f32 %v6662, 0.2
        %v6680 = vmul.f32 %v6663, 0.2
        %v6681 = vmul.f32 %v6664, 0.2
        %v6682 = vmul.f32 %v6665, 0.2
        %v6683 = vmul.f32 %v6666, 0.2
        %v6684 = vmul.f32 %v6667, 0.2
        %v6685 = vmul.f32 %v6668, 0.2
        %v6686 = vmul.f32 %v6669, 0.2
        %v6687 = vmax.f32 %v6654, %v6671
        %v6688 = vmax.f32 %v6655, %v6672
        %v6689 = vmax.f32 %v6656, %v6673
        %v6690 = vmax.f32 %v6657, %v6674
        %v6691 = vmax.f32 %v6658, %v6675
        %v6692 = vmax.f32 %v6659, %v6676
        %v6693 = vmax.f32 %v6660, %v6677
        %v6694 = vmax.f32 %v6661, %v6678
        %v6695 = vmax.f32 %v6662, %v6679
        %v6696 = vmax.f32 %v6663, %v6680
        %v6697 = vmax.f32 %v6664, %v6681
        %v6698 = vmax.f32 %v6665, %v6682
        %v6699 = vmax.f32 %v6666, %v6683
        %v6700 = vmax.f32 %v6667, %v6684
        %v6701 = vmax.f32 %v6668, %v6685
        %v6702 = vmax.f32 %v6669, %v6686
        %v6703 = vstv %s6670
        %v6704 = vmul.f32 %v6703, %v6687
        %v6705 = vmul.f32 %v6703, %v6688
        %v6706 = vmul.f32 %v6703, %v6689
        %v6707 = vmul.f32 %v6703, %v6690
        %v6708 = vmul.f32 %v6703, %v6691
        %v6709 = vmul.f32 %v6703, %v6692
        %v6710 = vmul.f32 %v6703, %v6693
        %v6711 = vmul.f32 %v6703, %v6694
        %v6712 = vmul.f32 %v6703, %v6695
        %v6713 = vmul.f32 %v6703, %v6696
        %v6714 = vmul.f32 %v6703, %v6697
        %v6715 = vmul.f32 %v6703, %v6698
        %v6716 = vmul.f32 %v6703, %v6699
        %v6717 = vmul.f32 %v6703, %v6700
        %v6718 = vmul.f32 %v6703, %v6701
        %v6719 = vmul.f32 %v6703, %v6702
        %6720 = vset.pattern.permute.xlu0 30
        %6721 = vperm.xlu0 %6720, %v4347
        %v6722 = vpop.permute.xlu0 %6721
        %6724 = vset.pattern.permute.xlu0 30
        %6725 = vperm.xlu0 %6724, %v4348
        %v6726 = vpop.permute.xlu0 %6725
        %6728 = vset.pattern.permute.xlu0 30
        %6729 = vperm.xlu0 %6728, %v4349
        %v6730 = vpop.permute.xlu0 %6729
        %6732 = vset.pattern.permute.xlu0 30
        %6733 = vperm.xlu0 %6732, %v4350
        %v6734 = vpop.permute.xlu0 %6733
        %6736 = vset.pattern.permute.xlu0 30
        %6737 = vperm.xlu0 %6736, %v4351
        %v6738 = vpop.permute.xlu0 %6737
        %6740 = vset.pattern.permute.xlu0 30
        %6741 = vperm.xlu0 %6740, %v4352
        %v6742 = vpop.permute.xlu0 %6741
        %6744 = vset.pattern.permute.xlu0 30
        %6745 = vperm.xlu0 %6744, %v4353
        %v6746 = vpop.permute.xlu0 %6745
        %6748 = vset.pattern.permute.xlu0 30
        %6749 = vperm.xlu0 %6748, %v4354
        %v6750 = vpop.permute.xlu0 %6749
        %6752 = vset.pattern.permute.xlu0 30
        %6753 = vperm.xlu0 %6752, %v4355
        %v6754 = vpop.permute.xlu0 %6753
        %6756 = vset.pattern.permute.xlu0 30
        %6757 = vperm.xlu0 %6756, %v4356
        %v6758 = vpop.permute.xlu0 %6757
        %6760 = vset.pattern.permute.xlu0 30
        %6761 = vperm.xlu0 %6760, %v4357
        %v6762 = vpop.permute.xlu0 %6761
        %6764 = vset.pattern.permute.xlu0 30
        %6765 = vperm.xlu0 %6764, %v4358
        %v6766 = vpop.permute.xlu0 %6765
        %6768 = vset.pattern.permute.xlu0 30
        %6769 = vperm.xlu0 %6768, %v4359
        %v6770 = vpop.permute.xlu0 %6769
        %6772 = vset.pattern.permute.xlu0 30
        %6773 = vperm.xlu0 %6772, %v4360
        %v6774 = vpop.permute.xlu0 %6773
        %6776 = vset.pattern.permute.xlu0 30
        %6777 = vperm.xlu0 %6776, %v4361
        %v6778 = vpop.permute.xlu0 %6777
        %6780 = vset.pattern.permute.xlu0 30
        %6781 = vperm.xlu0 %6780, %v4362
        %v6782 = vpop.permute.xlu0 %6781
        %v6784 = vlaneseq
        %v6785 = vshrl.u32 %v6784, 7
        %v6786 = vsub.s32 6, %v6785
        %v6787 = vrot.slane %v4380, %v6786
        %v6788 = vadd.f32 %v6722, %v6787
        %v6789 = vadd.f32 %v6726, %v6787
        %v6790 = vadd.f32 %v6730, %v6787
        %v6791 = vadd.f32 %v6734, %v6787
        %v6792 = vadd.f32 %v6738, %v6787
        %v6793 = vadd.f32 %v6742, %v6787
        %v6794 = vadd.f32 %v6746, %v6787
        %v6795 = vadd.f32 %v6750, %v6787
        %v6796 = vadd.f32 %v6754, %v6787
        %v6797 = vadd.f32 %v6758, %v6787
        %v6798 = vadd.f32 %v6762, %v6787
        %v6799 = vadd.f32 %v6766, %v6787
        %v6800 = vadd.f32 %v6770, %v6787
        %v6801 = vadd.f32 %v6774, %v6787
        %v6802 = vadd.f32 %v6778, %v6787
        %v6803 = vadd.f32 %v6782, %v6787
        %s6804 = sld [smem:[#allocation6 + $0x86]]
        %v6805 = vmul.f32 %v6788, 0.2
        %v6806 = vmul.f32 %v6789, 0.2
        %v6807 = vmul.f32 %v6790, 0.2
        %v6808 = vmul.f32 %v6791, 0.2
        %v6809 = vmul.f32 %v6792, 0.2
        %v6810 = vmul.f32 %v6793, 0.2
        %v6811 = vmul.f32 %v6794, 0.2
        %v6812 = vmul.f32 %v6795, 0.2
        %v6813 = vmul.f32 %v6796, 0.2
        %v6814 = vmul.f32 %v6797, 0.2
        %v6815 = vmul.f32 %v6798, 0.2
        %v6816 = vmul.f32 %v6799, 0.2
        %v6817 = vmul.f32 %v6800, 0.2
        %v6818 = vmul.f32 %v6801, 0.2
        %v6819 = vmul.f32 %v6802, 0.2
        %v6820 = vmul.f32 %v6803, 0.2
        %v6821 = vmax.f32 %v6788, %v6805
        %v6822 = vmax.f32 %v6789, %v6806
        %v6823 = vmax.f32 %v6790, %v6807
        %v6824 = vmax.f32 %v6791, %v6808
        %v6825 = vmax.f32 %v6792, %v6809
        %v6826 = vmax.f32 %v6793, %v6810
        %v6827 = vmax.f32 %v6794, %v6811
        %v6828 = vmax.f32 %v6795, %v6812
        %v6829 = vmax.f32 %v6796, %v6813
        %v6830 = vmax.f32 %v6797, %v6814
        %v6831 = vmax.f32 %v6798, %v6815
        %v6832 = vmax.f32 %v6799, %v6816
        %v6833 = vmax.f32 %v6800, %v6817
        %v6834 = vmax.f32 %v6801, %v6818
        %v6835 = vmax.f32 %v6802, %v6819
        %v6836 = vmax.f32 %v6803, %v6820
        %v6837 = vstv %s6804
        %v6838 = vmul.f32 %v6837, %v6821
        %v6839 = vmul.f32 %v6837, %v6822
        %v6840 = vmul.f32 %v6837, %v6823
        %v6841 = vmul.f32 %v6837, %v6824
        %v6842 = vmul.f32 %v6837, %v6825
        %v6843 = vmul.f32 %v6837, %v6826
        %v6844 = vmul.f32 %v6837, %v6827
        %v6845 = vmul.f32 %v6837, %v6828
        %v6846 = vmul.f32 %v6837, %v6829
        %v6847 = vmul.f32 %v6837, %v6830
        %v6848 = vmul.f32 %v6837, %v6831
        %v6849 = vmul.f32 %v6837, %v6832
        %v6850 = vmul.f32 %v6837, %v6833
        %v6851 = vmul.f32 %v6837, %v6834
        %v6852 = vmul.f32 %v6837, %v6835
        %v6853 = vmul.f32 %v6837, %v6836
        %6854 = vset.pattern.permute.xlu0 31
        %6855 = vperm.xlu0 %6854, %v4347
        %v6856 = vpop.permute.xlu0 %6855
        %6858 = vset.pattern.permute.xlu0 31
        %6859 = vperm.xlu0 %6858, %v4348
        %v6860 = vpop.permute.xlu0 %6859
        %6862 = vset.pattern.permute.xlu0 31
        %6863 = vperm.xlu0 %6862, %v4349
        %v6864 = vpop.permute.xlu0 %6863
        %6866 = vset.pattern.permute.xlu0 31
        %6867 = vperm.xlu0 %6866, %v4350
        %v6868 = vpop.permute.xlu0 %6867
        %6870 = vset.pattern.permute.xlu0 31
        %6871 = vperm.xlu0 %6870, %v4351
        %v6872 = vpop.permute.xlu0 %6871
        %6874 = vset.pattern.permute.xlu0 31
        %6875 = vperm.xlu0 %6874, %v4352
        %v6876 = vpop.permute.xlu0 %6875
        %6878 = vset.pattern.permute.xlu0 31
        %6879 = vperm.xlu0 %6878, %v4353
        %v6880 = vpop.permute.xlu0 %6879
        %6882 = vset.pattern.permute.xlu0 31
        %6883 = vperm.xlu0 %6882, %v4354
        %v6884 = vpop.permute.xlu0 %6883
        %6886 = vset.pattern.permute.xlu0 31
        %6887 = vperm.xlu0 %6886, %v4355
        %v6888 = vpop.permute.xlu0 %6887
        %6890 = vset.pattern.permute.xlu0 31
        %6891 = vperm.xlu0 %6890, %v4356
        %v6892 = vpop.permute.xlu0 %6891
        %6894 = vset.pattern.permute.xlu0 31
        %6895 = vperm.xlu0 %6894, %v4357
        %v6896 = vpop.permute.xlu0 %6895
        %6898 = vset.pattern.permute.xlu0 31
        %6899 = vperm.xlu0 %6898, %v4358
        %v6900 = vpop.permute.xlu0 %6899
        %6902 = vset.pattern.permute.xlu0 31
        %6903 = vperm.xlu0 %6902, %v4359
        %v6904 = vpop.permute.xlu0 %6903
        %6906 = vset.pattern.permute.xlu0 31
        %6907 = vperm.xlu0 %6906, %v4360
        %v6908 = vpop.permute.xlu0 %6907
        %6910 = vset.pattern.permute.xlu0 31
        %6911 = vperm.xlu0 %6910, %v4361
        %v6912 = vpop.permute.xlu0 %6911
        %6914 = vset.pattern.permute.xlu0 31
        %6915 = vperm.xlu0 %6914, %v4362
        %v6916 = vpop.permute.xlu0 %6915
        %v6918 = vlaneseq
        %v6919 = vshrl.u32 %v6918, 7
        %v6920 = vsub.s32 7, %v6919
        %v6921 = vrot.slane %v4380, %v6920
        %v6922 = vadd.f32 %v6856, %v6921
        %v6923 = vadd.f32 %v6860, %v6921
        %v6924 = vadd.f32 %v6864, %v6921
        %v6925 = vadd.f32 %v6868, %v6921
        %v6926 = vadd.f32 %v6872, %v6921
        %v6927 = vadd.f32 %v6876, %v6921
        %v6928 = vadd.f32 %v6880, %v6921
        %v6929 = vadd.f32 %v6884, %v6921
        %v6930 = vadd.f32 %v6888, %v6921
        %v6931 = vadd.f32 %v6892, %v6921
        %v6932 = vadd.f32 %v6896, %v6921
        %v6933 = vadd.f32 %v6900, %v6921
        %v6934 = vadd.f32 %v6904, %v6921
        %v6935 = vadd.f32 %v6908, %v6921
        %v6936 = vadd.f32 %v6912, %v6921
        %v6937 = vadd.f32 %v6916, %v6921
        %s6938 = sld [smem:[#allocation6 + $0x87]]
        %v6939 = vmul.f32 %v6922, 0.2
        %v6940 = vmul.f32 %v6923, 0.2
        %v6941 = vmul.f32 %v6924, 0.2
        %v6942 = vmul.f32 %v6925, 0.2
        %v6943 = vmul.f32 %v6926, 0.2
        %v6944 = vmul.f32 %v6927, 0.2
        %v6945 = vmul.f32 %v6928, 0.2
        %v6946 = vmul.f32 %v6929, 0.2
        %v6947 = vmul.f32 %v6930, 0.2
        %v6948 = vmul.f32 %v6931, 0.2
        %v6949 = vmul.f32 %v6932, 0.2
        %v6950 = vmul.f32 %v6933, 0.2
        %v6951 = vmul.f32 %v6934, 0.2
        %v6952 = vmul.f32 %v6935, 0.2
        %v6953 = vmul.f32 %v6936, 0.2
        %v6954 = vmul.f32 %v6937, 0.2
        %v6955 = vmax.f32 %v6922, %v6939
        %v6956 = vmax.f32 %v6923, %v6940
        %v6957 = vmax.f32 %v6924, %v6941
        %v6958 = vmax.f32 %v6925, %v6942
        %v6959 = vmax.f32 %v6926, %v6943
        %v6960 = vmax.f32 %v6927, %v6944
        %v6961 = vmax.f32 %v6928, %v6945
        %v6962 = vmax.f32 %v6929, %v6946
        %v6963 = vmax.f32 %v6930, %v6947
        %v6964 = vmax.f32 %v6931, %v6948
        %v6965 = vmax.f32 %v6932, %v6949
        %v6966 = vmax.f32 %v6933, %v6950
        %v6967 = vmax.f32 %v6934, %v6951
        %v6968 = vmax.f32 %v6935, %v6952
        %v6969 = vmax.f32 %v6936, %v6953
        %v6970 = vmax.f32 %v6937, %v6954
        %v6971 = vstv %s6938
        %v6972 = vmul.f32 %v6971, %v6955
        %v6973 = vmul.f32 %v6971, %v6956
        %v6974 = vmul.f32 %v6971, %v6957
        %v6975 = vmul.f32 %v6971, %v6958
        %v6976 = vmul.f32 %v6971, %v6959
        %v6977 = vmul.f32 %v6971, %v6960
        %v6978 = vmul.f32 %v6971, %v6961
        %v6979 = vmul.f32 %v6971, %v6962
        %v6980 = vmul.f32 %v6971, %v6963
        %v6981 = vmul.f32 %v6971, %v6964
        %v6982 = vmul.f32 %v6971, %v6965
        %v6983 = vmul.f32 %v6971, %v6966
        %v6984 = vmul.f32 %v6971, %v6967
        %v6985 = vmul.f32 %v6971, %v6968
        %v6986 = vmul.f32 %v6971, %v6969
        %v6987 = vmul.f32 %v6971, %v6970
        %v6988 = vadd.f32 %v6034, %v6168
        %v6989 = vadd.f32 %v6035, %v6169
        %v6990 = vadd.f32 %v6036, %v6170
        %v6991 = vadd.f32 %v6037, %v6171
        %v6992 = vadd.f32 %v6038, %v6172
        %v6993 = vadd.f32 %v6039, %v6173
        %v6994 = vadd.f32 %v6040, %v6174
        %v6995 = vadd.f32 %v6041, %v6175
        %v6996 = vadd.f32 %v6042, %v6176
        %v6997 = vadd.f32 %v6043, %v6177
        %v6998 = vadd.f32 %v6044, %v6178
        %v6999 = vadd.f32 %v6045, %v6179
        %v7000 = vadd.f32 %v6046, %v6180
        %v7001 = vadd.f32 %v6047, %v6181
        %v7002 = vadd.f32 %v6048, %v6182
        %v7003 = vadd.f32 %v6049, %v6183
        %v7004 = vadd.f32 %v6302, %v6436
        %v7005 = vadd.f32 %v6303, %v6437
        %v7006 = vadd.f32 %v6304, %v6438
        %v7007 = vadd.f32 %v6305, %v6439
        %v7008 = vadd.f32 %v6306, %v6440
        %v7009 = vadd.f32 %v6307, %v6441
        %v7010 = vadd.f32 %v6308, %v6442
        %v7011 = vadd.f32 %v6309, %v6443
        %v7012 = vadd.f32 %v6310, %v6444
        %v7013 = vadd.f32 %v6311, %v6445
        %v7014 = vadd.f32 %v6312, %v6446
        %v7015 = vadd.f32 %v6313, %v6447
        %v7016 = vadd.f32 %v6314, %v6448
        %v7017 = vadd.f32 %v6315, %v6449
        %v7018 = vadd.f32 %v6316, %v6450
        %v7019 = vadd.f32 %v6317, %v6451
        %v7020 = vadd.f32 %v6570, %v6704
        %v7021 = vadd.f32 %v6571, %v6705
        %v7022 = vadd.f32 %v6572, %v6706
        %v7023 = vadd.f32 %v6573, %v6707
        %v7024 = vadd.f32 %v6574, %v6708
        %v7025 = vadd.f32 %v6575, %v6709
        %v7026 = vadd.f32 %v6576, %v6710
        %v7027 = vadd.f32 %v6577, %v6711
        %v7028 = vadd.f32 %v6578, %v6712
        %v7029 = vadd.f32 %v6579, %v6713
        %v7030 = vadd.f32 %v6580, %v6714
        %v7031 = vadd.f32 %v6581, %v6715
        %v7032 = vadd.f32 %v6582, %v6716
        %v7033 = vadd.f32 %v6583, %v6717
        %v7034 = vadd.f32 %v6584, %v6718
        %v7035 = vadd.f32 %v6585, %v6719
        %v7036 = vadd.f32 %v6838, %v6972
        %v7037 = vadd.f32 %v6839, %v6973
        %v7038 = vadd.f32 %v6840, %v6974
        %v7039 = vadd.f32 %v6841, %v6975
        %v7040 = vadd.f32 %v6842, %v6976
        %v7041 = vadd.f32 %v6843, %v6977
        %v7042 = vadd.f32 %v6844, %v6978
        %v7043 = vadd.f32 %v6845, %v6979
        %v7044 = vadd.f32 %v6846, %v6980
        %v7045 = vadd.f32 %v6847, %v6981
        %v7046 = vadd.f32 %v6848, %v6982
        %v7047 = vadd.f32 %v6849, %v6983
        %v7048 = vadd.f32 %v6850, %v6984
        %v7049 = vadd.f32 %v6851, %v6985
        %v7050 = vadd.f32 %v6852, %v6986
        %v7051 = vadd.f32 %v6853, %v6987
        %v7052 = vadd.f32 %v6988, %v7004
        %v7053 = vadd.f32 %v6989, %v7005
        %v7054 = vadd.f32 %v6990, %v7006
        %v7055 = vadd.f32 %v6991, %v7007
        %v7056 = vadd.f32 %v6992, %v7008
        %v7057 = vadd.f32 %v6993, %v7009
        %v7058 = vadd.f32 %v6994, %v7010
        %v7059 = vadd.f32 %v6995, %v7011
        %v7060 = vadd.f32 %v6996, %v7012
        %v7061 = vadd.f32 %v6997, %v7013
        %v7062 = vadd.f32 %v6998, %v7014
        %v7063 = vadd.f32 %v6999, %v7015
        %v7064 = vadd.f32 %v7000, %v7016
        %v7065 = vadd.f32 %v7001, %v7017
        %v7066 = vadd.f32 %v7002, %v7018
        %v7067 = vadd.f32 %v7003, %v7019
        %v7068 = vadd.f32 %v7020, %v7036
        %v7069 = vadd.f32 %v7021, %v7037
        %v7070 = vadd.f32 %v7022, %v7038
        %v7071 = vadd.f32 %v7023, %v7039
        %v7072 = vadd.f32 %v7024, %v7040
        %v7073 = vadd.f32 %v7025, %v7041
        %v7074 = vadd.f32 %v7026, %v7042
        %v7075 = vadd.f32 %v7027, %v7043
        %v7076 = vadd.f32 %v7028, %v7044
        %v7077 = vadd.f32 %v7029, %v7045
        %v7078 = vadd.f32 %v7030, %v7046
        %v7079 = vadd.f32 %v7031, %v7047
        %v7080 = vadd.f32 %v7032, %v7048
        %v7081 = vadd.f32 %v7033, %v7049
        %v7082 = vadd.f32 %v7034, %v7050
        %v7083 = vadd.f32 %v7035, %v7051
        %v7084 = vadd.f32 %v7052, %v7068
        %v7085 = vadd.f32 %v7053, %v7069
        %v7086 = vadd.f32 %v7054, %v7070
        %v7087 = vadd.f32 %v7055, %v7071
        %v7088 = vadd.f32 %v7056, %v7072
        %v7089 = vadd.f32 %v7057, %v7073
        %v7090 = vadd.f32 %v7058, %v7074
        %v7091 = vadd.f32 %v7059, %v7075
        %v7092 = vadd.f32 %v7060, %v7076
        %v7093 = vadd.f32 %v7061, %v7077
        %v7094 = vadd.f32 %v7062, %v7078
        %v7095 = vadd.f32 %v7063, %v7079
        %v7096 = vadd.f32 %v7064, %v7080
        %v7097 = vadd.f32 %v7065, %v7081
        %v7098 = vadd.f32 %v7066, %v7082
        %v7099 = vadd.f32 %v7067, %v7083
        %v7100 = vadd.f32 %v7084, %v550
        %v7101 = vadd.f32 %v7085, %v551
        %v7102 = vadd.f32 %v7086, %v552
        %v7103 = vadd.f32 %v7087, %v553
        %v7104 = vadd.f32 %v7088, %v554
        %v7105 = vadd.f32 %v7089, %v555
        %v7106 = vadd.f32 %v7090, %v556
        %v7107 = vadd.f32 %v7091, %v557
        %v7108 = vadd.f32 %v7092, %v558
        %v7109 = vadd.f32 %v7093, %v559
        %v7110 = vadd.f32 %v7094, %v560
        %v7111 = vadd.f32 %v7095, %v561
        %v7112 = vadd.f32 %v7096, %v562
        %v7113 = vadd.f32 %v7097, %v563
        %v7114 = vadd.f32 %v7098, %v564
        %v7115 = vadd.f32 %v7099, %v565
        %7116 = vmax.xlane.f32.xlu0 %v7100
        %v7117 = vpop.xlane.xlu0 %7116
        %7118 = vmax.xlane.f32.xlu0 %v7101
        %v7119 = vpop.xlane.xlu0 %7118
        %7120 = vmax.xlane.f32.xlu0 %v7102
        %v7121 = vpop.xlane.xlu0 %7120
        %7122 = vmax.xlane.f32.xlu0 %v7103
        %v7123 = vpop.xlane.xlu0 %7122
        %7124 = vmax.xlane.f32.xlu0 %v7104
        %v7125 = vpop.xlane.xlu0 %7124
        %7126 = vmax.xlane.f32.xlu0 %v7105
        %v7127 = vpop.xlane.xlu0 %7126
        %7128 = vmax.xlane.f32.xlu0 %v7106
        %v7129 = vpop.xlane.xlu0 %7128
        %7130 = vmax.xlane.f32.xlu0 %v7107
        %v7131 = vpop.xlane.xlu0 %7130
        %7132 = vmax.xlane.f32.xlu0 %v7108
        %v7133 = vpop.xlane.xlu0 %7132
        %7134 = vmax.xlane.f32.xlu0 %v7109
        %v7135 = vpop.xlane.xlu0 %7134
        %7136 = vmax.xlane.f32.xlu0 %v7110
        %v7137 = vpop.xlane.xlu0 %7136
        %7138 = vmax.xlane.f32.xlu0 %v7111
        %v7139 = vpop.xlane.xlu0 %7138
        %7140 = vmax.xlane.f32.xlu0 %v7112
        %v7141 = vpop.xlane.xlu0 %7140
        %7142 = vmax.xlane.f32.xlu0 %v7113
        %v7143 = vpop.xlane.xlu0 %7142
        %7144 = vmax.xlane.f32.xlu0 %v7114
        %v7145 = vpop.xlane.xlu0 %7144
        %7146 = vmax.xlane.f32.xlu0 %v7115
        %v7147 = vpop.xlane.xlu0 %7146
        %v7148 = vsub.f32 %v7100, %v7117
        %v7149 = vsub.f32 %v7101, %v7119
        %v7150 = vsub.f32 %v7102, %v7121
        %v7151 = vsub.f32 %v7103, %v7123
        %v7152 = vsub.f32 %v7104, %v7125
        %v7153 = vsub.f32 %v7105, %v7127
        %v7154 = vsub.f32 %v7106, %v7129
        %v7155 = vsub.f32 %v7107, %v7131
        %v7156 = vsub.f32 %v7108, %v7133
        %v7157 = vsub.f32 %v7109, %v7135
        %v7158 = vsub.f32 %v7110, %v7137
        %v7159 = vsub.f32 %v7111, %v7139
        %v7160 = vsub.f32 %v7112, %v7141
        %v7161 = vsub.f32 %v7113, %v7143
        %v7162 = vsub.f32 %v7114, %v7145
        %v7163 = vsub.f32 %v7115, %v7147
        %v7164 = vmul.f32 %v7148, 1.442695
        %v7165 = vpow.pop %v7164
        %v7166 = vmul.f32 %v7149, 1.442695
        %v7167 = vpow.pop %v7166
        %v7168 = vmul.f32 %v7150, 1.442695
        %v7169 = vpow.pop %v7168
        %v7170 = vmul.f32 %v7151, 1.442695
        %v7171 = vpow.pop %v7170
        %v7172 = vmul.f32 %v7152, 1.442695
        %v7173 = vpow.pop %v7172
        %v7174 = vmul.f32 %v7153, 1.442695
        %v7175 = vpow.pop %v7174
        %v7176 = vmul.f32 %v7154, 1.442695
        %v7177 = vpow.pop %v7176
        %v7178 = vmul.f32 %v7155, 1.442695
        %v7179 = vpow.pop %v7178
        %v7180 = vmul.f32 %v7156, 1.442695
        %v7181 = vpow.pop %v7180
        %v7182 = vmul.f32 %v7157, 1.442695
        %v7183 = vpow.pop %v7182
        %v7184 = vmul.f32 %v7158, 1.442695
        %v7185 = vpow.pop %v7184
        %v7186 = vmul.f32 %v7159, 1.442695
        %v7187 = vpow.pop %v7186
        %v7188 = vmul.f32 %v7160, 1.442695
        %v7189 = vpow.pop %v7188
        %v7190 = vmul.f32 %v7161, 1.442695
        %v7191 = vpow.pop %v7190
        %v7192 = vmul.f32 %v7162, 1.442695
        %v7193 = vpow.pop %v7192
        %v7194 = vmul.f32 %v7163, 1.442695
        %v7195 = vpow.pop %v7194
        %7196 = vadd.xlane.f32.xlu0 %v7165
        %v7197 = vpop.xlane.xlu0 %7196
        %7198 = vadd.xlane.f32.xlu0 %v7167
        %v7199 = vpop.xlane.xlu0 %7198
        %7200 = vadd.xlane.f32.xlu0 %v7169
        %v7201 = vpop.xlane.xlu0 %7200
        %7202 = vadd.xlane.f32.xlu0 %v7171
        %v7203 = vpop.xlane.xlu0 %7202
        %7204 = vadd.xlane.f32.xlu0 %v7173
        %v7205 = vpop.xlane.xlu0 %7204
        %7206 = vadd.xlane.f32.xlu0 %v7175
        %v7207 = vpop.xlane.xlu0 %7206
        %7208 = vadd.xlane.f32.xlu0 %v7177
        %v7209 = vpop.xlane.xlu0 %7208
        %7210 = vadd.xlane.f32.xlu0 %v7179
        %v7211 = vpop.xlane.xlu0 %7210
        %7212 = vadd.xlane.f32.xlu0 %v7181
        %v7213 = vpop.xlane.xlu0 %7212
        %7214 = vadd.xlane.f32.xlu0 %v7183
        %v7215 = vpop.xlane.xlu0 %7214
        %7216 = vadd.xlane.f32.xlu0 %v7185
        %v7217 = vpop.xlane.xlu0 %7216
        %7218 = vadd.xlane.f32.xlu0 %v7187
        %v7219 = vpop.xlane.xlu0 %7218
        %7220 = vadd.xlane.f32.xlu0 %v7189
        %v7221 = vpop.xlane.xlu0 %7220
        %7222 = vadd.xlane.f32.xlu0 %v7191
        %v7223 = vpop.xlane.xlu0 %7222
        %7224 = vadd.xlane.f32.xlu0 %v7193
        %v7225 = vpop.xlane.xlu0 %7224
        %7226 = vadd.xlane.f32.xlu0 %v7195
        %v7227 = vpop.xlane.xlu0 %7226
        %v7228 = vrcp.pop %v7197
        %v7229 = vrcp.pop %v7199
        %v7230 = vrcp.pop %v7201
        %v7231 = vrcp.pop %v7203
        %v7232 = vrcp.pop %v7205
        %v7233 = vrcp.pop %v7207
        %v7234 = vrcp.pop %v7209
        %v7235 = vrcp.pop %v7211
        %v7236 = vrcp.pop %v7213
        %v7237 = vrcp.pop %v7215
        %v7238 = vrcp.pop %v7217
        %v7239 = vrcp.pop %v7219
        %v7240 = vrcp.pop %v7221
        %v7241 = vrcp.pop %v7223
        %v7242 = vrcp.pop %v7225
        %v7243 = vrcp.pop %v7227
        %v7244 = vpack.c.bf16 %v7167, %v7165
        %v7245 = vpack.c.bf16 %v7171, %v7169
        %v7246 = vpack.c.bf16 %v7175, %v7173
        %v7247 = vpack.c.bf16 %v7179, %v7177
        %v7248 = vpack.c.bf16 %v7183, %v7181
        %v7249 = vpack.c.bf16 %v7187, %v7185
        %v7250 = vpack.c.bf16 %v7191, %v7189
        %v7251 = vpack.c.bf16 %v7195, %v7193
        %7260 = vrot.lane.b32.xlu0 %v5747, 120
        %v7261 = vpop.permute.xlu0 %7260
        %7262 = vrot.lane.b32.xlu0 %v5748, 120
        %v7263 = vpop.permute.xlu0 %7262
        %7264 = vrot.lane.b32.xlu0 %v5749, 120
        %v7265 = vpop.permute.xlu0 %7264
        %7266 = vrot.lane.b32.xlu0 %v5750, 120
        %v7267 = vpop.permute.xlu0 %7266
        %7268 = vrot.lane.b32.xlu0 %v5751, 120
        %v7269 = vpop.permute.xlu0 %7268
        %7270 = vrot.lane.b32.xlu0 %v5752, 120
        %v7271 = vpop.permute.xlu0 %7270
        %7272 = vrot.lane.b32.xlu0 %v5753, 120
        %v7273 = vpop.permute.xlu0 %7272
        %7274 = vrot.lane.b32.xlu0 %v5754, 120
        %v7275 = vpop.permute.xlu0 %7274
        %7284 = vmatprep.subr.bf16.mxu0 0
        %7285 = vmatpush1.bf16.msra.mxu0 %v7261
        %7286 = vmatprep.subr.bf16.mxu0 0
        %7287 = vmatpush1.bf16.msra.mxu0 %v7263
        %7288 = vmatprep.subr.bf16.mxu0 0
        %7289 = vmatpush1.bf16.msra.mxu0 %v7265
        %7290 = vmatprep.subr.bf16.mxu0 0
        %7291 = vmatpush1.bf16.msra.mxu0 %v7267
        %7292 = vmatprep.subr.bf16.mxu0 0
        %7293 = vmatpush1.bf16.msra.mxu0 %v7269
        %7294 = vmatprep.subr.bf16.mxu0 0
        %7295 = vmatpush1.bf16.msra.mxu0 %v7271
        %7296 = vmatprep.subr.bf16.mxu0 0
        %7297 = vmatpush1.bf16.msra.mxu0 %v7273
        %7298 = vmatprep.subr.bf16.mxu0 0
        %7299 = vmatpush1.bf16.msra.mxu0 %v7275
        %7300 = vmatprep.subr.bf16.mxu0 0
        %7301 = vmatpush1.bf16.msra.mxu0 0
        %7302 = vmatprep.subr.bf16.mxu0 0
        %7303 = vmatpush1.bf16.msra.mxu0 0
        %7304 = vmatprep.subr.bf16.mxu0 0
        %7305 = vmatpush1.bf16.msra.mxu0 0
        %7306 = vmatprep.subr.bf16.mxu0 0
        %7307 = vmatpush1.bf16.msra.mxu0 0
        %7308 = vmatprep.subr.bf16.mxu0 0
        %7309 = vmatpush1.bf16.msra.mxu0 0
        %7310 = vmatprep.subr.bf16.mxu0 0
        %7311 = vmatpush1.bf16.msra.mxu0 0
        %7312 = vmatprep.subr.bf16.mxu0 0
        %7313 = vmatpush1.bf16.msra.mxu0 0
        %7314 = vmatprep.subr.bf16.mxu0 0
        %7315 = vmatpush1.bf16.msra.mxu0 0
        %7316 = vmatprep.mubr.bf16.mxu0 0
        %7317 = vmatmul.mubr.bf16.gmra.mrb[0].mxu0 %v7244
        %v7318 = vpop.f32.mrb[0].mxu0
        %v7319 = vadd.f32 0.0, %v7318
        %v7320 = vpop.f32.mrb[0].mxu0
        %v7321 = vpop.f32.mrb[0].mxu0
        %v7322 = vadd.f32 0.0, %v7321
        %v7323 = vpop.f32.mrb[0].mxu0
        %7324 = vmatprep.mubr.bf16.mxu0 0
        %7325 = vmatmul.mubr.bf16.gmra.mrb[0].mxu0 %v7245
        %v7326 = vpop.f32.mrb[0].mxu0
        %v7327 = vadd.f32 0.0, %v7326
        %v7328 = vpop.f32.mrb[0].mxu0
        %v7329 = vpop.f32.mrb[0].mxu0
        %v7330 = vadd.f32 0.0, %v7329
        %v7331 = vpop.f32.mrb[0].mxu0
        %7332 = vmatprep.mubr.bf16.mxu0 0
        %7333 = vmatmul.mubr.bf16.gmra.mrb[0].mxu0 %v7246
        %v7334 = vpop.f32.mrb[0].mxu0
        %v7335 = vadd.f32 0.0, %v7334
        %v7336 = vpop.f32.mrb[0].mxu0
        %v7337 = vpop.f32.mrb[0].mxu0
        %v7338 = vadd.f32 0.0, %v7337
        %v7339 = vpop.f32.mrb[0].mxu0
        %7340 = vmatprep.mubr.bf16.mxu0 0
        %7341 = vmatmul.mubr.bf16.gmra.mrb[0].mxu0 %v7247
        %v7342 = vpop.f32.mrb[0].mxu0
        %v7343 = vadd.f32 0.0, %v7342
        %v7344 = vpop.f32.mrb[0].mxu0
        %v7345 = vpop.f32.mrb[0].mxu0
        %v7346 = vadd.f32 0.0, %v7345
        %v7347 = vpop.f32.mrb[0].mxu0
        %7348 = vmatprep.mubr.bf16.mxu0 0
        %7349 = vmatmul.mubr.bf16.gmra.mrb[0].mxu0 %v7248
        %v7350 = vpop.f32.mrb[0].mxu0
        %v7351 = vadd.f32 0.0, %v7350
        %v7352 = vpop.f32.mrb[0].mxu0
        %v7353 = vpop.f32.mrb[0].mxu0
        %v7354 = vadd.f32 0.0, %v7353
        %v7355 = vpop.f32.mrb[0].mxu0
        %7356 = vmatprep.mubr.bf16.mxu0 0
        %7357 = vmatmul.mubr.bf16.gmra.mrb[0].mxu0 %v7249
        %v7358 = vpop.f32.mrb[0].mxu0
        %v7359 = vadd.f32 0.0, %v7358
        %v7360 = vpop.f32.mrb[0].mxu0
        %v7361 = vpop.f32.mrb[0].mxu0
        %v7362 = vadd.f32 0.0, %v7361
        %v7363 = vpop.f32.mrb[0].mxu0
        %7364 = vmatprep.mubr.bf16.mxu0 0
        %7365 = vmatmul.mubr.bf16.gmra.mrb[0].mxu0 %v7250
        %v7366 = vpop.f32.mrb[0].mxu0
        %v7367 = vadd.f32 0.0, %v7366
        %v7368 = vpop.f32.mrb[0].mxu0
        %v7369 = vpop.f32.mrb[0].mxu0
        %v7370 = vadd.f32 0.0, %v7369
        %v7371 = vpop.f32.mrb[0].mxu0
        %7372 = vmatprep.mubr.bf16.mxu0 0
        %7373 = vmatmul.mubr.bf16.gmra.mrb[0].mxu0 %v7251
        %v7374 = vpop.f32.mrb[0].mxu0
        %v7375 = vadd.f32 0.0, %v7374
        %v7376 = vpop.f32.mrb[0].mxu0
        %v7377 = vpop.f32.mrb[0].mxu0
        %v7378 = vadd.f32 0.0, %v7377
        %v7379 = vpop.f32.mrb[0].mxu0
        %7380 = vdwg.mxu0
        %v7381 = vmul.f32 %v7319, %v7228
        %v7382 = vmul.f32 %v7322, %v7229
        %v7383 = vmul.f32 %v7327, %v7230
        %v7384 = vmul.f32 %v7330, %v7231
        %v7385 = vmul.f32 %v7335, %v7232
        %v7386 = vmul.f32 %v7338, %v7233
        %v7387 = vmul.f32 %v7343, %v7234
        %v7388 = vmul.f32 %v7346, %v7235
        %v7389 = vmul.f32 %v7351, %v7236
        %v7390 = vmul.f32 %v7354, %v7237
        %v7391 = vmul.f32 %v7359, %v7238
        %v7392 = vmul.f32 %v7362, %v7239
        %v7393 = vmul.f32 %v7367, %v7240
        %v7394 = vmul.f32 %v7370, %v7241
        %v7395 = vmul.f32 %v7375, %v7242
        %v7396 = vmul.f32 %v7378, %v7243
        %7397 = vrot.lane.b32.xlu0 %v5873, 120
        %v7398 = vpop.permute.xlu0 %7397
        %v7400 = vadd.f32 %v7381, %v7398
        %v7401 = vadd.f32 %v7382, %v7398
        %v7402 = vadd.f32 %v7383, %v7398
        %v7403 = vadd.f32 %v7384, %v7398
        %v7404 = vadd.f32 %v7385, %v7398
        %v7405 = vadd.f32 %v7386, %v7398
        %v7406 = vadd.f32 %v7387, %v7398
        %v7407 = vadd.f32 %v7388, %v7398
        %v7408 = vadd.f32 %v7389, %v7398
        %v7409 = vadd.f32 %v7390, %v7398
        %v7410 = vadd.f32 %v7391, %v7398
        %v7411 = vadd.f32 %v7392, %v7398
        %v7412 = vadd.f32 %v7393, %v7398
        %v7413 = vadd.f32 %v7394, %v7398
        %v7414 = vadd.f32 %v7395, %v7398
        %v7415 = vadd.f32 %v7396, %v7398
        %v7416 = vmax.f32 %v7400, 0.0
        %v7417 = vmax.f32 %v7401, 0.0
        %v7418 = vmax.f32 %v7402, 0.0
        %v7419 = vmax.f32 %v7403, 0.0
        %v7420 = vmax.f32 %v7404, 0.0
        %v7421 = vmax.f32 %v7405, 0.0
        %v7422 = vmax.f32 %v7406, 0.0
        %v7423 = vmax.f32 %v7407, 0.0
        %v7424 = vmax.f32 %v7408, 0.0
        %v7425 = vmax.f32 %v7409, 0.0
        %v7426 = vmax.f32 %v7410, 0.0
        %v7427 = vmax.f32 %v7411, 0.0
        %v7428 = vmax.f32 %v7412, 0.0
        %v7429 = vmax.f32 %v7413, 0.0
        %v7430 = vmax.f32 %v7414, 0.0
        %v7431 = vmax.f32 %v7415, 0.0
        %v7432 = vpack.c.bf16 %v7417, %v7416
        %v7433 = vpack.c.bf16 %v7419, %v7418
        %v7434 = vpack.c.bf16 %v7421, %v7420
        %v7435 = vpack.c.bf16 %v7423, %v7422
        %v7436 = vpack.c.bf16 %v7425, %v7424
        %v7437 = vpack.c.bf16 %v7427, %v7426
        %v7438 = vpack.c.bf16 %v7429, %v7428
        %v7439 = vpack.c.bf16 %v7431, %v7430
        %v7440 = vld [vmem:[%s12 + $0x4] sm:$0xf]
        %v7442 = vsel %vm3854, %v7432, 0
        %v7445 = vsel %vm3854, %v7433, 0
        %v7448 = vsel %vm3854, %v7434, 0
        %v7451 = vsel %vm3854, %v7435, 0
        %v7454 = vsel %vm3854, %v7436, 0
        %v7457 = vsel %vm3854, %v7437, 0
        %v7460 = vsel %vm3854, %v7438, 0
        %v7463 = vsel %vm3854, %v7439, 0
        %v7466 = vsel %vm3879, %v7440, 0
        %7468 = vmatprep.subr.bf16.mxu0 0
        %7469 = vmatpush1.bf16.msra.mxu0 %v7466
        %7470 = vmatprep.subr.bf16.mxu0 0
        %7471 = vmatpush1.bf16.msra.mxu0 0
        %7472 = vmatprep.subr.bf16.mxu0 0
        %7473 = vmatpush1.bf16.msra.mxu0 0
        %7474 = vmatprep.subr.bf16.mxu0 0
        %7475 = vmatpush1.bf16.msra.mxu0 0
        %7476 = vmatprep.subr.bf16.mxu0 0
        %7477 = vmatpush1.bf16.msra.mxu0 0
        %7478 = vmatprep.subr.bf16.mxu0 0
        %7479 = vmatpush1.bf16.msra.mxu0 0
        %7480 = vmatprep.subr.bf16.mxu0 0
        %7481 = vmatpush1.bf16.msra.mxu0 0
        %7482 = vmatprep.subr.bf16.mxu0 0
        %7483 = vmatpush1.bf16.msra.mxu0 0
        %7484 = vmatprep.subr.bf16.mxu0 0
        %7485 = vmatpush1.bf16.msra.mxu0 0
        %7486 = vmatprep.subr.bf16.mxu0 0
        %7487 = vmatpush1.bf16.msra.mxu0 0
        %7488 = vmatprep.subr.bf16.mxu0 0
        %7489 = vmatpush1.bf16.msra.mxu0 0
        %7490 = vmatprep.subr.bf16.mxu0 0
        %7491 = vmatpush1.bf16.msra.mxu0 0
        %7492 = vmatprep.subr.bf16.mxu0 0
        %7493 = vmatpush1.bf16.msra.mxu0 0
        %7494 = vmatprep.subr.bf16.mxu0 0
        %7495 = vmatpush1.bf16.msra.mxu0 0
        %7496 = vmatprep.subr.bf16.mxu0 0
        %7497 = vmatpush1.bf16.msra.mxu0 0
        %7498 = vmatprep.subr.bf16.mxu0 0
        %7499 = vmatpush1.bf16.msra.mxu0 0
        %7500 = vmatprep.mubr.bf16.mxu0 0
        %7501 = vmatmul.mubr.bf16.gmra.mrb[0].mxu0 %v7442
        %v7502 = vpop.f32.mrb[0].mxu0
        %v7503 = vadd.f32 0.0, %v7502
        %v7504 = vpop.f32.mrb[0].mxu0
        %v7505 = vpop.f32.mrb[0].mxu0
        %v7506 = vadd.f32 0.0, %v7505
        %v7507 = vpop.f32.mrb[0].mxu0
        %7508 = vmatprep.mubr.bf16.mxu0 0
        %7509 = vmatmul.mubr.bf16.gmra.mrb[0].mxu0 %v7445
        %v7510 = vpop.f32.mrb[0].mxu0
        %v7511 = vadd.f32 0.0, %v7510
        %v7512 = vpop.f32.mrb[0].mxu0
        %v7513 = vpop.f32.mrb[0].mxu0
        %v7514 = vadd.f32 0.0, %v7513
        %v7515 = vpop.f32.mrb[0].mxu0
        %7516 = vmatprep.mubr.bf16.mxu0 0
        %7517 = vmatmul.mubr.bf16.gmra.mrb[0].mxu0 %v7448
        %v7518 = vpop.f32.mrb[0].mxu0
        %v7519 = vadd.f32 0.0, %v7518
        %v7520 = vpop.f32.mrb[0].mxu0
        %v7521 = vpop.f32.mrb[0].mxu0
        %v7522 = vadd.f32 0.0, %v7521
        %v7523 = vpop.f32.mrb[0].mxu0
        %7524 = vmatprep.mubr.bf16.mxu0 0
        %7525 = vmatmul.mubr.bf16.gmra.mrb[0].mxu0 %v7451
        %v7526 = vpop.f32.mrb[0].mxu0
        %v7527 = vadd.f32 0.0, %v7526
        %v7528 = vpop.f32.mrb[0].mxu0
        %v7529 = vpop.f32.mrb[0].mxu0
        %v7530 = vadd.f32 0.0, %v7529
        %v7531 = vpop.f32.mrb[0].mxu0
        %7532 = vmatprep.mubr.bf16.mxu0 0
        %7533 = vmatmul.mubr.bf16.gmra.mrb[0].mxu0 %v7454
        %v7534 = vpop.f32.mrb[0].mxu0
        %v7535 = vadd.f32 0.0, %v7534
        %v7536 = vpop.f32.mrb[0].mxu0
        %v7537 = vpop.f32.mrb[0].mxu0
        %v7538 = vadd.f32 0.0, %v7537
        %v7539 = vpop.f32.mrb[0].mxu0
        %7540 = vmatprep.mubr.bf16.mxu0 0
        %7541 = vmatmul.mubr.bf16.gmra.mrb[0].mxu0 %v7457
        %v7542 = vpop.f32.mrb[0].mxu0
        %v7543 = vadd.f32 0.0, %v7542
        %v7544 = vpop.f32.mrb[0].mxu0
        %v7545 = vpop.f32.mrb[0].mxu0
        %v7546 = vadd.f32 0.0, %v7545
        %v7547 = vpop.f32.mrb[0].mxu0
        %7548 = vmatprep.mubr.bf16.mxu0 0
        %7549 = vmatmul.mubr.bf16.gmra.mrb[0].mxu0 %v7460
        %v7550 = vpop.f32.mrb[0].mxu0
        %v7551 = vadd.f32 0.0, %v7550
        %v7552 = vpop.f32.mrb[0].mxu0
        %v7553 = vpop.f32.mrb[0].mxu0
        %v7554 = vadd.f32 0.0, %v7553
        %v7555 = vpop.f32.mrb[0].mxu0
        %7556 = vmatprep.mubr.bf16.mxu0 0
        %7557 = vmatmul.mubr.bf16.gmra.mrb[0].mxu0 %v7463
        %v7558 = vpop.f32.mrb[0].mxu0
        %v7559 = vadd.f32 0.0, %v7558
        %v7560 = vpop.f32.mrb[0].mxu0
        %v7561 = vpop.f32.mrb[0].mxu0
        %v7562 = vadd.f32 0.0, %v7561
        %v7563 = vpop.f32.mrb[0].mxu0
        %7564 = vdwg.mxu0
        %v7566 = vsel %vm3854, %v5907, 0
        %v7569 = vsel %vm3854, %v5908, 0
        %v7572 = vsel %vm3854, %v5909, 0
        %v7575 = vsel %vm3854, %v5910, 0
        %v7578 = vsel %vm3854, %v5911, 0
        %v7581 = vsel %vm3854, %v5912, 0
        %v7584 = vsel %vm3854, %v5913, 0
        %v7587 = vsel %vm3854, %v5914, 0
        %v7590 = vsel %vm3879, %v5915, 0
        %7592 = vmatprep.subr.bf16.mxu0 0
        %7593 = vmatpush1.bf16.msra.mxu0 %v7590
        %7594 = vmatprep.subr.bf16.mxu0 0
        %7595 = vmatpush1.bf16.msra.mxu0 0
        %7596 = vmatprep.subr.bf16.mxu0 0
        %7597 = vmatpush1.bf16.msra.mxu0 0
        %7598 = vmatprep.subr.bf16.mxu0 0
        %7599 = vmatpush1.bf16.msra.mxu0 0
        %7600 = vmatprep.subr.bf16.mxu0 0
        %7601 = vmatpush1.bf16.msra.mxu0 0
        %7602 = vmatprep.subr.bf16.mxu0 0
        %7603 = vmatpush1.bf16.msra.mxu0 0
        %7604 = vmatprep.subr.bf16.mxu0 0
        %7605 = vmatpush1.bf16.msra.mxu0 0
        %7606 = vmatprep.subr.bf16.mxu0 0
        %7607 = vmatpush1.bf16.msra.mxu0 0
        %7608 = vmatprep.subr.bf16.mxu0 0
        %7609 = vmatpush1.bf16.msra.mxu0 0
        %7610 = vmatprep.subr.bf16.mxu0 0
        %7611 = vmatpush1.bf16.msra.mxu0 0
        %7612 = vmatprep.subr.bf16.mxu0 0
        %7613 = vmatpush1.bf16.msra.mxu0 0
        %7614 = vmatprep.subr.bf16.mxu0 0
        %7615 = vmatpush1.bf16.msra.mxu0 0
        %7616 = vmatprep.subr.bf16.mxu0 0
        %7617 = vmatpush1.bf16.msra.mxu0 0
        %7618 = vmatprep.subr.bf16.mxu0 0
        %7619 = vmatpush1.bf16.msra.mxu0 0
        %7620 = vmatprep.subr.bf16.mxu0 0
        %7621 = vmatpush1.bf16.msra.mxu0 0
        %7622 = vmatprep.subr.bf16.mxu0 0
        %7623 = vmatpush1.bf16.msra.mxu0 0
        %7624 = vmatprep.mubr.bf16.mxu0 0
        %7625 = vmatmul.mubr.bf16.gmra.mrb[0].mxu0 %v7566
        %v7626 = vpop.f32.mrb[0].mxu0
        %v7627 = vadd.f32 %v7503, %v7626
        %v7628 = vpop.f32.mrb[0].mxu0
        %v7629 = vpop.f32.mrb[0].mxu0
        %v7630 = vadd.f32 %v7506, %v7629
        %v7631 = vpop.f32.mrb[0].mxu0
        %7632 = vmatprep.mubr.bf16.mxu0 0
        %7633 = vmatmul.mubr.bf16.gmra.mrb[0].mxu0 %v7569
        %v7634 = vpop.f32.mrb[0].mxu0
        %v7635 = vadd.f32 %v7511, %v7634
        %v7636 = vpop.f32.mrb[0].mxu0
        %v7637 = vpop.f32.mrb[0].mxu0
        %v7638 = vadd.f32 %v7514, %v7637
        %v7639 = vpop.f32.mrb[0].mxu0
        %7640 = vmatprep.mubr.bf16.mxu0 0
        %7641 = vmatmul.mubr.bf16.gmra.mrb[0].mxu0 %v7572
        %v7642 = vpop.f32.mrb[0].mxu0
        %v7643 = vadd.f32 %v7519, %v7642
        %v7644 = vpop.f32.mrb[0].mxu0
        %v7645 = vpop.f32.mrb[0].mxu0
        %v7646 = vadd.f32 %v7522, %v7645
        %v7647 = vpop.f32.mrb[0].mxu0
        %7648 = vmatprep.mubr.bf16.mxu0 0
        %7649 = vmatmul.mubr.bf16.gmra.mrb[0].mxu0 %v7575
        %v7650 = vpop.f32.mrb[0].mxu0
        %v7651 = vadd.f32 %v7527, %v7650
        %v7652 = vpop.f32.mrb[0].mxu0
        %v7653 = vpop.f32.mrb[0].mxu0
        %v7654 = vadd.f32 %v7530, %v7653
        %v7655 = vpop.f32.mrb[0].mxu0
        %7656 = vmatprep.mubr.bf16.mxu0 0
        %7657 = vmatmul.mubr.bf16.gmra.mrb[0].mxu0 %v7578
        %v7658 = vpop.f32.mrb[0].mxu0
        %v7659 = vadd.f32 %v7535, %v7658
        %v7660 = vpop.f32.mrb[0].mxu0
        %v7661 = vpop.f32.mrb[0].mxu0
        %v7662 = vadd.f32 %v7538, %v7661
        %v7663 = vpop.f32.mrb[0].mxu0
        %7664 = vmatprep.mubr.bf16.mxu0 0
        %7665 = vmatmul.mubr.bf16.gmra.mrb[0].mxu0 %v7581
        %v7666 = vpop.f32.mrb[0].mxu0
        %v7667 = vadd.f32 %v7543, %v7666
        %v7668 = vpop.f32.mrb[0].mxu0
        %v7669 = vpop.f32.mrb[0].mxu0
        %v7670 = vadd.f32 %v7546, %v7669
        %v7671 = vpop.f32.mrb[0].mxu0
        %7672 = vmatprep.mubr.bf16.mxu0 0
        %7673 = vmatmul.mubr.bf16.gmra.mrb[0].mxu0 %v7584
        %v7674 = vpop.f32.mrb[0].mxu0
        %v7675 = vadd.f32 %v7551, %v7674
        %v7676 = vpop.f32.mrb[0].mxu0
        %v7677 = vpop.f32.mrb[0].mxu0
        %v7678 = vadd.f32 %v7554, %v7677
        %v7679 = vpop.f32.mrb[0].mxu0
        %7680 = vmatprep.mubr.bf16.mxu0 0
        %7681 = vmatmul.mubr.bf16.gmra.mrb[0].mxu0 %v7587
        %v7682 = vpop.f32.mrb[0].mxu0
        %v7683 = vadd.f32 %v7559, %v7682
        %v7684 = vpop.f32.mrb[0].mxu0
        %v7685 = vpop.f32.mrb[0].mxu0
        %v7686 = vadd.f32 %v7562, %v7685
        %v7687 = vpop.f32.mrb[0].mxu0
        %7688 = vdwg.mxu0
        %s7689 = sld [smem:[#allocation3]]
        %v7690 = vstv %s7689
        %v7691 = vadd.f32 %v7627, %v7690
        %v7692 = vadd.f32 %v7630, %v7690
        %v7693 = vadd.f32 %v7635, %v7690
        %v7694 = vadd.f32 %v7638, %v7690
        %v7695 = vadd.f32 %v7643, %v7690
        %v7696 = vadd.f32 %v7646, %v7690
        %v7697 = vadd.f32 %v7651, %v7690
        %v7698 = vadd.f32 %v7654, %v7690
        %v7699 = vadd.f32 %v7659, %v7690
        %v7700 = vadd.f32 %v7662, %v7690
        %v7701 = vadd.f32 %v7667, %v7690
        %v7702 = vadd.f32 %v7670, %v7690
        %v7703 = vadd.f32 %v7675, %v7690
        %v7704 = vadd.f32 %v7678, %v7690
        %v7705 = vadd.f32 %v7683, %v7690
        %v7706 = vadd.f32 %v7686, %v7690
        %7723 = vrot.lane.b32.xlu0 %v4106, 1
        %v7724 = vpop.permute.xlu0 %7723
        %7725 = vrot.lane.b32.xlu0 %v4107, 1
        %v7726 = vpop.permute.xlu0 %7725
        %7727 = vrot.lane.b32.xlu0 %v4108, 1
        %v7728 = vpop.permute.xlu0 %7727
        %7729 = vrot.lane.b32.xlu0 %v4109, 1
        %v7730 = vpop.permute.xlu0 %7729
        %7731 = vrot.lane.b32.xlu0 %v4110, 1
        %v7732 = vpop.permute.xlu0 %7731
        %7733 = vrot.lane.b32.xlu0 %v4111, 1
        %v7734 = vpop.permute.xlu0 %7733
        %7735 = vrot.lane.b32.xlu0 %v4112, 1
        %v7736 = vpop.permute.xlu0 %7735
        %7737 = vrot.lane.b32.xlu0 %v4113, 1
        %v7738 = vpop.permute.xlu0 %7737
        %7739 = vrot.lane.b32.xlu0 %v4114, 1
        %v7740 = vpop.permute.xlu0 %7739
        %7741 = vrot.lane.b32.xlu0 %v4115, 1
        %v7742 = vpop.permute.xlu0 %7741
        %7743 = vrot.lane.b32.xlu0 %v4116, 1
        %v7744 = vpop.permute.xlu0 %7743
        %7745 = vrot.lane.b32.xlu0 %v4117, 1
        %v7746 = vpop.permute.xlu0 %7745
        %7747 = vrot.lane.b32.xlu0 %v4118, 1
        %v7748 = vpop.permute.xlu0 %7747
        %7749 = vrot.lane.b32.xlu0 %v4119, 1
        %v7750 = vpop.permute.xlu0 %7749
        %7751 = vrot.lane.b32.xlu0 %v4120, 1
        %v7752 = vpop.permute.xlu0 %7751
        %7753 = vrot.lane.b32.xlu0 %v4121, 1
        %v7754 = vpop.permute.xlu0 %7753
        %7787 = vrot.lane.b32.xlu0 %v7691, 2
        %v7788 = vpop.permute.xlu0 %7787
        %7789 = vrot.lane.b32.xlu0 %v7692, 2
        %v7790 = vpop.permute.xlu0 %7789
        %7791 = vrot.lane.b32.xlu0 %v7693, 2
        %v7792 = vpop.permute.xlu0 %7791
        %7793 = vrot.lane.b32.xlu0 %v7694, 2
        %v7794 = vpop.permute.xlu0 %7793
        %7795 = vrot.lane.b32.xlu0 %v7695, 2
        %v7796 = vpop.permute.xlu0 %7795
        %7797 = vrot.lane.b32.xlu0 %v7696, 2
        %v7798 = vpop.permute.xlu0 %7797
        %7799 = vrot.lane.b32.xlu0 %v7697, 2
        %v7800 = vpop.permute.xlu0 %7799
        %7801 = vrot.lane.b32.xlu0 %v7698, 2
        %v7802 = vpop.permute.xlu0 %7801
        %7803 = vrot.lane.b32.xlu0 %v7699, 2
        %v7804 = vpop.permute.xlu0 %7803
        %7805 = vrot.lane.b32.xlu0 %v7700, 2
        %v7806 = vpop.permute.xlu0 %7805
        %7807 = vrot.lane.b32.xlu0 %v7701, 2
        %v7808 = vpop.permute.xlu0 %7807
        %7809 = vrot.lane.b32.xlu0 %v7702, 2
        %v7810 = vpop.permute.xlu0 %7809
        %7811 = vrot.lane.b32.xlu0 %v7703, 2
        %v7812 = vpop.permute.xlu0 %7811
        %7813 = vrot.lane.b32.xlu0 %v7704, 2
        %v7814 = vpop.permute.xlu0 %7813
        %7815 = vrot.lane.b32.xlu0 %v7705, 2
        %v7816 = vpop.permute.xlu0 %7815
        %7817 = vrot.lane.b32.xlu0 %v7706, 2
        %v7818 = vpop.permute.xlu0 %7817
        %vm7835 = vcmask 7168
        %v7836 = vsel %vm7835, %v616, %v7724
        %v7837 = vsel %vm7835, %v617, %v7726
        %v7838 = vsel %vm7835, %v618, %v7728
        %v7839 = vsel %vm7835, %v619, %v7730
        %v7840 = vsel %vm7835, %v620, %v7732
        %v7841 = vsel %vm7835, %v621, %v7734
        %v7842 = vsel %vm7835, %v622, %v7736
        %v7843 = vsel %vm7835, %v623, %v7738
        %v7844 = vsel %vm7835, %v624, %v7740
        %v7845 = vsel %vm7835, %v625, %v7742
        %v7846 = vsel %vm7835, %v626, %v7744
        %v7847 = vsel %vm7835, %v627, %v7746
        %v7848 = vsel %vm7835, %v628, %v7748
        %v7849 = vsel %vm7835, %v629, %v7750
        %v7850 = vsel %vm7835, %v630, %v7752
        %v7851 = vsel %vm7835, %v631, %v7754
        %vm7852 = vcmask 15360
        %v7853 = vsel %vm7852, %v7836, %v7788
        %v7854 = vsel %vm7852, %v7837, %v7790
        %v7855 = vsel %vm7852, %v7838, %v7792
        %v7856 = vsel %vm7852, %v7839, %v7794
        %v7857 = vsel %vm7852, %v7840, %v7796
        %v7858 = vsel %vm7852, %v7841, %v7798
        %v7859 = vsel %vm7852, %v7842, %v7800
        %v7860 = vsel %vm7852, %v7843, %v7802
        %v7861 = vsel %vm7852, %v7844, %v7804
        %v7862 = vsel %vm7852, %v7845, %v7806
        %v7863 = vsel %vm7852, %v7846, %v7808
        %v7864 = vsel %vm7852, %v7847, %v7810
        %v7865 = vsel %vm7852, %v7848, %v7812
        %v7866 = vsel %vm7852, %v7849, %v7814
        %v7867 = vsel %vm7852, %v7850, %v7816
        %v7868 = vsel %vm7852, %v7851, %v7818
        %7869 = vxpose.xlu0.b32.start [1/16] %v7853, 128
        %7870 = vxpose.xlu0.b32.cont [2/16] %v7854, 128
        %7871 = vxpose.xlu0.b32.cont [3/16] %v7855, 128
        %7872 = vxpose.xlu0.b32.cont [4/16] %v7856, 128
        %7873 = vxpose.xlu0.b32.cont [5/16] %v7857, 128
        %7874 = vxpose.xlu0.b32.cont [6/16] %v7858, 128
        %7875 = vxpose.xlu0.b32.cont [7/16] %v7859, 128
        %7876 = vxpose.xlu0.b32.cont [8/16] %v7860, 128
        %7877 = vxpose.xlu0.b32.cont [9/16] %v7861, 128
        %7878 = vxpose.xlu0.b32.cont [10/16] %v7862, 128
        %7879 = vxpose.xlu0.b32.cont [11/16] %v7863, 128
        %7880 = vxpose.xlu0.b32.cont [12/16] %v7864, 128
        %7881 = vxpose.xlu0.b32.cont [13/16] %v7865, 128
        %7882 = vxpose.xlu0.b32.cont [14/16] %v7866, 128
        %7883 = vxpose.xlu0.b32.cont [15/16] %v7867, 128
        %7884 = vxpose.xlu0.b32.end [16/16] %v7868, 128
        %v7885 = vpop.trf.xlu0
        %v7886 = vpop.trf.xlu0
        %v7887 = vpop.trf.xlu0
        %v7888 = vpop.trf.xlu0
        %v7889 = vpop.trf.xlu0
        %v7890 = vpop.trf.xlu0
        %v7891 = vpop.trf.xlu0
        %v7892 = vpop.trf.xlu0
        %v7893 = vpop.trf.xlu0
        %v7894 = vpop.trf.xlu0
        %v7895 = vpop.trf.xlu0
        %v7896 = vpop.trf.xlu0
        %v7897 = vpop.trf.xlu0
        %v7898 = vpop.trf.xlu0
        %v7899 = vpop.trf.xlu0
        %v7900 = vpop.trf.xlu0
        %7901 = vst [vmem:[%s516] sm:$0x7] %v7885
        %p7902 = scmp.lt.s32.totalorder %s29, 1
        %s7903 = scalar_select %p7902, %s29, 1
        %s7904 = smul.addr %s7903, 4
        %s7905 = scalar_lea.vmem %s14, %s7904
        // Predicated region
        $region85: #{tpu_custom_call.1} parent=75 // pred_check
          %p7906 = pneg %p351
        $region86: #{tpu_custom_call.1} parent=75 // pred_check_branch
          %7908 = sbr.rel (%p7906) target = $region88
        $region87: #{tpu_custom_call.1} parent=75 // pred_region
          _
        $region88: #{tpu_custom_call.1} parent=75 // pred_fallthru
          _
      $region76: #{tpu_custom_call.1} parent=5 // pred_fallthru
        _
      %p7909 = scmp.le.s32.totalorder 2, %s24
      // Predicated region
      $region89: #{tpu_custom_call.1} parent=5 // pred_check
        %p7910 = pneg %p7909
      $region90: #{tpu_custom_call.1} parent=5 // pred_check_branch
        %7912 = sbr.rel (%p7910) target = $region92
      $region91: #{tpu_custom_call.1} parent=5 // pred_region
        %s7913 = ssub.s32 %s24, 2
        // Predicated region
        $region93: #{tpu_custom_call.1} parent=91 // pred_check
          %p7914 = pneg %p357
        $region94: #{tpu_custom_call.1} parent=91 // pred_check_branch
          %7916 = sbr.rel (%p7914) target = $region96
        $region95: #{tpu_custom_call.1} parent=91 // pred_region
          %p7917 = scmp.lt.s32.totalorder %s30, 1
          %s7918 = scalar_select %p7917, %s30, 1
          %s7919 = smul.addr %s7918, 4
          %s7920 = scalar_lea.vmem %s14, %s7919
        $region96: #{tpu_custom_call.1} parent=91 // pred_fallthru
          _
      $region92: #{tpu_custom_call.1} parent=5 // pred_fallthru
        _
    $region6: #{tpu_custom_call.1} parent=1 // loop_footer
      %s28 = sadd.s32 1, %s24
    $region7: #{tpu_custom_call.1} parent=1 // loop_footer_branch
      %23 = sbr.rel target = $region3
    $region8: #{tpu_custom_call.1} parent=1 // loop_exit
      _
    %7921 = vsyncpa [#allocation5], 1
    %s7922 = scalar_lea.sflag [#allocation5], 1
    %7923 = vsyncpa %s7922, 1
    %7924 = vsyncpa [#allocation7], 1

</llo_original>
